<compile_context>
chip_gen: v6e
topology: v6e:2x2x1
jax: 0.10.0
libtpu: 0.0.40
codegen_flags: <defaults>
</compile_context>

<pallas_src>
import math

import jax
import jax.numpy as jnp
from jax import lax
from jax.experimental import pallas as pl
from jax.experimental.pallas import tpu as pltpu


class Metric:
    """Minimal synthetic metric: only basis_dim() is needed by this forward."""

    def __init__(self, dims: int):
        self._dims = dims

    def dims(self) -> int:
        return self._dims

    def basis_dim(self) -> int:
        return 2 ** self._dims


def _triple(v):
    if isinstance(v, (tuple, list)):
        assert len(v) == 3
        return tuple(int(e) for e in v)
    return (int(v), int(v), int(v))


def _round_up(x: int, m: int) -> int:
    return ((x + m - 1) // m) * m


def _ceil_div(a: int, b: int) -> int:
    return -(-a // b)


def convert3d_to_ga(x, weight, bias, metric: Metric, out_channels: int,
                    stride=1, padding=0, *, tile_s: int = 1024,
                    compute_dtype=None):
    """Pallas implementation of Convert3dToGA.forward (fused-im2col conv3d + GA view)."""
    B, C_in, D, H, W = x.shape
    C_out, C_in_w, kD, kH, kW = weight.shape
    assert C_in_w == C_in
    basis = metric.basis_dim()
    assert C_out == out_channels * basis

    sD, sH, sW = _triple(stride)
    pD, pH, pW = _triple(padding)

    Do = (D + 2 * pD - kD) // sD + 1
    Ho = (H + 2 * pH - kH) // sH + 1
    Wo = (W + 2 * pW - kW) // sW + 1
    assert Do > 0 and Ho > 0 and Wo > 0
    Dp, Hp, Wp = D + 2 * pD, H + 2 * pH, W + 2 * pW
    HW = Hp * Wp
    ntaps = kD * kH * kW
    K = C_in * ntaps

    dt = x.dtype
    cdt = dt if compute_dtype is None else jnp.dtype(compute_dtype)

    # Embedded ("flat shift") output length: output (di, i, j) lives at flat index
    # q = di*sD*HW + i*sH*Wp + j*sW, indexed with the *input's* strides, so every
    # conv tap is a pure static shift of the flattened padded input.
    Eq_base = Do * sD * HW
    ts = _round_up(min(max(int(tile_s), 128), _round_up(Eq_base, 128)), 128)
    n_s = _ceil_div(Eq_base, ts)
    Eq_pad = n_s * ts

    # Static per-tap flat offsets (order (kd, kh, kw) -> matches w_mat layout below).
    bases = [kd * HW + kh * Wp + kw
             for kd in range(kD) for kh in range(kH) for kw in range(kW)]
    base_max = bases[-1]

    # Pad D with a few extra zero slices so the largest (garbage) tile read stays
    # in bounds of the flattened input: need Np2 >= Eq_pad + base_max.
    Np = Dp * HW
    extra_d = _ceil_div(max(0, Eq_pad + base_max - Np), HW)
    Dp2 = Dp + extra_d
    Np2 = Dp2 * HW

    # Single (small) pad + free reshape; no im2col materialization in HBM.
    xp = jnp.pad(x, ((0, 0), (0, 0), (pD, pD + extra_d), (pH, pH), (pW, pW)))
    xf = xp.reshape(B, C_in, Np2)
    if cdt != dt:
        xf = xf.astype(cdt)   # bf16 option: halves HBM read + VMEM of the operand

    # Weight rows ordered (kd, kh, kw, c_in) to match the on-chip col assembly.
    w_mat = jnp.transpose(weight, (0, 2, 3, 4, 1)).reshape(C_out, K).astype(cdt)
    if bias is None:
        bias = jnp.zeros((C_out,), dt)
    b_col = bias.reshape(C_out, 1).astype(jnp.float32)

    def kernel(w_ref, b_ref, x_ref, o_ref, col_ref):
        # w_ref:   (C_out, K)     resident flattened conv weight
        # b_ref:   (C_out, 1)     resident f32 bias column
        # x_ref:   (C_in, Np2)    whole padded, flattened input volume of this batch
        # o_ref:   (C_out, Eq_pad) embedded output for this batch
        # col_ref: (K, ts)        VMEM scratch: on-chip im2col tile
        w = w_ref[...]
        b = b_ref[...]
        for si in range(n_s):                       # static unroll: all slice starts static
            q0 = si * ts                            # lane-aligned (multiple of 128)
            for t, base in enumerate(bases):        # assemble patch matrix in VMEM
                a = q0 + base
                col_ref[pl.ds(t * C_in, C_in), :] = (
                    x_ref[:, a:a + ts].astype(col_ref.dtype))
            # One MXU GEMM per tile with contraction depth K (not 27 depth-C_in dots).
            # Default MXU f32 precision: identical numerics to the previously
            # validated version; pass compute_dtype=bf16 on v6e/v7x if tolerated.
            acc = jnp.dot(w, col_ref[...], preferred_element_type=jnp.float32)
            o_ref[:, q0:q0 + ts] = (acc + b).astype(o_ref.dtype)

    itemsize = jnp.dtype(cdt).itemsize
    out_itemsize = jnp.dtype(dt).itemsize
    vmem_est = (2 * C_in * Np2 * itemsize            # x block (double buffered)
                + 2 * C_out * Eq_pad * out_itemsize  # out block (double buffered)
                + C_out * K * itemsize + C_out * 4   # resident weight + bias
                + K * ts * itemsize)                 # col scratch
    vmem_limit = int(min(64 * 2 ** 20, max(8 * 2 ** 20, 4 * vmem_est)))

    cost = pl.CostEstimate(
        flops=2 * B * C_out * K * Eq_pad,
        transcendentals=0,
        bytes_accessed=(B * C_in * Np2 + C_out * K) * itemsize
        + B * C_out * Eq_pad * out_itemsize,
    )

    out_emb = pl.pallas_call(
        kernel,
        out_shape=jax.ShapeDtypeStruct((B, C_out, Eq_pad), dt),
        grid=(B,),
        in_specs=[
            pl.BlockSpec((C_out, K), lambda b: (0, 0)),        # weight (resident)
            pl.BlockSpec((C_out, 1), lambda b: (0, 0)),        # bias   (resident)
            pl.BlockSpec((None, C_in, Np2), lambda b: (b, 0, 0)),  # padded volume
        ],
        out_specs=pl.BlockSpec((None, C_out, Eq_pad), lambda b: (b, 0, 0)),
        scratch_shapes=[pltpu.VMEM((K, ts), cdt)],
        compiler_params=pltpu.CompilerParams(
            dimension_semantics=("parallel",),
            vmem_limit_bytes=vmem_limit,
        ),
        cost_estimate=cost,
    )(w_mat, b_col, xf)

    # Extract the valid outputs from the embedded layout (garbage halo columns are
    # dropped here; review correctness concern #2: this slice must stay).
    r = out_emb[:, :, :Eq_base].reshape(B, C_out, Do, sD, Hp, Wp)
    h_lim = (Ho - 1) * sH + 1
    w_lim = (Wo - 1) * sW + 1
    y = r[:, :, :, 0, 0:h_lim:sH, 0:w_lim:sW]          # (B, C_out, Do, Ho, Wo)
    return y.reshape(B, out_channels, basis, Do, Ho, Wo)


if __name__ == "__main__":
    key = jax.random.PRNGKey(0)
    k_w, k_b, k_x = jax.random.split(key, 3)

    # Small shapes consistent with the module: B=2, C_in=4, 8x16x16 volume,
    # out_channels=2, metric dims=4 (basis_dim=16) -> conv out channels = 32.
    B, C_in, D, H, W = 2, 4, 8, 16, 16
    out_channels = 2
    metric = Metric(dims=4)
    kernel_size = (3, 3, 3)
    stride = (1, 1, 1)
    padding = (1, 1, 1)
    C_out = out_channels * metric.basis_dim()

    fan_in = C_in * kernel_size[0] * kernel_size[1] * kernel_size[2]
    bound = 1.0 / math.sqrt(fan_in)
    weight = jax.random.uniform(k_w, (C_out, C_in, *kernel_size), jnp.float32,
                                minval=-bound, maxval=bound)
    bias = jax.random.uniform(k_b, (C_out,), jnp.float32, minval=-bound, maxval=bound)
    x = jax.random.normal(k_x, (B, C_in, D, H, W), dtype=jnp.float32)

    out = convert3d_to_ga(x, weight, bias, metric, out_channels, stride, padding)
    out = jax.block_until_ready(out)

    # Pure-JAX reference: Conv3d (NCDHW) + bias, then the GA view.
    ref = lax.conv_general_dilated(
        x, weight,
        window_strides=stride,
        padding=[(padding[0], padding[0]), (padding[1], padding[1]),
                 (padding[2], padding[2])],
        dimension_numbers=("NCDHW", "OIDHW", "NCDHW"),
        precision=lax.Precision.HIGHEST,
    )
    ref = ref + bias[None, :, None, None, None]
    ref = ref.reshape(B, out_channels, metric.basis_dim(), *ref.shape[2:])

    assert out.shape == ref.shape, (out.shape, ref.shape)
    max_err = float(jnp.max(jnp.abs(out - ref)))
    assert jnp.allclose(out, ref, rtol=1e-3, atol=1e-3), f"max abs err = {max_err}"

    print("KERNEL_OK")
</pallas_src>

<mosaic_0001>
module attributes {stable_mosaic.version = 11 : i64} {
  func.func @kernel(%arg0: i32, %arg1: memref<32x108xf32, #tpu.memory_space<vmem>>, %arg2: memref<32x1xf32, #tpu.memory_space<vmem>>, %arg3: memref<1x4x3888xf32, #tpu.memory_space<vmem>>, %arg4: memref<1x32x3072xf32, #tpu.memory_space<vmem>>, %arg5: memref<108x1024xf32, #tpu.memory_space<vmem>>) attributes {dimension_semantics = [#tpu.dimension_semantics<parallel>], iteration_bounds = array<i64: 2>, scalar_prefetch = 0 : i64, scratch_operands = 1 : i64, tpu.core_type = #tpu.core_type<tc>, window_params = [{pipeline_mode = #tpu.pipeline_mode<synchronous>, transform_indices = @transform_0, window_bounds = array<i64: 32, 108>}, {pipeline_mode = #tpu.pipeline_mode<synchronous>, transform_indices = @transform_1, window_bounds = array<i64: 32, 1>}, {transform_indices = @transform_2, window_bounds = array<i64: 1, 4, 3888>}, {transform_indices = @transform_3, window_bounds = array<i64: 1, 32, 3072>}]} {
    %c0 = arith.constant 0 : index
    %c0_0 = arith.constant 0 : index
    %0 = vector.load %arg1[%c0, %c0_0] : memref<32x108xf32, #tpu.memory_space<vmem>>, vector<32x108xf32>
    %c0_1 = arith.constant 0 : index
    %c0_2 = arith.constant 0 : index
    %1 = vector.load %arg2[%c0_1, %c0_2] : memref<32x1xf32, #tpu.memory_space<vmem>>, vector<32x1xf32>
    %c0_3 = arith.constant 0 : index
    %c0_4 = arith.constant 0 : index
    %c0_5 = arith.constant 0 : index
    %2 = vector.load %arg3[%c0_3, %c0_4, %c0_5] : memref<1x4x3888xf32, #tpu.memory_space<vmem>>, vector<1x4x1024xf32>
    %3 = vector.shape_cast %2 : vector<1x4x1024xf32> to vector<4x1024xf32>
    %c0_6 = arith.constant 0 : index
    %c0_7 = arith.constant 0 : index
    %4 = vector.load %arg5[%c0_6, %c0_7] : memref<108x1024xf32, #tpu.memory_space<vmem>>, vector<4x1024xf32>
    tpu.vector_store %arg5[%c0_6, %c0_7], %3 {strides = array<i32>} : memref<108x1024xf32, #tpu.memory_space<vmem>>, vector<4x1024xf32>,
    %c0_8 = arith.constant 0 : index
    %c0_9 = arith.constant 0 : index
    %c1 = arith.constant 1 : index
    %5 = vector.load %arg3[%c0_8, %c0_9, %c1] : memref<1x4x3888xf32, #tpu.memory_space<vmem>>, vector<1x4x1024xf32>
    %6 = vector.shape_cast %5 : vector<1x4x1024xf32> to vector<4x1024xf32>
    %c4 = arith.constant 4 : index
    %c0_10 = arith.constant 0 : index
    %7 = vector.load %arg5[%c4, %c0_10] : memref<108x1024xf32, #tpu.memory_space<vmem>>, vector<4x1024xf32>
    tpu.vector_store %arg5[%c4, %c0_10], %6 {strides = array<i32>} : memref<108x1024xf32, #tpu.memory_space<vmem>>, vector<4x1024xf32>,
    %c0_11 = arith.constant 0 : index
    %c0_12 = arith.constant 0 : index
    %c2 = arith.constant 2 : index
    %8 = vector.load %arg3[%c0_11, %c0_12, %c2] : memref<1x4x3888xf32, #tpu.memory_space<vmem>>, vector<1x4x1024xf32>
    %9 = vector.shape_cast %8 : vector<1x4x1024xf32> to vector<4x1024xf32>
    %c8 = arith.constant 8 : index
    %c0_13 = arith.constant 0 : index
    %10 = vector.load %arg5[%c8, %c0_13] : memref<108x1024xf32, #tpu.memory_space<vmem>>, vector<4x1024xf32>
    tpu.vector_store %arg5[%c8, %c0_13], %9 {strides = array<i32>} : memref<108x1024xf32, #tpu.memory_space<vmem>>, vector<4x1024xf32>,
    %c0_14 = arith.constant 0 : index
    %c0_15 = arith.constant 0 : index
    %c18 = arith.constant 18 : index
    %11 = vector.load %arg3[%c0_14, %c0_15, %c18] : memref<1x4x3888xf32, #tpu.memory_space<vmem>>, vector<1x4x1024xf32>
    %12 = vector.shape_cast %11 : vector<1x4x1024xf32> to vector<4x1024xf32>
    %c12 = arith.constant 12 : index
    %c0_16 = arith.constant 0 : index
    %13 = vector.load %arg5[%c12, %c0_16] : memref<108x1024xf32, #tpu.memory_space<vmem>>, vector<4x1024xf32>
    tpu.vector_store %arg5[%c12, %c0_16], %12 {strides = array<i32>} : memref<108x1024xf32, #tpu.memory_space<vmem>>, vector<4x1024xf32>,
    %c0_17 = arith.constant 0 : index
    %c0_18 = arith.constant 0 : index
    %c19 = arith.constant 19 : index
    %14 = vector.load %arg3[%c0_17, %c0_18, %c19] : memref<1x4x3888xf32, #tpu.memory_space<vmem>>, vector<1x4x1024xf32>
    %15 = vector.shape_cast %14 : vector<1x4x1024xf32> to vector<4x1024xf32>
    %c16 = arith.constant 16 : index
    %c0_19 = arith.constant 0 : index
    %16 = vector.load %arg5[%c16, %c0_19] : memref<108x1024xf32, #tpu.memory_space<vmem>>, vector<4x1024xf32>
    tpu.vector_store %arg5[%c16, %c0_19], %15 {strides = array<i32>} : memref<108x1024xf32, #tpu.memory_space<vmem>>, vector<4x1024xf32>,
    %c0_20 = arith.constant 0 : index
    %c0_21 = arith.constant 0 : index
    %c20 = arith.constant 20 : index
    %17 = vector.load %arg3[%c0_20, %c0_21, %c20] : memref<1x4x3888xf32, #tpu.memory_space<vmem>>, vector<1x4x1024xf32>
    %18 = vector.shape_cast %17 : vector<1x4x1024xf32> to vector<4x1024xf32>
    %c20_22 = arith.constant 20 : index
    %c0_23 = arith.constant 0 : index
    %19 = vector.load %arg5[%c20_22, %c0_23] : memref<108x1024xf32, #tpu.memory_space<vmem>>, vector<4x1024xf32>
    tpu.vector_store %arg5[%c20_22, %c0_23], %18 {strides = array<i32>} : memref<108x1024xf32, #tpu.memory_space<vmem>>, vector<4x1024xf32>,
    %c0_24 = arith.constant 0 : index
    %c0_25 = arith.constant 0 : index
    %c36 = arith.constant 36 : index
    %20 = vector.load %arg3[%c0_24, %c0_25, %c36] : memref<1x4x3888xf32, #tpu.memory_space<vmem>>, vector<1x4x1024xf32>
    %21 = vector.shape_cast %20 : vector<1x4x1024xf32> to vector<4x1024xf32>
    %c24 = arith.constant 24 : index
    %c0_26 = arith.constant 0 : index
    %22 = vector.load %arg5[%c24, %c0_26] : memref<108x1024xf32, #tpu.memory_space<vmem>>, vector<4x1024xf32>
    tpu.vector_store %arg5[%c24, %c0_26], %21 {strides = array<i32>} : memref<108x1024xf32, #tpu.memory_space<vmem>>, vector<4x1024xf32>,
    %c0_27 = arith.constant 0 : index
    %c0_28 = arith.constant 0 : index
    %c37 = arith.constant 37 : index
    %23 = vector.load %arg3[%c0_27, %c0_28, %c37] : memref<1x4x3888xf32, #tpu.memory_space<vmem>>, vector<1x4x1024xf32>
    %24 = vector.shape_cast %23 : vector<1x4x1024xf32> to vector<4x1024xf32>
    %c28 = arith.constant 28 : index
    %c0_29 = arith.constant 0 : index
    %25 = vector.load %arg5[%c28, %c0_29] : memref<108x1024xf32, #tpu.memory_space<vmem>>, vector<4x1024xf32>
    tpu.vector_store %arg5[%c28, %c0_29], %24 {strides = array<i32>} : memref<108x1024xf32, #tpu.memory_space<vmem>>, vector<4x1024xf32>,
    %c0_30 = arith.constant 0 : index
    %c0_31 = arith.constant 0 : index
    %c38 = arith.constant 38 : index
    %26 = vector.load %arg3[%c0_30, %c0_31, %c38] : memref<1x4x3888xf32, #tpu.memory_space<vmem>>, vector<1x4x1024xf32>
    %27 = vector.shape_cast %26 : vector<1x4x1024xf32> to vector<4x1024xf32>
    %c32 = arith.constant 32 : index
    %c0_32 = arith.constant 0 : index
    %28 = vector.load %arg5[%c32, %c0_32] : memref<108x1024xf32, #tpu.memory_space<vmem>>, vector<4x1024xf32>
    tpu.vector_store %arg5[%c32, %c0_32], %27 {strides = array<i32>} : memref<108x1024xf32, #tpu.memory_space<vmem>>, vector<4x1024xf32>,
    %c0_33 = arith.constant 0 : index
    %c0_34 = arith.constant 0 : index
    %c324 = arith.constant 324 : index
    %29 = vector.load %arg3[%c0_33, %c0_34, %c324] : memref<1x4x3888xf32, #tpu.memory_space<vmem>>, vector<1x4x1024xf32>
    %30 = vector.shape_cast %29 : vector<1x4x1024xf32> to vector<4x1024xf32>
    %c36_35 = arith.constant 36 : index
    %c0_36 = arith.constant 0 : index
    %31 = vector.load %arg5[%c36_35, %c0_36] : memref<108x1024xf32, #tpu.memory_space<vmem>>, vector<4x1024xf32>
    tpu.vector_store %arg5[%c36_35, %c0_36], %30 {strides = array<i32>} : memref<108x1024xf32, #tpu.memory_space<vmem>>, vector<4x1024xf32>,
    %c0_37 = arith.constant 0 : index
    %c0_38 = arith.constant 0 : index
    %c325 = arith.constant 325 : index
    %32 = vector.load %arg3[%c0_37, %c0_38, %c325] : memref<1x4x3888xf32, #tpu.memory_space<vmem>>, vector<1x4x1024xf32>
    %33 = vector.shape_cast %32 : vector<1x4x1024xf32> to vector<4x1024xf32>
    %c40 = arith.constant 40 : index
    %c0_39 = arith.constant 0 : index
    %34 = vector.load %arg5[%c40, %c0_39] : memref<108x1024xf32, #tpu.memory_space<vmem>>, vector<4x1024xf32>
    tpu.vector_store %arg5[%c40, %c0_39], %33 {strides = array<i32>} : memref<108x1024xf32, #tpu.memory_space<vmem>>, vector<4x1024xf32>,
    %c0_40 = arith.constant 0 : index
    %c0_41 = arith.constant 0 : index
    %c326 = arith.constant 326 : index
    %35 = vector.load %arg3[%c0_40, %c0_41, %c326] : memref<1x4x3888xf32, #tpu.memory_space<vmem>>, vector<1x4x1024xf32>
    %36 = vector.shape_cast %35 : vector<1x4x1024xf32> to vector<4x1024xf32>
    %c44 = arith.constant 44 : index
    %c0_42 = arith.constant 0 : index
    %37 = vector.load %arg5[%c44, %c0_42] : memref<108x1024xf32, #tpu.memory_space<vmem>>, vector<4x1024xf32>
    tpu.vector_store %arg5[%c44, %c0_42], %36 {strides = array<i32>} : memref<108x1024xf32, #tpu.memory_space<vmem>>, vector<4x1024xf32>,
    %c0_43 = arith.constant 0 : index
    %c0_44 = arith.constant 0 : index
    %c342 = arith.constant 342 : index
    %38 = vector.load %arg3[%c0_43, %c0_44, %c342] : memref<1x4x3888xf32, #tpu.memory_space<vmem>>, vector<1x4x1024xf32>
    %39 = vector.shape_cast %38 : vector<1x4x1024xf32> to vector<4x1024xf32>
    %c48 = arith.constant 48 : index
    %c0_45 = arith.constant 0 : index
    %40 = vector.load %arg5[%c48, %c0_45] : memref<108x1024xf32, #tpu.memory_space<vmem>>, vector<4x1024xf32>
    tpu.vector_store %arg5[%c48, %c0_45], %39 {strides = array<i32>} : memref<108x1024xf32, #tpu.memory_space<vmem>>, vector<4x1024xf32>,
    %c0_46 = arith.constant 0 : index
    %c0_47 = arith.constant 0 : index
    %c343 = arith.constant 343 : index
    %41 = vector.load %arg3[%c0_46, %c0_47, %c343] : memref<1x4x3888xf32, #tpu.memory_space<vmem>>, vector<1x4x1024xf32>
    %42 = vector.shape_cast %41 : vector<1x4x1024xf32> to vector<4x1024xf32>
    %c52 = arith.constant 52 : index
    %c0_48 = arith.constant 0 : index
    %43 = vector.load %arg5[%c52, %c0_48] : memref<108x1024xf32, #tpu.memory_space<vmem>>, vector<4x1024xf32>
    tpu.vector_store %arg5[%c52, %c0_48], %42 {strides = array<i32>} : memref<108x1024xf32, #tpu.memory_space<vmem>>, vector<4x1024xf32>,
    %c0_49 = arith.constant 0 : index
    %c0_50 = arith.constant 0 : index
    %c344 = arith.constant 344 : index
    %44 = vector.load %arg3[%c0_49, %c0_50, %c344] : memref<1x4x3888xf32, #tpu.memory_space<vmem>>, vector<1x4x1024xf32>
    %45 = vector.shape_cast %44 : vector<1x4x1024xf32> to vector<4x1024xf32>
    %c56 = arith.constant 56 : index
    %c0_51 = arith.constant 0 : index
    %46 = vector.load %arg5[%c56, %c0_51] : memref<108x1024xf32, #tpu.memory_space<vmem>>, vector<4x1024xf32>
    tpu.vector_store %arg5[%c56, %c0_51], %45 {strides = array<i32>} : memref<108x1024xf32, #tpu.memory_space<vmem>>, vector<4x1024xf32>,
    %c0_52 = arith.constant 0 : index
    %c0_53 = arith.constant 0 : index
    %c360 = arith.constant 360 : index
    %47 = vector.load %arg3[%c0_52, %c0_53, %c360] : memref<1x4x3888xf32, #tpu.memory_space<vmem>>, vector<1x4x1024xf32>
    %48 = vector.shape_cast %47 : vector<1x4x1024xf32> to vector<4x1024xf32>
    %c60 = arith.constant 60 : index
    %c0_54 = arith.constant 0 : index
    %49 = vector.load %arg5[%c60, %c0_54] : memref<108x1024xf32, #tpu.memory_space<vmem>>, vector<4x1024xf32>
    tpu.vector_store %arg5[%c60, %c0_54], %48 {strides = array<i32>} : memref<108x1024xf32, #tpu.memory_space<vmem>>, vector<4x1024xf32>,
    %c0_55 = arith.constant 0 : index
    %c0_56 = arith.constant 0 : index
    %c361 = arith.constant 361 : index
    %50 = vector.load %arg3[%c0_55, %c0_56, %c361] : memref<1x4x3888xf32, #tpu.memory_space<vmem>>, vector<1x4x1024xf32>
    %51 = vector.shape_cast %50 : vector<1x4x1024xf32> to vector<4x1024xf32>
    %c64 = arith.constant 64 : index
    %c0_57 = arith.constant 0 : index
    %52 = vector.load %arg5[%c64, %c0_57] : memref<108x1024xf32, #tpu.memory_space<vmem>>, vector<4x1024xf32>
    tpu.vector_store %arg5[%c64, %c0_57], %51 {strides = array<i32>} : memref<108x1024xf32, #tpu.memory_space<vmem>>, vector<4x1024xf32>,
    %c0_58 = arith.constant 0 : index
    %c0_59 = arith.constant 0 : index
    %c362 = arith.constant 362 : index
    %53 = vector.load %arg3[%c0_58, %c0_59, %c362] : memref<1x4x3888xf32, #tpu.memory_space<vmem>>, vector<1x4x1024xf32>
    %54 = vector.shape_cast %53 : vector<1x4x1024xf32> to vector<4x1024xf32>
    %c68 = arith.constant 68 : index
    %c0_60 = arith.constant 0 : index
    %55 = vector.load %arg5[%c68, %c0_60] : memref<108x1024xf32, #tpu.memory_space<vmem>>, vector<4x1024xf32>
    tpu.vector_store %arg5[%c68, %c0_60], %54 {strides = array<i32>} : memref<108x1024xf32, #tpu.memory_space<vmem>>, vector<4x1024xf32>,
    %c0_61 = arith.constant 0 : index
    %c0_62 = arith.constant 0 : index
    %c648 = arith.constant 648 : index
    %56 = vector.load %arg3[%c0_61, %c0_62, %c648] : memref<1x4x3888xf32, #tpu.memory_space<vmem>>, vector<1x4x1024xf32>
    %57 = vector.shape_cast %56 : vector<1x4x1024xf32> to vector<4x1024xf32>
    %c72 = arith.constant 72 : index
    %c0_63 = arith.constant 0 : index
    %58 = vector.load %arg5[%c72, %c0_63] : memref<108x1024xf32, #tpu.memory_space<vmem>>, vector<4x1024xf32>
    tpu.vector_store %arg5[%c72, %c0_63], %57 {strides = array<i32>} : memref<108x1024xf32, #tpu.memory_space<vmem>>, vector<4x1024xf32>,
    %c0_64 = arith.constant 0 : index
    %c0_65 = arith.constant 0 : index
    %c649 = arith.constant 649 : index
    %59 = vector.load %arg3[%c0_64, %c0_65, %c649] : memref<1x4x3888xf32, #tpu.memory_space<vmem>>, vector<1x4x1024xf32>
    %60 = vector.shape_cast %59 : vector<1x4x1024xf32> to vector<4x1024xf32>
    %c76 = arith.constant 76 : index
    %c0_66 = arith.constant 0 : index
    %61 = vector.load %arg5[%c76, %c0_66] : memref<108x1024xf32, #tpu.memory_space<vmem>>, vector<4x1024xf32>
    tpu.vector_store %arg5[%c76, %c0_66], %60 {strides = array<i32>} : memref<108x1024xf32, #tpu.memory_space<vmem>>, vector<4x1024xf32>,
    %c0_67 = arith.constant 0 : index
    %c0_68 = arith.constant 0 : index
    %c650 = arith.constant 650 : index
    %62 = vector.load %arg3[%c0_67, %c0_68, %c650] : memref<1x4x3888xf32, #tpu.memory_space<vmem>>, vector<1x4x1024xf32>
    %63 = vector.shape_cast %62 : vector<1x4x1024xf32> to vector<4x1024xf32>
    %c80 = arith.constant 80 : index
    %c0_69 = arith.constant 0 : index
    %64 = vector.load %arg5[%c80, %c0_69] : memref<108x1024xf32, #tpu.memory_space<vmem>>, vector<4x1024xf32>
    tpu.vector_store %arg5[%c80, %c0_69], %63 {strides = array<i32>} : memref<108x1024xf32, #tpu.memory_space<vmem>>, vector<4x1024xf32>,
    %c0_70 = arith.constant 0 : index
    %c0_71 = arith.constant 0 : index
    %c666 = arith.constant 666 : index
    %65 = vector.load %arg3[%c0_70, %c0_71, %c666] : memref<1x4x3888xf32, #tpu.memory_space<vmem>>, vector<1x4x1024xf32>
    %66 = vector.shape_cast %65 : vector<1x4x1024xf32> to vector<4x1024xf32>
    %c84 = arith.constant 84 : index
    %c0_72 = arith.constant 0 : index
    %67 = vector.load %arg5[%c84, %c0_72] : memref<108x1024xf32, #tpu.memory_space<vmem>>, vector<4x1024xf32>
    tpu.vector_store %arg5[%c84, %c0_72], %66 {strides = array<i32>} : memref<108x1024xf32, #tpu.memory_space<vmem>>, vector<4x1024xf32>,
    %c0_73 = arith.constant 0 : index
    %c0_74 = arith.constant 0 : index
    %c667 = arith.constant 667 : index
    %68 = vector.load %arg3[%c0_73, %c0_74, %c667] : memref<1x4x3888xf32, #tpu.memory_space<vmem>>, vector<1x4x1024xf32>
    %69 = vector.shape_cast %68 : vector<1x4x1024xf32> to vector<4x1024xf32>
    %c88 = arith.constant 88 : index
    %c0_75 = arith.constant 0 : index
    %70 = vector.load %arg5[%c88, %c0_75] : memref<108x1024xf32, #tpu.memory_space<vmem>>, vector<4x1024xf32>
    tpu.vector_store %arg5[%c88, %c0_75], %69 {strides = array<i32>} : memref<108x1024xf32, #tpu.memory_space<vmem>>, vector<4x1024xf32>,
    %c0_76 = arith.constant 0 : index
    %c0_77 = arith.constant 0 : index
    %c668 = arith.constant 668 : index
    %71 = vector.load %arg3[%c0_76, %c0_77, %c668] : memref<1x4x3888xf32, #tpu.memory_space<vmem>>, vector<1x4x1024xf32>
    %72 = vector.shape_cast %71 : vector<1x4x1024xf32> to vector<4x1024xf32>
    %c92 = arith.constant 92 : index
    %c0_78 = arith.constant 0 : index
    %73 = vector.load %arg5[%c92, %c0_78] : memref<108x1024xf32, #tpu.memory_space<vmem>>, vector<4x1024xf32>
    tpu.vector_store %arg5[%c92, %c0_78], %72 {strides = array<i32>} : memref<108x1024xf32, #tpu.memory_space<vmem>>, vector<4x1024xf32>,
    %c0_79 = arith.constant 0 : index
    %c0_80 = arith.constant 0 : index
    %c684 = arith.constant 684 : index
    %74 = vector.load %arg3[%c0_79, %c0_80, %c684] : memref<1x4x3888xf32, #tpu.memory_space<vmem>>, vector<1x4x1024xf32>
    %75 = vector.shape_cast %74 : vector<1x4x1024xf32> to vector<4x1024xf32>
    %c96 = arith.constant 96 : index
    %c0_81 = arith.constant 0 : index
    %76 = vector.load %arg5[%c96, %c0_81] : memref<108x1024xf32, #tpu.memory_space<vmem>>, vector<4x1024xf32>
    tpu.vector_store %arg5[%c96, %c0_81], %75 {strides = array<i32>} : memref<108x1024xf32, #tpu.memory_space<vmem>>, vector<4x1024xf32>,
    %c0_82 = arith.constant 0 : index
    %c0_83 = arith.constant 0 : index
    %c685 = arith.constant 685 : index
    %77 = vector.load %arg3[%c0_82, %c0_83, %c685] : memref<1x4x3888xf32, #tpu.memory_space<vmem>>, vector<1x4x1024xf32>
    %78 = vector.shape_cast %77 : vector<1x4x1024xf32> to vector<4x1024xf32>
    %c100 = arith.constant 100 : index
    %c0_84 = arith.constant 0 : index
    %79 = vector.load %arg5[%c100, %c0_84] : memref<108x1024xf32, #tpu.memory_space<vmem>>, vector<4x1024xf32>
    tpu.vector_store %arg5[%c100, %c0_84], %78 {strides = array<i32>} : memref<108x1024xf32, #tpu.memory_space<vmem>>, vector<4x1024xf32>,
    %c0_85 = arith.constant 0 : index
    %c0_86 = arith.constant 0 : index
    %c686 = arith.constant 686 : index
    %80 = vector.load %arg3[%c0_85, %c0_86, %c686] : memref<1x4x3888xf32, #tpu.memory_space<vmem>>, vector<1x4x1024xf32>
    %81 = vector.shape_cast %80 : vector<1x4x1024xf32> to vector<4x1024xf32>
    %c104 = arith.constant 104 : index
    %c0_87 = arith.constant 0 : index
    %82 = vector.load %arg5[%c104, %c0_87] : memref<108x1024xf32, #tpu.memory_space<vmem>>, vector<4x1024xf32>
    tpu.vector_store %arg5[%c104, %c0_87], %81 {strides = array<i32>} : memref<108x1024xf32, #tpu.memory_space<vmem>>, vector<4x1024xf32>,
    %c0_88 = arith.constant 0 : index
    %c0_89 = arith.constant 0 : index
    %83 = vector.load %arg5[%c0_88, %c0_89] : memref<108x1024xf32, #tpu.memory_space<vmem>>, vector<108x1024xf32>
    %cst = arith.constant dense<0.000000e+00> : vector<32x1024xf32>
    %84 = tpu.matmul %0, %83, %cst {dimension_numbers = #tpu.dot_dimension_numbers<[1], [0], [0], [1], [0, 0, 1, 1], [], []>} : vector<32x108xf32>, vector<108x1024xf32>, vector<32x1024xf32> -> vector<32x1024xf32>
    %85 = vector.broadcast %1 : vector<32x1xf32> to vector<32x1024xf32>
    %86 = arith.addf %84, %85 : vector<32x1024xf32>
    %c0_90 = arith.constant 0 : index
    %c0_91 = arith.constant 0 : index
    %c0_92 = arith.constant 0 : index
    %87 = vector.load %arg4[%c0_90, %c0_91, %c0_92] : memref<1x32x3072xf32, #tpu.memory_space<vmem>>, vector<1x32x1024xf32>
    %88 = vector.shape_cast %87 : vector<1x32x1024xf32> to vector<32x1024xf32>
    %89 = vector.shape_cast %86 : vector<32x1024xf32> to vector<1x32x1024xf32>
    tpu.vector_store %arg4[%c0_90, %c0_91, %c0_92], %89 {strides = array<i32>} : memref<1x32x3072xf32, #tpu.memory_space<vmem>>, vector<1x32x1024xf32>,
    %c0_93 = arith.constant 0 : index
    %c0_94 = arith.constant 0 : index
    %c1024 = arith.constant 1024 : index
    %90 = vector.load %arg3[%c0_93, %c0_94, %c1024] : memref<1x4x3888xf32, #tpu.memory_space<vmem>>, vector<1x4x1024xf32>
    %91 = vector.shape_cast %90 : vector<1x4x1024xf32> to vector<4x1024xf32>
    %c0_95 = arith.constant 0 : index
    %c0_96 = arith.constant 0 : index
    %92 = vector.load %arg5[%c0_95, %c0_96] : memref<108x1024xf32, #tpu.memory_space<vmem>>, vector<4x1024xf32>
    tpu.vector_store %arg5[%c0_95, %c0_96], %91 {strides = array<i32>} : memref<108x1024xf32, #tpu.memory_space<vmem>>, vector<4x1024xf32>,
    %c0_97 = arith.constant 0 : index
    %c0_98 = arith.constant 0 : index
    %c1025 = arith.constant 1025 : index
    %93 = vector.load %arg3[%c0_97, %c0_98, %c1025] : memref<1x4x3888xf32, #tpu.memory_space<vmem>>, vector<1x4x1024xf32>
    %94 = vector.shape_cast %93 : vector<1x4x1024xf32> to vector<4x1024xf32>
    %c4_99 = arith.constant 4 : index
    %c0_100 = arith.constant 0 : index
    %95 = vector.load %arg5[%c4_99, %c0_100] : memref<108x1024xf32, #tpu.memory_space<vmem>>, vector<4x1024xf32>
    tpu.vector_store %arg5[%c4_99, %c0_100], %94 {strides = array<i32>} : memref<108x1024xf32, #tpu.memory_space<vmem>>, vector<4x1024xf32>,
    %c0_101 = arith.constant 0 : index
    %c0_102 = arith.constant 0 : index
    %c1026 = arith.constant 1026 : index
    %96 = vector.load %arg3[%c0_101, %c0_102, %c1026] : memref<1x4x3888xf32, #tpu.memory_space<vmem>>, vector<1x4x1024xf32>
    %97 = vector.shape_cast %96 : vector<1x4x1024xf32> to vector<4x1024xf32>
    %c8_103 = arith.constant 8 : index
    %c0_104 = arith.constant 0 : index
    %98 = vector.load %arg5[%c8_103, %c0_104] : memref<108x1024xf32, #tpu.memory_space<vmem>>, vector<4x1024xf32>
    tpu.vector_store %arg5[%c8_103, %c0_104], %97 {strides = array<i32>} : memref<108x1024xf32, #tpu.memory_space<vmem>>, vector<4x1024xf32>,
    %c0_105 = arith.constant 0 : index
    %c0_106 = arith.constant 0 : index
    %c1042 = arith.constant 1042 : index
    %99 = vector.load %arg3[%c0_105, %c0_106, %c1042] : memref<1x4x3888xf32, #tpu.memory_space<vmem>>, vector<1x4x1024xf32>
    %100 = vector.shape_cast %99 : vector<1x4x1024xf32> to vector<4x1024xf32>
    %c12_107 = arith.constant 12 : index
    %c0_108 = arith.constant 0 : index
    %101 = vector.load %arg5[%c12_107, %c0_108] : memref<108x1024xf32, #tpu.memory_space<vmem>>, vector<4x1024xf32>
    tpu.vector_store %arg5[%c12_107, %c0_108], %100 {strides = array<i32>} : memref<108x1024xf32, #tpu.memory_space<vmem>>, vector<4x1024xf32>,
    %c0_109 = arith.constant 0 : index
    %c0_110 = arith.constant 0 : index
    %c1043 = arith.constant 1043 : index
    %102 = vector.load %arg3[%c0_109, %c0_110, %c1043] : memref<1x4x3888xf32, #tpu.memory_space<vmem>>, vector<1x4x1024xf32>
    %103 = vector.shape_cast %102 : vector<1x4x1024xf32> to vector<4x1024xf32>
    %c16_111 = arith.constant 16 : index
    %c0_112 = arith.constant 0 : index
    %104 = vector.load %arg5[%c16_111, %c0_112] : memref<108x1024xf32, #tpu.memory_space<vmem>>, vector<4x1024xf32>
    tpu.vector_store %arg5[%c16_111, %c0_112], %103 {strides = array<i32>} : memref<108x1024xf32, #tpu.memory_space<vmem>>, vector<4x1024xf32>,
    %c0_113 = arith.constant 0 : index
    %c0_114 = arith.constant 0 : index
    %c1044 = arith.constant 1044 : index
    %105 = vector.load %arg3[%c0_113, %c0_114, %c1044] : memref<1x4x3888xf32, #tpu.memory_space<vmem>>, vector<1x4x1024xf32>
    %106 = vector.shape_cast %105 : vector<1x4x1024xf32> to vector<4x1024xf32>
    %c20_115 = arith.constant 20 : index
    %c0_116 = arith.constant 0 : index
    %107 = vector.load %arg5[%c20_115, %c0_116] : memref<108x1024xf32, #tpu.memory_space<vmem>>, vector<4x1024xf32>
    tpu.vector_store %arg5[%c20_115, %c0_116], %106 {strides = array<i32>} : memref<108x1024xf32, #tpu.memory_space<vmem>>, vector<4x1024xf32>,
    %c0_117 = arith.constant 0 : index
    %c0_118 = arith.constant 0 : index
    %c1060 = arith.constant 1060 : index
    %108 = vector.load %arg3[%c0_117, %c0_118, %c1060] : memref<1x4x3888xf32, #tpu.memory_space<vmem>>, vector<1x4x1024xf32>
    %109 = vector.shape_cast %108 : vector<1x4x1024xf32> to vector<4x1024xf32>
    %c24_119 = arith.constant 24 : index
    %c0_120 = arith.constant 0 : index
    %110 = vector.load %arg5[%c24_119, %c0_120] : memref<108x1024xf32, #tpu.memory_space<vmem>>, vector<4x1024xf32>
    tpu.vector_store %arg5[%c24_119, %c0_120], %109 {strides = array<i32>} : memref<108x1024xf32, #tpu.memory_space<vmem>>, vector<4x1024xf32>,
    %c0_121 = arith.constant 0 : index
    %c0_122 = arith.constant 0 : index
    %c1061 = arith.constant 1061 : index
    %111 = vector.load %arg3[%c0_121, %c0_122, %c1061] : memref<1x4x3888xf32, #tpu.memory_space<vmem>>, vector<1x4x1024xf32>
    %112 = vector.shape_cast %111 : vector<1x4x1024xf32> to vector<4x1024xf32>
    %c28_123 = arith.constant 28 : index
    %c0_124 = arith.constant 0 : index
    %113 = vector.load %arg5[%c28_123, %c0_124] : memref<108x1024xf32, #tpu.memory_space<vmem>>, vector<4x1024xf32>
    tpu.vector_store %arg5[%c28_123, %c0_124], %112 {strides = array<i32>} : memref<108x1024xf32, #tpu.memory_space<vmem>>, vector<4x1024xf32>,
    %c0_125 = arith.constant 0 : index
    %c0_126 = arith.constant 0 : index
    %c1062 = arith.constant 1062 : index
    %114 = vector.load %arg3[%c0_125, %c0_126, %c1062] : memref<1x4x3888xf32, #tpu.memory_space<vmem>>, vector<1x4x1024xf32>
    %115 = vector.shape_cast %114 : vector<1x4x1024xf32> to vector<4x1024xf32>
    %c32_127 = arith.constant 32 : index
    %c0_128 = arith.constant 0 : index
    %116 = vector.load %arg5[%c32_127, %c0_128] : memref<108x1024xf32, #tpu.memory_space<vmem>>, vector<4x1024xf32>
    tpu.vector_store %arg5[%c32_127, %c0_128], %115 {strides = array<i32>} : memref<108x1024xf32, #tpu.memory_space<vmem>>, vector<4x1024xf32>,
    %c0_129 = arith.constant 0 : index
    %c0_130 = arith.constant 0 : index
    %c1348 = arith.constant 1348 : index
    %117 = vector.load %arg3[%c0_129, %c0_130, %c1348] : memref<1x4x3888xf32, #tpu.memory_space<vmem>>, vector<1x4x1024xf32>
    %118 = vector.shape_cast %117 : vector<1x4x1024xf32> to vector<4x1024xf32>
    %c36_131 = arith.constant 36 : index
    %c0_132 = arith.constant 0 : index
    %119 = vector.load %arg5[%c36_131, %c0_132] : memref<108x1024xf32, #tpu.memory_space<vmem>>, vector<4x1024xf32>
    tpu.vector_store %arg5[%c36_131, %c0_132], %118 {strides = array<i32>} : memref<108x1024xf32, #tpu.memory_space<vmem>>, vector<4x1024xf32>,
    %c0_133 = arith.constant 0 : index
    %c0_134 = arith.constant 0 : index
    %c1349 = arith.constant 1349 : index
    %120 = vector.load %arg3[%c0_133, %c0_134, %c1349] : memref<1x4x3888xf32, #tpu.memory_space<vmem>>, vector<1x4x1024xf32>
    %121 = vector.shape_cast %120 : vector<1x4x1024xf32> to vector<4x1024xf32>
    %c40_135 = arith.constant 40 : index
    %c0_136 = arith.constant 0 : index
    %122 = vector.load %arg5[%c40_135, %c0_136] : memref<108x1024xf32, #tpu.memory_space<vmem>>, vector<4x1024xf32>
    tpu.vector_store %arg5[%c40_135, %c0_136], %121 {strides = array<i32>} : memref<108x1024xf32, #tpu.memory_space<vmem>>, vector<4x1024xf32>,
    %c0_137 = arith.constant 0 : index
    %c0_138 = arith.constant 0 : index
    %c1350 = arith.constant 1350 : index
    %123 = vector.load %arg3[%c0_137, %c0_138, %c1350] : memref<1x4x3888xf32, #tpu.memory_space<vmem>>, vector<1x4x1024xf32>
    %124 = vector.shape_cast %123 : vector<1x4x1024xf32> to vector<4x1024xf32>
    %c44_139 = arith.constant 44 : index
    %c0_140 = arith.constant 0 : index
    %125 = vector.load %arg5[%c44_139, %c0_140] : memref<108x1024xf32, #tpu.memory_space<vmem>>, vector<4x1024xf32>
    tpu.vector_store %arg5[%c44_139, %c0_140], %124 {strides = array<i32>} : memref<108x1024xf32, #tpu.memory_space<vmem>>, vector<4x1024xf32>,
    %c0_141 = arith.constant 0 : index
    %c0_142 = arith.constant 0 : index
    %c1366 = arith.constant 1366 : index
    %126 = vector.load %arg3[%c0_141, %c0_142, %c1366] : memref<1x4x3888xf32, #tpu.memory_space<vmem>>, vector<1x4x1024xf32>
    %127 = vector.shape_cast %126 : vector<1x4x1024xf32> to vector<4x1024xf32>
    %c48_143 = arith.constant 48 : index
    %c0_144 = arith.constant 0 : index
    %128 = vector.load %arg5[%c48_143, %c0_144] : memref<108x1024xf32, #tpu.memory_space<vmem>>, vector<4x1024xf32>
    tpu.vector_store %arg5[%c48_143, %c0_144], %127 {strides = array<i32>} : memref<108x1024xf32, #tpu.memory_space<vmem>>, vector<4x1024xf32>,
    %c0_145 = arith.constant 0 : index
    %c0_146 = arith.constant 0 : index
    %c1367 = arith.constant 1367 : index
    %129 = vector.load %arg3[%c0_145, %c0_146, %c1367] : memref<1x4x3888xf32, #tpu.memory_space<vmem>>, vector<1x4x1024xf32>
    %130 = vector.shape_cast %129 : vector<1x4x1024xf32> to vector<4x1024xf32>
    %c52_147 = arith.constant 52 : index
    %c0_148 = arith.constant 0 : index
    %131 = vector.load %arg5[%c52_147, %c0_148] : memref<108x1024xf32, #tpu.memory_space<vmem>>, vector<4x1024xf32>
    tpu.vector_store %arg5[%c52_147, %c0_148], %130 {strides = array<i32>} : memref<108x1024xf32, #tpu.memory_space<vmem>>, vector<4x1024xf32>,
    %c0_149 = arith.constant 0 : index
    %c0_150 = arith.constant 0 : index
    %c1368 = arith.constant 1368 : index
    %132 = vector.load %arg3[%c0_149, %c0_150, %c1368] : memref<1x4x3888xf32, #tpu.memory_space<vmem>>, vector<1x4x1024xf32>
    %133 = vector.shape_cast %132 : vector<1x4x1024xf32> to vector<4x1024xf32>
    %c56_151 = arith.constant 56 : index
    %c0_152 = arith.constant 0 : index
    %134 = vector.load %arg5[%c56_151, %c0_152] : memref<108x1024xf32, #tpu.memory_space<vmem>>, vector<4x1024xf32>
    tpu.vector_store %arg5[%c56_151, %c0_152], %133 {strides = array<i32>} : memref<108x1024xf32, #tpu.memory_space<vmem>>, vector<4x1024xf32>,
    %c0_153 = arith.constant 0 : index
    %c0_154 = arith.constant 0 : index
    %c1384 = arith.constant 1384 : index
    %135 = vector.load %arg3[%c0_153, %c0_154, %c1384] : memref<1x4x3888xf32, #tpu.memory_space<vmem>>, vector<1x4x1024xf32>
    %136 = vector.shape_cast %135 : vector<1x4x1024xf32> to vector<4x1024xf32>
    %c60_155 = arith.constant 60 : index
    %c0_156 = arith.constant 0 : index
    %137 = vector.load %arg5[%c60_155, %c0_156] : memref<108x1024xf32, #tpu.memory_space<vmem>>, vector<4x1024xf32>
    tpu.vector_store %arg5[%c60_155, %c0_156], %136 {strides = array<i32>} : memref<108x1024xf32, #tpu.memory_space<vmem>>, vector<4x1024xf32>,
    %c0_157 = arith.constant 0 : index
    %c0_158 = arith.constant 0 : index
    %c1385 = arith.constant 1385 : index
    %138 = vector.load %arg3[%c0_157, %c0_158, %c1385] : memref<1x4x3888xf32, #tpu.memory_space<vmem>>, vector<1x4x1024xf32>
    %139 = vector.shape_cast %138 : vector<1x4x1024xf32> to vector<4x1024xf32>
    %c64_159 = arith.constant 64 : index
    %c0_160 = arith.constant 0 : index
    %140 = vector.load %arg5[%c64_159, %c0_160] : memref<108x1024xf32, #tpu.memory_space<vmem>>, vector<4x1024xf32>
    tpu.vector_store %arg5[%c64_159, %c0_160], %139 {strides = array<i32>} : memref<108x1024xf32, #tpu.memory_space<vmem>>, vector<4x1024xf32>,
    %c0_161 = arith.constant 0 : index
    %c0_162 = arith.constant 0 : index
    %c1386 = arith.constant 1386 : index
    %141 = vector.load %arg3[%c0_161, %c0_162, %c1386] : memref<1x4x3888xf32, #tpu.memory_space<vmem>>, vector<1x4x1024xf32>
    %142 = vector.shape_cast %141 : vector<1x4x1024xf32> to vector<4x1024xf32>
    %c68_163 = arith.constant 68 : index
    %c0_164 = arith.constant 0 : index
    %143 = vector.load %arg5[%c68_163, %c0_164] : memref<108x1024xf32, #tpu.memory_space<vmem>>, vector<4x1024xf32>
    tpu.vector_store %arg5[%c68_163, %c0_164], %142 {strides = array<i32>} : memref<108x1024xf32, #tpu.memory_space<vmem>>, vector<4x1024xf32>,
    %c0_165 = arith.constant 0 : index
    %c0_166 = arith.constant 0 : index
    %c1672 = arith.constant 1672 : index
    %144 = vector.load %arg3[%c0_165, %c0_166, %c1672] : memref<1x4x3888xf32, #tpu.memory_space<vmem>>, vector<1x4x1024xf32>
    %145 = vector.shape_cast %144 : vector<1x4x1024xf32> to vector<4x1024xf32>
    %c72_167 = arith.constant 72 : index
    %c0_168 = arith.constant 0 : index
    %146 = vector.load %arg5[%c72_167, %c0_168] : memref<108x1024xf32, #tpu.memory_space<vmem>>, vector<4x1024xf32>
    tpu.vector_store %arg5[%c72_167, %c0_168], %145 {strides = array<i32>} : memref<108x1024xf32, #tpu.memory_space<vmem>>, vector<4x1024xf32>,
    %c0_169 = arith.constant 0 : index
    %c0_170 = arith.constant 0 : index
    %c1673 = arith.constant 1673 : index
    %147 = vector.load %arg3[%c0_169, %c0_170, %c1673] : memref<1x4x3888xf32, #tpu.memory_space<vmem>>, vector<1x4x1024xf32>
    %148 = vector.shape_cast %147 : vector<1x4x1024xf32> to vector<4x1024xf32>
    %c76_171 = arith.constant 76 : index
    %c0_172 = arith.constant 0 : index
    %149 = vector.load %arg5[%c76_171, %c0_172] : memref<108x1024xf32, #tpu.memory_space<vmem>>, vector<4x1024xf32>
    tpu.vector_store %arg5[%c76_171, %c0_172], %148 {strides = array<i32>} : memref<108x1024xf32, #tpu.memory_space<vmem>>, vector<4x1024xf32>,
    %c0_173 = arith.constant 0 : index
    %c0_174 = arith.constant 0 : index
    %c1674 = arith.constant 1674 : index
    %150 = vector.load %arg3[%c0_173, %c0_174, %c1674] : memref<1x4x3888xf32, #tpu.memory_space<vmem>>, vector<1x4x1024xf32>
    %151 = vector.shape_cast %150 : vector<1x4x1024xf32> to vector<4x1024xf32>
    %c80_175 = arith.constant 80 : index
    %c0_176 = arith.constant 0 : index
    %152 = vector.load %arg5[%c80_175, %c0_176] : memref<108x1024xf32, #tpu.memory_space<vmem>>, vector<4x1024xf32>
    tpu.vector_store %arg5[%c80_175, %c0_176], %151 {strides = array<i32>} : memref<108x1024xf32, #tpu.memory_space<vmem>>, vector<4x1024xf32>,
    %c0_177 = arith.constant 0 : index
    %c0_178 = arith.constant 0 : index
    %c1690 = arith.constant 1690 : index
    %153 = vector.load %arg3[%c0_177, %c0_178, %c1690] : memref<1x4x3888xf32, #tpu.memory_space<vmem>>, vector<1x4x1024xf32>
    %154 = vector.shape_cast %153 : vector<1x4x1024xf32> to vector<4x1024xf32>
    %c84_179 = arith.constant 84 : index
    %c0_180 = arith.constant 0 : index
    %155 = vector.load %arg5[%c84_179, %c0_180] : memref<108x1024xf32, #tpu.memory_space<vmem>>, vector<4x1024xf32>
    tpu.vector_store %arg5[%c84_179, %c0_180], %154 {strides = array<i32>} : memref<108x1024xf32, #tpu.memory_space<vmem>>, vector<4x1024xf32>,
    %c0_181 = arith.constant 0 : index
    %c0_182 = arith.constant 0 : index
    %c1691 = arith.constant 1691 : index
    %156 = vector.load %arg3[%c0_181, %c0_182, %c1691] : memref<1x4x3888xf32, #tpu.memory_space<vmem>>, vector<1x4x1024xf32>
    %157 = vector.shape_cast %156 : vector<1x4x1024xf32> to vector<4x1024xf32>
    %c88_183 = arith.constant 88 : index
    %c0_184 = arith.constant 0 : index
    %158 = vector.load %arg5[%c88_183, %c0_184] : memref<108x1024xf32, #tpu.memory_space<vmem>>, vector<4x1024xf32>
    tpu.vector_store %arg5[%c88_183, %c0_184], %157 {strides = array<i32>} : memref<108x1024xf32, #tpu.memory_space<vmem>>, vector<4x1024xf32>,
    %c0_185 = arith.constant 0 : index
    %c0_186 = arith.constant 0 : index
    %c1692 = arith.constant 1692 : index
    %159 = vector.load %arg3[%c0_185, %c0_186, %c1692] : memref<1x4x3888xf32, #tpu.memory_space<vmem>>, vector<1x4x1024xf32>
    %160 = vector.shape_cast %159 : vector<1x4x1024xf32> to vector<4x1024xf32>
    %c92_187 = arith.constant 92 : index
    %c0_188 = arith.constant 0 : index
    %161 = vector.load %arg5[%c92_187, %c0_188] : memref<108x1024xf32, #tpu.memory_space<vmem>>, vector<4x1024xf32>
    tpu.vector_store %arg5[%c92_187, %c0_188], %160 {strides = array<i32>} : memref<108x1024xf32, #tpu.memory_space<vmem>>, vector<4x1024xf32>,
    %c0_189 = arith.constant 0 : index
    %c0_190 = arith.constant 0 : index
    %c1708 = arith.constant 1708 : index
    %162 = vector.load %arg3[%c0_189, %c0_190, %c1708] : memref<1x4x3888xf32, #tpu.memory_space<vmem>>, vector<1x4x1024xf32>
    %163 = vector.shape_cast %162 : vector<1x4x1024xf32> to vector<4x1024xf32>
    %c96_191 = arith.constant 96 : index
    %c0_192 = arith.constant 0 : index
    %164 = vector.load %arg5[%c96_191, %c0_192] : memref<108x1024xf32, #tpu.memory_space<vmem>>, vector<4x1024xf32>
    tpu.vector_store %arg5[%c96_191, %c0_192], %163 {strides = array<i32>} : memref<108x1024xf32, #tpu.memory_space<vmem>>, vector<4x1024xf32>,
    %c0_193 = arith.constant 0 : index
    %c0_194 = arith.constant 0 : index
    %c1709 = arith.constant 1709 : index
    %165 = vector.load %arg3[%c0_193, %c0_194, %c1709] : memref<1x4x3888xf32, #tpu.memory_space<vmem>>, vector<1x4x1024xf32>
    %166 = vector.shape_cast %165 : vector<1x4x1024xf32> to vector<4x1024xf32>
    %c100_195 = arith.constant 100 : index
    %c0_196 = arith.constant 0 : index
    %167 = vector.load %arg5[%c100_195, %c0_196] : memref<108x1024xf32, #tpu.memory_space<vmem>>, vector<4x1024xf32>
    tpu.vector_store %arg5[%c100_195, %c0_196], %166 {strides = array<i32>} : memref<108x1024xf32, #tpu.memory_space<vmem>>, vector<4x1024xf32>,
    %c0_197 = arith.constant 0 : index
    %c0_198 = arith.constant 0 : index
    %c1710 = arith.constant 1710 : index
    %168 = vector.load %arg3[%c0_197, %c0_198, %c1710] : memref<1x4x3888xf32, #tpu.memory_space<vmem>>, vector<1x4x1024xf32>
    %169 = vector.shape_cast %168 : vector<1x4x1024xf32> to vector<4x1024xf32>
    %c104_199 = arith.constant 104 : index
    %c0_200 = arith.constant 0 : index
    %170 = vector.load %arg5[%c104_199, %c0_200] : memref<108x1024xf32, #tpu.memory_space<vmem>>, vector<4x1024xf32>
    tpu.vector_store %arg5[%c104_199, %c0_200], %169 {strides = array<i32>} : memref<108x1024xf32, #tpu.memory_space<vmem>>, vector<4x1024xf32>,
    %c0_201 = arith.constant 0 : index
    %c0_202 = arith.constant 0 : index
    %171 = vector.load %arg5[%c0_201, %c0_202] : memref<108x1024xf32, #tpu.memory_space<vmem>>, vector<108x1024xf32>
    %cst_203 = arith.constant dense<0.000000e+00> : vector<32x1024xf32>
    %172 = tpu.matmul %0, %171, %cst_203 {dimension_numbers = #tpu.dot_dimension_numbers<[1], [0], [0], [1], [0, 0, 1, 1], [], []>} : vector<32x108xf32>, vector<108x1024xf32>, vector<32x1024xf32> -> vector<32x1024xf32>
    %173 = vector.broadcast %1 : vector<32x1xf32> to vector<32x1024xf32>
    %174 = arith.addf %172, %173 : vector<32x1024xf32>
    %c0_204 = arith.constant 0 : index
    %c0_205 = arith.constant 0 : index
    %c1024_206 = arith.constant 1024 : index
    %175 = vector.load %arg4[%c0_204, %c0_205, %c1024_206] : memref<1x32x3072xf32, #tpu.memory_space<vmem>>, vector<1x32x1024xf32>
    %176 = vector.shape_cast %175 : vector<1x32x1024xf32> to vector<32x1024xf32>
    %177 = vector.shape_cast %174 : vector<32x1024xf32> to vector<1x32x1024xf32>
    tpu.vector_store %arg4[%c0_204, %c0_205, %c1024_206], %177 {strides = array<i32>} : memref<1x32x3072xf32, #tpu.memory_space<vmem>>, vector<1x32x1024xf32>,
    %c0_207 = arith.constant 0 : index
    %c0_208 = arith.constant 0 : index
    %c2048 = arith.constant 2048 : index
    %178 = vector.load %arg3[%c0_207, %c0_208, %c2048] : memref<1x4x3888xf32, #tpu.memory_space<vmem>>, vector<1x4x1024xf32>
    %179 = vector.shape_cast %178 : vector<1x4x1024xf32> to vector<4x1024xf32>
    %c0_209 = arith.constant 0 : index
    %c0_210 = arith.constant 0 : index
    %180 = vector.load %arg5[%c0_209, %c0_210] : memref<108x1024xf32, #tpu.memory_space<vmem>>, vector<4x1024xf32>
    tpu.vector_store %arg5[%c0_209, %c0_210], %179 {strides = array<i32>} : memref<108x1024xf32, #tpu.memory_space<vmem>>, vector<4x1024xf32>,
    %c0_211 = arith.constant 0 : index
    %c0_212 = arith.constant 0 : index
    %c2049 = arith.constant 2049 : index
    %181 = vector.load %arg3[%c0_211, %c0_212, %c2049] : memref<1x4x3888xf32, #tpu.memory_space<vmem>>, vector<1x4x1024xf32>
    %182 = vector.shape_cast %181 : vector<1x4x1024xf32> to vector<4x1024xf32>
    %c4_213 = arith.constant 4 : index
    %c0_214 = arith.constant 0 : index
    %183 = vector.load %arg5[%c4_213, %c0_214] : memref<108x1024xf32, #tpu.memory_space<vmem>>, vector<4x1024xf32>
    tpu.vector_store %arg5[%c4_213, %c0_214], %182 {strides = array<i32>} : memref<108x1024xf32, #tpu.memory_space<vmem>>, vector<4x1024xf32>,
    %c0_215 = arith.constant 0 : index
    %c0_216 = arith.constant 0 : index
    %c2050 = arith.constant 2050 : index
    %184 = vector.load %arg3[%c0_215, %c0_216, %c2050] : memref<1x4x3888xf32, #tpu.memory_space<vmem>>, vector<1x4x1024xf32>
    %185 = vector.shape_cast %184 : vector<1x4x1024xf32> to vector<4x1024xf32>
    %c8_217 = arith.constant 8 : index
    %c0_218 = arith.constant 0 : index
    %186 = vector.load %arg5[%c8_217, %c0_218] : memref<108x1024xf32, #tpu.memory_space<vmem>>, vector<4x1024xf32>
    tpu.vector_store %arg5[%c8_217, %c0_218], %185 {strides = array<i32>} : memref<108x1024xf32, #tpu.memory_space<vmem>>, vector<4x1024xf32>,
    %c0_219 = arith.constant 0 : index
    %c0_220 = arith.constant 0 : index
    %c2066 = arith.constant 2066 : index
    %187 = vector.load %arg3[%c0_219, %c0_220, %c2066] : memref<1x4x3888xf32, #tpu.memory_space<vmem>>, vector<1x4x1024xf32>
    %188 = vector.shape_cast %187 : vector<1x4x1024xf32> to vector<4x1024xf32>
    %c12_221 = arith.constant 12 : index
    %c0_222 = arith.constant 0 : index
    %189 = vector.load %arg5[%c12_221, %c0_222] : memref<108x1024xf32, #tpu.memory_space<vmem>>, vector<4x1024xf32>
    tpu.vector_store %arg5[%c12_221, %c0_222], %188 {strides = array<i32>} : memref<108x1024xf32, #tpu.memory_space<vmem>>, vector<4x1024xf32>,
    %c0_223 = arith.constant 0 : index
    %c0_224 = arith.constant 0 : index
    %c2067 = arith.constant 2067 : index
    %190 = vector.load %arg3[%c0_223, %c0_224, %c2067] : memref<1x4x3888xf32, #tpu.memory_space<vmem>>, vector<1x4x1024xf32>
    %191 = vector.shape_cast %190 : vector<1x4x1024xf32> to vector<4x1024xf32>
    %c16_225 = arith.constant 16 : index
    %c0_226 = arith.constant 0 : index
    %192 = vector.load %arg5[%c16_225, %c0_226] : memref<108x1024xf32, #tpu.memory_space<vmem>>, vector<4x1024xf32>
    tpu.vector_store %arg5[%c16_225, %c0_226], %191 {strides = array<i32>} : memref<108x1024xf32, #tpu.memory_space<vmem>>, vector<4x1024xf32>,
    %c0_227 = arith.constant 0 : index
    %c0_228 = arith.constant 0 : index
    %c2068 = arith.constant 2068 : index
    %193 = vector.load %arg3[%c0_227, %c0_228, %c2068] : memref<1x4x3888xf32, #tpu.memory_space<vmem>>, vector<1x4x1024xf32>
    %194 = vector.shape_cast %193 : vector<1x4x1024xf32> to vector<4x1024xf32>
    %c20_229 = arith.constant 20 : index
    %c0_230 = arith.constant 0 : index
    %195 = vector.load %arg5[%c20_229, %c0_230] : memref<108x1024xf32, #tpu.memory_space<vmem>>, vector<4x1024xf32>
    tpu.vector_store %arg5[%c20_229, %c0_230], %194 {strides = array<i32>} : memref<108x1024xf32, #tpu.memory_space<vmem>>, vector<4x1024xf32>,
    %c0_231 = arith.constant 0 : index
    %c0_232 = arith.constant 0 : index
    %c2084 = arith.constant 2084 : index
    %196 = vector.load %arg3[%c0_231, %c0_232, %c2084] : memref<1x4x3888xf32, #tpu.memory_space<vmem>>, vector<1x4x1024xf32>
    %197 = vector.shape_cast %196 : vector<1x4x1024xf32> to vector<4x1024xf32>
    %c24_233 = arith.constant 24 : index
    %c0_234 = arith.constant 0 : index
    %198 = vector.load %arg5[%c24_233, %c0_234] : memref<108x1024xf32, #tpu.memory_space<vmem>>, vector<4x1024xf32>
    tpu.vector_store %arg5[%c24_233, %c0_234], %197 {strides = array<i32>} : memref<108x1024xf32, #tpu.memory_space<vmem>>, vector<4x1024xf32>,
    %c0_235 = arith.constant 0 : index
    %c0_236 = arith.constant 0 : index
    %c2085 = arith.constant 2085 : index
    %199 = vector.load %arg3[%c0_235, %c0_236, %c2085] : memref<1x4x3888xf32, #tpu.memory_space<vmem>>, vector<1x4x1024xf32>
    %200 = vector.shape_cast %199 : vector<1x4x1024xf32> to vector<4x1024xf32>
    %c28_237 = arith.constant 28 : index
    %c0_238 = arith.constant 0 : index
    %201 = vector.load %arg5[%c28_237, %c0_238] : memref<108x1024xf32, #tpu.memory_space<vmem>>, vector<4x1024xf32>
    tpu.vector_store %arg5[%c28_237, %c0_238], %200 {strides = array<i32>} : memref<108x1024xf32, #tpu.memory_space<vmem>>, vector<4x1024xf32>,
    %c0_239 = arith.constant 0 : index
    %c0_240 = arith.constant 0 : index
    %c2086 = arith.constant 2086 : index
    %202 = vector.load %arg3[%c0_239, %c0_240, %c2086] : memref<1x4x3888xf32, #tpu.memory_space<vmem>>, vector<1x4x1024xf32>
    %203 = vector.shape_cast %202 : vector<1x4x1024xf32> to vector<4x1024xf32>
    %c32_241 = arith.constant 32 : index
    %c0_242 = arith.constant 0 : index
    %204 = vector.load %arg5[%c32_241, %c0_242] : memref<108x1024xf32, #tpu.memory_space<vmem>>, vector<4x1024xf32>
    tpu.vector_store %arg5[%c32_241, %c0_242], %203 {strides = array<i32>} : memref<108x1024xf32, #tpu.memory_space<vmem>>, vector<4x1024xf32>,
    %c0_243 = arith.constant 0 : index
    %c0_244 = arith.constant 0 : index
    %c2372 = arith.constant 2372 : index
    %205 = vector.load %arg3[%c0_243, %c0_244, %c2372] : memref<1x4x3888xf32, #tpu.memory_space<vmem>>, vector<1x4x1024xf32>
    %206 = vector.shape_cast %205 : vector<1x4x1024xf32> to vector<4x1024xf32>
    %c36_245 = arith.constant 36 : index
    %c0_246 = arith.constant 0 : index
    %207 = vector.load %arg5[%c36_245, %c0_246] : memref<108x1024xf32, #tpu.memory_space<vmem>>, vector<4x1024xf32>
    tpu.vector_store %arg5[%c36_245, %c0_246], %206 {strides = array<i32>} : memref<108x1024xf32, #tpu.memory_space<vmem>>, vector<4x1024xf32>,
    %c0_247 = arith.constant 0 : index
    %c0_248 = arith.constant 0 : index
    %c2373 = arith.constant 2373 : index
    %208 = vector.load %arg3[%c0_247, %c0_248, %c2373] : memref<1x4x3888xf32, #tpu.memory_space<vmem>>, vector<1x4x1024xf32>
    %209 = vector.shape_cast %208 : vector<1x4x1024xf32> to vector<4x1024xf32>
    %c40_249 = arith.constant 40 : index
    %c0_250 = arith.constant 0 : index
    %210 = vector.load %arg5[%c40_249, %c0_250] : memref<108x1024xf32, #tpu.memory_space<vmem>>, vector<4x1024xf32>
    tpu.vector_store %arg5[%c40_249, %c0_250], %209 {strides = array<i32>} : memref<108x1024xf32, #tpu.memory_space<vmem>>, vector<4x1024xf32>,
    %c0_251 = arith.constant 0 : index
    %c0_252 = arith.constant 0 : index
    %c2374 = arith.constant 2374 : index
    %211 = vector.load %arg3[%c0_251, %c0_252, %c2374] : memref<1x4x3888xf32, #tpu.memory_space<vmem>>, vector<1x4x1024xf32>
    %212 = vector.shape_cast %211 : vector<1x4x1024xf32> to vector<4x1024xf32>
    %c44_253 = arith.constant 44 : index
    %c0_254 = arith.constant 0 : index
    %213 = vector.load %arg5[%c44_253, %c0_254] : memref<108x1024xf32, #tpu.memory_space<vmem>>, vector<4x1024xf32>
    tpu.vector_store %arg5[%c44_253, %c0_254], %212 {strides = array<i32>} : memref<108x1024xf32, #tpu.memory_space<vmem>>, vector<4x1024xf32>,
    %c0_255 = arith.constant 0 : index
    %c0_256 = arith.constant 0 : index
    %c2390 = arith.constant 2390 : index
    %214 = vector.load %arg3[%c0_255, %c0_256, %c2390] : memref<1x4x3888xf32, #tpu.memory_space<vmem>>, vector<1x4x1024xf32>
    %215 = vector.shape_cast %214 : vector<1x4x1024xf32> to vector<4x1024xf32>
    %c48_257 = arith.constant 48 : index
    %c0_258 = arith.constant 0 : index
    %216 = vector.load %arg5[%c48_257, %c0_258] : memref<108x1024xf32, #tpu.memory_space<vmem>>, vector<4x1024xf32>
    tpu.vector_store %arg5[%c48_257, %c0_258], %215 {strides = array<i32>} : memref<108x1024xf32, #tpu.memory_space<vmem>>, vector<4x1024xf32>,
    %c0_259 = arith.constant 0 : index
    %c0_260 = arith.constant 0 : index
    %c2391 = arith.constant 2391 : index
    %217 = vector.load %arg3[%c0_259, %c0_260, %c2391] : memref<1x4x3888xf32, #tpu.memory_space<vmem>>, vector<1x4x1024xf32>
    %218 = vector.shape_cast %217 : vector<1x4x1024xf32> to vector<4x1024xf32>
    %c52_261 = arith.constant 52 : index
    %c0_262 = arith.constant 0 : index
    %219 = vector.load %arg5[%c52_261, %c0_262] : memref<108x1024xf32, #tpu.memory_space<vmem>>, vector<4x1024xf32>
    tpu.vector_store %arg5[%c52_261, %c0_262], %218 {strides = array<i32>} : memref<108x1024xf32, #tpu.memory_space<vmem>>, vector<4x1024xf32>,
    %c0_263 = arith.constant 0 : index
    %c0_264 = arith.constant 0 : index
    %c2392 = arith.constant 2392 : index
    %220 = vector.load %arg3[%c0_263, %c0_264, %c2392] : memref<1x4x3888xf32, #tpu.memory_space<vmem>>, vector<1x4x1024xf32>
    %221 = vector.shape_cast %220 : vector<1x4x1024xf32> to vector<4x1024xf32>
    %c56_265 = arith.constant 56 : index
    %c0_266 = arith.constant 0 : index
    %222 = vector.load %arg5[%c56_265, %c0_266] : memref<108x1024xf32, #tpu.memory_space<vmem>>, vector<4x1024xf32>
    tpu.vector_store %arg5[%c56_265, %c0_266], %221 {strides = array<i32>} : memref<108x1024xf32, #tpu.memory_space<vmem>>, vector<4x1024xf32>,
    %c0_267 = arith.constant 0 : index
    %c0_268 = arith.constant 0 : index
    %c2408 = arith.constant 2408 : index
    %223 = vector.load %arg3[%c0_267, %c0_268, %c2408] : memref<1x4x3888xf32, #tpu.memory_space<vmem>>, vector<1x4x1024xf32>
    %224 = vector.shape_cast %223 : vector<1x4x1024xf32> to vector<4x1024xf32>
    %c60_269 = arith.constant 60 : index
    %c0_270 = arith.constant 0 : index
    %225 = vector.load %arg5[%c60_269, %c0_270] : memref<108x1024xf32, #tpu.memory_space<vmem>>, vector<4x1024xf32>
    tpu.vector_store %arg5[%c60_269, %c0_270], %224 {strides = array<i32>} : memref<108x1024xf32, #tpu.memory_space<vmem>>, vector<4x1024xf32>,
    %c0_271 = arith.constant 0 : index
    %c0_272 = arith.constant 0 : index
    %c2409 = arith.constant 2409 : index
    %226 = vector.load %arg3[%c0_271, %c0_272, %c2409] : memref<1x4x3888xf32, #tpu.memory_space<vmem>>, vector<1x4x1024xf32>
    %227 = vector.shape_cast %226 : vector<1x4x1024xf32> to vector<4x1024xf32>
    %c64_273 = arith.constant 64 : index
    %c0_274 = arith.constant 0 : index
    %228 = vector.load %arg5[%c64_273, %c0_274] : memref<108x1024xf32, #tpu.memory_space<vmem>>, vector<4x1024xf32>
    tpu.vector_store %arg5[%c64_273, %c0_274], %227 {strides = array<i32>} : memref<108x1024xf32, #tpu.memory_space<vmem>>, vector<4x1024xf32>,
    %c0_275 = arith.constant 0 : index
    %c0_276 = arith.constant 0 : index
    %c2410 = arith.constant 2410 : index
    %229 = vector.load %arg3[%c0_275, %c0_276, %c2410] : memref<1x4x3888xf32, #tpu.memory_space<vmem>>, vector<1x4x1024xf32>
    %230 = vector.shape_cast %229 : vector<1x4x1024xf32> to vector<4x1024xf32>
    %c68_277 = arith.constant 68 : index
    %c0_278 = arith.constant 0 : index
    %231 = vector.load %arg5[%c68_277, %c0_278] : memref<108x1024xf32, #tpu.memory_space<vmem>>, vector<4x1024xf32>
    tpu.vector_store %arg5[%c68_277, %c0_278], %230 {strides = array<i32>} : memref<108x1024xf32, #tpu.memory_space<vmem>>, vector<4x1024xf32>,
    %c0_279 = arith.constant 0 : index
    %c0_280 = arith.constant 0 : index
    %c2696 = arith.constant 2696 : index
    %232 = vector.load %arg3[%c0_279, %c0_280, %c2696] : memref<1x4x3888xf32, #tpu.memory_space<vmem>>, vector<1x4x1024xf32>
    %233 = vector.shape_cast %232 : vector<1x4x1024xf32> to vector<4x1024xf32>
    %c72_281 = arith.constant 72 : index
    %c0_282 = arith.constant 0 : index
    %234 = vector.load %arg5[%c72_281, %c0_282] : memref<108x1024xf32, #tpu.memory_space<vmem>>, vector<4x1024xf32>
    tpu.vector_store %arg5[%c72_281, %c0_282], %233 {strides = array<i32>} : memref<108x1024xf32, #tpu.memory_space<vmem>>, vector<4x1024xf32>,
    %c0_283 = arith.constant 0 : index
    %c0_284 = arith.constant 0 : index
    %c2697 = arith.constant 2697 : index
    %235 = vector.load %arg3[%c0_283, %c0_284, %c2697] : memref<1x4x3888xf32, #tpu.memory_space<vmem>>, vector<1x4x1024xf32>
    %236 = vector.shape_cast %235 : vector<1x4x1024xf32> to vector<4x1024xf32>
    %c76_285 = arith.constant 76 : index
    %c0_286 = arith.constant 0 : index
    %237 = vector.load %arg5[%c76_285, %c0_286] : memref<108x1024xf32, #tpu.memory_space<vmem>>, vector<4x1024xf32>
    tpu.vector_store %arg5[%c76_285, %c0_286], %236 {strides = array<i32>} : memref<108x1024xf32, #tpu.memory_space<vmem>>, vector<4x1024xf32>,
    %c0_287 = arith.constant 0 : index
    %c0_288 = arith.constant 0 : index
    %c2698 = arith.constant 2698 : index
    %238 = vector.load %arg3[%c0_287, %c0_288, %c2698] : memref<1x4x3888xf32, #tpu.memory_space<vmem>>, vector<1x4x1024xf32>
    %239 = vector.shape_cast %238 : vector<1x4x1024xf32> to vector<4x1024xf32>
    %c80_289 = arith.constant 80 : index
    %c0_290 = arith.constant 0 : index
    %240 = vector.load %arg5[%c80_289, %c0_290] : memref<108x1024xf32, #tpu.memory_space<vmem>>, vector<4x1024xf32>
    tpu.vector_store %arg5[%c80_289, %c0_290], %239 {strides = array<i32>} : memref<108x1024xf32, #tpu.memory_space<vmem>>, vector<4x1024xf32>,
    %c0_291 = arith.constant 0 : index
    %c0_292 = arith.constant 0 : index
    %c2714 = arith.constant 2714 : index
    %241 = vector.load %arg3[%c0_291, %c0_292, %c2714] : memref<1x4x3888xf32, #tpu.memory_space<vmem>>, vector<1x4x1024xf32>
    %242 = vector.shape_cast %241 : vector<1x4x1024xf32> to vector<4x1024xf32>
    %c84_293 = arith.constant 84 : index
    %c0_294 = arith.constant 0 : index
    %243 = vector.load %arg5[%c84_293, %c0_294] : memref<108x1024xf32, #tpu.memory_space<vmem>>, vector<4x1024xf32>
    tpu.vector_store %arg5[%c84_293, %c0_294], %242 {strides = array<i32>} : memref<108x1024xf32, #tpu.memory_space<vmem>>, vector<4x1024xf32>,
    %c0_295 = arith.constant 0 : index
    %c0_296 = arith.constant 0 : index
    %c2715 = arith.constant 2715 : index
    %244 = vector.load %arg3[%c0_295, %c0_296, %c2715] : memref<1x4x3888xf32, #tpu.memory_space<vmem>>, vector<1x4x1024xf32>
    %245 = vector.shape_cast %244 : vector<1x4x1024xf32> to vector<4x1024xf32>
    %c88_297 = arith.constant 88 : index
    %c0_298 = arith.constant 0 : index
    %246 = vector.load %arg5[%c88_297, %c0_298] : memref<108x1024xf32, #tpu.memory_space<vmem>>, vector<4x1024xf32>
    tpu.vector_store %arg5[%c88_297, %c0_298], %245 {strides = array<i32>} : memref<108x1024xf32, #tpu.memory_space<vmem>>, vector<4x1024xf32>,
    %c0_299 = arith.constant 0 : index
    %c0_300 = arith.constant 0 : index
    %c2716 = arith.constant 2716 : index
    %247 = vector.load %arg3[%c0_299, %c0_300, %c2716] : memref<1x4x3888xf32, #tpu.memory_space<vmem>>, vector<1x4x1024xf32>
    %248 = vector.shape_cast %247 : vector<1x4x1024xf32> to vector<4x1024xf32>
    %c92_301 = arith.constant 92 : index
    %c0_302 = arith.constant 0 : index
    %249 = vector.load %arg5[%c92_301, %c0_302] : memref<108x1024xf32, #tpu.memory_space<vmem>>, vector<4x1024xf32>
    tpu.vector_store %arg5[%c92_301, %c0_302], %248 {strides = array<i32>} : memref<108x1024xf32, #tpu.memory_space<vmem>>, vector<4x1024xf32>,
    %c0_303 = arith.constant 0 : index
    %c0_304 = arith.constant 0 : index
    %c2732 = arith.constant 2732 : index
    %250 = vector.load %arg3[%c0_303, %c0_304, %c2732] : memref<1x4x3888xf32, #tpu.memory_space<vmem>>, vector<1x4x1024xf32>
    %251 = vector.shape_cast %250 : vector<1x4x1024xf32> to vector<4x1024xf32>
    %c96_305 = arith.constant 96 : index
    %c0_306 = arith.constant 0 : index
    %252 = vector.load %arg5[%c96_305, %c0_306] : memref<108x1024xf32, #tpu.memory_space<vmem>>, vector<4x1024xf32>
    tpu.vector_store %arg5[%c96_305, %c0_306], %251 {strides = array<i32>} : memref<108x1024xf32, #tpu.memory_space<vmem>>, vector<4x1024xf32>,
    %c0_307 = arith.constant 0 : index
    %c0_308 = arith.constant 0 : index
    %c2733 = arith.constant 2733 : index
    %253 = vector.load %arg3[%c0_307, %c0_308, %c2733] : memref<1x4x3888xf32, #tpu.memory_space<vmem>>, vector<1x4x1024xf32>
    %254 = vector.shape_cast %253 : vector<1x4x1024xf32> to vector<4x1024xf32>
    %c100_309 = arith.constant 100 : index
    %c0_310 = arith.constant 0 : index
    %255 = vector.load %arg5[%c100_309, %c0_310] : memref<108x1024xf32, #tpu.memory_space<vmem>>, vector<4x1024xf32>
    tpu.vector_store %arg5[%c100_309, %c0_310], %254 {strides = array<i32>} : memref<108x1024xf32, #tpu.memory_space<vmem>>, vector<4x1024xf32>,
    %c0_311 = arith.constant 0 : index
    %c0_312 = arith.constant 0 : index
    %c2734 = arith.constant 2734 : index
    %256 = vector.load %arg3[%c0_311, %c0_312, %c2734] : memref<1x4x3888xf32, #tpu.memory_space<vmem>>, vector<1x4x1024xf32>
    %257 = vector.shape_cast %256 : vector<1x4x1024xf32> to vector<4x1024xf32>
    %c104_313 = arith.constant 104 : index
    %c0_314 = arith.constant 0 : index
    %258 = vector.load %arg5[%c104_313, %c0_314] : memref<108x1024xf32, #tpu.memory_space<vmem>>, vector<4x1024xf32>
    tpu.vector_store %arg5[%c104_313, %c0_314], %257 {strides = array<i32>} : memref<108x1024xf32, #tpu.memory_space<vmem>>, vector<4x1024xf32>,
    %c0_315 = arith.constant 0 : index
    %c0_316 = arith.constant 0 : index
    %259 = vector.load %arg5[%c0_315, %c0_316] : memref<108x1024xf32, #tpu.memory_space<vmem>>, vector<108x1024xf32>
    %cst_317 = arith.constant dense<0.000000e+00> : vector<32x1024xf32>
    %260 = tpu.matmul %0, %259, %cst_317 {dimension_numbers = #tpu.dot_dimension_numbers<[1], [0], [0], [1], [0, 0, 1, 1], [], []>} : vector<32x108xf32>, vector<108x1024xf32>, vector<32x1024xf32> -> vector<32x1024xf32>
    %261 = vector.broadcast %1 : vector<32x1xf32> to vector<32x1024xf32>
    %262 = arith.addf %260, %261 : vector<32x1024xf32>
    %c0_318 = arith.constant 0 : index
    %c0_319 = arith.constant 0 : index
    %c2048_320 = arith.constant 2048 : index
    %263 = vector.load %arg4[%c0_318, %c0_319, %c2048_320] : memref<1x32x3072xf32, #tpu.memory_space<vmem>>, vector<1x32x1024xf32>
    %264 = vector.shape_cast %263 : vector<1x32x1024xf32> to vector<32x1024xf32>
    %265 = vector.shape_cast %262 : vector<32x1024xf32> to vector<1x32x1024xf32>
    tpu.vector_store %arg4[%c0_318, %c0_319, %c2048_320], %265 {strides = array<i32>} : memref<1x32x3072xf32, #tpu.memory_space<vmem>>, vector<1x32x1024xf32>,
    return
  }
  func.func @transform_0(%arg0: i32) -> (i32, i32) {
    %c0_i32 = arith.constant 0 : i32
    %c0_i32_0 = arith.constant 0 : i32
    %c0_i32_1 = arith.constant 0 : i32
    return %c0_i32, %c0_i32_0 : i32, i32
  }
  func.func @transform_1(%arg0: i32) -> (i32, i32) {
    %c0_i32 = arith.constant 0 : i32
    %c0_i32_0 = arith.constant 0 : i32
    %c0_i32_1 = arith.constant 0 : i32
    return %c0_i32, %c0_i32_0 : i32, i32
  }
  func.func @transform_2(%arg0: i32) -> (i32, i32, i32) {
    %c0_i32 = arith.constant 0 : i32
    %c0_i32_0 = arith.constant 0 : i32
    %c0_i32_1 = arith.constant 0 : i32
    return %arg0, %c0_i32, %c0_i32_0 : i32, i32, i32
  }
  func.func @transform_3(%arg0: i32) -> (i32, i32, i32) {
    %c0_i32 = arith.constant 0 : i32
    %c0_i32_0 = arith.constant 0 : i32
    %c0_i32_1 = arith.constant 0 : i32
    return %arg0, %c0_i32, %c0_i32_0 : i32, i32, i32
  }
}

</mosaic_0001>

<llo_original>
// kernel: tpu_custom_call.1
$region0: #{tpu_custom_call.1}
  #allocation0 [shape = 'u32[]', space=smem, size = 0x4, offset = 0x4, fixed_abs, tag = 'smem constant byte address 0x4 - core index']
  #allocation1 [shape = 'u32[144,128]{1,0:T(1,128)}', space=vmem, size = 0x12000, scoped, tag = 'internal scratch']
  #allocation2 [shape = 'f32[108,1024]{1,0:T(8,128)}', space=vmem, size = 0x70000, scoped, tag = 'scratch operand']
  %s0 = inlined_call_operand.vmem [shape: f32[32,108], index: 0, kind: input, shape index: {}]
  %s1 = inlined_call_operand.vmem [shape: f32[32,1], index: 1, kind: input, shape index: {}]
  %s2 = inlined_call_operand.hbm [shape: f32[2,4,3888], index: 2, kind: input, shape index: {}]
  %s3 = inlined_call_operand.hbm [shape: f32[2,32,3072], index: 3, kind: output, shape index: {}]
  %s4 = sld [smem:[#allocation0]]
  $region49: #{tpu_custom_call.1} parent=0
    _
  %s6 = ssub.s32 1, %s4
  %s7 = scalar_select 0, %s6, %s4
  $region1: #{tpu_custom_call.1} parent=0
    #allocation3 [shape = 'u8[126976]{0}', space=vmem, size = 0x1f000, scoped, tag = 'input window, operand 2']
    #allocation4 [shape = 's32[2]{0}', space=sflag, size = 0x8, scoped, tag = 'scoped memory for tpu_custom_call.1']
    #allocation5 [shape = 's32[2]{0}', space=sflag, size = 0x8, scoped, tag = 'scoped memory for tpu_custom_call.1']
    #allocation6 [shape = 'u8[786432]{0}', space=vmem, size = 0xc0000, scoped, tag = 'output window, operand 0']
    %8 = vsyncpa [#allocation4], 0
    %s9 = scalar_lea.sflag [#allocation4], 1
    %10 = vsyncpa %s9, 0
    %11 = vsyncpa [#allocation5], 0
    %s12 = scalar_lea.sflag [#allocation5], 1
    %13 = vsyncpa %s12, 0
    loop: start=0, step=1, limit=4
    $region2: #{tpu_custom_call.1} parent=1 // loop_pre_header
      _
    $region3: #{tpu_custom_call.1} parent=1 // loop_header
      %s15 = sphi 0, %s19
      %p16 = scmp.ge.s32.totalorder %s15, 4
      %s23 = sphi 0, %s23
      %s25 = sphi 0, %s23
      %s26 = sphi 0, %s25
      %s40 = sphi 0, %s26
      %s44 = sphi 0, %s44
      %s46 = sphi 0, %s44
      %s47 = sphi 0, %s46
      %s61 = sphi 0, %s47
      %s67 = sphi 0, %s69
      %s70 = sphi 0, %s67
      %s71 = sphi 0, %s70
      %s87 = sphi 0, %s71
      %s93 = sphi 0, %s95
      %s96 = sphi 0, %s93
      %s97 = sphi 0, %s96
      %s113 = sphi 0, %s97
    $region4: #{tpu_custom_call.1} parent=1 // loop_header_branch
      %18 = sbr.rel (%p16) target = $region8
    $region5: #{tpu_custom_call.1} parent=1 // loop_body
      %s20 = ssub.s32 %s15, 1
      %s21 = ssub.s32 %s15, 2
      %s22 = sadd.s32 %s15, 1
      %s24 = sadd.s32 %s23, 1
      %p27 = scmp.eq.s32.totalorder %s15, 1
      %p28 = scmp.ne.s32.totalorder %s23, %s25
      %p29 = scmp.eq.s32.totalorder %s15, 0
      %p30 = por %p28, %p29
      %p31 = scmp.ne.s32.totalorder %s23, %s25
      %p32 = scmp.eq.s32.totalorder %s20, 1
      %p33 = por %p31, %p32
      %p34 = scmp.ne.s32.totalorder %s25, %s26
      %p35 = scmp.eq.s32.totalorder %s20, 0
      %p36 = por %p34, %p35
      %p37 = scmp.ne.s32.totalorder %s25, %s26
      %p38 = scmp.eq.s32.totalorder %s21, 1
      %p39 = por %p37, %p38
      %p41 = scmp.ne.s32.totalorder %s26, %s40
      %p42 = scmp.eq.s32.totalorder %s21, 0
      %p43 = por %p41, %p42
      %s45 = sadd.s32 %s44, 1
      %p48 = scmp.eq.s32.totalorder %s15, 1
      %p49 = scmp.ne.s32.totalorder %s44, %s46
      %p50 = scmp.eq.s32.totalorder %s15, 0
      %p51 = por %p49, %p50
      %p52 = scmp.ne.s32.totalorder %s44, %s46
      %p53 = scmp.eq.s32.totalorder %s20, 1
      %p54 = por %p52, %p53
      %p55 = scmp.ne.s32.totalorder %s46, %s47
      %p56 = scmp.eq.s32.totalorder %s20, 0
      %p57 = por %p55, %p56
      %p58 = scmp.ne.s32.totalorder %s46, %s47
      %p59 = scmp.eq.s32.totalorder %s21, 1
      %p60 = por %p58, %p59
      %p62 = scmp.ne.s32.totalorder %s47, %s61
      %p63 = scmp.eq.s32.totalorder %s21, 0
      %p64 = por %p62, %p63
      %s65 = ssub.s32 %s15, %s22
      %p66 = scmp.eq.s32.totalorder %s65, 0
      %s68 = sadd.s32 %s67, 1
      %s69 = scalar_select %p66, %s67, %s68
      %p72 = pneg %p66
      %p73 = scmp.eq.s32.totalorder %s15, 1
      %p74 = por %p72, %p73
      %p75 = scmp.ne.s32.totalorder %s67, %s70
      %p76 = scmp.eq.s32.totalorder %s15, 0
      %p77 = por %p75, %p76
      %p78 = scmp.ne.s32.totalorder %s67, %s70
      %p79 = scmp.eq.s32.totalorder %s20, 1
      %p80 = por %p78, %p79
      %p81 = scmp.ne.s32.totalorder %s70, %s71
      %p82 = scmp.eq.s32.totalorder %s20, 0
      %p83 = por %p81, %p82
      %p84 = scmp.ne.s32.totalorder %s70, %s71
      %p85 = scmp.eq.s32.totalorder %s21, 1
      %p86 = por %p84, %p85
      %p88 = scmp.ne.s32.totalorder %s71, %s87
      %p89 = scmp.eq.s32.totalorder %s21, 0
      %p90 = por %p88, %p89
      %s91 = ssub.s32 %s15, %s22
      %p92 = scmp.eq.s32.totalorder %s91, 0
      %s94 = sadd.s32 %s93, 1
      %s95 = scalar_select %p92, %s93, %s94
      %p98 = pneg %p92
      %p99 = scmp.eq.s32.totalorder %s15, 1
      %p100 = por %p98, %p99
      %p101 = scmp.ne.s32.totalorder %s93, %s96
      %p102 = scmp.eq.s32.totalorder %s15, 0
      %p103 = por %p101, %p102
      %p104 = scmp.ne.s32.totalorder %s93, %s96
      %p105 = scmp.eq.s32.totalorder %s20, 1
      %p106 = por %p104, %p105
      %p107 = scmp.ne.s32.totalorder %s96, %s97
      %p108 = scmp.eq.s32.totalorder %s20, 0
      %p109 = por %p107, %p108
      %p110 = scmp.ne.s32.totalorder %s96, %s97
      %p111 = scmp.eq.s32.totalorder %s21, 1
      %p112 = por %p110, %p111
      %p114 = scmp.ne.s32.totalorder %s97, %s113
      %p115 = scmp.eq.s32.totalorder %s21, 0
      %p116 = por %p114, %p115
      %p117 = scmp.le.s32.totalorder 1, %s15
      %p118 = scmp.lt.s32.totalorder %s15, 3
      %p119 = pnand %p117, %p118
      %p120 = pneg %p119
      // Predicated region
      $region9: #{tpu_custom_call.1} parent=5 // pred_check
        _
      $region10: #{tpu_custom_call.1} parent=5 // pred_check_branch
        %122 = sbr.rel (%p119) target = $region12
      $region11: #{tpu_custom_call.1} parent=5 // pred_region
        %s123 = ssub.s32 %s15, 1
        // Predicated region
        $region13: #{tpu_custom_call.1} parent=11 // pred_check
          %p124 = pneg %p36
        $region14: #{tpu_custom_call.1} parent=11 // pred_check_branch
          %126 = sbr.rel (%p124) target = $region16
        $region15: #{tpu_custom_call.1} parent=11 // pred_region
          _
        $region16: #{tpu_custom_call.1} parent=11 // pred_fallthru
          _
        // Predicated region
        $region17: #{tpu_custom_call.1} parent=11 // pred_check
          %p127 = pneg %p57
        $region18: #{tpu_custom_call.1} parent=11 // pred_check_branch
          %129 = sbr.rel (%p127) target = $region20
        $region19: #{tpu_custom_call.1} parent=11 // pred_region
          _
        $region20: #{tpu_custom_call.1} parent=11 // pred_fallthru
          _
      $region12: #{tpu_custom_call.1} parent=5 // pred_fallthru
        _
      %p130 = scmp.lt.s32.totalorder %s15, 2
      // Predicated region
      $region21: #{tpu_custom_call.1} parent=5 // pred_check
        %p131 = pneg %p130
      $region22: #{tpu_custom_call.1} parent=5 // pred_check_branch
        %133 = sbr.rel (%p131) target = $region24
      $region23: #{tpu_custom_call.1} parent=5 // pred_region
        // Predicated region
        $region25: #{tpu_custom_call.1} parent=23 // pred_check
          %p134 = pneg %p77
        $region26: #{tpu_custom_call.1} parent=23 // pred_check_branch
          %136 = sbr.rel (%p134) target = $region28
        $region27: #{tpu_custom_call.1} parent=23 // pred_region
          %s137 = sand.u32 %s67, 1
          %s138 = scalar_lea.sflag [#allocation4], %s137
          %s139 = sand.u32 %s67, 1
          %s140 = smul.addr %s139, 124
          %s141 = scalar_lea.vmem [#allocation3], %s140
          %s143 = ssub.s32 1984, 1984
          %144 = vsyncadd %s138, %s143
          %s145 = smul.addr %s15, 31
          %s146 = smul.addr %s145, 64
          %s147 = scalar_lea.hbm %s2, %s146
          %s149 = sshll.u32 %s141, 4
          %s150 = int_to_ptr.vmem [resolvable:$true] %s149
          %152 = dma.hbm_to_vmem [thread:$0]  %s147, 1984, %s150, %s138
        $region28: #{tpu_custom_call.1} parent=23 // pred_fallthru
          _
      $region24: #{tpu_custom_call.1} parent=5 // pred_fallthru
        _
      %p153 = scmp.le.s32.totalorder 1, %s15
      %p154 = scmp.lt.s32.totalorder %s15, 3
      %p155 = pnand %p153, %p154
      %p156 = pneg %p155
      // Predicated region
      $region29: #{tpu_custom_call.1} parent=5 // pred_check
        _
      $region30: #{tpu_custom_call.1} parent=5 // pred_check_branch
        %158 = sbr.rel (%p155) target = $region32
      $region31: #{tpu_custom_call.1} parent=5 // pred_region
        %s159 = ssub.s32 %s15, 1
        %s160 = sand.u32 %s70, 1
        %s161 = scalar_lea.sflag [#allocation4], %s160
        %s162 = sand.u32 %s70, 1
        %s163 = smul.addr %s162, 124
        %s164 = scalar_lea.vmem [#allocation3], %s163
        // Predicated region
        $region33: #{tpu_custom_call.1} parent=31 // pred_check
          %p165 = pneg %p83
        $region34: #{tpu_custom_call.1} parent=31 // pred_check_branch
          %167 = sbr.rel (%p165) target = $region36
        $region35: #{tpu_custom_call.1} parent=31 // pred_region
          %168 = dma.done %s161, 1984
        $region36: #{tpu_custom_call.1} parent=31 // pred_fallthru
          _
        %p169 = pneg %p36
        %p170 = pneg %p33
        %p171 = pneg %p57
        %p172 = pneg %p54
        %s173 = sand.u32 %s70, 1
        %s174 = scalar_lea.sflag [#allocation4], %s173
        %s175 = sand.u32 %s70, 1
        %s176 = smul.addr %s175, 124
        %s177 = scalar_lea.vmem [#allocation3], %s176
        %p178 = pneg %p83
        %p179 = pneg %p80
        %p180 = pneg %p109
        %p181 = pneg %p106
        %s182 = sand.u32 %s96, 1
        %s183 = scalar_lea.sflag [#allocation5], %s182
        %s184 = sand.u32 %s96, 1
        %s185 = smul.addr %s184, 768
        %s186 = scalar_lea.vmem [#allocation6], %s185
        %v187 = vld [vmem:[%s0] sm:$0xff]
        %v188 = vld [vmem:[%s0 + $0x8] sm:$0xff]
        %v189 = vld [vmem:[%s0 + $0x10] sm:$0xff]
        %v190 = vld [vmem:[%s0 + $0x18] sm:$0xff]
        %v191 = vld [vmem:[%s1] sm:$0xff]
        %v192 = vld [vmem:[%s1 + $0x8] sm:$0xff]
        %v193 = vld [vmem:[%s1 + $0x10] sm:$0xff]
        %v194 = vld [vmem:[%s1 + $0x18] sm:$0xff]
        %v195 = vld [vmem:[%s164] sm:$0xff]
        %v196 = vld [vmem:[%s164 + $0x8] sm:$0xff]
        %v197 = vld [vmem:[%s164 + $0x10] sm:$0xff]
        %v198 = vld [vmem:[%s164 + $0x18] sm:$0xff]
        %v203 = vcombine.high %v195, %v195
        %v204 = vcombine.high %v196, %v196
        %v205 = vcombine.high %v197, %v197
        %v206 = vcombine.high %v198, %v198
        %211 = vst [vmem:[#allocation2] sm:$0xf] %v195
        %212 = vst [vmem:[#allocation2 + $0x8] sm:$0xf] %v203
        %213 = vst [vmem:[#allocation2 + $0x10] sm:$0xf] %v196
        %214 = vst [vmem:[#allocation2 + $0x18] sm:$0xf] %v204
        %215 = vst [vmem:[#allocation2 + $0x20] sm:$0xf] %v197
        %216 = vst [vmem:[#allocation2 + $0x28] sm:$0xf] %v205
        %217 = vst [vmem:[#allocation2 + $0x30] sm:$0xf] %v198
        %218 = vst [vmem:[#allocation2 + $0x38] sm:$0xf] %v206
        %v219 = vld [vmem:[%s164] sm:$0xff]
        %v220 = vld [vmem:[%s164 + $0x8] sm:$0xff]
        %v221 = vld [vmem:[%s164 + $0x10] sm:$0xff]
        %v222 = vld [vmem:[%s164 + $0x18] sm:$0xff]
        %v223 = vld [vmem:[%s164 + $0x20] sm:$0xf]
        %v229 = vcombine.low %v219, %v219
        %v230 = vcombine.low %v220, %v220
        %v231 = vcombine.low %v221, %v221
        %v232 = vcombine.low %v222, %v222
        %v233 = vcombine.low %v223, %v223
        %234 = vrot.lane.b32.xlu0 %v229, 127
        %v235 = vpop.permute.xlu0 %234
        %236 = vrot.lane.b32.xlu0 %v219, 127
        %v237 = vpop.permute.xlu0 %236
        %238 = vrot.lane.b32.xlu0 %v230, 127
        %v239 = vpop.permute.xlu0 %238
        %240 = vrot.lane.b32.xlu0 %v220, 127
        %v241 = vpop.permute.xlu0 %240
        %242 = vrot.lane.b32.xlu0 %v231, 127
        %v243 = vpop.permute.xlu0 %242
        %244 = vrot.lane.b32.xlu0 %v221, 127
        %v245 = vpop.permute.xlu0 %244
        %246 = vrot.lane.b32.xlu0 %v232, 127
        %v247 = vpop.permute.xlu0 %246
        %248 = vrot.lane.b32.xlu0 %v222, 127
        %v249 = vpop.permute.xlu0 %248
        %250 = vrot.lane.b32.xlu0 %v233, 127
        %v251 = vpop.permute.xlu0 %250
        %vm252 = vcmask 1039360
        %v253 = vsel %vm252, %v235, %v237
        %v254 = vsel %vm252, %v237, %v239
        %v255 = vsel %vm252, %v239, %v241
        %v256 = vsel %vm252, %v241, %v243
        %v257 = vsel %vm252, %v243, %v245
        %v258 = vsel %vm252, %v245, %v247
        %v259 = vsel %vm252, %v247, %v249
        %v260 = vsel %vm252, %v249, %v251
        %269 = vst [vmem:[#allocation2] sm:$0xf0] %v253
        %270 = vst [vmem:[#allocation2 + $0x8] sm:$0xf0] %v254
        %271 = vst [vmem:[#allocation2 + $0x10] sm:$0xf0] %v255
        %272 = vst [vmem:[#allocation2 + $0x18] sm:$0xf0] %v256
        %273 = vst [vmem:[#allocation2 + $0x20] sm:$0xf0] %v257
        %274 = vst [vmem:[#allocation2 + $0x28] sm:$0xf0] %v258
        %275 = vst [vmem:[#allocation2 + $0x30] sm:$0xf0] %v259
        %276 = vst [vmem:[#allocation2 + $0x38] sm:$0xf0] %v260
        %v277 = vld [vmem:[%s164] sm:$0xff]
        %v278 = vld [vmem:[%s164 + $0x8] sm:$0xff]
        %v279 = vld [vmem:[%s164 + $0x10] sm:$0xff]
        %v280 = vld [vmem:[%s164 + $0x18] sm:$0xff]
        %v281 = vld [vmem:[%s164 + $0x20] sm:$0xf]
        %v287 = vcombine.high %v277, %v277
        %v288 = vcombine.high %v278, %v278
        %v289 = vcombine.high %v279, %v279
        %v290 = vcombine.high %v280, %v280
        %291 = vrot.lane.b32.xlu0 %v277, 126
        %v292 = vpop.permute.xlu0 %291
        %293 = vrot.lane.b32.xlu0 %v287, 126
        %v294 = vpop.permute.xlu0 %293
        %295 = vrot.lane.b32.xlu0 %v278, 126
        %v296 = vpop.permute.xlu0 %295
        %297 = vrot.lane.b32.xlu0 %v288, 126
        %v298 = vpop.permute.xlu0 %297
        %299 = vrot.lane.b32.xlu0 %v279, 126
        %v300 = vpop.permute.xlu0 %299
        %301 = vrot.lane.b32.xlu0 %v289, 126
        %v302 = vpop.permute.xlu0 %301
        %303 = vrot.lane.b32.xlu0 %v280, 126
        %v304 = vpop.permute.xlu0 %303
        %305 = vrot.lane.b32.xlu0 %v290, 126
        %v306 = vpop.permute.xlu0 %305
        %307 = vrot.lane.b32.xlu0 %v281, 126
        %v308 = vpop.permute.xlu0 %307
        %vm309 = vcmask 1031168
        %v310 = vsel %vm309, %v292, %v294
        %v311 = vsel %vm309, %v294, %v296
        %v312 = vsel %vm309, %v296, %v298
        %v313 = vsel %vm309, %v298, %v300
        %v314 = vsel %vm309, %v300, %v302
        %v315 = vsel %vm309, %v302, %v304
        %v316 = vsel %vm309, %v304, %v306
        %v317 = vsel %vm309, %v306, %v308
        %326 = vst [vmem:[#allocation2 + $0x40] sm:$0xf] %v310
        %327 = vst [vmem:[#allocation2 + $0x48] sm:$0xf] %v311
        %328 = vst [vmem:[#allocation2 + $0x50] sm:$0xf] %v312
        %329 = vst [vmem:[#allocation2 + $0x58] sm:$0xf] %v313
        %330 = vst [vmem:[#allocation2 + $0x60] sm:$0xf] %v314
        %331 = vst [vmem:[#allocation2 + $0x68] sm:$0xf] %v315
        %332 = vst [vmem:[#allocation2 + $0x70] sm:$0xf] %v316
        %333 = vst [vmem:[#allocation2 + $0x78] sm:$0xf] %v317
        %v334 = vld [vmem:[%s164] sm:$0xff]
        %v335 = vld [vmem:[%s164 + $0x8] sm:$0xff]
        %v336 = vld [vmem:[%s164 + $0x10] sm:$0xff]
        %v337 = vld [vmem:[%s164 + $0x18] sm:$0xff]
        %v338 = vld [vmem:[%s164 + $0x20] sm:$0xf]
        %v344 = vcombine.low %v334, %v334
        %v345 = vcombine.low %v335, %v335
        %v346 = vcombine.low %v336, %v336
        %v347 = vcombine.low %v337, %v337
        %v348 = vcombine.low %v338, %v338
        %349 = vrot.lane.b32.xlu0 %v344, 110
        %v350 = vpop.permute.xlu0 %349
        %351 = vrot.lane.b32.xlu0 %v334, 110
        %v352 = vpop.permute.xlu0 %351
        %353 = vrot.lane.b32.xlu0 %v345, 110
        %v354 = vpop.permute.xlu0 %353
        %355 = vrot.lane.b32.xlu0 %v335, 110
        %v356 = vpop.permute.xlu0 %355
        %357 = vrot.lane.b32.xlu0 %v346, 110
        %v358 = vpop.permute.xlu0 %357
        %359 = vrot.lane.b32.xlu0 %v336, 110
        %v360 = vpop.permute.xlu0 %359
        %361 = vrot.lane.b32.xlu0 %v347, 110
        %v362 = vpop.permute.xlu0 %361
        %363 = vrot.lane.b32.xlu0 %v337, 110
        %v364 = vpop.permute.xlu0 %363
        %365 = vrot.lane.b32.xlu0 %v348, 110
        %v366 = vpop.permute.xlu0 %365
        %vm367 = vcmask 900096
        %v368 = vsel %vm367, %v350, %v352
        %v369 = vsel %vm367, %v352, %v354
        %v370 = vsel %vm367, %v354, %v356
        %v371 = vsel %vm367, %v356, %v358
        %v372 = vsel %vm367, %v358, %v360
        %v373 = vsel %vm367, %v360, %v362
        %v374 = vsel %vm367, %v362, %v364
        %v375 = vsel %vm367, %v364, %v366
        %384 = vst [vmem:[#allocation2 + $0x40] sm:$0xf0] %v368
        %385 = vst [vmem:[#allocation2 + $0x48] sm:$0xf0] %v369
        %386 = vst [vmem:[#allocation2 + $0x50] sm:$0xf0] %v370
        %387 = vst [vmem:[#allocation2 + $0x58] sm:$0xf0] %v371
        %388 = vst [vmem:[#allocation2 + $0x60] sm:$0xf0] %v372
        %389 = vst [vmem:[#allocation2 + $0x68] sm:$0xf0] %v373
        %390 = vst [vmem:[#allocation2 + $0x70] sm:$0xf0] %v374
        %391 = vst [vmem:[#allocation2 + $0x78] sm:$0xf0] %v375
        %v392 = vld [vmem:[%s164] sm:$0xff]
        %v393 = vld [vmem:[%s164 + $0x8] sm:$0xff]
        %v394 = vld [vmem:[%s164 + $0x10] sm:$0xff]
        %v395 = vld [vmem:[%s164 + $0x18] sm:$0xff]
        %v396 = vld [vmem:[%s164 + $0x20] sm:$0xf]
        %v402 = vcombine.high %v392, %v392
        %v403 = vcombine.high %v393, %v393
        %v404 = vcombine.high %v394, %v394
        %v405 = vcombine.high %v395, %v395
        %406 = vrot.lane.b32.xlu0 %v392, 109
        %v407 = vpop.permute.xlu0 %406
        %408 = vrot.lane.b32.xlu0 %v402, 109
        %v409 = vpop.permute.xlu0 %408
        %410 = vrot.lane.b32.xlu0 %v393, 109
        %v411 = vpop.permute.xlu0 %410
        %412 = vrot.lane.b32.xlu0 %v403, 109
        %v413 = vpop.permute.xlu0 %412
        %414 = vrot.lane.b32.xlu0 %v394, 109
        %v415 = vpop.permute.xlu0 %414
        %416 = vrot.lane.b32.xlu0 %v404, 109
        %v417 = vpop.permute.xlu0 %416
        %418 = vrot.lane.b32.xlu0 %v395, 109
        %v419 = vpop.permute.xlu0 %418
        %420 = vrot.lane.b32.xlu0 %v405, 109
        %v421 = vpop.permute.xlu0 %420
        %422 = vrot.lane.b32.xlu0 %v396, 109
        %v423 = vpop.permute.xlu0 %422
        %vm424 = vcmask 891904
        %v425 = vsel %vm424, %v407, %v409
        %v426 = vsel %vm424, %v409, %v411
        %v427 = vsel %vm424, %v411, %v413
        %v428 = vsel %vm424, %v413, %v415
        %v429 = vsel %vm424, %v415, %v417
        %v430 = vsel %vm424, %v417, %v419
        %v431 = vsel %vm424, %v419, %v421
        %v432 = vsel %vm424, %v421, %v423
        %441 = vst [vmem:[#allocation2 + $0x80] sm:$0xf] %v425
        %442 = vst [vmem:[#allocation2 + $0x88] sm:$0xf] %v426
        %443 = vst [vmem:[#allocation2 + $0x90] sm:$0xf] %v427
        %444 = vst [vmem:[#allocation2 + $0x98] sm:$0xf] %v428
        %445 = vst [vmem:[#allocation2 + $0xa0] sm:$0xf] %v429
        %446 = vst [vmem:[#allocation2 + $0xa8] sm:$0xf] %v430
        %447 = vst [vmem:[#allocation2 + $0xb0] sm:$0xf] %v431
        %448 = vst [vmem:[#allocation2 + $0xb8] sm:$0xf] %v432
        %v449 = vld [vmem:[%s164] sm:$0xff]
        %v450 = vld [vmem:[%s164 + $0x8] sm:$0xff]
        %v451 = vld [vmem:[%s164 + $0x10] sm:$0xff]
        %v452 = vld [vmem:[%s164 + $0x18] sm:$0xff]
        %v453 = vld [vmem:[%s164 + $0x20] sm:$0xf]
        %v459 = vcombine.low %v449, %v449
        %v460 = vcombine.low %v450, %v450
        %v461 = vcombine.low %v451, %v451
        %v462 = vcombine.low %v452, %v452
        %v463 = vcombine.low %v453, %v453
        %464 = vrot.lane.b32.xlu0 %v459, 108
        %v465 = vpop.permute.xlu0 %464
        %466 = vrot.lane.b32.xlu0 %v449, 108
        %v467 = vpop.permute.xlu0 %466
        %468 = vrot.lane.b32.xlu0 %v460, 108
        %v469 = vpop.permute.xlu0 %468
        %470 = vrot.lane.b32.xlu0 %v450, 108
        %v471 = vpop.permute.xlu0 %470
        %472 = vrot.lane.b32.xlu0 %v461, 108
        %v473 = vpop.permute.xlu0 %472
        %474 = vrot.lane.b32.xlu0 %v451, 108
        %v475 = vpop.permute.xlu0 %474
        %476 = vrot.lane.b32.xlu0 %v462, 108
        %v477 = vpop.permute.xlu0 %476
        %478 = vrot.lane.b32.xlu0 %v452, 108
        %v479 = vpop.permute.xlu0 %478
        %480 = vrot.lane.b32.xlu0 %v463, 108
        %v481 = vpop.permute.xlu0 %480
        %vm482 = vcmask 883712
        %v483 = vsel %vm482, %v465, %v467
        %v484 = vsel %vm482, %v467, %v469
        %v485 = vsel %vm482, %v469, %v471
        %v486 = vsel %vm482, %v471, %v473
        %v487 = vsel %vm482, %v473, %v475
        %v488 = vsel %vm482, %v475, %v477
        %v489 = vsel %vm482, %v477, %v479
        %v490 = vsel %vm482, %v479, %v481
        %499 = vst [vmem:[#allocation2 + $0x80] sm:$0xf0] %v483
        %500 = vst [vmem:[#allocation2 + $0x88] sm:$0xf0] %v484
        %501 = vst [vmem:[#allocation2 + $0x90] sm:$0xf0] %v485
        %502 = vst [vmem:[#allocation2 + $0x98] sm:$0xf0] %v486
        %503 = vst [vmem:[#allocation2 + $0xa0] sm:$0xf0] %v487
        %504 = vst [vmem:[#allocation2 + $0xa8] sm:$0xf0] %v488
        %505 = vst [vmem:[#allocation2 + $0xb0] sm:$0xf0] %v489
        %506 = vst [vmem:[#allocation2 + $0xb8] sm:$0xf0] %v490
        %v507 = vld [vmem:[%s164] sm:$0xff]
        %v508 = vld [vmem:[%s164 + $0x8] sm:$0xff]
        %v509 = vld [vmem:[%s164 + $0x10] sm:$0xff]
        %v510 = vld [vmem:[%s164 + $0x18] sm:$0xff]
        %v511 = vld [vmem:[%s164 + $0x20] sm:$0xf]
        %v517 = vcombine.high %v507, %v507
        %v518 = vcombine.high %v508, %v508
        %v519 = vcombine.high %v509, %v509
        %v520 = vcombine.high %v510, %v510
        %521 = vrot.lane.b32.xlu0 %v507, 92
        %v522 = vpop.permute.xlu0 %521
        %523 = vrot.lane.b32.xlu0 %v517, 92
        %v524 = vpop.permute.xlu0 %523
        %525 = vrot.lane.b32.xlu0 %v508, 92
        %v526 = vpop.permute.xlu0 %525
        %527 = vrot.lane.b32.xlu0 %v518, 92
        %v528 = vpop.permute.xlu0 %527
        %529 = vrot.lane.b32.xlu0 %v509, 92
        %v530 = vpop.permute.xlu0 %529
        %531 = vrot.lane.b32.xlu0 %v519, 92
        %v532 = vpop.permute.xlu0 %531
        %533 = vrot.lane.b32.xlu0 %v510, 92
        %v534 = vpop.permute.xlu0 %533
        %535 = vrot.lane.b32.xlu0 %v520, 92
        %v536 = vpop.permute.xlu0 %535
        %537 = vrot.lane.b32.xlu0 %v511, 92
        %v538 = vpop.permute.xlu0 %537
        %vm539 = vcmask 752640
        %v540 = vsel %vm539, %v522, %v524
        %v541 = vsel %vm539, %v524, %v526
        %v542 = vsel %vm539, %v526, %v528
        %v543 = vsel %vm539, %v528, %v530
        %v544 = vsel %vm539, %v530, %v532
        %v545 = vsel %vm539, %v532, %v534
        %v546 = vsel %vm539, %v534, %v536
        %v547 = vsel %vm539, %v536, %v538
        %556 = vst [vmem:[#allocation2 + $0xc0] sm:$0xf] %v540
        %557 = vst [vmem:[#allocation2 + $0xc8] sm:$0xf] %v541
        %558 = vst [vmem:[#allocation2 + $0xd0] sm:$0xf] %v542
        %559 = vst [vmem:[#allocation2 + $0xd8] sm:$0xf] %v543
        %560 = vst [vmem:[#allocation2 + $0xe0] sm:$0xf] %v544
        %561 = vst [vmem:[#allocation2 + $0xe8] sm:$0xf] %v545
        %562 = vst [vmem:[#allocation2 + $0xf0] sm:$0xf] %v546
        %563 = vst [vmem:[#allocation2 + $0xf8] sm:$0xf] %v547
        %v564 = vld [vmem:[%s164] sm:$0xff]
        %v565 = vld [vmem:[%s164 + $0x8] sm:$0xff]
        %v566 = vld [vmem:[%s164 + $0x10] sm:$0xff]
        %v567 = vld [vmem:[%s164 + $0x18] sm:$0xff]
        %v568 = vld [vmem:[%s164 + $0x20] sm:$0xf]
        %v574 = vcombine.low %v564, %v564
        %v575 = vcombine.low %v565, %v565
        %v576 = vcombine.low %v566, %v566
        %v577 = vcombine.low %v567, %v567
        %v578 = vcombine.low %v568, %v568
        %579 = vrot.lane.b32.xlu0 %v574, 91
        %v580 = vpop.permute.xlu0 %579
        %581 = vrot.lane.b32.xlu0 %v564, 91
        %v582 = vpop.permute.xlu0 %581
        %583 = vrot.lane.b32.xlu0 %v575, 91
        %v584 = vpop.permute.xlu0 %583
        %585 = vrot.lane.b32.xlu0 %v565, 91
        %v586 = vpop.permute.xlu0 %585
        %587 = vrot.lane.b32.xlu0 %v576, 91
        %v588 = vpop.permute.xlu0 %587
        %589 = vrot.lane.b32.xlu0 %v566, 91
        %v590 = vpop.permute.xlu0 %589
        %591 = vrot.lane.b32.xlu0 %v577, 91
        %v592 = vpop.permute.xlu0 %591
        %593 = vrot.lane.b32.xlu0 %v567, 91
        %v594 = vpop.permute.xlu0 %593
        %595 = vrot.lane.b32.xlu0 %v578, 91
        %v596 = vpop.permute.xlu0 %595
        %vm597 = vcmask 744448
        %v598 = vsel %vm597, %v580, %v582
        %v599 = vsel %vm597, %v582, %v584
        %v600 = vsel %vm597, %v584, %v586
        %v601 = vsel %vm597, %v586, %v588
        %v602 = vsel %vm597, %v588, %v590
        %v603 = vsel %vm597, %v590, %v592
        %v604 = vsel %vm597, %v592, %v594
        %v605 = vsel %vm597, %v594, %v596
        %614 = vst [vmem:[#allocation2 + $0xc0] sm:$0xf0] %v598
        %615 = vst [vmem:[#allocation2 + $0xc8] sm:$0xf0] %v599
        %616 = vst [vmem:[#allocation2 + $0xd0] sm:$0xf0] %v600
        %617 = vst [vmem:[#allocation2 + $0xd8] sm:$0xf0] %v601
        %618 = vst [vmem:[#allocation2 + $0xe0] sm:$0xf0] %v602
        %619 = vst [vmem:[#allocation2 + $0xe8] sm:$0xf0] %v603
        %620 = vst [vmem:[#allocation2 + $0xf0] sm:$0xf0] %v604
        %621 = vst [vmem:[#allocation2 + $0xf8] sm:$0xf0] %v605
        %v622 = vld [vmem:[%s164] sm:$0xff]
        %v623 = vld [vmem:[%s164 + $0x8] sm:$0xff]
        %v624 = vld [vmem:[%s164 + $0x10] sm:$0xff]
        %v625 = vld [vmem:[%s164 + $0x18] sm:$0xff]
        %v626 = vld [vmem:[%s164 + $0x20] sm:$0xf]
        %v632 = vcombine.high %v622, %v622
        %v633 = vcombine.high %v623, %v623
        %v634 = vcombine.high %v624, %v624
        %v635 = vcombine.high %v625, %v625
        %636 = vrot.lane.b32.xlu0 %v622, 90
        %v637 = vpop.permute.xlu0 %636
        %638 = vrot.lane.b32.xlu0 %v632, 90
        %v639 = vpop.permute.xlu0 %638
        %640 = vrot.lane.b32.xlu0 %v623, 90
        %v641 = vpop.permute.xlu0 %640
        %642 = vrot.lane.b32.xlu0 %v633, 90
        %v643 = vpop.permute.xlu0 %642
        %644 = vrot.lane.b32.xlu0 %v624, 90
        %v645 = vpop.permute.xlu0 %644
        %646 = vrot.lane.b32.xlu0 %v634, 90
        %v647 = vpop.permute.xlu0 %646
        %648 = vrot.lane.b32.xlu0 %v625, 90
        %v649 = vpop.permute.xlu0 %648
        %650 = vrot.lane.b32.xlu0 %v635, 90
        %v651 = vpop.permute.xlu0 %650
        %652 = vrot.lane.b32.xlu0 %v626, 90
        %v653 = vpop.permute.xlu0 %652
        %vm654 = vcmask 736256
        %v655 = vsel %vm654, %v637, %v639
        %v656 = vsel %vm654, %v639, %v641
        %v657 = vsel %vm654, %v641, %v643
        %v658 = vsel %vm654, %v643, %v645
        %v659 = vsel %vm654, %v645, %v647
        %v660 = vsel %vm654, %v647, %v649
        %v661 = vsel %vm654, %v649, %v651
        %v662 = vsel %vm654, %v651, %v653
        %671 = vst [vmem:[#allocation2 + $0x100] sm:$0xf] %v655
        %672 = vst [vmem:[#allocation2 + $0x108] sm:$0xf] %v656
        %673 = vst [vmem:[#allocation2 + $0x110] sm:$0xf] %v657
        %674 = vst [vmem:[#allocation2 + $0x118] sm:$0xf] %v658
        %675 = vst [vmem:[#allocation2 + $0x120] sm:$0xf] %v659
        %676 = vst [vmem:[#allocation2 + $0x128] sm:$0xf] %v660
        %677 = vst [vmem:[#allocation2 + $0x130] sm:$0xf] %v661
        %678 = vst [vmem:[#allocation2 + $0x138] sm:$0xf] %v662
        %v679 = vld [vmem:[%s164 + $0x8] sm:$0xff]
        %v680 = vld [vmem:[%s164 + $0x10] sm:$0xff]
        %v681 = vld [vmem:[%s164 + $0x18] sm:$0xff]
        %v682 = vld [vmem:[%s164 + $0x20] sm:$0xff]
        %v683 = vld [vmem:[%s164 + $0x28] sm:$0xf]
        %v689 = vcombine.low %v679, %v679
        %v690 = vcombine.low %v680, %v680
        %v691 = vcombine.low %v681, %v681
        %v692 = vcombine.low %v682, %v682
        %v693 = vcombine.low %v683, %v683
        %694 = vrot.lane.b32.xlu0 %v689, 60
        %v695 = vpop.permute.xlu0 %694
        %696 = vrot.lane.b32.xlu0 %v679, 60
        %v697 = vpop.permute.xlu0 %696
        %698 = vrot.lane.b32.xlu0 %v690, 60
        %v699 = vpop.permute.xlu0 %698
        %700 = vrot.lane.b32.xlu0 %v680, 60
        %v701 = vpop.permute.xlu0 %700
        %702 = vrot.lane.b32.xlu0 %v691, 60
        %v703 = vpop.permute.xlu0 %702
        %704 = vrot.lane.b32.xlu0 %v681, 60
        %v705 = vpop.permute.xlu0 %704
        %706 = vrot.lane.b32.xlu0 %v692, 60
        %v707 = vpop.permute.xlu0 %706
        %708 = vrot.lane.b32.xlu0 %v682, 60
        %v709 = vpop.permute.xlu0 %708
        %710 = vrot.lane.b32.xlu0 %v693, 60
        %v711 = vpop.permute.xlu0 %710
        %vm712 = vcmask 490496
        %v713 = vsel %vm712, %v695, %v697
        %v714 = vsel %vm712, %v697, %v699
        %v715 = vsel %vm712, %v699, %v701
        %v716 = vsel %vm712, %v701, %v703
        %v717 = vsel %vm712, %v703, %v705
        %v718 = vsel %vm712, %v705, %v707
        %v719 = vsel %vm712, %v707, %v709
        %v720 = vsel %vm712, %v709, %v711
        %729 = vst [vmem:[#allocation2 + $0x100] sm:$0xf0] %v713
        %730 = vst [vmem:[#allocation2 + $0x108] sm:$0xf0] %v714
        %731 = vst [vmem:[#allocation2 + $0x110] sm:$0xf0] %v715
        %732 = vst [vmem:[#allocation2 + $0x118] sm:$0xf0] %v716
        %733 = vst [vmem:[#allocation2 + $0x120] sm:$0xf0] %v717
        %734 = vst [vmem:[#allocation2 + $0x128] sm:$0xf0] %v718
        %735 = vst [vmem:[#allocation2 + $0x130] sm:$0xf0] %v719
        %736 = vst [vmem:[#allocation2 + $0x138] sm:$0xf0] %v720
        %v737 = vld [vmem:[%s164 + $0x8] sm:$0xff]
        %v738 = vld [vmem:[%s164 + $0x10] sm:$0xff]
        %v739 = vld [vmem:[%s164 + $0x18] sm:$0xff]
        %v740 = vld [vmem:[%s164 + $0x20] sm:$0xff]
        %v741 = vld [vmem:[%s164 + $0x28] sm:$0xf]
        %v747 = vcombine.high %v737, %v737
        %v748 = vcombine.high %v738, %v738
        %v749 = vcombine.high %v739, %v739
        %v750 = vcombine.high %v740, %v740
        %751 = vrot.lane.b32.xlu0 %v737, 59
        %v752 = vpop.permute.xlu0 %751
        %753 = vrot.lane.b32.xlu0 %v747, 59
        %v754 = vpop.permute.xlu0 %753
        %755 = vrot.lane.b32.xlu0 %v738, 59
        %v756 = vpop.permute.xlu0 %755
        %757 = vrot.lane.b32.xlu0 %v748, 59
        %v758 = vpop.permute.xlu0 %757
        %759 = vrot.lane.b32.xlu0 %v739, 59
        %v760 = vpop.permute.xlu0 %759
        %761 = vrot.lane.b32.xlu0 %v749, 59
        %v762 = vpop.permute.xlu0 %761
        %763 = vrot.lane.b32.xlu0 %v740, 59
        %v764 = vpop.permute.xlu0 %763
        %765 = vrot.lane.b32.xlu0 %v750, 59
        %v766 = vpop.permute.xlu0 %765
        %767 = vrot.lane.b32.xlu0 %v741, 59
        %v768 = vpop.permute.xlu0 %767
        %vm769 = vcmask 482304
        %v770 = vsel %vm769, %v752, %v754
        %v771 = vsel %vm769, %v754, %v756
        %v772 = vsel %vm769, %v756, %v758
        %v773 = vsel %vm769, %v758, %v760
        %v774 = vsel %vm769, %v760, %v762
        %v775 = vsel %vm769, %v762, %v764
        %v776 = vsel %vm769, %v764, %v766
        %v777 = vsel %vm769, %v766, %v768
        %786 = vst [vmem:[#allocation2 + $0x140] sm:$0xf] %v770
        %787 = vst [vmem:[#allocation2 + $0x148] sm:$0xf] %v771
        %788 = vst [vmem:[#allocation2 + $0x150] sm:$0xf] %v772
        %789 = vst [vmem:[#allocation2 + $0x158] sm:$0xf] %v773
        %790 = vst [vmem:[#allocation2 + $0x160] sm:$0xf] %v774
        %791 = vst [vmem:[#allocation2 + $0x168] sm:$0xf] %v775
        %792 = vst [vmem:[#allocation2 + $0x170] sm:$0xf] %v776
        %793 = vst [vmem:[#allocation2 + $0x178] sm:$0xf] %v777
        %v794 = vld [vmem:[%s164 + $0x8] sm:$0xff]
        %v795 = vld [vmem:[%s164 + $0x10] sm:$0xff]
        %v796 = vld [vmem:[%s164 + $0x18] sm:$0xff]
        %v797 = vld [vmem:[%s164 + $0x20] sm:$0xff]
        %v798 = vld [vmem:[%s164 + $0x28] sm:$0xf]
        %v804 = vcombine.low %v794, %v794
        %v805 = vcombine.low %v795, %v795
        %v806 = vcombine.low %v796, %v796
        %v807 = vcombine.low %v797, %v797
        %v808 = vcombine.low %v798, %v798
        %809 = vrot.lane.b32.xlu0 %v804, 58
        %v810 = vpop.permute.xlu0 %809
        %811 = vrot.lane.b32.xlu0 %v794, 58
        %v812 = vpop.permute.xlu0 %811
        %813 = vrot.lane.b32.xlu0 %v805, 58
        %v814 = vpop.permute.xlu0 %813
        %815 = vrot.lane.b32.xlu0 %v795, 58
        %v816 = vpop.permute.xlu0 %815
        %817 = vrot.lane.b32.xlu0 %v806, 58
        %v818 = vpop.permute.xlu0 %817
        %819 = vrot.lane.b32.xlu0 %v796, 58
        %v820 = vpop.permute.xlu0 %819
        %821 = vrot.lane.b32.xlu0 %v807, 58
        %v822 = vpop.permute.xlu0 %821
        %823 = vrot.lane.b32.xlu0 %v797, 58
        %v824 = vpop.permute.xlu0 %823
        %825 = vrot.lane.b32.xlu0 %v808, 58
        %v826 = vpop.permute.xlu0 %825
        %vm827 = vcmask 474112
        %v828 = vsel %vm827, %v810, %v812
        %v829 = vsel %vm827, %v812, %v814
        %v830 = vsel %vm827, %v814, %v816
        %v831 = vsel %vm827, %v816, %v818
        %v832 = vsel %vm827, %v818, %v820
        %v833 = vsel %vm827, %v820, %v822
        %v834 = vsel %vm827, %v822, %v824
        %v835 = vsel %vm827, %v824, %v826
        %844 = vst [vmem:[#allocation2 + $0x140] sm:$0xf0] %v828
        %845 = vst [vmem:[#allocation2 + $0x148] sm:$0xf0] %v829
        %846 = vst [vmem:[#allocation2 + $0x150] sm:$0xf0] %v830
        %847 = vst [vmem:[#allocation2 + $0x158] sm:$0xf0] %v831
        %848 = vst [vmem:[#allocation2 + $0x160] sm:$0xf0] %v832
        %849 = vst [vmem:[#allocation2 + $0x168] sm:$0xf0] %v833
        %850 = vst [vmem:[#allocation2 + $0x170] sm:$0xf0] %v834
        %851 = vst [vmem:[#allocation2 + $0x178] sm:$0xf0] %v835
        %v852 = vld [vmem:[%s164 + $0x8] sm:$0xff]
        %v853 = vld [vmem:[%s164 + $0x10] sm:$0xff]
        %v854 = vld [vmem:[%s164 + $0x18] sm:$0xff]
        %v855 = vld [vmem:[%s164 + $0x20] sm:$0xff]
        %v856 = vld [vmem:[%s164 + $0x28] sm:$0xf]
        %v862 = vcombine.high %v852, %v852
        %v863 = vcombine.high %v853, %v853
        %v864 = vcombine.high %v854, %v854
        %v865 = vcombine.high %v855, %v855
        %866 = vrot.lane.b32.xlu0 %v852, 42
        %v867 = vpop.permute.xlu0 %866
        %868 = vrot.lane.b32.xlu0 %v862, 42
        %v869 = vpop.permute.xlu0 %868
        %870 = vrot.lane.b32.xlu0 %v853, 42
        %v871 = vpop.permute.xlu0 %870
        %872 = vrot.lane.b32.xlu0 %v863, 42
        %v873 = vpop.permute.xlu0 %872
        %874 = vrot.lane.b32.xlu0 %v854, 42
        %v875 = vpop.permute.xlu0 %874
        %876 = vrot.lane.b32.xlu0 %v864, 42
        %v877 = vpop.permute.xlu0 %876
        %878 = vrot.lane.b32.xlu0 %v855, 42
        %v879 = vpop.permute.xlu0 %878
        %880 = vrot.lane.b32.xlu0 %v865, 42
        %v881 = vpop.permute.xlu0 %880
        %882 = vrot.lane.b32.xlu0 %v856, 42
        %v883 = vpop.permute.xlu0 %882
        %vm884 = vcmask 343040
        %v885 = vsel %vm884, %v867, %v869
        %v886 = vsel %vm884, %v869, %v871
        %v887 = vsel %vm884, %v871, %v873
        %v888 = vsel %vm884, %v873, %v875
        %v889 = vsel %vm884, %v875, %v877
        %v890 = vsel %vm884, %v877, %v879
        %v891 = vsel %vm884, %v879, %v881
        %v892 = vsel %vm884, %v881, %v883
        %901 = vst [vmem:[#allocation2 + $0x180] sm:$0xf] %v885
        %902 = vst [vmem:[#allocation2 + $0x188] sm:$0xf] %v886
        %903 = vst [vmem:[#allocation2 + $0x190] sm:$0xf] %v887
        %904 = vst [vmem:[#allocation2 + $0x198] sm:$0xf] %v888
        %905 = vst [vmem:[#allocation2 + $0x1a0] sm:$0xf] %v889
        %906 = vst [vmem:[#allocation2 + $0x1a8] sm:$0xf] %v890
        %907 = vst [vmem:[#allocation2 + $0x1b0] sm:$0xf] %v891
        %908 = vst [vmem:[#allocation2 + $0x1b8] sm:$0xf] %v892
        %v909 = vld [vmem:[%s164 + $0x8] sm:$0xff]
        %v910 = vld [vmem:[%s164 + $0x10] sm:$0xff]
        %v911 = vld [vmem:[%s164 + $0x18] sm:$0xff]
        %v912 = vld [vmem:[%s164 + $0x20] sm:$0xff]
        %v913 = vld [vmem:[%s164 + $0x28] sm:$0xf]
        %v919 = vcombine.low %v909, %v909
        %v920 = vcombine.low %v910, %v910
        %v921 = vcombine.low %v911, %v911
        %v922 = vcombine.low %v912, %v912
        %v923 = vcombine.low %v913, %v913
        %924 = vrot.lane.b32.xlu0 %v919, 41
        %v925 = vpop.permute.xlu0 %924
        %926 = vrot.lane.b32.xlu0 %v909, 41
        %v927 = vpop.permute.xlu0 %926
        %928 = vrot.lane.b32.xlu0 %v920, 41
        %v929 = vpop.permute.xlu0 %928
        %930 = vrot.lane.b32.xlu0 %v910, 41
        %v931 = vpop.permute.xlu0 %930
        %932 = vrot.lane.b32.xlu0 %v921, 41
        %v933 = vpop.permute.xlu0 %932
        %934 = vrot.lane.b32.xlu0 %v911, 41
        %v935 = vpop.permute.xlu0 %934
        %936 = vrot.lane.b32.xlu0 %v922, 41
        %v937 = vpop.permute.xlu0 %936
        %938 = vrot.lane.b32.xlu0 %v912, 41
        %v939 = vpop.permute.xlu0 %938
        %940 = vrot.lane.b32.xlu0 %v923, 41
        %v941 = vpop.permute.xlu0 %940
        %vm942 = vcmask 334848
        %v943 = vsel %vm942, %v925, %v927
        %v944 = vsel %vm942, %v927, %v929
        %v945 = vsel %vm942, %v929, %v931
        %v946 = vsel %vm942, %v931, %v933
        %v947 = vsel %vm942, %v933, %v935
        %v948 = vsel %vm942, %v935, %v937
        %v949 = vsel %vm942, %v937, %v939
        %v950 = vsel %vm942, %v939, %v941
        %959 = vst [vmem:[#allocation2 + $0x180] sm:$0xf0] %v943
        %960 = vst [vmem:[#allocation2 + $0x188] sm:$0xf0] %v944
        %961 = vst [vmem:[#allocation2 + $0x190] sm:$0xf0] %v945
        %962 = vst [vmem:[#allocation2 + $0x198] sm:$0xf0] %v946
        %963 = vst [vmem:[#allocation2 + $0x1a0] sm:$0xf0] %v947
        %964 = vst [vmem:[#allocation2 + $0x1a8] sm:$0xf0] %v948
        %965 = vst [vmem:[#allocation2 + $0x1b0] sm:$0xf0] %v949
        %966 = vst [vmem:[#allocation2 + $0x1b8] sm:$0xf0] %v950
        %v967 = vld [vmem:[%s164 + $0x8] sm:$0xff]
        %v968 = vld [vmem:[%s164 + $0x10] sm:$0xff]
        %v969 = vld [vmem:[%s164 + $0x18] sm:$0xff]
        %v970 = vld [vmem:[%s164 + $0x20] sm:$0xff]
        %v971 = vld [vmem:[%s164 + $0x28] sm:$0xf]
        %v977 = vcombine.high %v967, %v967
        %v978 = vcombine.high %v968, %v968
        %v979 = vcombine.high %v969, %v969
        %v980 = vcombine.high %v970, %v970
        %981 = vrot.lane.b32.xlu0 %v967, 40
        %v982 = vpop.permute.xlu0 %981
        %983 = vrot.lane.b32.xlu0 %v977, 40
        %v984 = vpop.permute.xlu0 %983
        %985 = vrot.lane.b32.xlu0 %v968, 40
        %v986 = vpop.permute.xlu0 %985
        %987 = vrot.lane.b32.xlu0 %v978, 40
        %v988 = vpop.permute.xlu0 %987
        %989 = vrot.lane.b32.xlu0 %v969, 40
        %v990 = vpop.permute.xlu0 %989
        %991 = vrot.lane.b32.xlu0 %v979, 40
        %v992 = vpop.permute.xlu0 %991
        %993 = vrot.lane.b32.xlu0 %v970, 40
        %v994 = vpop.permute.xlu0 %993
        %995 = vrot.lane.b32.xlu0 %v980, 40
        %v996 = vpop.permute.xlu0 %995
        %997 = vrot.lane.b32.xlu0 %v971, 40
        %v998 = vpop.permute.xlu0 %997
        %vm999 = vcmask 326656
        %v1000 = vsel %vm999, %v982, %v984
        %v1001 = vsel %vm999, %v984, %v986
        %v1002 = vsel %vm999, %v986, %v988
        %v1003 = vsel %vm999, %v988, %v990
        %v1004 = vsel %vm999, %v990, %v992
        %v1005 = vsel %vm999, %v992, %v994
        %v1006 = vsel %vm999, %v994, %v996
        %v1007 = vsel %vm999, %v996, %v998
        %1016 = vst [vmem:[#allocation2 + $0x1c0] sm:$0xf] %v1000
        %1017 = vst [vmem:[#allocation2 + $0x1c8] sm:$0xf] %v1001
        %1018 = vst [vmem:[#allocation2 + $0x1d0] sm:$0xf] %v1002
        %1019 = vst [vmem:[#allocation2 + $0x1d8] sm:$0xf] %v1003
        %1020 = vst [vmem:[#allocation2 + $0x1e0] sm:$0xf] %v1004
        %1021 = vst [vmem:[#allocation2 + $0x1e8] sm:$0xf] %v1005
        %1022 = vst [vmem:[#allocation2 + $0x1f0] sm:$0xf] %v1006
        %1023 = vst [vmem:[#allocation2 + $0x1f8] sm:$0xf] %v1007
        %v1024 = vld [vmem:[%s164 + $0x8] sm:$0xff]
        %v1025 = vld [vmem:[%s164 + $0x10] sm:$0xff]
        %v1026 = vld [vmem:[%s164 + $0x18] sm:$0xff]
        %v1027 = vld [vmem:[%s164 + $0x20] sm:$0xff]
        %v1028 = vld [vmem:[%s164 + $0x28] sm:$0xf]
        %v1034 = vcombine.low %v1024, %v1024
        %v1035 = vcombine.low %v1025, %v1025
        %v1036 = vcombine.low %v1026, %v1026
        %v1037 = vcombine.low %v1027, %v1027
        %v1038 = vcombine.low %v1028, %v1028
        %1039 = vrot.lane.b32.xlu0 %v1034, 24
        %v1040 = vpop.permute.xlu0 %1039
        %1041 = vrot.lane.b32.xlu0 %v1024, 24
        %v1042 = vpop.permute.xlu0 %1041
        %1043 = vrot.lane.b32.xlu0 %v1035, 24
        %v1044 = vpop.permute.xlu0 %1043
        %1045 = vrot.lane.b32.xlu0 %v1025, 24
        %v1046 = vpop.permute.xlu0 %1045
        %1047 = vrot.lane.b32.xlu0 %v1036, 24
        %v1048 = vpop.permute.xlu0 %1047
        %1049 = vrot.lane.b32.xlu0 %v1026, 24
        %v1050 = vpop.permute.xlu0 %1049
        %1051 = vrot.lane.b32.xlu0 %v1037, 24
        %v1052 = vpop.permute.xlu0 %1051
        %1053 = vrot.lane.b32.xlu0 %v1027, 24
        %v1054 = vpop.permute.xlu0 %1053
        %1055 = vrot.lane.b32.xlu0 %v1038, 24
        %v1056 = vpop.permute.xlu0 %1055
        %vm1057 = vcmask 195584
        %v1058 = vsel %vm1057, %v1040, %v1042
        %v1059 = vsel %vm1057, %v1042, %v1044
        %v1060 = vsel %vm1057, %v1044, %v1046
        %v1061 = vsel %vm1057, %v1046, %v1048
        %v1062 = vsel %vm1057, %v1048, %v1050
        %v1063 = vsel %vm1057, %v1050, %v1052
        %v1064 = vsel %vm1057, %v1052, %v1054
        %v1065 = vsel %vm1057, %v1054, %v1056
        %1074 = vst [vmem:[#allocation2 + $0x1c0] sm:$0xf0] %v1058
        %1075 = vst [vmem:[#allocation2 + $0x1c8] sm:$0xf0] %v1059
        %1076 = vst [vmem:[#allocation2 + $0x1d0] sm:$0xf0] %v1060
        %1077 = vst [vmem:[#allocation2 + $0x1d8] sm:$0xf0] %v1061
        %1078 = vst [vmem:[#allocation2 + $0x1e0] sm:$0xf0] %v1062
        %1079 = vst [vmem:[#allocation2 + $0x1e8] sm:$0xf0] %v1063
        %1080 = vst [vmem:[#allocation2 + $0x1f0] sm:$0xf0] %v1064
        %1081 = vst [vmem:[#allocation2 + $0x1f8] sm:$0xf0] %v1065
        %v1082 = vld [vmem:[%s164 + $0x8] sm:$0xff]
        %v1083 = vld [vmem:[%s164 + $0x10] sm:$0xff]
        %v1084 = vld [vmem:[%s164 + $0x18] sm:$0xff]
        %v1085 = vld [vmem:[%s164 + $0x20] sm:$0xff]
        %v1086 = vld [vmem:[%s164 + $0x28] sm:$0xf]
        %v1092 = vcombine.high %v1082, %v1082
        %v1093 = vcombine.high %v1083, %v1083
        %v1094 = vcombine.high %v1084, %v1084
        %v1095 = vcombine.high %v1085, %v1085
        %1096 = vrot.lane.b32.xlu0 %v1082, 23
        %v1097 = vpop.permute.xlu0 %1096
        %1098 = vrot.lane.b32.xlu0 %v1092, 23
        %v1099 = vpop.permute.xlu0 %1098
        %1100 = vrot.lane.b32.xlu0 %v1083, 23
        %v1101 = vpop.permute.xlu0 %1100
        %1102 = vrot.lane.b32.xlu0 %v1093, 23
        %v1103 = vpop.permute.xlu0 %1102
        %1104 = vrot.lane.b32.xlu0 %v1084, 23
        %v1105 = vpop.permute.xlu0 %1104
        %1106 = vrot.lane.b32.xlu0 %v1094, 23
        %v1107 = vpop.permute.xlu0 %1106
        %1108 = vrot.lane.b32.xlu0 %v1085, 23
        %v1109 = vpop.permute.xlu0 %1108
        %1110 = vrot.lane.b32.xlu0 %v1095, 23
        %v1111 = vpop.permute.xlu0 %1110
        %1112 = vrot.lane.b32.xlu0 %v1086, 23
        %v1113 = vpop.permute.xlu0 %1112
        %vm1114 = vcmask 187392
        %v1115 = vsel %vm1114, %v1097, %v1099
        %v1116 = vsel %vm1114, %v1099, %v1101
        %v1117 = vsel %vm1114, %v1101, %v1103
        %v1118 = vsel %vm1114, %v1103, %v1105
        %v1119 = vsel %vm1114, %v1105, %v1107
        %v1120 = vsel %vm1114, %v1107, %v1109
        %v1121 = vsel %vm1114, %v1109, %v1111
        %v1122 = vsel %vm1114, %v1111, %v1113
        %1131 = vst [vmem:[#allocation2 + $0x200] sm:$0xf] %v1115
        %1132 = vst [vmem:[#allocation2 + $0x208] sm:$0xf] %v1116
        %1133 = vst [vmem:[#allocation2 + $0x210] sm:$0xf] %v1117
        %1134 = vst [vmem:[#allocation2 + $0x218] sm:$0xf] %v1118
        %1135 = vst [vmem:[#allocation2 + $0x220] sm:$0xf] %v1119
        %1136 = vst [vmem:[#allocation2 + $0x228] sm:$0xf] %v1120
        %1137 = vst [vmem:[#allocation2 + $0x230] sm:$0xf] %v1121
        %1138 = vst [vmem:[#allocation2 + $0x238] sm:$0xf] %v1122
        %v1139 = vld [vmem:[%s164 + $0x8] sm:$0xff]
        %v1140 = vld [vmem:[%s164 + $0x10] sm:$0xff]
        %v1141 = vld [vmem:[%s164 + $0x18] sm:$0xff]
        %v1142 = vld [vmem:[%s164 + $0x20] sm:$0xff]
        %v1143 = vld [vmem:[%s164 + $0x28] sm:$0xf]
        %v1149 = vcombine.low %v1139, %v1139
        %v1150 = vcombine.low %v1140, %v1140
        %v1151 = vcombine.low %v1141, %v1141
        %v1152 = vcombine.low %v1142, %v1142
        %v1153 = vcombine.low %v1143, %v1143
        %1154 = vrot.lane.b32.xlu0 %v1149, 22
        %v1155 = vpop.permute.xlu0 %1154
        %1156 = vrot.lane.b32.xlu0 %v1139, 22
        %v1157 = vpop.permute.xlu0 %1156
        %1158 = vrot.lane.b32.xlu0 %v1150, 22
        %v1159 = vpop.permute.xlu0 %1158
        %1160 = vrot.lane.b32.xlu0 %v1140, 22
        %v1161 = vpop.permute.xlu0 %1160
        %1162 = vrot.lane.b32.xlu0 %v1151, 22
        %v1163 = vpop.permute.xlu0 %1162
        %1164 = vrot.lane.b32.xlu0 %v1141, 22
        %v1165 = vpop.permute.xlu0 %1164
        %1166 = vrot.lane.b32.xlu0 %v1152, 22
        %v1167 = vpop.permute.xlu0 %1166
        %1168 = vrot.lane.b32.xlu0 %v1142, 22
        %v1169 = vpop.permute.xlu0 %1168
        %1170 = vrot.lane.b32.xlu0 %v1153, 22
        %v1171 = vpop.permute.xlu0 %1170
        %vm1172 = vcmask 179200
        %v1173 = vsel %vm1172, %v1155, %v1157
        %v1174 = vsel %vm1172, %v1157, %v1159
        %v1175 = vsel %vm1172, %v1159, %v1161
        %v1176 = vsel %vm1172, %v1161, %v1163
        %v1177 = vsel %vm1172, %v1163, %v1165
        %v1178 = vsel %vm1172, %v1165, %v1167
        %v1179 = vsel %vm1172, %v1167, %v1169
        %v1180 = vsel %vm1172, %v1169, %v1171
        %1189 = vst [vmem:[#allocation2 + $0x200] sm:$0xf0] %v1173
        %1190 = vst [vmem:[#allocation2 + $0x208] sm:$0xf0] %v1174
        %1191 = vst [vmem:[#allocation2 + $0x210] sm:$0xf0] %v1175
        %1192 = vst [vmem:[#allocation2 + $0x218] sm:$0xf0] %v1176
        %1193 = vst [vmem:[#allocation2 + $0x220] sm:$0xf0] %v1177
        %1194 = vst [vmem:[#allocation2 + $0x228] sm:$0xf0] %v1178
        %1195 = vst [vmem:[#allocation2 + $0x230] sm:$0xf0] %v1179
        %1196 = vst [vmem:[#allocation2 + $0x238] sm:$0xf0] %v1180
        %v1197 = vld [vmem:[%s164 + $0x14] sm:$0xff]
        %v1198 = vld [vmem:[%s164 + $0x1c] sm:$0xff]
        %v1199 = vld [vmem:[%s164 + $0x24] sm:$0xff]
        %v1200 = vld [vmem:[%s164 + $0x2c] sm:$0xff]
        %v1201 = vld [vmem:[%s164 + $0x34] sm:$0xf]
        %v1207 = vcombine.high %v1197, %v1197
        %v1208 = vcombine.high %v1198, %v1198
        %v1209 = vcombine.high %v1199, %v1199
        %v1210 = vcombine.high %v1200, %v1200
        %1211 = vrot.lane.b32.xlu0 %v1197, 120
        %v1212 = vpop.permute.xlu0 %1211
        %1213 = vrot.lane.b32.xlu0 %v1207, 120
        %v1214 = vpop.permute.xlu0 %1213
        %1215 = vrot.lane.b32.xlu0 %v1198, 120
        %v1216 = vpop.permute.xlu0 %1215
        %1217 = vrot.lane.b32.xlu0 %v1208, 120
        %v1218 = vpop.permute.xlu0 %1217
        %1219 = vrot.lane.b32.xlu0 %v1199, 120
        %v1220 = vpop.permute.xlu0 %1219
        %1221 = vrot.lane.b32.xlu0 %v1209, 120
        %v1222 = vpop.permute.xlu0 %1221
        %1223 = vrot.lane.b32.xlu0 %v1200, 120
        %v1224 = vpop.permute.xlu0 %1223
        %1225 = vrot.lane.b32.xlu0 %v1210, 120
        %v1226 = vpop.permute.xlu0 %1225
        %1227 = vrot.lane.b32.xlu0 %v1201, 120
        %v1228 = vpop.permute.xlu0 %1227
        %vm1229 = vcmask 982016
        %v1230 = vsel %vm1229, %v1212, %v1214
        %v1231 = vsel %vm1229, %v1214, %v1216
        %v1232 = vsel %vm1229, %v1216, %v1218
        %v1233 = vsel %vm1229, %v1218, %v1220
        %v1234 = vsel %vm1229, %v1220, %v1222
        %v1235 = vsel %vm1229, %v1222, %v1224
        %v1236 = vsel %vm1229, %v1224, %v1226
        %v1237 = vsel %vm1229, %v1226, %v1228
        %1246 = vst [vmem:[#allocation2 + $0x240] sm:$0xf] %v1230
        %1247 = vst [vmem:[#allocation2 + $0x248] sm:$0xf] %v1231
        %1248 = vst [vmem:[#allocation2 + $0x250] sm:$0xf] %v1232
        %1249 = vst [vmem:[#allocation2 + $0x258] sm:$0xf] %v1233
        %1250 = vst [vmem:[#allocation2 + $0x260] sm:$0xf] %v1234
        %1251 = vst [vmem:[#allocation2 + $0x268] sm:$0xf] %v1235
        %1252 = vst [vmem:[#allocation2 + $0x270] sm:$0xf] %v1236
        %1253 = vst [vmem:[#allocation2 + $0x278] sm:$0xf] %v1237
        %v1254 = vld [vmem:[%s164 + $0x14] sm:$0xff]
        %v1255 = vld [vmem:[%s164 + $0x1c] sm:$0xff]
        %v1256 = vld [vmem:[%s164 + $0x24] sm:$0xff]
        %v1257 = vld [vmem:[%s164 + $0x2c] sm:$0xff]
        %v1258 = vld [vmem:[%s164 + $0x34] sm:$0xf]
        %v1264 = vcombine.low %v1254, %v1254
        %v1265 = vcombine.low %v1255, %v1255
        %v1266 = vcombine.low %v1256, %v1256
        %v1267 = vcombine.low %v1257, %v1257
        %v1268 = vcombine.low %v1258, %v1258
        %1269 = vrot.lane.b32.xlu0 %v1264, 119
        %v1270 = vpop.permute.xlu0 %1269
        %1271 = vrot.lane.b32.xlu0 %v1254, 119
        %v1272 = vpop.permute.xlu0 %1271
        %1273 = vrot.lane.b32.xlu0 %v1265, 119
        %v1274 = vpop.permute.xlu0 %1273
        %1275 = vrot.lane.b32.xlu0 %v1255, 119
        %v1276 = vpop.permute.xlu0 %1275
        %1277 = vrot.lane.b32.xlu0 %v1266, 119
        %v1278 = vpop.permute.xlu0 %1277
        %1279 = vrot.lane.b32.xlu0 %v1256, 119
        %v1280 = vpop.permute.xlu0 %1279
        %1281 = vrot.lane.b32.xlu0 %v1267, 119
        %v1282 = vpop.permute.xlu0 %1281
        %1283 = vrot.lane.b32.xlu0 %v1257, 119
        %v1284 = vpop.permute.xlu0 %1283
        %1285 = vrot.lane.b32.xlu0 %v1268, 119
        %v1286 = vpop.permute.xlu0 %1285
        %vm1287 = vcmask 973824
        %v1288 = vsel %vm1287, %v1270, %v1272
        %v1289 = vsel %vm1287, %v1272, %v1274
        %v1290 = vsel %vm1287, %v1274, %v1276
        %v1291 = vsel %vm1287, %v1276, %v1278
        %v1292 = vsel %vm1287, %v1278, %v1280
        %v1293 = vsel %vm1287, %v1280, %v1282
        %v1294 = vsel %vm1287, %v1282, %v1284
        %v1295 = vsel %vm1287, %v1284, %v1286
        %1304 = vst [vmem:[#allocation2 + $0x240] sm:$0xf0] %v1288
        %1305 = vst [vmem:[#allocation2 + $0x248] sm:$0xf0] %v1289
        %1306 = vst [vmem:[#allocation2 + $0x250] sm:$0xf0] %v1290
        %1307 = vst [vmem:[#allocation2 + $0x258] sm:$0xf0] %v1291
        %1308 = vst [vmem:[#allocation2 + $0x260] sm:$0xf0] %v1292
        %1309 = vst [vmem:[#allocation2 + $0x268] sm:$0xf0] %v1293
        %1310 = vst [vmem:[#allocation2 + $0x270] sm:$0xf0] %v1294
        %1311 = vst [vmem:[#allocation2 + $0x278] sm:$0xf0] %v1295
        %v1312 = vld [vmem:[%s164 + $0x14] sm:$0xff]
        %v1313 = vld [vmem:[%s164 + $0x1c] sm:$0xff]
        %v1314 = vld [vmem:[%s164 + $0x24] sm:$0xff]
        %v1315 = vld [vmem:[%s164 + $0x2c] sm:$0xff]
        %v1316 = vld [vmem:[%s164 + $0x34] sm:$0xf]
        %v1322 = vcombine.high %v1312, %v1312
        %v1323 = vcombine.high %v1313, %v1313
        %v1324 = vcombine.high %v1314, %v1314
        %v1325 = vcombine.high %v1315, %v1315
        %1326 = vrot.lane.b32.xlu0 %v1312, 118
        %v1327 = vpop.permute.xlu0 %1326
        %1328 = vrot.lane.b32.xlu0 %v1322, 118
        %v1329 = vpop.permute.xlu0 %1328
        %1330 = vrot.lane.b32.xlu0 %v1313, 118
        %v1331 = vpop.permute.xlu0 %1330
        %1332 = vrot.lane.b32.xlu0 %v1323, 118
        %v1333 = vpop.permute.xlu0 %1332
        %1334 = vrot.lane.b32.xlu0 %v1314, 118
        %v1335 = vpop.permute.xlu0 %1334
        %1336 = vrot.lane.b32.xlu0 %v1324, 118
        %v1337 = vpop.permute.xlu0 %1336
        %1338 = vrot.lane.b32.xlu0 %v1315, 118
        %v1339 = vpop.permute.xlu0 %1338
        %1340 = vrot.lane.b32.xlu0 %v1325, 118
        %v1341 = vpop.permute.xlu0 %1340
        %1342 = vrot.lane.b32.xlu0 %v1316, 118
        %v1343 = vpop.permute.xlu0 %1342
        %vm1344 = vcmask 965632
        %v1345 = vsel %vm1344, %v1327, %v1329
        %v1346 = vsel %vm1344, %v1329, %v1331
        %v1347 = vsel %vm1344, %v1331, %v1333
        %v1348 = vsel %vm1344, %v1333, %v1335
        %v1349 = vsel %vm1344, %v1335, %v1337
        %v1350 = vsel %vm1344, %v1337, %v1339
        %v1351 = vsel %vm1344, %v1339, %v1341
        %v1352 = vsel %vm1344, %v1341, %v1343
        %1361 = vst [vmem:[#allocation2 + $0x280] sm:$0xf] %v1345
        %1362 = vst [vmem:[#allocation2 + $0x288] sm:$0xf] %v1346
        %1363 = vst [vmem:[#allocation2 + $0x290] sm:$0xf] %v1347
        %1364 = vst [vmem:[#allocation2 + $0x298] sm:$0xf] %v1348
        %1365 = vst [vmem:[#allocation2 + $0x2a0] sm:$0xf] %v1349
        %1366 = vst [vmem:[#allocation2 + $0x2a8] sm:$0xf] %v1350
        %1367 = vst [vmem:[#allocation2 + $0x2b0] sm:$0xf] %v1351
        %1368 = vst [vmem:[#allocation2 + $0x2b8] sm:$0xf] %v1352
        %v1369 = vld [vmem:[%s164 + $0x14] sm:$0xff]
        %v1370 = vld [vmem:[%s164 + $0x1c] sm:$0xff]
        %v1371 = vld [vmem:[%s164 + $0x24] sm:$0xff]
        %v1372 = vld [vmem:[%s164 + $0x2c] sm:$0xff]
        %v1373 = vld [vmem:[%s164 + $0x34] sm:$0xf]
        %v1379 = vcombine.low %v1369, %v1369
        %v1380 = vcombine.low %v1370, %v1370
        %v1381 = vcombine.low %v1371, %v1371
        %v1382 = vcombine.low %v1372, %v1372
        %v1383 = vcombine.low %v1373, %v1373
        %1384 = vrot.lane.b32.xlu0 %v1379, 102
        %v1385 = vpop.permute.xlu0 %1384
        %1386 = vrot.lane.b32.xlu0 %v1369, 102
        %v1387 = vpop.permute.xlu0 %1386
        %1388 = vrot.lane.b32.xlu0 %v1380, 102
        %v1389 = vpop.permute.xlu0 %1388
        %1390 = vrot.lane.b32.xlu0 %v1370, 102
        %v1391 = vpop.permute.xlu0 %1390
        %1392 = vrot.lane.b32.xlu0 %v1381, 102
        %v1393 = vpop.permute.xlu0 %1392
        %1394 = vrot.lane.b32.xlu0 %v1371, 102
        %v1395 = vpop.permute.xlu0 %1394
        %1396 = vrot.lane.b32.xlu0 %v1382, 102
        %v1397 = vpop.permute.xlu0 %1396
        %1398 = vrot.lane.b32.xlu0 %v1372, 102
        %v1399 = vpop.permute.xlu0 %1398
        %1400 = vrot.lane.b32.xlu0 %v1383, 102
        %v1401 = vpop.permute.xlu0 %1400
        %vm1402 = vcmask 834560
        %v1403 = vsel %vm1402, %v1385, %v1387
        %v1404 = vsel %vm1402, %v1387, %v1389
        %v1405 = vsel %vm1402, %v1389, %v1391
        %v1406 = vsel %vm1402, %v1391, %v1393
        %v1407 = vsel %vm1402, %v1393, %v1395
        %v1408 = vsel %vm1402, %v1395, %v1397
        %v1409 = vsel %vm1402, %v1397, %v1399
        %v1410 = vsel %vm1402, %v1399, %v1401
        %1419 = vst [vmem:[#allocation2 + $0x280] sm:$0xf0] %v1403
        %1420 = vst [vmem:[#allocation2 + $0x288] sm:$0xf0] %v1404
        %1421 = vst [vmem:[#allocation2 + $0x290] sm:$0xf0] %v1405
        %1422 = vst [vmem:[#allocation2 + $0x298] sm:$0xf0] %v1406
        %1423 = vst [vmem:[#allocation2 + $0x2a0] sm:$0xf0] %v1407
        %1424 = vst [vmem:[#allocation2 + $0x2a8] sm:$0xf0] %v1408
        %1425 = vst [vmem:[#allocation2 + $0x2b0] sm:$0xf0] %v1409
        %1426 = vst [vmem:[#allocation2 + $0x2b8] sm:$0xf0] %v1410
        %v1427 = vld [vmem:[%s164 + $0x14] sm:$0xff]
        %v1428 = vld [vmem:[%s164 + $0x1c] sm:$0xff]
        %v1429 = vld [vmem:[%s164 + $0x24] sm:$0xff]
        %v1430 = vld [vmem:[%s164 + $0x2c] sm:$0xff]
        %v1431 = vld [vmem:[%s164 + $0x34] sm:$0xf]
        %v1437 = vcombine.high %v1427, %v1427
        %v1438 = vcombine.high %v1428, %v1428
        %v1439 = vcombine.high %v1429, %v1429
        %v1440 = vcombine.high %v1430, %v1430
        %1441 = vrot.lane.b32.xlu0 %v1427, 101
        %v1442 = vpop.permute.xlu0 %1441
        %1443 = vrot.lane.b32.xlu0 %v1437, 101
        %v1444 = vpop.permute.xlu0 %1443
        %1445 = vrot.lane.b32.xlu0 %v1428, 101
        %v1446 = vpop.permute.xlu0 %1445
        %1447 = vrot.lane.b32.xlu0 %v1438, 101
        %v1448 = vpop.permute.xlu0 %1447
        %1449 = vrot.lane.b32.xlu0 %v1429, 101
        %v1450 = vpop.permute.xlu0 %1449
        %1451 = vrot.lane.b32.xlu0 %v1439, 101
        %v1452 = vpop.permute.xlu0 %1451
        %1453 = vrot.lane.b32.xlu0 %v1430, 101
        %v1454 = vpop.permute.xlu0 %1453
        %1455 = vrot.lane.b32.xlu0 %v1440, 101
        %v1456 = vpop.permute.xlu0 %1455
        %1457 = vrot.lane.b32.xlu0 %v1431, 101
        %v1458 = vpop.permute.xlu0 %1457
        %vm1459 = vcmask 826368
        %v1460 = vsel %vm1459, %v1442, %v1444
        %v1461 = vsel %vm1459, %v1444, %v1446
        %v1462 = vsel %vm1459, %v1446, %v1448
        %v1463 = vsel %vm1459, %v1448, %v1450
        %v1464 = vsel %vm1459, %v1450, %v1452
        %v1465 = vsel %vm1459, %v1452, %v1454
        %v1466 = vsel %vm1459, %v1454, %v1456
        %v1467 = vsel %vm1459, %v1456, %v1458
        %1476 = vst [vmem:[#allocation2 + $0x2c0] sm:$0xf] %v1460
        %1477 = vst [vmem:[#allocation2 + $0x2c8] sm:$0xf] %v1461
        %1478 = vst [vmem:[#allocation2 + $0x2d0] sm:$0xf] %v1462
        %1479 = vst [vmem:[#allocation2 + $0x2d8] sm:$0xf] %v1463
        %1480 = vst [vmem:[#allocation2 + $0x2e0] sm:$0xf] %v1464
        %1481 = vst [vmem:[#allocation2 + $0x2e8] sm:$0xf] %v1465
        %1482 = vst [vmem:[#allocation2 + $0x2f0] sm:$0xf] %v1466
        %1483 = vst [vmem:[#allocation2 + $0x2f8] sm:$0xf] %v1467
        %v1484 = vld [vmem:[%s164 + $0x14] sm:$0xff]
        %v1485 = vld [vmem:[%s164 + $0x1c] sm:$0xff]
        %v1486 = vld [vmem:[%s164 + $0x24] sm:$0xff]
        %v1487 = vld [vmem:[%s164 + $0x2c] sm:$0xff]
        %v1488 = vld [vmem:[%s164 + $0x34] sm:$0xf]
        %v1494 = vcombine.low %v1484, %v1484
        %v1495 = vcombine.low %v1485, %v1485
        %v1496 = vcombine.low %v1486, %v1486
        %v1497 = vcombine.low %v1487, %v1487
        %v1498 = vcombine.low %v1488, %v1488
        %1499 = vrot.lane.b32.xlu0 %v1494, 100
        %v1500 = vpop.permute.xlu0 %1499
        %1501 = vrot.lane.b32.xlu0 %v1484, 100
        %v1502 = vpop.permute.xlu0 %1501
        %1503 = vrot.lane.b32.xlu0 %v1495, 100
        %v1504 = vpop.permute.xlu0 %1503
        %1505 = vrot.lane.b32.xlu0 %v1485, 100
        %v1506 = vpop.permute.xlu0 %1505
        %1507 = vrot.lane.b32.xlu0 %v1496, 100
        %v1508 = vpop.permute.xlu0 %1507
        %1509 = vrot.lane.b32.xlu0 %v1486, 100
        %v1510 = vpop.permute.xlu0 %1509
        %1511 = vrot.lane.b32.xlu0 %v1497, 100
        %v1512 = vpop.permute.xlu0 %1511
        %1513 = vrot.lane.b32.xlu0 %v1487, 100
        %v1514 = vpop.permute.xlu0 %1513
        %1515 = vrot.lane.b32.xlu0 %v1498, 100
        %v1516 = vpop.permute.xlu0 %1515
        %vm1517 = vcmask 818176
        %v1518 = vsel %vm1517, %v1500, %v1502
        %v1519 = vsel %vm1517, %v1502, %v1504
        %v1520 = vsel %vm1517, %v1504, %v1506
        %v1521 = vsel %vm1517, %v1506, %v1508
        %v1522 = vsel %vm1517, %v1508, %v1510
        %v1523 = vsel %vm1517, %v1510, %v1512
        %v1524 = vsel %vm1517, %v1512, %v1514
        %v1525 = vsel %vm1517, %v1514, %v1516
        %1534 = vst [vmem:[#allocation2 + $0x2c0] sm:$0xf0] %v1518
        %1535 = vst [vmem:[#allocation2 + $0x2c8] sm:$0xf0] %v1519
        %1536 = vst [vmem:[#allocation2 + $0x2d0] sm:$0xf0] %v1520
        %1537 = vst [vmem:[#allocation2 + $0x2d8] sm:$0xf0] %v1521
        %1538 = vst [vmem:[#allocation2 + $0x2e0] sm:$0xf0] %v1522
        %1539 = vst [vmem:[#allocation2 + $0x2e8] sm:$0xf0] %v1523
        %1540 = vst [vmem:[#allocation2 + $0x2f0] sm:$0xf0] %v1524
        %1541 = vst [vmem:[#allocation2 + $0x2f8] sm:$0xf0] %v1525
        %v1542 = vld [vmem:[%s164 + $0x14] sm:$0xff]
        %v1543 = vld [vmem:[%s164 + $0x1c] sm:$0xff]
        %v1544 = vld [vmem:[%s164 + $0x24] sm:$0xff]
        %v1545 = vld [vmem:[%s164 + $0x2c] sm:$0xff]
        %v1546 = vld [vmem:[%s164 + $0x34] sm:$0xf]
        %v1552 = vcombine.high %v1542, %v1542
        %v1553 = vcombine.high %v1543, %v1543
        %v1554 = vcombine.high %v1544, %v1544
        %v1555 = vcombine.high %v1545, %v1545
        %1556 = vrot.lane.b32.xlu0 %v1542, 84
        %v1557 = vpop.permute.xlu0 %1556
        %1558 = vrot.lane.b32.xlu0 %v1552, 84
        %v1559 = vpop.permute.xlu0 %1558
        %1560 = vrot.lane.b32.xlu0 %v1543, 84
        %v1561 = vpop.permute.xlu0 %1560
        %1562 = vrot.lane.b32.xlu0 %v1553, 84
        %v1563 = vpop.permute.xlu0 %1562
        %1564 = vrot.lane.b32.xlu0 %v1544, 84
        %v1565 = vpop.permute.xlu0 %1564
        %1566 = vrot.lane.b32.xlu0 %v1554, 84
        %v1567 = vpop.permute.xlu0 %1566
        %1568 = vrot.lane.b32.xlu0 %v1545, 84
        %v1569 = vpop.permute.xlu0 %1568
        %1570 = vrot.lane.b32.xlu0 %v1555, 84
        %v1571 = vpop.permute.xlu0 %1570
        %1572 = vrot.lane.b32.xlu0 %v1546, 84
        %v1573 = vpop.permute.xlu0 %1572
        %vm1574 = vcmask 687104
        %v1575 = vsel %vm1574, %v1557, %v1559
        %v1576 = vsel %vm1574, %v1559, %v1561
        %v1577 = vsel %vm1574, %v1561, %v1563
        %v1578 = vsel %vm1574, %v1563, %v1565
        %v1579 = vsel %vm1574, %v1565, %v1567
        %v1580 = vsel %vm1574, %v1567, %v1569
        %v1581 = vsel %vm1574, %v1569, %v1571
        %v1582 = vsel %vm1574, %v1571, %v1573
        %1591 = vst [vmem:[#allocation2 + $0x300] sm:$0xf] %v1575
        %1592 = vst [vmem:[#allocation2 + $0x308] sm:$0xf] %v1576
        %1593 = vst [vmem:[#allocation2 + $0x310] sm:$0xf] %v1577
        %1594 = vst [vmem:[#allocation2 + $0x318] sm:$0xf] %v1578
        %1595 = vst [vmem:[#allocation2 + $0x320] sm:$0xf] %v1579
        %1596 = vst [vmem:[#allocation2 + $0x328] sm:$0xf] %v1580
        %1597 = vst [vmem:[#allocation2 + $0x330] sm:$0xf] %v1581
        %1598 = vst [vmem:[#allocation2 + $0x338] sm:$0xf] %v1582
        %v1599 = vld [vmem:[%s164 + $0x14] sm:$0xff]
        %v1600 = vld [vmem:[%s164 + $0x1c] sm:$0xff]
        %v1601 = vld [vmem:[%s164 + $0x24] sm:$0xff]
        %v1602 = vld [vmem:[%s164 + $0x2c] sm:$0xff]
        %v1603 = vld [vmem:[%s164 + $0x34] sm:$0xf]
        %v1609 = vcombine.low %v1599, %v1599
        %v1610 = vcombine.low %v1600, %v1600
        %v1611 = vcombine.low %v1601, %v1601
        %v1612 = vcombine.low %v1602, %v1602
        %v1613 = vcombine.low %v1603, %v1603
        %1614 = vrot.lane.b32.xlu0 %v1609, 83
        %v1615 = vpop.permute.xlu0 %1614
        %1616 = vrot.lane.b32.xlu0 %v1599, 83
        %v1617 = vpop.permute.xlu0 %1616
        %1618 = vrot.lane.b32.xlu0 %v1610, 83
        %v1619 = vpop.permute.xlu0 %1618
        %1620 = vrot.lane.b32.xlu0 %v1600, 83
        %v1621 = vpop.permute.xlu0 %1620
        %1622 = vrot.lane.b32.xlu0 %v1611, 83
        %v1623 = vpop.permute.xlu0 %1622
        %1624 = vrot.lane.b32.xlu0 %v1601, 83
        %v1625 = vpop.permute.xlu0 %1624
        %1626 = vrot.lane.b32.xlu0 %v1612, 83
        %v1627 = vpop.permute.xlu0 %1626
        %1628 = vrot.lane.b32.xlu0 %v1602, 83
        %v1629 = vpop.permute.xlu0 %1628
        %1630 = vrot.lane.b32.xlu0 %v1613, 83
        %v1631 = vpop.permute.xlu0 %1630
        %vm1632 = vcmask 678912
        %v1633 = vsel %vm1632, %v1615, %v1617
        %v1634 = vsel %vm1632, %v1617, %v1619
        %v1635 = vsel %vm1632, %v1619, %v1621
        %v1636 = vsel %vm1632, %v1621, %v1623
        %v1637 = vsel %vm1632, %v1623, %v1625
        %v1638 = vsel %vm1632, %v1625, %v1627
        %v1639 = vsel %vm1632, %v1627, %v1629
        %v1640 = vsel %vm1632, %v1629, %v1631
        %1649 = vst [vmem:[#allocation2 + $0x300] sm:$0xf0] %v1633
        %1650 = vst [vmem:[#allocation2 + $0x308] sm:$0xf0] %v1634
        %1651 = vst [vmem:[#allocation2 + $0x310] sm:$0xf0] %v1635
        %1652 = vst [vmem:[#allocation2 + $0x318] sm:$0xf0] %v1636
        %1653 = vst [vmem:[#allocation2 + $0x320] sm:$0xf0] %v1637
        %1654 = vst [vmem:[#allocation2 + $0x328] sm:$0xf0] %v1638
        %1655 = vst [vmem:[#allocation2 + $0x330] sm:$0xf0] %v1639
        %1656 = vst [vmem:[#allocation2 + $0x338] sm:$0xf0] %v1640
        %v1657 = vld [vmem:[%s164 + $0x14] sm:$0xff]
        %v1658 = vld [vmem:[%s164 + $0x1c] sm:$0xff]
        %v1659 = vld [vmem:[%s164 + $0x24] sm:$0xff]
        %v1660 = vld [vmem:[%s164 + $0x2c] sm:$0xff]
        %v1661 = vld [vmem:[%s164 + $0x34] sm:$0xf]
        %v1667 = vcombine.high %v1657, %v1657
        %v1668 = vcombine.high %v1658, %v1658
        %v1669 = vcombine.high %v1659, %v1659
        %v1670 = vcombine.high %v1660, %v1660
        %1671 = vrot.lane.b32.xlu0 %v1657, 82
        %v1672 = vpop.permute.xlu0 %1671
        %1673 = vrot.lane.b32.xlu0 %v1667, 82
        %v1674 = vpop.permute.xlu0 %1673
        %1675 = vrot.lane.b32.xlu0 %v1658, 82
        %v1676 = vpop.permute.xlu0 %1675
        %1677 = vrot.lane.b32.xlu0 %v1668, 82
        %v1678 = vpop.permute.xlu0 %1677
        %1679 = vrot.lane.b32.xlu0 %v1659, 82
        %v1680 = vpop.permute.xlu0 %1679
        %1681 = vrot.lane.b32.xlu0 %v1669, 82
        %v1682 = vpop.permute.xlu0 %1681
        %1683 = vrot.lane.b32.xlu0 %v1660, 82
        %v1684 = vpop.permute.xlu0 %1683
        %1685 = vrot.lane.b32.xlu0 %v1670, 82
        %v1686 = vpop.permute.xlu0 %1685
        %1687 = vrot.lane.b32.xlu0 %v1661, 82
        %v1688 = vpop.permute.xlu0 %1687
        %vm1689 = vcmask 670720
        %v1690 = vsel %vm1689, %v1672, %v1674
        %v1691 = vsel %vm1689, %v1674, %v1676
        %v1692 = vsel %vm1689, %v1676, %v1678
        %v1693 = vsel %vm1689, %v1678, %v1680
        %v1694 = vsel %vm1689, %v1680, %v1682
        %v1695 = vsel %vm1689, %v1682, %v1684
        %v1696 = vsel %vm1689, %v1684, %v1686
        %v1697 = vsel %vm1689, %v1686, %v1688
        %1706 = vst [vmem:[#allocation2 + $0x340] sm:$0xf] %v1690
        %1707 = vst [vmem:[#allocation2 + $0x348] sm:$0xf] %v1691
        %1708 = vst [vmem:[#allocation2 + $0x350] sm:$0xf] %v1692
        %1709 = vst [vmem:[#allocation2 + $0x358] sm:$0xf] %v1693
        %1710 = vst [vmem:[#allocation2 + $0x360] sm:$0xf] %v1694
        %1711 = vst [vmem:[#allocation2 + $0x368] sm:$0xf] %v1695
        %1712 = vst [vmem:[#allocation2 + $0x370] sm:$0xf] %v1696
        %1713 = vst [vmem:[#allocation2 + $0x378] sm:$0xf] %v1697
        %v1714 = vld [vmem:[#allocation2] sm:$0xff]
        %v1715 = vld [vmem:[#allocation2 + $0x8] sm:$0xff]
        %v1716 = vld [vmem:[#allocation2 + $0x10] sm:$0xff]
        %v1717 = vld [vmem:[#allocation2 + $0x18] sm:$0xff]
        %v1718 = vld [vmem:[#allocation2 + $0x20] sm:$0xff]
        %v1719 = vld [vmem:[#allocation2 + $0x28] sm:$0xff]
        %v1720 = vld [vmem:[#allocation2 + $0x30] sm:$0xff]
        %v1721 = vld [vmem:[#allocation2 + $0x38] sm:$0xff]
        %v1722 = vld [vmem:[#allocation2 + $0x40] sm:$0xff]
        %v1723 = vld [vmem:[#allocation2 + $0x48] sm:$0xff]
        %v1724 = vld [vmem:[#allocation2 + $0x50] sm:$0xff]
        %v1725 = vld [vmem:[#allocation2 + $0x58] sm:$0xff]
        %v1726 = vld [vmem:[#allocation2 + $0x60] sm:$0xff]
        %v1727 = vld [vmem:[#allocation2 + $0x68] sm:$0xff]
        %v1728 = vld [vmem:[#allocation2 + $0x70] sm:$0xff]
        %v1729 = vld [vmem:[#allocation2 + $0x78] sm:$0xff]
        %v1730 = vld [vmem:[#allocation2 + $0x80] sm:$0xff]
        %v1731 = vld [vmem:[#allocation2 + $0x88] sm:$0xff]
        %v1732 = vld [vmem:[#allocation2 + $0x90] sm:$0xff]
        %v1733 = vld [vmem:[#allocation2 + $0x98] sm:$0xff]
        %v1734 = vld [vmem:[#allocation2 + $0xa0] sm:$0xff]
        %v1735 = vld [vmem:[#allocation2 + $0xa8] sm:$0xff]
        %v1736 = vld [vmem:[#allocation2 + $0xb0] sm:$0xff]
        %v1737 = vld [vmem:[#allocation2 + $0xb8] sm:$0xff]
        %v1738 = vld [vmem:[#allocation2 + $0xc0] sm:$0xff]
        %v1739 = vld [vmem:[#allocation2 + $0xc8] sm:$0xff]
        %v1740 = vld [vmem:[#allocation2 + $0xd0] sm:$0xff]
        %v1741 = vld [vmem:[#allocation2 + $0xd8] sm:$0xff]
        %v1742 = vld [vmem:[#allocation2 + $0xe0] sm:$0xff]
        %v1743 = vld [vmem:[#allocation2 + $0xe8] sm:$0xff]
        %v1744 = vld [vmem:[#allocation2 + $0xf0] sm:$0xff]
        %v1745 = vld [vmem:[#allocation2 + $0xf8] sm:$0xff]
        %v1746 = vld [vmem:[#allocation2 + $0x100] sm:$0xff]
        %v1747 = vld [vmem:[#allocation2 + $0x108] sm:$0xff]
        %v1748 = vld [vmem:[#allocation2 + $0x110] sm:$0xff]
        %v1749 = vld [vmem:[#allocation2 + $0x118] sm:$0xff]
        %v1750 = vld [vmem:[#allocation2 + $0x120] sm:$0xff]
        %v1751 = vld [vmem:[#allocation2 + $0x128] sm:$0xff]
        %v1752 = vld [vmem:[#allocation2 + $0x130] sm:$0xff]
        %v1753 = vld [vmem:[#allocation2 + $0x138] sm:$0xff]
        %v1754 = vld [vmem:[#allocation2 + $0x140] sm:$0xff]
        %v1755 = vld [vmem:[#allocation2 + $0x148] sm:$0xff]
        %v1756 = vld [vmem:[#allocation2 + $0x150] sm:$0xff]
        %v1757 = vld [vmem:[#allocation2 + $0x158] sm:$0xff]
        %v1758 = vld [vmem:[#allocation2 + $0x160] sm:$0xff]
        %v1759 = vld [vmem:[#allocation2 + $0x168] sm:$0xff]
        %v1760 = vld [vmem:[#allocation2 + $0x170] sm:$0xff]
        %v1761 = vld [vmem:[#allocation2 + $0x178] sm:$0xff]
        %v1762 = vld [vmem:[#allocation2 + $0x180] sm:$0xff]
        %v1763 = vld [vmem:[#allocation2 + $0x188] sm:$0xff]
        %v1764 = vld [vmem:[#allocation2 + $0x190] sm:$0xff]
        %v1765 = vld [vmem:[#allocation2 + $0x198] sm:$0xff]
        %v1766 = vld [vmem:[#allocation2 + $0x1a0] sm:$0xff]
        %v1767 = vld [vmem:[#allocation2 + $0x1a8] sm:$0xff]
        %v1768 = vld [vmem:[#allocation2 + $0x1b0] sm:$0xff]
        %v1769 = vld [vmem:[#allocation2 + $0x1b8] sm:$0xff]
        %v1770 = vld [vmem:[#allocation2 + $0x1c0] sm:$0xff]
        %v1771 = vld [vmem:[#allocation2 + $0x1c8] sm:$0xff]
        %v1772 = vld [vmem:[#allocation2 + $0x1d0] sm:$0xff]
        %v1773 = vld [vmem:[#allocation2 + $0x1d8] sm:$0xff]
        %v1774 = vld [vmem:[#allocation2 + $0x1e0] sm:$0xff]
        %v1775 = vld [vmem:[#allocation2 + $0x1e8] sm:$0xff]
        %v1776 = vld [vmem:[#allocation2 + $0x1f0] sm:$0xff]
        %v1777 = vld [vmem:[#allocation2 + $0x1f8] sm:$0xff]
        %v1778 = vld [vmem:[#allocation2 + $0x200] sm:$0xff]
        %v1779 = vld [vmem:[#allocation2 + $0x208] sm:$0xff]
        %v1780 = vld [vmem:[#allocation2 + $0x210] sm:$0xff]
        %v1781 = vld [vmem:[#allocation2 + $0x218] sm:$0xff]
        %v1782 = vld [vmem:[#allocation2 + $0x220] sm:$0xff]
        %v1783 = vld [vmem:[#allocation2 + $0x228] sm:$0xff]
        %v1784 = vld [vmem:[#allocation2 + $0x230] sm:$0xff]
        %v1785 = vld [vmem:[#allocation2 + $0x238] sm:$0xff]
        %v1786 = vld [vmem:[#allocation2 + $0x240] sm:$0xff]
        %v1787 = vld [vmem:[#allocation2 + $0x248] sm:$0xff]
        %v1788 = vld [vmem:[#allocation2 + $0x250] sm:$0xff]
        %v1789 = vld [vmem:[#allocation2 + $0x258] sm:$0xff]
        %v1790 = vld [vmem:[#allocation2 + $0x260] sm:$0xff]
        %v1791 = vld [vmem:[#allocation2 + $0x268] sm:$0xff]
        %v1792 = vld [vmem:[#allocation2 + $0x270] sm:$0xff]
        %v1793 = vld [vmem:[#allocation2 + $0x278] sm:$0xff]
        %v1794 = vld [vmem:[#allocation2 + $0x280] sm:$0xff]
        %v1795 = vld [vmem:[#allocation2 + $0x288] sm:$0xff]
        %v1796 = vld [vmem:[#allocation2 + $0x290] sm:$0xff]
        %v1797 = vld [vmem:[#allocation2 + $0x298] sm:$0xff]
        %v1798 = vld [vmem:[#allocation2 + $0x2a0] sm:$0xff]
        %v1799 = vld [vmem:[#allocation2 + $0x2a8] sm:$0xff]
        %v1800 = vld [vmem:[#allocation2 + $0x2b0] sm:$0xff]
        %v1801 = vld [vmem:[#allocation2 + $0x2b8] sm:$0xff]
        %v1802 = vld [vmem:[#allocation2 + $0x2c0] sm:$0xff]
        %v1803 = vld [vmem:[#allocation2 + $0x2c8] sm:$0xff]
        %v1804 = vld [vmem:[#allocation2 + $0x2d0] sm:$0xff]
        %v1805 = vld [vmem:[#allocation2 + $0x2d8] sm:$0xff]
        %v1806 = vld [vmem:[#allocation2 + $0x2e0] sm:$0xff]
        %v1807 = vld [vmem:[#allocation2 + $0x2e8] sm:$0xff]
        %v1808 = vld [vmem:[#allocation2 + $0x2f0] sm:$0xff]
        %v1809 = vld [vmem:[#allocation2 + $0x2f8] sm:$0xff]
        %v1810 = vld [vmem:[#allocation2 + $0x300] sm:$0xff]
        %v1811 = vld [vmem:[#allocation2 + $0x308] sm:$0xff]
        %v1812 = vld [vmem:[#allocation2 + $0x310] sm:$0xff]
        %v1813 = vld [vmem:[#allocation2 + $0x318] sm:$0xff]
        %v1814 = vld [vmem:[#allocation2 + $0x320] sm:$0xff]
        %v1815 = vld [vmem:[#allocation2 + $0x328] sm:$0xff]
        %v1816 = vld [vmem:[#allocation2 + $0x330] sm:$0xff]
        %v1817 = vld [vmem:[#allocation2 + $0x338] sm:$0xff]
        %v1818 = vld [vmem:[#allocation2 + $0x340] sm:$0xf]
        %v1819 = vld [vmem:[#allocation2 + $0x348] sm:$0xf]
        %v1820 = vld [vmem:[#allocation2 + $0x350] sm:$0xf]
        %v1821 = vld [vmem:[#allocation2 + $0x358] sm:$0xf]
        %v1822 = vld [vmem:[#allocation2 + $0x360] sm:$0xf]
        %v1823 = vld [vmem:[#allocation2 + $0x368] sm:$0xf]
        %v1824 = vld [vmem:[#allocation2 + $0x370] sm:$0xf]
        %v1825 = vld [vmem:[#allocation2 + $0x378] sm:$0xf]
        %1827 = vset.pattern.permute.xlu0 0
        %1828 = vperm.xlu0 %1827, %v191
        %v1829 = vpop.permute.xlu0 %1828
        %1832 = vset.pattern.permute.xlu0 0
        %1833 = vperm.xlu0 %1832, %v192
        %v1834 = vpop.permute.xlu0 %1833
        %1837 = vset.pattern.permute.xlu0 0
        %1838 = vperm.xlu0 %1837, %v193
        %v1839 = vpop.permute.xlu0 %1838
        %1842 = vset.pattern.permute.xlu0 0
        %1843 = vperm.xlu0 %1842, %v194
        %v1844 = vpop.permute.xlu0 %1843
        %v1847 = vsel %vm482, %v187, 0
        %v1850 = vsel %vm482, %v188, 0
        %v1853 = vsel %vm482, %v189, 0
        %v1856 = vsel %vm482, %v190, 0
        %vm1858 = vcmask 1043456
        %v1860 = vsel %vm1858, %v1818, 0
        %v1863 = vsel %vm1858, %v1819, 0
        %v1866 = vsel %vm1858, %v1820, 0
        %v1869 = vsel %vm1858, %v1821, 0
        %v1872 = vsel %vm1858, %v1822, 0
        %v1875 = vsel %vm1858, %v1823, 0
        %v1878 = vsel %vm1858, %v1824, 0
        %v1881 = vsel %vm1858, %v1825, 0
        %1883 = vmatprep.subr.mxu0 0.0
        %1884 = vmatpush1.msra.mxu0 0.0
        %1885 = vmatprep.subr.mxu0 0.0
        %1886 = vmatpush1.msra.mxu0 0.0
        %1887 = vmatprep.subr.mxu0 %v1863
        %1888 = vmatpush1.msra.mxu0 %v1860
        %1889 = vmatprep.subr.mxu0 %v1811
        %1890 = vmatpush1.msra.mxu0 %v1810
        %1891 = vmatprep.subr.mxu0 %v1803
        %1892 = vmatpush1.msra.mxu0 %v1802
        %1893 = vmatprep.subr.mxu0 %v1795
        %1894 = vmatpush1.msra.mxu0 %v1794
        %1895 = vmatprep.subr.mxu0 %v1787
        %1896 = vmatpush1.msra.mxu0 %v1786
        %1897 = vmatprep.subr.mxu0 %v1779
        %1898 = vmatpush1.msra.mxu0 %v1778
        %1899 = vmatprep.subr.mxu0 %v1771
        %1900 = vmatpush1.msra.mxu0 %v1770
        %1901 = vmatprep.subr.mxu0 %v1763
        %1902 = vmatpush1.msra.mxu0 %v1762
        %1903 = vmatprep.subr.mxu0 %v1755
        %1904 = vmatpush1.msra.mxu0 %v1754
        %1905 = vmatprep.subr.mxu0 %v1747
        %1906 = vmatpush1.msra.mxu0 %v1746
        %1907 = vmatprep.subr.mxu0 %v1739
        %1908 = vmatpush1.msra.mxu0 %v1738
        %1909 = vmatprep.subr.mxu0 %v1731
        %1910 = vmatpush1.msra.mxu0 %v1730
        %1911 = vmatprep.subr.mxu0 %v1723
        %1912 = vmatpush1.msra.mxu0 %v1722
        %1913 = vmatprep.subr.mxu0 %v1715
        %1914 = vmatpush1.msra.mxu0 %v1714
        %1915 = vmatprep.subr.mxu0 0.0
        %1916 = vmatpush2.msra.mxu0 0.0
        %1917 = vmatprep.subr.mxu0 0.0
        %1918 = vmatpush2.msra.mxu0 0.0
        %1919 = vmatprep.subr.mxu0 0.0
        %1920 = vmatpush2.msra.mxu0 0.0
        %1921 = vmatprep.subr.mxu0 0.0
        %1922 = vmatpush2.msra.mxu0 0.0
        %1923 = vmatprep.subr.mxu0 0.0
        %1924 = vmatpush2.msra.mxu0 0.0
        %1925 = vmatprep.subr.mxu0 0.0
        %1926 = vmatpush2.msra.mxu0 0.0
        %1927 = vmatprep.subr.mxu0 0.0
        %1928 = vmatpush2.msra.mxu0 0.0
        %1929 = vmatprep.subr.mxu0 0.0
        %1930 = vmatpush2.msra.mxu0 0.0
        %1931 = vmatprep.subr.mxu0 0.0
        %1932 = vmatpush2.msra.mxu0 0.0
        %1933 = vmatprep.subr.mxu0 0.0
        %1934 = vmatpush2.msra.mxu0 0.0
        %1935 = vmatprep.subr.mxu0 0.0
        %1936 = vmatpush2.msra.mxu0 0.0
        %1937 = vmatprep.subr.mxu0 0.0
        %1938 = vmatpush2.msra.mxu0 0.0
        %1939 = vmatprep.subr.mxu0 0.0
        %1940 = vmatpush2.msra.mxu0 0.0
        %1941 = vmatprep.subr.mxu0 0.0
        %1942 = vmatpush2.msra.mxu0 0.0
        %1943 = vmatprep.subr.mxu0 0.0
        %1944 = vmatpush2.msra.mxu0 0.0
        %1945 = vmatprep.subr.mxu0 0.0
        %1946 = vmatpush2.msra.mxu0 0.0
        %1947 = vmatprep.mubr.f32.mxu0 0.0
        %1948 = vmatmul.mubr.f32.gmra.mxu0 %v1847
        %v1949 = vpop.f32.mrf.mxu0
        %v1950 = vadd.f32 %v1829, %v1949
        %v1951 = vpop.f32.mrf.mxu0
        %v1952 = vadd.f32 %v1829, %v1951
        %1953 = vmatprep.mubr.f32.mxu0 0.0
        %1954 = vmatmul.mubr.f32.gmra.mxu0 %v1850
        %v1955 = vpop.f32.mrf.mxu0
        %v1956 = vadd.f32 %v1834, %v1955
        %v1957 = vpop.f32.mrf.mxu0
        %v1958 = vadd.f32 %v1834, %v1957
        %1959 = vmatprep.mubr.f32.mxu0 0.0
        %1960 = vmatmul.mubr.f32.gmra.mxu0 %v1853
        %v1961 = vpop.f32.mrf.mxu0
        %v1962 = vadd.f32 %v1839, %v1961
        %v1963 = vpop.f32.mrf.mxu0
        %v1964 = vadd.f32 %v1839, %v1963
        %1965 = vmatprep.mubr.f32.mxu0 0.0
        %1966 = vmatmul.mubr.f32.gmra.mxu0 %v1856
        %v1967 = vpop.f32.mrf.mxu0
        %v1968 = vadd.f32 %v1844, %v1967
        %v1969 = vpop.f32.mrf.mxu0
        %v1970 = vadd.f32 %v1844, %v1969
        %1971 = vdwg.mxu0
        %1972 = vmatprep.subr.mxu0 0.0
        %1973 = vmatpush1.msra.mxu0 0.0
        %1974 = vmatprep.subr.mxu0 0.0
        %1975 = vmatpush1.msra.mxu0 0.0
        %1976 = vmatprep.subr.mxu0 %v1869
        %1977 = vmatpush1.msra.mxu0 %v1866
        %1978 = vmatprep.subr.mxu0 %v1813
        %1979 = vmatpush1.msra.mxu0 %v1812
        %1980 = vmatprep.subr.mxu0 %v1805
        %1981 = vmatpush1.msra.mxu0 %v1804
        %1982 = vmatprep.subr.mxu0 %v1797
        %1983 = vmatpush1.msra.mxu0 %v1796
        %1984 = vmatprep.subr.mxu0 %v1789
        %1985 = vmatpush1.msra.mxu0 %v1788
        %1986 = vmatprep.subr.mxu0 %v1781
        %1987 = vmatpush1.msra.mxu0 %v1780
        %1988 = vmatprep.subr.mxu0 %v1773
        %1989 = vmatpush1.msra.mxu0 %v1772
        %1990 = vmatprep.subr.mxu0 %v1765
        %1991 = vmatpush1.msra.mxu0 %v1764
        %1992 = vmatprep.subr.mxu0 %v1757
        %1993 = vmatpush1.msra.mxu0 %v1756
        %1994 = vmatprep.subr.mxu0 %v1749
        %1995 = vmatpush1.msra.mxu0 %v1748
        %1996 = vmatprep.subr.mxu0 %v1741
        %1997 = vmatpush1.msra.mxu0 %v1740
        %1998 = vmatprep.subr.mxu0 %v1733
        %1999 = vmatpush1.msra.mxu0 %v1732
        %2000 = vmatprep.subr.mxu0 %v1725
        %2001 = vmatpush1.msra.mxu0 %v1724
        %2002 = vmatprep.subr.mxu0 %v1717
        %2003 = vmatpush1.msra.mxu0 %v1716
        %2004 = vmatprep.subr.mxu0 0.0
        %2005 = vmatpush2.msra.mxu0 0.0
        %2006 = vmatprep.subr.mxu0 0.0
        %2007 = vmatpush2.msra.mxu0 0.0
        %2008 = vmatprep.subr.mxu0 0.0
        %2009 = vmatpush2.msra.mxu0 0.0
        %2010 = vmatprep.subr.mxu0 0.0
        %2011 = vmatpush2.msra.mxu0 0.0
        %2012 = vmatprep.subr.mxu0 0.0
        %2013 = vmatpush2.msra.mxu0 0.0
        %2014 = vmatprep.subr.mxu0 0.0
        %2015 = vmatpush2.msra.mxu0 0.0
        %2016 = vmatprep.subr.mxu0 0.0
        %2017 = vmatpush2.msra.mxu0 0.0
        %2018 = vmatprep.subr.mxu0 0.0
        %2019 = vmatpush2.msra.mxu0 0.0
        %2020 = vmatprep.subr.mxu0 0.0
        %2021 = vmatpush2.msra.mxu0 0.0
        %2022 = vmatprep.subr.mxu0 0.0
        %2023 = vmatpush2.msra.mxu0 0.0
        %2024 = vmatprep.subr.mxu0 0.0
        %2025 = vmatpush2.msra.mxu0 0.0
        %2026 = vmatprep.subr.mxu0 0.0
        %2027 = vmatpush2.msra.mxu0 0.0
        %2028 = vmatprep.subr.mxu0 0.0
        %2029 = vmatpush2.msra.mxu0 0.0
        %2030 = vmatprep.subr.mxu0 0.0
        %2031 = vmatpush2.msra.mxu0 0.0
        %2032 = vmatprep.subr.mxu0 0.0
        %2033 = vmatpush2.msra.mxu0 0.0
        %2034 = vmatprep.subr.mxu0 0.0
        %2035 = vmatpush2.msra.mxu0 0.0
        %2036 = vmatprep.mubr.f32.mxu0 0.0
        %2037 = vmatmul.mubr.f32.gmra.mxu0 %v1847
        %v2038 = vpop.f32.mrf.mxu0
        %v2039 = vadd.f32 %v1829, %v2038
        %v2040 = vpop.f32.mrf.mxu0
        %v2041 = vadd.f32 %v1829, %v2040
        %2042 = vmatprep.mubr.f32.mxu0 0.0
        %2043 = vmatmul.mubr.f32.gmra.mxu0 %v1850
        %v2044 = vpop.f32.mrf.mxu0
        %v2045 = vadd.f32 %v1834, %v2044
        %v2046 = vpop.f32.mrf.mxu0
        %v2047 = vadd.f32 %v1834, %v2046
        %2048 = vmatprep.mubr.f32.mxu0 0.0
        %2049 = vmatmul.mubr.f32.gmra.mxu0 %v1853
        %v2050 = vpop.f32.mrf.mxu0
        %v2051 = vadd.f32 %v1839, %v2050
        %v2052 = vpop.f32.mrf.mxu0
        %v2053 = vadd.f32 %v1839, %v2052
        %2054 = vmatprep.mubr.f32.mxu0 0.0
        %2055 = vmatmul.mubr.f32.gmra.mxu0 %v1856
        %v2056 = vpop.f32.mrf.mxu0
        %v2057 = vadd.f32 %v1844, %v2056
        %v2058 = vpop.f32.mrf.mxu0
        %v2059 = vadd.f32 %v1844, %v2058
        %2060 = vdwg.mxu0
        %2061 = vmatprep.subr.mxu0 0.0
        %2062 = vmatpush1.msra.mxu0 0.0
        %2063 = vmatprep.subr.mxu0 0.0
        %2064 = vmatpush1.msra.mxu0 0.0
        %2065 = vmatprep.subr.mxu0 %v1875
        %2066 = vmatpush1.msra.mxu0 %v1872
        %2067 = vmatprep.subr.mxu0 %v1815
        %2068 = vmatpush1.msra.mxu0 %v1814
        %2069 = vmatprep.subr.mxu0 %v1807
        %2070 = vmatpush1.msra.mxu0 %v1806
        %2071 = vmatprep.subr.mxu0 %v1799
        %2072 = vmatpush1.msra.mxu0 %v1798
        %2073 = vmatprep.subr.mxu0 %v1791
        %2074 = vmatpush1.msra.mxu0 %v1790
        %2075 = vmatprep.subr.mxu0 %v1783
        %2076 = vmatpush1.msra.mxu0 %v1782
        %2077 = vmatprep.subr.mxu0 %v1775
        %2078 = vmatpush1.msra.mxu0 %v1774
        %2079 = vmatprep.subr.mxu0 %v1767
        %2080 = vmatpush1.msra.mxu0 %v1766
        %2081 = vmatprep.subr.mxu0 %v1759
        %2082 = vmatpush1.msra.mxu0 %v1758
        %2083 = vmatprep.subr.mxu0 %v1751
        %2084 = vmatpush1.msra.mxu0 %v1750
        %2085 = vmatprep.subr.mxu0 %v1743
        %2086 = vmatpush1.msra.mxu0 %v1742
        %2087 = vmatprep.subr.mxu0 %v1735
        %2088 = vmatpush1.msra.mxu0 %v1734
        %2089 = vmatprep.subr.mxu0 %v1727
        %2090 = vmatpush1.msra.mxu0 %v1726
        %2091 = vmatprep.subr.mxu0 %v1719
        %2092 = vmatpush1.msra.mxu0 %v1718
        %2093 = vmatprep.subr.mxu0 0.0
        %2094 = vmatpush2.msra.mxu0 0.0
        %2095 = vmatprep.subr.mxu0 0.0
        %2096 = vmatpush2.msra.mxu0 0.0
        %2097 = vmatprep.subr.mxu0 0.0
        %2098 = vmatpush2.msra.mxu0 0.0
        %2099 = vmatprep.subr.mxu0 0.0
        %2100 = vmatpush2.msra.mxu0 0.0
        %2101 = vmatprep.subr.mxu0 0.0
        %2102 = vmatpush2.msra.mxu0 0.0
        %2103 = vmatprep.subr.mxu0 0.0
        %2104 = vmatpush2.msra.mxu0 0.0
        %2105 = vmatprep.subr.mxu0 0.0
        %2106 = vmatpush2.msra.mxu0 0.0
        %2107 = vmatprep.subr.mxu0 0.0
        %2108 = vmatpush2.msra.mxu0 0.0
        %2109 = vmatprep.subr.mxu0 0.0
        %2110 = vmatpush2.msra.mxu0 0.0
        %2111 = vmatprep.subr.mxu0 0.0
        %2112 = vmatpush2.msra.mxu0 0.0
        %2113 = vmatprep.subr.mxu0 0.0
        %2114 = vmatpush2.msra.mxu0 0.0
        %2115 = vmatprep.subr.mxu0 0.0
        %2116 = vmatpush2.msra.mxu0 0.0
        %2117 = vmatprep.subr.mxu0 0.0
        %2118 = vmatpush2.msra.mxu0 0.0
        %2119 = vmatprep.subr.mxu0 0.0
        %2120 = vmatpush2.msra.mxu0 0.0
        %2121 = vmatprep.subr.mxu0 0.0
        %2122 = vmatpush2.msra.mxu0 0.0
        %2123 = vmatprep.subr.mxu0 0.0
        %2124 = vmatpush2.msra.mxu0 0.0
        %2125 = vmatprep.mubr.f32.mxu0 0.0
        %2126 = vmatmul.mubr.f32.gmra.mxu0 %v1847
        %v2127 = vpop.f32.mrf.mxu0
        %v2128 = vadd.f32 %v1829, %v2127
        %v2129 = vpop.f32.mrf.mxu0
        %v2130 = vadd.f32 %v1829, %v2129
        %2131 = vmatprep.mubr.f32.mxu0 0.0
        %2132 = vmatmul.mubr.f32.gmra.mxu0 %v1850
        %v2133 = vpop.f32.mrf.mxu0
        %v2134 = vadd.f32 %v1834, %v2133
        %v2135 = vpop.f32.mrf.mxu0
        %v2136 = vadd.f32 %v1834, %v2135
        %2137 = vmatprep.mubr.f32.mxu0 0.0
        %2138 = vmatmul.mubr.f32.gmra.mxu0 %v1853
        %v2139 = vpop.f32.mrf.mxu0
        %v2140 = vadd.f32 %v1839, %v2139
        %v2141 = vpop.f32.mrf.mxu0
        %v2142 = vadd.f32 %v1839, %v2141
        %2143 = vmatprep.mubr.f32.mxu0 0.0
        %2144 = vmatmul.mubr.f32.gmra.mxu0 %v1856
        %v2145 = vpop.f32.mrf.mxu0
        %v2146 = vadd.f32 %v1844, %v2145
        %v2147 = vpop.f32.mrf.mxu0
        %v2148 = vadd.f32 %v1844, %v2147
        %2149 = vdwg.mxu0
        %2150 = vmatprep.subr.mxu0 0.0
        %2151 = vmatpush1.msra.mxu0 0.0
        %2152 = vmatprep.subr.mxu0 0.0
        %2153 = vmatpush1.msra.mxu0 0.0
        %2154 = vmatprep.subr.mxu0 %v1881
        %2155 = vmatpush1.msra.mxu0 %v1878
        %2156 = vmatprep.subr.mxu0 %v1817
        %2157 = vmatpush1.msra.mxu0 %v1816
        %2158 = vmatprep.subr.mxu0 %v1809
        %2159 = vmatpush1.msra.mxu0 %v1808
        %2160 = vmatprep.subr.mxu0 %v1801
        %2161 = vmatpush1.msra.mxu0 %v1800
        %2162 = vmatprep.subr.mxu0 %v1793
        %2163 = vmatpush1.msra.mxu0 %v1792
        %2164 = vmatprep.subr.mxu0 %v1785
        %2165 = vmatpush1.msra.mxu0 %v1784
        %2166 = vmatprep.subr.mxu0 %v1777
        %2167 = vmatpush1.msra.mxu0 %v1776
        %2168 = vmatprep.subr.mxu0 %v1769
        %2169 = vmatpush1.msra.mxu0 %v1768
        %2170 = vmatprep.subr.mxu0 %v1761
        %2171 = vmatpush1.msra.mxu0 %v1760
        %2172 = vmatprep.subr.mxu0 %v1753
        %2173 = vmatpush1.msra.mxu0 %v1752
        %2174 = vmatprep.subr.mxu0 %v1745
        %2175 = vmatpush1.msra.mxu0 %v1744
        %2176 = vmatprep.subr.mxu0 %v1737
        %2177 = vmatpush1.msra.mxu0 %v1736
        %2178 = vmatprep.subr.mxu0 %v1729
        %2179 = vmatpush1.msra.mxu0 %v1728
        %2180 = vmatprep.subr.mxu0 %v1721
        %2181 = vmatpush1.msra.mxu0 %v1720
        %2182 = vmatprep.subr.mxu0 0.0
        %2183 = vmatpush2.msra.mxu0 0.0
        %2184 = vmatprep.subr.mxu0 0.0
        %2185 = vmatpush2.msra.mxu0 0.0
        %2186 = vmatprep.subr.mxu0 0.0
        %2187 = vmatpush2.msra.mxu0 0.0
        %2188 = vmatprep.subr.mxu0 0.0
        %2189 = vmatpush2.msra.mxu0 0.0
        %2190 = vmatprep.subr.mxu0 0.0
        %2191 = vmatpush2.msra.mxu0 0.0
        %2192 = vmatprep.subr.mxu0 0.0
        %2193 = vmatpush2.msra.mxu0 0.0
        %2194 = vmatprep.subr.mxu0 0.0
        %2195 = vmatpush2.msra.mxu0 0.0
        %2196 = vmatprep.subr.mxu0 0.0
        %2197 = vmatpush2.msra.mxu0 0.0
        %2198 = vmatprep.subr.mxu0 0.0
        %2199 = vmatpush2.msra.mxu0 0.0
        %2200 = vmatprep.subr.mxu0 0.0
        %2201 = vmatpush2.msra.mxu0 0.0
        %2202 = vmatprep.subr.mxu0 0.0
        %2203 = vmatpush2.msra.mxu0 0.0
        %2204 = vmatprep.subr.mxu0 0.0
        %2205 = vmatpush2.msra.mxu0 0.0
        %2206 = vmatprep.subr.mxu0 0.0
        %2207 = vmatpush2.msra.mxu0 0.0
        %2208 = vmatprep.subr.mxu0 0.0
        %2209 = vmatpush2.msra.mxu0 0.0
        %2210 = vmatprep.subr.mxu0 0.0
        %2211 = vmatpush2.msra.mxu0 0.0
        %2212 = vmatprep.subr.mxu0 0.0
        %2213 = vmatpush2.msra.mxu0 0.0
        %2214 = vmatprep.mubr.f32.mxu0 0.0
        %2215 = vmatmul.mubr.f32.gmra.mxu0 %v1847
        %v2216 = vpop.f32.mrf.mxu0
        %v2217 = vadd.f32 %v1829, %v2216
        %v2218 = vpop.f32.mrf.mxu0
        %v2219 = vadd.f32 %v1829, %v2218
        %2220 = vmatprep.mubr.f32.mxu0 0.0
        %2221 = vmatmul.mubr.f32.gmra.mxu0 %v1850
        %v2222 = vpop.f32.mrf.mxu0
        %v2223 = vadd.f32 %v1834, %v2222
        %v2224 = vpop.f32.mrf.mxu0
        %v2225 = vadd.f32 %v1834, %v2224
        %2226 = vmatprep.mubr.f32.mxu0 0.0
        %2227 = vmatmul.mubr.f32.gmra.mxu0 %v1853
        %v2228 = vpop.f32.mrf.mxu0
        %v2229 = vadd.f32 %v1839, %v2228
        %v2230 = vpop.f32.mrf.mxu0
        %v2231 = vadd.f32 %v1839, %v2230
        %2232 = vmatprep.mubr.f32.mxu0 0.0
        %2233 = vmatmul.mubr.f32.gmra.mxu0 %v1856
        %v2234 = vpop.f32.mrf.mxu0
        %v2235 = vadd.f32 %v1844, %v2234
        %v2236 = vpop.f32.mrf.mxu0
        %v2237 = vadd.f32 %v1844, %v2236
        %2238 = vdwg.mxu0
        %2239 = vst [vmem:[%s186] sm:$0xff] %v1950
        %2240 = vst [vmem:[%s186 + $0x8] sm:$0xff] %v1952
        %2241 = vst [vmem:[%s186 + $0x10] sm:$0xff] %v2039
        %2242 = vst [vmem:[%s186 + $0x18] sm:$0xff] %v2041
        %2243 = vst [vmem:[%s186 + $0x20] sm:$0xff] %v2128
        %2244 = vst [vmem:[%s186 + $0x28] sm:$0xff] %v2130
        %2245 = vst [vmem:[%s186 + $0x30] sm:$0xff] %v2217
        %2246 = vst [vmem:[%s186 + $0x38] sm:$0xff] %v2219
        %2247 = vst [vmem:[%s186 + $0xc0] sm:$0xff] %v1956
        %2248 = vst [vmem:[%s186 + $0xc8] sm:$0xff] %v1958
        %2249 = vst [vmem:[%s186 + $0xd0] sm:$0xff] %v2045
        %2250 = vst [vmem:[%s186 + $0xd8] sm:$0xff] %v2047
        %2251 = vst [vmem:[%s186 + $0xe0] sm:$0xff] %v2134
        %2252 = vst [vmem:[%s186 + $0xe8] sm:$0xff] %v2136
        %2253 = vst [vmem:[%s186 + $0xf0] sm:$0xff] %v2223
        %2254 = vst [vmem:[%s186 + $0xf8] sm:$0xff] %v2225
        %2255 = vst [vmem:[%s186 + $0x180] sm:$0xff] %v1962
        %2256 = vst [vmem:[%s186 + $0x188] sm:$0xff] %v1964
        %2257 = vst [vmem:[%s186 + $0x190] sm:$0xff] %v2051
        %2258 = vst [vmem:[%s186 + $0x198] sm:$0xff] %v2053
        %2259 = vst [vmem:[%s186 + $0x1a0] sm:$0xff] %v2140
        %2260 = vst [vmem:[%s186 + $0x1a8] sm:$0xff] %v2142
        %2261 = vst [vmem:[%s186 + $0x1b0] sm:$0xff] %v2229
        %2262 = vst [vmem:[%s186 + $0x1b8] sm:$0xff] %v2231
        %2263 = vst [vmem:[%s186 + $0x240] sm:$0xff] %v1968
        %2264 = vst [vmem:[%s186 + $0x248] sm:$0xff] %v1970
        %2265 = vst [vmem:[%s186 + $0x250] sm:$0xff] %v2057
        %2266 = vst [vmem:[%s186 + $0x258] sm:$0xff] %v2059
        %2267 = vst [vmem:[%s186 + $0x260] sm:$0xff] %v2146
        %2268 = vst [vmem:[%s186 + $0x268] sm:$0xff] %v2148
        %2269 = vst [vmem:[%s186 + $0x270] sm:$0xff] %v2235
        %2270 = vst [vmem:[%s186 + $0x278] sm:$0xff] %v2237
        %v2271 = vld [vmem:[%s164 + $0x20] sm:$0xff]
        %v2272 = vld [vmem:[%s164 + $0x28] sm:$0xff]
        %v2273 = vld [vmem:[%s164 + $0x30] sm:$0xff]
        %v2274 = vld [vmem:[%s164 + $0x38] sm:$0xff]
        %v2279 = vcombine.high %v2271, %v2271
        %v2280 = vcombine.high %v2272, %v2272
        %v2281 = vcombine.high %v2273, %v2273
        %v2282 = vcombine.high %v2274, %v2274
        %2287 = vst [vmem:[#allocation2] sm:$0xf] %v2271
        %2288 = vst [vmem:[#allocation2 + $0x8] sm:$0xf] %v2279
        %2289 = vst [vmem:[#allocation2 + $0x10] sm:$0xf] %v2272
        %2290 = vst [vmem:[#allocation2 + $0x18] sm:$0xf] %v2280
        %2291 = vst [vmem:[#allocation2 + $0x20] sm:$0xf] %v2273
        %2292 = vst [vmem:[#allocation2 + $0x28] sm:$0xf] %v2281
        %2293 = vst [vmem:[#allocation2 + $0x30] sm:$0xf] %v2274
        %2294 = vst [vmem:[#allocation2 + $0x38] sm:$0xf] %v2282
        %v2295 = vld [vmem:[%s164 + $0x20] sm:$0xff]
        %v2296 = vld [vmem:[%s164 + $0x28] sm:$0xff]
        %v2297 = vld [vmem:[%s164 + $0x30] sm:$0xff]
        %v2298 = vld [vmem:[%s164 + $0x38] sm:$0xff]
        %v2299 = vld [vmem:[%s164 + $0x40] sm:$0xf]
        %v2305 = vcombine.low %v2295, %v2295
        %v2306 = vcombine.low %v2296, %v2296
        %v2307 = vcombine.low %v2297, %v2297
        %v2308 = vcombine.low %v2298, %v2298
        %v2309 = vcombine.low %v2299, %v2299
        %2310 = vrot.lane.b32.xlu0 %v2305, 127
        %v2311 = vpop.permute.xlu0 %2310
        %2312 = vrot.lane.b32.xlu0 %v2295, 127
        %v2313 = vpop.permute.xlu0 %2312
        %2314 = vrot.lane.b32.xlu0 %v2306, 127
        %v2315 = vpop.permute.xlu0 %2314
        %2316 = vrot.lane.b32.xlu0 %v2296, 127
        %v2317 = vpop.permute.xlu0 %2316
        %2318 = vrot.lane.b32.xlu0 %v2307, 127
        %v2319 = vpop.permute.xlu0 %2318
        %2320 = vrot.lane.b32.xlu0 %v2297, 127
        %v2321 = vpop.permute.xlu0 %2320
        %2322 = vrot.lane.b32.xlu0 %v2308, 127
        %v2323 = vpop.permute.xlu0 %2322
        %2324 = vrot.lane.b32.xlu0 %v2298, 127
        %v2325 = vpop.permute.xlu0 %2324
        %2326 = vrot.lane.b32.xlu0 %v2309, 127
        %v2327 = vpop.permute.xlu0 %2326
        %v2328 = vsel %vm252, %v2311, %v2313
        %v2329 = vsel %vm252, %v2313, %v2315
        %v2330 = vsel %vm252, %v2315, %v2317
        %v2331 = vsel %vm252, %v2317, %v2319
        %v2332 = vsel %vm252, %v2319, %v2321
        %v2333 = vsel %vm252, %v2321, %v2323
        %v2334 = vsel %vm252, %v2323, %v2325
        %v2335 = vsel %vm252, %v2325, %v2327
        %2344 = vst [vmem:[#allocation2] sm:$0xf0] %v2328
        %2345 = vst [vmem:[#allocation2 + $0x8] sm:$0xf0] %v2329
        %2346 = vst [vmem:[#allocation2 + $0x10] sm:$0xf0] %v2330
        %2347 = vst [vmem:[#allocation2 + $0x18] sm:$0xf0] %v2331
        %2348 = vst [vmem:[#allocation2 + $0x20] sm:$0xf0] %v2332
        %2349 = vst [vmem:[#allocation2 + $0x28] sm:$0xf0] %v2333
        %2350 = vst [vmem:[#allocation2 + $0x30] sm:$0xf0] %v2334
        %2351 = vst [vmem:[#allocation2 + $0x38] sm:$0xf0] %v2335
        %v2352 = vld [vmem:[%s164 + $0x20] sm:$0xff]
        %v2353 = vld [vmem:[%s164 + $0x28] sm:$0xff]
        %v2354 = vld [vmem:[%s164 + $0x30] sm:$0xff]
        %v2355 = vld [vmem:[%s164 + $0x38] sm:$0xff]
        %v2356 = vld [vmem:[%s164 + $0x40] sm:$0xf]
        %v2362 = vcombine.high %v2352, %v2352
        %v2363 = vcombine.high %v2353, %v2353
        %v2364 = vcombine.high %v2354, %v2354
        %v2365 = vcombine.high %v2355, %v2355
        %2366 = vrot.lane.b32.xlu0 %v2352, 126
        %v2367 = vpop.permute.xlu0 %2366
        %2368 = vrot.lane.b32.xlu0 %v2362, 126
        %v2369 = vpop.permute.xlu0 %2368
        %2370 = vrot.lane.b32.xlu0 %v2353, 126
        %v2371 = vpop.permute.xlu0 %2370
        %2372 = vrot.lane.b32.xlu0 %v2363, 126
        %v2373 = vpop.permute.xlu0 %2372
        %2374 = vrot.lane.b32.xlu0 %v2354, 126
        %v2375 = vpop.permute.xlu0 %2374
        %2376 = vrot.lane.b32.xlu0 %v2364, 126
        %v2377 = vpop.permute.xlu0 %2376
        %2378 = vrot.lane.b32.xlu0 %v2355, 126
        %v2379 = vpop.permute.xlu0 %2378
        %2380 = vrot.lane.b32.xlu0 %v2365, 126
        %v2381 = vpop.permute.xlu0 %2380
        %2382 = vrot.lane.b32.xlu0 %v2356, 126
        %v2383 = vpop.permute.xlu0 %2382
        %v2384 = vsel %vm309, %v2367, %v2369
        %v2385 = vsel %vm309, %v2369, %v2371
        %v2386 = vsel %vm309, %v2371, %v2373
        %v2387 = vsel %vm309, %v2373, %v2375
        %v2388 = vsel %vm309, %v2375, %v2377
        %v2389 = vsel %vm309, %v2377, %v2379
        %v2390 = vsel %vm309, %v2379, %v2381
        %v2391 = vsel %vm309, %v2381, %v2383
        %2400 = vst [vmem:[#allocation2 + $0x40] sm:$0xf] %v2384
        %2401 = vst [vmem:[#allocation2 + $0x48] sm:$0xf] %v2385
        %2402 = vst [vmem:[#allocation2 + $0x50] sm:$0xf] %v2386
        %2403 = vst [vmem:[#allocation2 + $0x58] sm:$0xf] %v2387
        %2404 = vst [vmem:[#allocation2 + $0x60] sm:$0xf] %v2388
        %2405 = vst [vmem:[#allocation2 + $0x68] sm:$0xf] %v2389
        %2406 = vst [vmem:[#allocation2 + $0x70] sm:$0xf] %v2390
        %2407 = vst [vmem:[#allocation2 + $0x78] sm:$0xf] %v2391
        %v2408 = vld [vmem:[%s164 + $0x20] sm:$0xff]
        %v2409 = vld [vmem:[%s164 + $0x28] sm:$0xff]
        %v2410 = vld [vmem:[%s164 + $0x30] sm:$0xff]
        %v2411 = vld [vmem:[%s164 + $0x38] sm:$0xff]
        %v2412 = vld [vmem:[%s164 + $0x40] sm:$0xf]
        %v2418 = vcombine.low %v2408, %v2408
        %v2419 = vcombine.low %v2409, %v2409
        %v2420 = vcombine.low %v2410, %v2410
        %v2421 = vcombine.low %v2411, %v2411
        %v2422 = vcombine.low %v2412, %v2412
        %2423 = vrot.lane.b32.xlu0 %v2418, 110
        %v2424 = vpop.permute.xlu0 %2423
        %2425 = vrot.lane.b32.xlu0 %v2408, 110
        %v2426 = vpop.permute.xlu0 %2425
        %2427 = vrot.lane.b32.xlu0 %v2419, 110
        %v2428 = vpop.permute.xlu0 %2427
        %2429 = vrot.lane.b32.xlu0 %v2409, 110
        %v2430 = vpop.permute.xlu0 %2429
        %2431 = vrot.lane.b32.xlu0 %v2420, 110
        %v2432 = vpop.permute.xlu0 %2431
        %2433 = vrot.lane.b32.xlu0 %v2410, 110
        %v2434 = vpop.permute.xlu0 %2433
        %2435 = vrot.lane.b32.xlu0 %v2421, 110
        %v2436 = vpop.permute.xlu0 %2435
        %2437 = vrot.lane.b32.xlu0 %v2411, 110
        %v2438 = vpop.permute.xlu0 %2437
        %2439 = vrot.lane.b32.xlu0 %v2422, 110
        %v2440 = vpop.permute.xlu0 %2439
        %v2441 = vsel %vm367, %v2424, %v2426
        %v2442 = vsel %vm367, %v2426, %v2428
        %v2443 = vsel %vm367, %v2428, %v2430
        %v2444 = vsel %vm367, %v2430, %v2432
        %v2445 = vsel %vm367, %v2432, %v2434
        %v2446 = vsel %vm367, %v2434, %v2436
        %v2447 = vsel %vm367, %v2436, %v2438
        %v2448 = vsel %vm367, %v2438, %v2440
        %2457 = vst [vmem:[#allocation2 + $0x40] sm:$0xf0] %v2441
        %2458 = vst [vmem:[#allocation2 + $0x48] sm:$0xf0] %v2442
        %2459 = vst [vmem:[#allocation2 + $0x50] sm:$0xf0] %v2443
        %2460 = vst [vmem:[#allocation2 + $0x58] sm:$0xf0] %v2444
        %2461 = vst [vmem:[#allocation2 + $0x60] sm:$0xf0] %v2445
        %2462 = vst [vmem:[#allocation2 + $0x68] sm:$0xf0] %v2446
        %2463 = vst [vmem:[#allocation2 + $0x70] sm:$0xf0] %v2447
        %2464 = vst [vmem:[#allocation2 + $0x78] sm:$0xf0] %v2448
        %v2465 = vld [vmem:[%s164 + $0x20] sm:$0xff]
        %v2466 = vld [vmem:[%s164 + $0x28] sm:$0xff]
        %v2467 = vld [vmem:[%s164 + $0x30] sm:$0xff]
        %v2468 = vld [vmem:[%s164 + $0x38] sm:$0xff]
        %v2469 = vld [vmem:[%s164 + $0x40] sm:$0xf]
        %v2475 = vcombine.high %v2465, %v2465
        %v2476 = vcombine.high %v2466, %v2466
        %v2477 = vcombine.high %v2467, %v2467
        %v2478 = vcombine.high %v2468, %v2468
        %2479 = vrot.lane.b32.xlu0 %v2465, 109
        %v2480 = vpop.permute.xlu0 %2479
        %2481 = vrot.lane.b32.xlu0 %v2475, 109
        %v2482 = vpop.permute.xlu0 %2481
        %2483 = vrot.lane.b32.xlu0 %v2466, 109
        %v2484 = vpop.permute.xlu0 %2483
        %2485 = vrot.lane.b32.xlu0 %v2476, 109
        %v2486 = vpop.permute.xlu0 %2485
        %2487 = vrot.lane.b32.xlu0 %v2467, 109
        %v2488 = vpop.permute.xlu0 %2487
        %2489 = vrot.lane.b32.xlu0 %v2477, 109
        %v2490 = vpop.permute.xlu0 %2489
        %2491 = vrot.lane.b32.xlu0 %v2468, 109
        %v2492 = vpop.permute.xlu0 %2491
        %2493 = vrot.lane.b32.xlu0 %v2478, 109
        %v2494 = vpop.permute.xlu0 %2493
        %2495 = vrot.lane.b32.xlu0 %v2469, 109
        %v2496 = vpop.permute.xlu0 %2495
        %v2497 = vsel %vm424, %v2480, %v2482
        %v2498 = vsel %vm424, %v2482, %v2484
        %v2499 = vsel %vm424, %v2484, %v2486
        %v2500 = vsel %vm424, %v2486, %v2488
        %v2501 = vsel %vm424, %v2488, %v2490
        %v2502 = vsel %vm424, %v2490, %v2492
        %v2503 = vsel %vm424, %v2492, %v2494
        %v2504 = vsel %vm424, %v2494, %v2496
        %2513 = vst [vmem:[#allocation2 + $0x80] sm:$0xf] %v2497
        %2514 = vst [vmem:[#allocation2 + $0x88] sm:$0xf] %v2498
        %2515 = vst [vmem:[#allocation2 + $0x90] sm:$0xf] %v2499
        %2516 = vst [vmem:[#allocation2 + $0x98] sm:$0xf] %v2500
        %2517 = vst [vmem:[#allocation2 + $0xa0] sm:$0xf] %v2501
        %2518 = vst [vmem:[#allocation2 + $0xa8] sm:$0xf] %v2502
        %2519 = vst [vmem:[#allocation2 + $0xb0] sm:$0xf] %v2503
        %2520 = vst [vmem:[#allocation2 + $0xb8] sm:$0xf] %v2504
        %v2521 = vld [vmem:[%s164 + $0x20] sm:$0xff]
        %v2522 = vld [vmem:[%s164 + $0x28] sm:$0xff]
        %v2523 = vld [vmem:[%s164 + $0x30] sm:$0xff]
        %v2524 = vld [vmem:[%s164 + $0x38] sm:$0xff]
        %v2525 = vld [vmem:[%s164 + $0x40] sm:$0xf]
        %v2531 = vcombine.low %v2521, %v2521
        %v2532 = vcombine.low %v2522, %v2522
        %v2533 = vcombine.low %v2523, %v2523
        %v2534 = vcombine.low %v2524, %v2524
        %v2535 = vcombine.low %v2525, %v2525
        %2536 = vrot.lane.b32.xlu0 %v2531, 108
        %v2537 = vpop.permute.xlu0 %2536
        %2538 = vrot.lane.b32.xlu0 %v2521, 108
        %v2539 = vpop.permute.xlu0 %2538
        %2540 = vrot.lane.b32.xlu0 %v2532, 108
        %v2541 = vpop.permute.xlu0 %2540
        %2542 = vrot.lane.b32.xlu0 %v2522, 108
        %v2543 = vpop.permute.xlu0 %2542
        %2544 = vrot.lane.b32.xlu0 %v2533, 108
        %v2545 = vpop.permute.xlu0 %2544
        %2546 = vrot.lane.b32.xlu0 %v2523, 108
        %v2547 = vpop.permute.xlu0 %2546
        %2548 = vrot.lane.b32.xlu0 %v2534, 108
        %v2549 = vpop.permute.xlu0 %2548
        %2550 = vrot.lane.b32.xlu0 %v2524, 108
        %v2551 = vpop.permute.xlu0 %2550
        %2552 = vrot.lane.b32.xlu0 %v2535, 108
        %v2553 = vpop.permute.xlu0 %2552
        %v2554 = vsel %vm482, %v2537, %v2539
        %v2555 = vsel %vm482, %v2539, %v2541
        %v2556 = vsel %vm482, %v2541, %v2543
        %v2557 = vsel %vm482, %v2543, %v2545
        %v2558 = vsel %vm482, %v2545, %v2547
        %v2559 = vsel %vm482, %v2547, %v2549
        %v2560 = vsel %vm482, %v2549, %v2551
        %v2561 = vsel %vm482, %v2551, %v2553
        %2570 = vst [vmem:[#allocation2 + $0x80] sm:$0xf0] %v2554
        %2571 = vst [vmem:[#allocation2 + $0x88] sm:$0xf0] %v2555
        %2572 = vst [vmem:[#allocation2 + $0x90] sm:$0xf0] %v2556
        %2573 = vst [vmem:[#allocation2 + $0x98] sm:$0xf0] %v2557
        %2574 = vst [vmem:[#allocation2 + $0xa0] sm:$0xf0] %v2558
        %2575 = vst [vmem:[#allocation2 + $0xa8] sm:$0xf0] %v2559
        %2576 = vst [vmem:[#allocation2 + $0xb0] sm:$0xf0] %v2560
        %2577 = vst [vmem:[#allocation2 + $0xb8] sm:$0xf0] %v2561
        %v2578 = vld [vmem:[%s164 + $0x20] sm:$0xff]
        %v2579 = vld [vmem:[%s164 + $0x28] sm:$0xff]
        %v2580 = vld [vmem:[%s164 + $0x30] sm:$0xff]
        %v2581 = vld [vmem:[%s164 + $0x38] sm:$0xff]
        %v2582 = vld [vmem:[%s164 + $0x40] sm:$0xf]
        %v2588 = vcombine.high %v2578, %v2578
        %v2589 = vcombine.high %v2579, %v2579
        %v2590 = vcombine.high %v2580, %v2580
        %v2591 = vcombine.high %v2581, %v2581
        %2592 = vrot.lane.b32.xlu0 %v2578, 92
        %v2593 = vpop.permute.xlu0 %2592
        %2594 = vrot.lane.b32.xlu0 %v2588, 92
        %v2595 = vpop.permute.xlu0 %2594
        %2596 = vrot.lane.b32.xlu0 %v2579, 92
        %v2597 = vpop.permute.xlu0 %2596
        %2598 = vrot.lane.b32.xlu0 %v2589, 92
        %v2599 = vpop.permute.xlu0 %2598
        %2600 = vrot.lane.b32.xlu0 %v2580, 92
        %v2601 = vpop.permute.xlu0 %2600
        %2602 = vrot.lane.b32.xlu0 %v2590, 92
        %v2603 = vpop.permute.xlu0 %2602
        %2604 = vrot.lane.b32.xlu0 %v2581, 92
        %v2605 = vpop.permute.xlu0 %2604
        %2606 = vrot.lane.b32.xlu0 %v2591, 92
        %v2607 = vpop.permute.xlu0 %2606
        %2608 = vrot.lane.b32.xlu0 %v2582, 92
        %v2609 = vpop.permute.xlu0 %2608
        %v2610 = vsel %vm539, %v2593, %v2595
        %v2611 = vsel %vm539, %v2595, %v2597
        %v2612 = vsel %vm539, %v2597, %v2599
        %v2613 = vsel %vm539, %v2599, %v2601
        %v2614 = vsel %vm539, %v2601, %v2603
        %v2615 = vsel %vm539, %v2603, %v2605
        %v2616 = vsel %vm539, %v2605, %v2607
        %v2617 = vsel %vm539, %v2607, %v2609
        %2626 = vst [vmem:[#allocation2 + $0xc0] sm:$0xf] %v2610
        %2627 = vst [vmem:[#allocation2 + $0xc8] sm:$0xf] %v2611
        %2628 = vst [vmem:[#allocation2 + $0xd0] sm:$0xf] %v2612
        %2629 = vst [vmem:[#allocation2 + $0xd8] sm:$0xf] %v2613
        %2630 = vst [vmem:[#allocation2 + $0xe0] sm:$0xf] %v2614
        %2631 = vst [vmem:[#allocation2 + $0xe8] sm:$0xf] %v2615
        %2632 = vst [vmem:[#allocation2 + $0xf0] sm:$0xf] %v2616
        %2633 = vst [vmem:[#allocation2 + $0xf8] sm:$0xf] %v2617
        %v2634 = vld [vmem:[%s164 + $0x20] sm:$0xff]
        %v2635 = vld [vmem:[%s164 + $0x28] sm:$0xff]
        %v2636 = vld [vmem:[%s164 + $0x30] sm:$0xff]
        %v2637 = vld [vmem:[%s164 + $0x38] sm:$0xff]
        %v2638 = vld [vmem:[%s164 + $0x40] sm:$0xf]
        %v2644 = vcombine.low %v2634, %v2634
        %v2645 = vcombine.low %v2635, %v2635
        %v2646 = vcombine.low %v2636, %v2636
        %v2647 = vcombine.low %v2637, %v2637
        %v2648 = vcombine.low %v2638, %v2638
        %2649 = vrot.lane.b32.xlu0 %v2644, 91
        %v2650 = vpop.permute.xlu0 %2649
        %2651 = vrot.lane.b32.xlu0 %v2634, 91
        %v2652 = vpop.permute.xlu0 %2651
        %2653 = vrot.lane.b32.xlu0 %v2645, 91
        %v2654 = vpop.permute.xlu0 %2653
        %2655 = vrot.lane.b32.xlu0 %v2635, 91
        %v2656 = vpop.permute.xlu0 %2655
        %2657 = vrot.lane.b32.xlu0 %v2646, 91
        %v2658 = vpop.permute.xlu0 %2657
        %2659 = vrot.lane.b32.xlu0 %v2636, 91
        %v2660 = vpop.permute.xlu0 %2659
        %2661 = vrot.lane.b32.xlu0 %v2647, 91
        %v2662 = vpop.permute.xlu0 %2661
        %2663 = vrot.lane.b32.xlu0 %v2637, 91
        %v2664 = vpop.permute.xlu0 %2663
        %2665 = vrot.lane.b32.xlu0 %v2648, 91
        %v2666 = vpop.permute.xlu0 %2665
        %v2667 = vsel %vm597, %v2650, %v2652
        %v2668 = vsel %vm597, %v2652, %v2654
        %v2669 = vsel %vm597, %v2654, %v2656
        %v2670 = vsel %vm597, %v2656, %v2658
        %v2671 = vsel %vm597, %v2658, %v2660
        %v2672 = vsel %vm597, %v2660, %v2662
        %v2673 = vsel %vm597, %v2662, %v2664
        %v2674 = vsel %vm597, %v2664, %v2666
        %2683 = vst [vmem:[#allocation2 + $0xc0] sm:$0xf0] %v2667
        %2684 = vst [vmem:[#allocation2 + $0xc8] sm:$0xf0] %v2668
        %2685 = vst [vmem:[#allocation2 + $0xd0] sm:$0xf0] %v2669
        %2686 = vst [vmem:[#allocation2 + $0xd8] sm:$0xf0] %v2670
        %2687 = vst [vmem:[#allocation2 + $0xe0] sm:$0xf0] %v2671
        %2688 = vst [vmem:[#allocation2 + $0xe8] sm:$0xf0] %v2672
        %2689 = vst [vmem:[#allocation2 + $0xf0] sm:$0xf0] %v2673
        %2690 = vst [vmem:[#allocation2 + $0xf8] sm:$0xf0] %v2674
        %v2691 = vld [vmem:[%s164 + $0x20] sm:$0xff]
        %v2692 = vld [vmem:[%s164 + $0x28] sm:$0xff]
        %v2693 = vld [vmem:[%s164 + $0x30] sm:$0xff]
        %v2694 = vld [vmem:[%s164 + $0x38] sm:$0xff]
        %v2695 = vld [vmem:[%s164 + $0x40] sm:$0xf]
        %v2701 = vcombine.high %v2691, %v2691
        %v2702 = vcombine.high %v2692, %v2692
        %v2703 = vcombine.high %v2693, %v2693
        %v2704 = vcombine.high %v2694, %v2694
        %2705 = vrot.lane.b32.xlu0 %v2691, 90
        %v2706 = vpop.permute.xlu0 %2705
        %2707 = vrot.lane.b32.xlu0 %v2701, 90
        %v2708 = vpop.permute.xlu0 %2707
        %2709 = vrot.lane.b32.xlu0 %v2692, 90
        %v2710 = vpop.permute.xlu0 %2709
        %2711 = vrot.lane.b32.xlu0 %v2702, 90
        %v2712 = vpop.permute.xlu0 %2711
        %2713 = vrot.lane.b32.xlu0 %v2693, 90
        %v2714 = vpop.permute.xlu0 %2713
        %2715 = vrot.lane.b32.xlu0 %v2703, 90
        %v2716 = vpop.permute.xlu0 %2715
        %2717 = vrot.lane.b32.xlu0 %v2694, 90
        %v2718 = vpop.permute.xlu0 %2717
        %2719 = vrot.lane.b32.xlu0 %v2704, 90
        %v2720 = vpop.permute.xlu0 %2719
        %2721 = vrot.lane.b32.xlu0 %v2695, 90
        %v2722 = vpop.permute.xlu0 %2721
        %v2723 = vsel %vm654, %v2706, %v2708
        %v2724 = vsel %vm654, %v2708, %v2710
        %v2725 = vsel %vm654, %v2710, %v2712
        %v2726 = vsel %vm654, %v2712, %v2714
        %v2727 = vsel %vm654, %v2714, %v2716
        %v2728 = vsel %vm654, %v2716, %v2718
        %v2729 = vsel %vm654, %v2718, %v2720
        %v2730 = vsel %vm654, %v2720, %v2722
        %2739 = vst [vmem:[#allocation2 + $0x100] sm:$0xf] %v2723
        %2740 = vst [vmem:[#allocation2 + $0x108] sm:$0xf] %v2724
        %2741 = vst [vmem:[#allocation2 + $0x110] sm:$0xf] %v2725
        %2742 = vst [vmem:[#allocation2 + $0x118] sm:$0xf] %v2726
        %2743 = vst [vmem:[#allocation2 + $0x120] sm:$0xf] %v2727
        %2744 = vst [vmem:[#allocation2 + $0x128] sm:$0xf] %v2728
        %2745 = vst [vmem:[#allocation2 + $0x130] sm:$0xf] %v2729
        %2746 = vst [vmem:[#allocation2 + $0x138] sm:$0xf] %v2730
        %v2747 = vld [vmem:[%s164 + $0x28] sm:$0xff]
        %v2748 = vld [vmem:[%s164 + $0x30] sm:$0xff]
        %v2749 = vld [vmem:[%s164 + $0x38] sm:$0xff]
        %v2750 = vld [vmem:[%s164 + $0x40] sm:$0xff]
        %v2751 = vld [vmem:[%s164 + $0x48] sm:$0xf]
        %v2757 = vcombine.low %v2747, %v2747
        %v2758 = vcombine.low %v2748, %v2748
        %v2759 = vcombine.low %v2749, %v2749
        %v2760 = vcombine.low %v2750, %v2750
        %v2761 = vcombine.low %v2751, %v2751
        %2762 = vrot.lane.b32.xlu0 %v2757, 60
        %v2763 = vpop.permute.xlu0 %2762
        %2764 = vrot.lane.b32.xlu0 %v2747, 60
        %v2765 = vpop.permute.xlu0 %2764
        %2766 = vrot.lane.b32.xlu0 %v2758, 60
        %v2767 = vpop.permute.xlu0 %2766
        %2768 = vrot.lane.b32.xlu0 %v2748, 60
        %v2769 = vpop.permute.xlu0 %2768
        %2770 = vrot.lane.b32.xlu0 %v2759, 60
        %v2771 = vpop.permute.xlu0 %2770
        %2772 = vrot.lane.b32.xlu0 %v2749, 60
        %v2773 = vpop.permute.xlu0 %2772
        %2774 = vrot.lane.b32.xlu0 %v2760, 60
        %v2775 = vpop.permute.xlu0 %2774
        %2776 = vrot.lane.b32.xlu0 %v2750, 60
        %v2777 = vpop.permute.xlu0 %2776
        %2778 = vrot.lane.b32.xlu0 %v2761, 60
        %v2779 = vpop.permute.xlu0 %2778
        %v2780 = vsel %vm712, %v2763, %v2765
        %v2781 = vsel %vm712, %v2765, %v2767
        %v2782 = vsel %vm712, %v2767, %v2769
        %v2783 = vsel %vm712, %v2769, %v2771
        %v2784 = vsel %vm712, %v2771, %v2773
        %v2785 = vsel %vm712, %v2773, %v2775
        %v2786 = vsel %vm712, %v2775, %v2777
        %v2787 = vsel %vm712, %v2777, %v2779
        %2796 = vst [vmem:[#allocation2 + $0x100] sm:$0xf0] %v2780
        %2797 = vst [vmem:[#allocation2 + $0x108] sm:$0xf0] %v2781
        %2798 = vst [vmem:[#allocation2 + $0x110] sm:$0xf0] %v2782
        %2799 = vst [vmem:[#allocation2 + $0x118] sm:$0xf0] %v2783
        %2800 = vst [vmem:[#allocation2 + $0x120] sm:$0xf0] %v2784
        %2801 = vst [vmem:[#allocation2 + $0x128] sm:$0xf0] %v2785
        %2802 = vst [vmem:[#allocation2 + $0x130] sm:$0xf0] %v2786
        %2803 = vst [vmem:[#allocation2 + $0x138] sm:$0xf0] %v2787
        %v2804 = vld [vmem:[%s164 + $0x28] sm:$0xff]
        %v2805 = vld [vmem:[%s164 + $0x30] sm:$0xff]
        %v2806 = vld [vmem:[%s164 + $0x38] sm:$0xff]
        %v2807 = vld [vmem:[%s164 + $0x40] sm:$0xff]
        %v2808 = vld [vmem:[%s164 + $0x48] sm:$0xf]
        %v2814 = vcombine.high %v2804, %v2804
        %v2815 = vcombine.high %v2805, %v2805
        %v2816 = vcombine.high %v2806, %v2806
        %v2817 = vcombine.high %v2807, %v2807
        %2818 = vrot.lane.b32.xlu0 %v2804, 59
        %v2819 = vpop.permute.xlu0 %2818
        %2820 = vrot.lane.b32.xlu0 %v2814, 59
        %v2821 = vpop.permute.xlu0 %2820
        %2822 = vrot.lane.b32.xlu0 %v2805, 59
        %v2823 = vpop.permute.xlu0 %2822
        %2824 = vrot.lane.b32.xlu0 %v2815, 59
        %v2825 = vpop.permute.xlu0 %2824
        %2826 = vrot.lane.b32.xlu0 %v2806, 59
        %v2827 = vpop.permute.xlu0 %2826
        %2828 = vrot.lane.b32.xlu0 %v2816, 59
        %v2829 = vpop.permute.xlu0 %2828
        %2830 = vrot.lane.b32.xlu0 %v2807, 59
        %v2831 = vpop.permute.xlu0 %2830
        %2832 = vrot.lane.b32.xlu0 %v2817, 59
        %v2833 = vpop.permute.xlu0 %2832
        %2834 = vrot.lane.b32.xlu0 %v2808, 59
        %v2835 = vpop.permute.xlu0 %2834
        %v2836 = vsel %vm769, %v2819, %v2821
        %v2837 = vsel %vm769, %v2821, %v2823
        %v2838 = vsel %vm769, %v2823, %v2825
        %v2839 = vsel %vm769, %v2825, %v2827
        %v2840 = vsel %vm769, %v2827, %v2829
        %v2841 = vsel %vm769, %v2829, %v2831
        %v2842 = vsel %vm769, %v2831, %v2833
        %v2843 = vsel %vm769, %v2833, %v2835
        %2852 = vst [vmem:[#allocation2 + $0x140] sm:$0xf] %v2836
        %2853 = vst [vmem:[#allocation2 + $0x148] sm:$0xf] %v2837
        %2854 = vst [vmem:[#allocation2 + $0x150] sm:$0xf] %v2838
        %2855 = vst [vmem:[#allocation2 + $0x158] sm:$0xf] %v2839
        %2856 = vst [vmem:[#allocation2 + $0x160] sm:$0xf] %v2840
        %2857 = vst [vmem:[#allocation2 + $0x168] sm:$0xf] %v2841
        %2858 = vst [vmem:[#allocation2 + $0x170] sm:$0xf] %v2842
        %2859 = vst [vmem:[#allocation2 + $0x178] sm:$0xf] %v2843
        %v2860 = vld [vmem:[%s164 + $0x28] sm:$0xff]
        %v2861 = vld [vmem:[%s164 + $0x30] sm:$0xff]
        %v2862 = vld [vmem:[%s164 + $0x38] sm:$0xff]
        %v2863 = vld [vmem:[%s164 + $0x40] sm:$0xff]
        %v2864 = vld [vmem:[%s164 + $0x48] sm:$0xf]
        %v2870 = vcombine.low %v2860, %v2860
        %v2871 = vcombine.low %v2861, %v2861
        %v2872 = vcombine.low %v2862, %v2862
        %v2873 = vcombine.low %v2863, %v2863
        %v2874 = vcombine.low %v2864, %v2864
        %2875 = vrot.lane.b32.xlu0 %v2870, 58
        %v2876 = vpop.permute.xlu0 %2875
        %2877 = vrot.lane.b32.xlu0 %v2860, 58
        %v2878 = vpop.permute.xlu0 %2877
        %2879 = vrot.lane.b32.xlu0 %v2871, 58
        %v2880 = vpop.permute.xlu0 %2879
        %2881 = vrot.lane.b32.xlu0 %v2861, 58
        %v2882 = vpop.permute.xlu0 %2881
        %2883 = vrot.lane.b32.xlu0 %v2872, 58
        %v2884 = vpop.permute.xlu0 %2883
        %2885 = vrot.lane.b32.xlu0 %v2862, 58
        %v2886 = vpop.permute.xlu0 %2885
        %2887 = vrot.lane.b32.xlu0 %v2873, 58
        %v2888 = vpop.permute.xlu0 %2887
        %2889 = vrot.lane.b32.xlu0 %v2863, 58
        %v2890 = vpop.permute.xlu0 %2889
        %2891 = vrot.lane.b32.xlu0 %v2874, 58
        %v2892 = vpop.permute.xlu0 %2891
        %v2893 = vsel %vm827, %v2876, %v2878
        %v2894 = vsel %vm827, %v2878, %v2880
        %v2895 = vsel %vm827, %v2880, %v2882
        %v2896 = vsel %vm827, %v2882, %v2884
        %v2897 = vsel %vm827, %v2884, %v2886
        %v2898 = vsel %vm827, %v2886, %v2888
        %v2899 = vsel %vm827, %v2888, %v2890
        %v2900 = vsel %vm827, %v2890, %v2892
        %2909 = vst [vmem:[#allocation2 + $0x140] sm:$0xf0] %v2893
        %2910 = vst [vmem:[#allocation2 + $0x148] sm:$0xf0] %v2894
        %2911 = vst [vmem:[#allocation2 + $0x150] sm:$0xf0] %v2895
        %2912 = vst [vmem:[#allocation2 + $0x158] sm:$0xf0] %v2896
        %2913 = vst [vmem:[#allocation2 + $0x160] sm:$0xf0] %v2897
        %2914 = vst [vmem:[#allocation2 + $0x168] sm:$0xf0] %v2898
        %2915 = vst [vmem:[#allocation2 + $0x170] sm:$0xf0] %v2899
        %2916 = vst [vmem:[#allocation2 + $0x178] sm:$0xf0] %v2900
        %v2917 = vld [vmem:[%s164 + $0x28] sm:$0xff]
        %v2918 = vld [vmem:[%s164 + $0x30] sm:$0xff]
        %v2919 = vld [vmem:[%s164 + $0x38] sm:$0xff]
        %v2920 = vld [vmem:[%s164 + $0x40] sm:$0xff]
        %v2921 = vld [vmem:[%s164 + $0x48] sm:$0xf]
        %v2927 = vcombine.high %v2917, %v2917
        %v2928 = vcombine.high %v2918, %v2918
        %v2929 = vcombine.high %v2919, %v2919
        %v2930 = vcombine.high %v2920, %v2920
        %2931 = vrot.lane.b32.xlu0 %v2917, 42
        %v2932 = vpop.permute.xlu0 %2931
        %2933 = vrot.lane.b32.xlu0 %v2927, 42
        %v2934 = vpop.permute.xlu0 %2933
        %2935 = vrot.lane.b32.xlu0 %v2918, 42
        %v2936 = vpop.permute.xlu0 %2935
        %2937 = vrot.lane.b32.xlu0 %v2928, 42
        %v2938 = vpop.permute.xlu0 %2937
        %2939 = vrot.lane.b32.xlu0 %v2919, 42
        %v2940 = vpop.permute.xlu0 %2939
        %2941 = vrot.lane.b32.xlu0 %v2929, 42
        %v2942 = vpop.permute.xlu0 %2941
        %2943 = vrot.lane.b32.xlu0 %v2920, 42
        %v2944 = vpop.permute.xlu0 %2943
        %2945 = vrot.lane.b32.xlu0 %v2930, 42
        %v2946 = vpop.permute.xlu0 %2945
        %2947 = vrot.lane.b32.xlu0 %v2921, 42
        %v2948 = vpop.permute.xlu0 %2947
        %v2949 = vsel %vm884, %v2932, %v2934
        %v2950 = vsel %vm884, %v2934, %v2936
        %v2951 = vsel %vm884, %v2936, %v2938
        %v2952 = vsel %vm884, %v2938, %v2940
        %v2953 = vsel %vm884, %v2940, %v2942
        %v2954 = vsel %vm884, %v2942, %v2944
        %v2955 = vsel %vm884, %v2944, %v2946
        %v2956 = vsel %vm884, %v2946, %v2948
        %2965 = vst [vmem:[#allocation2 + $0x180] sm:$0xf] %v2949
        %2966 = vst [vmem:[#allocation2 + $0x188] sm:$0xf] %v2950
        %2967 = vst [vmem:[#allocation2 + $0x190] sm:$0xf] %v2951
        %2968 = vst [vmem:[#allocation2 + $0x198] sm:$0xf] %v2952
        %2969 = vst [vmem:[#allocation2 + $0x1a0] sm:$0xf] %v2953
        %2970 = vst [vmem:[#allocation2 + $0x1a8] sm:$0xf] %v2954
        %2971 = vst [vmem:[#allocation2 + $0x1b0] sm:$0xf] %v2955
        %2972 = vst [vmem:[#allocation2 + $0x1b8] sm:$0xf] %v2956
        %v2973 = vld [vmem:[%s164 + $0x28] sm:$0xff]
        %v2974 = vld [vmem:[%s164 + $0x30] sm:$0xff]
        %v2975 = vld [vmem:[%s164 + $0x38] sm:$0xff]
        %v2976 = vld [vmem:[%s164 + $0x40] sm:$0xff]
        %v2977 = vld [vmem:[%s164 + $0x48] sm:$0xf]
        %v2983 = vcombine.low %v2973, %v2973
        %v2984 = vcombine.low %v2974, %v2974
        %v2985 = vcombine.low %v2975, %v2975
        %v2986 = vcombine.low %v2976, %v2976
        %v2987 = vcombine.low %v2977, %v2977
        %2988 = vrot.lane.b32.xlu0 %v2983, 41
        %v2989 = vpop.permute.xlu0 %2988
        %2990 = vrot.lane.b32.xlu0 %v2973, 41
        %v2991 = vpop.permute.xlu0 %2990
        %2992 = vrot.lane.b32.xlu0 %v2984, 41
        %v2993 = vpop.permute.xlu0 %2992
        %2994 = vrot.lane.b32.xlu0 %v2974, 41
        %v2995 = vpop.permute.xlu0 %2994
        %2996 = vrot.lane.b32.xlu0 %v2985, 41
        %v2997 = vpop.permute.xlu0 %2996
        %2998 = vrot.lane.b32.xlu0 %v2975, 41
        %v2999 = vpop.permute.xlu0 %2998
        %3000 = vrot.lane.b32.xlu0 %v2986, 41
        %v3001 = vpop.permute.xlu0 %3000
        %3002 = vrot.lane.b32.xlu0 %v2976, 41
        %v3003 = vpop.permute.xlu0 %3002
        %3004 = vrot.lane.b32.xlu0 %v2987, 41
        %v3005 = vpop.permute.xlu0 %3004
        %v3006 = vsel %vm942, %v2989, %v2991
        %v3007 = vsel %vm942, %v2991, %v2993
        %v3008 = vsel %vm942, %v2993, %v2995
        %v3009 = vsel %vm942, %v2995, %v2997
        %v3010 = vsel %vm942, %v2997, %v2999
        %v3011 = vsel %vm942, %v2999, %v3001
        %v3012 = vsel %vm942, %v3001, %v3003
        %v3013 = vsel %vm942, %v3003, %v3005
        %3022 = vst [vmem:[#allocation2 + $0x180] sm:$0xf0] %v3006
        %3023 = vst [vmem:[#allocation2 + $0x188] sm:$0xf0] %v3007
        %3024 = vst [vmem:[#allocation2 + $0x190] sm:$0xf0] %v3008
        %3025 = vst [vmem:[#allocation2 + $0x198] sm:$0xf0] %v3009
        %3026 = vst [vmem:[#allocation2 + $0x1a0] sm:$0xf0] %v3010
        %3027 = vst [vmem:[#allocation2 + $0x1a8] sm:$0xf0] %v3011
        %3028 = vst [vmem:[#allocation2 + $0x1b0] sm:$0xf0] %v3012
        %3029 = vst [vmem:[#allocation2 + $0x1b8] sm:$0xf0] %v3013
        %v3030 = vld [vmem:[%s164 + $0x28] sm:$0xff]
        %v3031 = vld [vmem:[%s164 + $0x30] sm:$0xff]
        %v3032 = vld [vmem:[%s164 + $0x38] sm:$0xff]
        %v3033 = vld [vmem:[%s164 + $0x40] sm:$0xff]
        %v3034 = vld [vmem:[%s164 + $0x48] sm:$0xf]
        %v3040 = vcombine.high %v3030, %v3030
        %v3041 = vcombine.high %v3031, %v3031
        %v3042 = vcombine.high %v3032, %v3032
        %v3043 = vcombine.high %v3033, %v3033
        %3044 = vrot.lane.b32.xlu0 %v3030, 40
        %v3045 = vpop.permute.xlu0 %3044
        %3046 = vrot.lane.b32.xlu0 %v3040, 40
        %v3047 = vpop.permute.xlu0 %3046
        %3048 = vrot.lane.b32.xlu0 %v3031, 40
        %v3049 = vpop.permute.xlu0 %3048
        %3050 = vrot.lane.b32.xlu0 %v3041, 40
        %v3051 = vpop.permute.xlu0 %3050
        %3052 = vrot.lane.b32.xlu0 %v3032, 40
        %v3053 = vpop.permute.xlu0 %3052
        %3054 = vrot.lane.b32.xlu0 %v3042, 40
        %v3055 = vpop.permute.xlu0 %3054
        %3056 = vrot.lane.b32.xlu0 %v3033, 40
        %v3057 = vpop.permute.xlu0 %3056
        %3058 = vrot.lane.b32.xlu0 %v3043, 40
        %v3059 = vpop.permute.xlu0 %3058
        %3060 = vrot.lane.b32.xlu0 %v3034, 40
        %v3061 = vpop.permute.xlu0 %3060
        %v3062 = vsel %vm999, %v3045, %v3047
        %v3063 = vsel %vm999, %v3047, %v3049
        %v3064 = vsel %vm999, %v3049, %v3051
        %v3065 = vsel %vm999, %v3051, %v3053
        %v3066 = vsel %vm999, %v3053, %v3055
        %v3067 = vsel %vm999, %v3055, %v3057
        %v3068 = vsel %vm999, %v3057, %v3059
        %v3069 = vsel %vm999, %v3059, %v3061
        %3078 = vst [vmem:[#allocation2 + $0x1c0] sm:$0xf] %v3062
        %3079 = vst [vmem:[#allocation2 + $0x1c8] sm:$0xf] %v3063
        %3080 = vst [vmem:[#allocation2 + $0x1d0] sm:$0xf] %v3064
        %3081 = vst [vmem:[#allocation2 + $0x1d8] sm:$0xf] %v3065
        %3082 = vst [vmem:[#allocation2 + $0x1e0] sm:$0xf] %v3066
        %3083 = vst [vmem:[#allocation2 + $0x1e8] sm:$0xf] %v3067
        %3084 = vst [vmem:[#allocation2 + $0x1f0] sm:$0xf] %v3068
        %3085 = vst [vmem:[#allocation2 + $0x1f8] sm:$0xf] %v3069
        %v3086 = vld [vmem:[%s164 + $0x28] sm:$0xff]
        %v3087 = vld [vmem:[%s164 + $0x30] sm:$0xff]
        %v3088 = vld [vmem:[%s164 + $0x38] sm:$0xff]
        %v3089 = vld [vmem:[%s164 + $0x40] sm:$0xff]
        %v3090 = vld [vmem:[%s164 + $0x48] sm:$0xf]
        %v3096 = vcombine.low %v3086, %v3086
        %v3097 = vcombine.low %v3087, %v3087
        %v3098 = vcombine.low %v3088, %v3088
        %v3099 = vcombine.low %v3089, %v3089
        %v3100 = vcombine.low %v3090, %v3090
        %3101 = vrot.lane.b32.xlu0 %v3096, 24
        %v3102 = vpop.permute.xlu0 %3101
        %3103 = vrot.lane.b32.xlu0 %v3086, 24
        %v3104 = vpop.permute.xlu0 %3103
        %3105 = vrot.lane.b32.xlu0 %v3097, 24
        %v3106 = vpop.permute.xlu0 %3105
        %3107 = vrot.lane.b32.xlu0 %v3087, 24
        %v3108 = vpop.permute.xlu0 %3107
        %3109 = vrot.lane.b32.xlu0 %v3098, 24
        %v3110 = vpop.permute.xlu0 %3109
        %3111 = vrot.lane.b32.xlu0 %v3088, 24
        %v3112 = vpop.permute.xlu0 %3111
        %3113 = vrot.lane.b32.xlu0 %v3099, 24
        %v3114 = vpop.permute.xlu0 %3113
        %3115 = vrot.lane.b32.xlu0 %v3089, 24
        %v3116 = vpop.permute.xlu0 %3115
        %3117 = vrot.lane.b32.xlu0 %v3100, 24
        %v3118 = vpop.permute.xlu0 %3117
        %v3119 = vsel %vm1057, %v3102, %v3104
        %v3120 = vsel %vm1057, %v3104, %v3106
        %v3121 = vsel %vm1057, %v3106, %v3108
        %v3122 = vsel %vm1057, %v3108, %v3110
        %v3123 = vsel %vm1057, %v3110, %v3112
        %v3124 = vsel %vm1057, %v3112, %v3114
        %v3125 = vsel %vm1057, %v3114, %v3116
        %v3126 = vsel %vm1057, %v3116, %v3118
        %3135 = vst [vmem:[#allocation2 + $0x1c0] sm:$0xf0] %v3119
        %3136 = vst [vmem:[#allocation2 + $0x1c8] sm:$0xf0] %v3120
        %3137 = vst [vmem:[#allocation2 + $0x1d0] sm:$0xf0] %v3121
        %3138 = vst [vmem:[#allocation2 + $0x1d8] sm:$0xf0] %v3122
        %3139 = vst [vmem:[#allocation2 + $0x1e0] sm:$0xf0] %v3123
        %3140 = vst [vmem:[#allocation2 + $0x1e8] sm:$0xf0] %v3124
        %3141 = vst [vmem:[#allocation2 + $0x1f0] sm:$0xf0] %v3125
        %3142 = vst [vmem:[#allocation2 + $0x1f8] sm:$0xf0] %v3126
        %v3143 = vld [vmem:[%s164 + $0x28] sm:$0xff]
        %v3144 = vld [vmem:[%s164 + $0x30] sm:$0xff]
        %v3145 = vld [vmem:[%s164 + $0x38] sm:$0xff]
        %v3146 = vld [vmem:[%s164 + $0x40] sm:$0xff]
        %v3147 = vld [vmem:[%s164 + $0x48] sm:$0xf]
        %v3153 = vcombine.high %v3143, %v3143
        %v3154 = vcombine.high %v3144, %v3144
        %v3155 = vcombine.high %v3145, %v3145
        %v3156 = vcombine.high %v3146, %v3146
        %3157 = vrot.lane.b32.xlu0 %v3143, 23
        %v3158 = vpop.permute.xlu0 %3157
        %3159 = vrot.lane.b32.xlu0 %v3153, 23
        %v3160 = vpop.permute.xlu0 %3159
        %3161 = vrot.lane.b32.xlu0 %v3144, 23
        %v3162 = vpop.permute.xlu0 %3161
        %3163 = vrot.lane.b32.xlu0 %v3154, 23
        %v3164 = vpop.permute.xlu0 %3163
        %3165 = vrot.lane.b32.xlu0 %v3145, 23
        %v3166 = vpop.permute.xlu0 %3165
        %3167 = vrot.lane.b32.xlu0 %v3155, 23
        %v3168 = vpop.permute.xlu0 %3167
        %3169 = vrot.lane.b32.xlu0 %v3146, 23
        %v3170 = vpop.permute.xlu0 %3169
        %3171 = vrot.lane.b32.xlu0 %v3156, 23
        %v3172 = vpop.permute.xlu0 %3171
        %3173 = vrot.lane.b32.xlu0 %v3147, 23
        %v3174 = vpop.permute.xlu0 %3173
        %v3175 = vsel %vm1114, %v3158, %v3160
        %v3176 = vsel %vm1114, %v3160, %v3162
        %v3177 = vsel %vm1114, %v3162, %v3164
        %v3178 = vsel %vm1114, %v3164, %v3166
        %v3179 = vsel %vm1114, %v3166, %v3168
        %v3180 = vsel %vm1114, %v3168, %v3170
        %v3181 = vsel %vm1114, %v3170, %v3172
        %v3182 = vsel %vm1114, %v3172, %v3174
        %3191 = vst [vmem:[#allocation2 + $0x200] sm:$0xf] %v3175
        %3192 = vst [vmem:[#allocation2 + $0x208] sm:$0xf] %v3176
        %3193 = vst [vmem:[#allocation2 + $0x210] sm:$0xf] %v3177
        %3194 = vst [vmem:[#allocation2 + $0x218] sm:$0xf] %v3178
        %3195 = vst [vmem:[#allocation2 + $0x220] sm:$0xf] %v3179
        %3196 = vst [vmem:[#allocation2 + $0x228] sm:$0xf] %v3180
        %3197 = vst [vmem:[#allocation2 + $0x230] sm:$0xf] %v3181
        %3198 = vst [vmem:[#allocation2 + $0x238] sm:$0xf] %v3182
        %v3199 = vld [vmem:[%s164 + $0x28] sm:$0xff]
        %v3200 = vld [vmem:[%s164 + $0x30] sm:$0xff]
        %v3201 = vld [vmem:[%s164 + $0x38] sm:$0xff]
        %v3202 = vld [vmem:[%s164 + $0x40] sm:$0xff]
        %v3203 = vld [vmem:[%s164 + $0x48] sm:$0xf]
        %v3209 = vcombine.low %v3199, %v3199
        %v3210 = vcombine.low %v3200, %v3200
        %v3211 = vcombine.low %v3201, %v3201
        %v3212 = vcombine.low %v3202, %v3202
        %v3213 = vcombine.low %v3203, %v3203
        %3214 = vrot.lane.b32.xlu0 %v3209, 22
        %v3215 = vpop.permute.xlu0 %3214
        %3216 = vrot.lane.b32.xlu0 %v3199, 22
        %v3217 = vpop.permute.xlu0 %3216
        %3218 = vrot.lane.b32.xlu0 %v3210, 22
        %v3219 = vpop.permute.xlu0 %3218
        %3220 = vrot.lane.b32.xlu0 %v3200, 22
        %v3221 = vpop.permute.xlu0 %3220
        %3222 = vrot.lane.b32.xlu0 %v3211, 22
        %v3223 = vpop.permute.xlu0 %3222
        %3224 = vrot.lane.b32.xlu0 %v3201, 22
        %v3225 = vpop.permute.xlu0 %3224
        %3226 = vrot.lane.b32.xlu0 %v3212, 22
        %v3227 = vpop.permute.xlu0 %3226
        %3228 = vrot.lane.b32.xlu0 %v3202, 22
        %v3229 = vpop.permute.xlu0 %3228
        %3230 = vrot.lane.b32.xlu0 %v3213, 22
        %v3231 = vpop.permute.xlu0 %3230
        %v3232 = vsel %vm1172, %v3215, %v3217
        %v3233 = vsel %vm1172, %v3217, %v3219
        %v3234 = vsel %vm1172, %v3219, %v3221
        %v3235 = vsel %vm1172, %v3221, %v3223
        %v3236 = vsel %vm1172, %v3223, %v3225
        %v3237 = vsel %vm1172, %v3225, %v3227
        %v3238 = vsel %vm1172, %v3227, %v3229
        %v3239 = vsel %vm1172, %v3229, %v3231
        %3248 = vst [vmem:[#allocation2 + $0x200] sm:$0xf0] %v3232
        %3249 = vst [vmem:[#allocation2 + $0x208] sm:$0xf0] %v3233
        %3250 = vst [vmem:[#allocation2 + $0x210] sm:$0xf0] %v3234
        %3251 = vst [vmem:[#allocation2 + $0x218] sm:$0xf0] %v3235
        %3252 = vst [vmem:[#allocation2 + $0x220] sm:$0xf0] %v3236
        %3253 = vst [vmem:[#allocation2 + $0x228] sm:$0xf0] %v3237
        %3254 = vst [vmem:[#allocation2 + $0x230] sm:$0xf0] %v3238
        %3255 = vst [vmem:[#allocation2 + $0x238] sm:$0xf0] %v3239
        %v3256 = vld [vmem:[%s164 + $0x34] sm:$0xff]
        %v3257 = vld [vmem:[%s164 + $0x3c] sm:$0xff]
        %v3258 = vld [vmem:[%s164 + $0x44] sm:$0xff]
        %v3259 = vld [vmem:[%s164 + $0x4c] sm:$0xff]
        %v3260 = vld [vmem:[%s164 + $0x54] sm:$0xf]
        %v3266 = vcombine.high %v3256, %v3256
        %v3267 = vcombine.high %v3257, %v3257
        %v3268 = vcombine.high %v3258, %v3258
        %v3269 = vcombine.high %v3259, %v3259
        %3270 = vrot.lane.b32.xlu0 %v3256, 120
        %v3271 = vpop.permute.xlu0 %3270
        %3272 = vrot.lane.b32.xlu0 %v3266, 120
        %v3273 = vpop.permute.xlu0 %3272
        %3274 = vrot.lane.b32.xlu0 %v3257, 120
        %v3275 = vpop.permute.xlu0 %3274
        %3276 = vrot.lane.b32.xlu0 %v3267, 120
        %v3277 = vpop.permute.xlu0 %3276
        %3278 = vrot.lane.b32.xlu0 %v3258, 120
        %v3279 = vpop.permute.xlu0 %3278
        %3280 = vrot.lane.b32.xlu0 %v3268, 120
        %v3281 = vpop.permute.xlu0 %3280
        %3282 = vrot.lane.b32.xlu0 %v3259, 120
        %v3283 = vpop.permute.xlu0 %3282
        %3284 = vrot.lane.b32.xlu0 %v3269, 120
        %v3285 = vpop.permute.xlu0 %3284
        %3286 = vrot.lane.b32.xlu0 %v3260, 120
        %v3287 = vpop.permute.xlu0 %3286
        %v3288 = vsel %vm1229, %v3271, %v3273
        %v3289 = vsel %vm1229, %v3273, %v3275
        %v3290 = vsel %vm1229, %v3275, %v3277
        %v3291 = vsel %vm1229, %v3277, %v3279
        %v3292 = vsel %vm1229, %v3279, %v3281
        %v3293 = vsel %vm1229, %v3281, %v3283
        %v3294 = vsel %vm1229, %v3283, %v3285
        %v3295 = vsel %vm1229, %v3285, %v3287
        %3304 = vst [vmem:[#allocation2 + $0x240] sm:$0xf] %v3288
        %3305 = vst [vmem:[#allocation2 + $0x248] sm:$0xf] %v3289
        %3306 = vst [vmem:[#allocation2 + $0x250] sm:$0xf] %v3290
        %3307 = vst [vmem:[#allocation2 + $0x258] sm:$0xf] %v3291
        %3308 = vst [vmem:[#allocation2 + $0x260] sm:$0xf] %v3292
        %3309 = vst [vmem:[#allocation2 + $0x268] sm:$0xf] %v3293
        %3310 = vst [vmem:[#allocation2 + $0x270] sm:$0xf] %v3294
        %3311 = vst [vmem:[#allocation2 + $0x278] sm:$0xf] %v3295
        %v3312 = vld [vmem:[%s164 + $0x34] sm:$0xff]
        %v3313 = vld [vmem:[%s164 + $0x3c] sm:$0xff]
        %v3314 = vld [vmem:[%s164 + $0x44] sm:$0xff]
        %v3315 = vld [vmem:[%s164 + $0x4c] sm:$0xff]
        %v3316 = vld [vmem:[%s164 + $0x54] sm:$0xf]
        %v3322 = vcombine.low %v3312, %v3312
        %v3323 = vcombine.low %v3313, %v3313
        %v3324 = vcombine.low %v3314, %v3314
        %v3325 = vcombine.low %v3315, %v3315
        %v3326 = vcombine.low %v3316, %v3316
        %3327 = vrot.lane.b32.xlu0 %v3322, 119
        %v3328 = vpop.permute.xlu0 %3327
        %3329 = vrot.lane.b32.xlu0 %v3312, 119
        %v3330 = vpop.permute.xlu0 %3329
        %3331 = vrot.lane.b32.xlu0 %v3323, 119
        %v3332 = vpop.permute.xlu0 %3331
        %3333 = vrot.lane.b32.xlu0 %v3313, 119
        %v3334 = vpop.permute.xlu0 %3333
        %3335 = vrot.lane.b32.xlu0 %v3324, 119
        %v3336 = vpop.permute.xlu0 %3335
        %3337 = vrot.lane.b32.xlu0 %v3314, 119
        %v3338 = vpop.permute.xlu0 %3337
        %3339 = vrot.lane.b32.xlu0 %v3325, 119
        %v3340 = vpop.permute.xlu0 %3339
        %3341 = vrot.lane.b32.xlu0 %v3315, 119
        %v3342 = vpop.permute.xlu0 %3341
        %3343 = vrot.lane.b32.xlu0 %v3326, 119
        %v3344 = vpop.permute.xlu0 %3343
        %v3345 = vsel %vm1287, %v3328, %v3330
        %v3346 = vsel %vm1287, %v3330, %v3332
        %v3347 = vsel %vm1287, %v3332, %v3334
        %v3348 = vsel %vm1287, %v3334, %v3336
        %v3349 = vsel %vm1287, %v3336, %v3338
        %v3350 = vsel %vm1287, %v3338, %v3340
        %v3351 = vsel %vm1287, %v3340, %v3342
        %v3352 = vsel %vm1287, %v3342, %v3344
        %3361 = vst [vmem:[#allocation2 + $0x240] sm:$0xf0] %v3345
        %3362 = vst [vmem:[#allocation2 + $0x248] sm:$0xf0] %v3346
        %3363 = vst [vmem:[#allocation2 + $0x250] sm:$0xf0] %v3347
        %3364 = vst [vmem:[#allocation2 + $0x258] sm:$0xf0] %v3348
        %3365 = vst [vmem:[#allocation2 + $0x260] sm:$0xf0] %v3349
        %3366 = vst [vmem:[#allocation2 + $0x268] sm:$0xf0] %v3350
        %3367 = vst [vmem:[#allocation2 + $0x270] sm:$0xf0] %v3351
        %3368 = vst [vmem:[#allocation2 + $0x278] sm:$0xf0] %v3352
        %v3369 = vld [vmem:[%s164 + $0x34] sm:$0xff]
        %v3370 = vld [vmem:[%s164 + $0x3c] sm:$0xff]
        %v3371 = vld [vmem:[%s164 + $0x44] sm:$0xff]
        %v3372 = vld [vmem:[%s164 + $0x4c] sm:$0xff]
        %v3373 = vld [vmem:[%s164 + $0x54] sm:$0xf]
        %v3379 = vcombine.high %v3369, %v3369
        %v3380 = vcombine.high %v3370, %v3370
        %v3381 = vcombine.high %v3371, %v3371
        %v3382 = vcombine.high %v3372, %v3372
        %3383 = vrot.lane.b32.xlu0 %v3369, 118
        %v3384 = vpop.permute.xlu0 %3383
        %3385 = vrot.lane.b32.xlu0 %v3379, 118
        %v3386 = vpop.permute.xlu0 %3385
        %3387 = vrot.lane.b32.xlu0 %v3370, 118
        %v3388 = vpop.permute.xlu0 %3387
        %3389 = vrot.lane.b32.xlu0 %v3380, 118
        %v3390 = vpop.permute.xlu0 %3389
        %3391 = vrot.lane.b32.xlu0 %v3371, 118
        %v3392 = vpop.permute.xlu0 %3391
        %3393 = vrot.lane.b32.xlu0 %v3381, 118
        %v3394 = vpop.permute.xlu0 %3393
        %3395 = vrot.lane.b32.xlu0 %v3372, 118
        %v3396 = vpop.permute.xlu0 %3395
        %3397 = vrot.lane.b32.xlu0 %v3382, 118
        %v3398 = vpop.permute.xlu0 %3397
        %3399 = vrot.lane.b32.xlu0 %v3373, 118
        %v3400 = vpop.permute.xlu0 %3399
        %v3401 = vsel %vm1344, %v3384, %v3386
        %v3402 = vsel %vm1344, %v3386, %v3388
        %v3403 = vsel %vm1344, %v3388, %v3390
        %v3404 = vsel %vm1344, %v3390, %v3392
        %v3405 = vsel %vm1344, %v3392, %v3394
        %v3406 = vsel %vm1344, %v3394, %v3396
        %v3407 = vsel %vm1344, %v3396, %v3398
        %v3408 = vsel %vm1344, %v3398, %v3400
        %3417 = vst [vmem:[#allocation2 + $0x280] sm:$0xf] %v3401
        %3418 = vst [vmem:[#allocation2 + $0x288] sm:$0xf] %v3402
        %3419 = vst [vmem:[#allocation2 + $0x290] sm:$0xf] %v3403
        %3420 = vst [vmem:[#allocation2 + $0x298] sm:$0xf] %v3404
        %3421 = vst [vmem:[#allocation2 + $0x2a0] sm:$0xf] %v3405
        %3422 = vst [vmem:[#allocation2 + $0x2a8] sm:$0xf] %v3406
        %3423 = vst [vmem:[#allocation2 + $0x2b0] sm:$0xf] %v3407
        %3424 = vst [vmem:[#allocation2 + $0x2b8] sm:$0xf] %v3408
        %v3425 = vld [vmem:[%s164 + $0x34] sm:$0xff]
        %v3426 = vld [vmem:[%s164 + $0x3c] sm:$0xff]
        %v3427 = vld [vmem:[%s164 + $0x44] sm:$0xff]
        %v3428 = vld [vmem:[%s164 + $0x4c] sm:$0xff]
        %v3429 = vld [vmem:[%s164 + $0x54] sm:$0xf]
        %v3435 = vcombine.low %v3425, %v3425
        %v3436 = vcombine.low %v3426, %v3426
        %v3437 = vcombine.low %v3427, %v3427
        %v3438 = vcombine.low %v3428, %v3428
        %v3439 = vcombine.low %v3429, %v3429
        %3440 = vrot.lane.b32.xlu0 %v3435, 102
        %v3441 = vpop.permute.xlu0 %3440
        %3442 = vrot.lane.b32.xlu0 %v3425, 102
        %v3443 = vpop.permute.xlu0 %3442
        %3444 = vrot.lane.b32.xlu0 %v3436, 102
        %v3445 = vpop.permute.xlu0 %3444
        %3446 = vrot.lane.b32.xlu0 %v3426, 102
        %v3447 = vpop.permute.xlu0 %3446
        %3448 = vrot.lane.b32.xlu0 %v3437, 102
        %v3449 = vpop.permute.xlu0 %3448
        %3450 = vrot.lane.b32.xlu0 %v3427, 102
        %v3451 = vpop.permute.xlu0 %3450
        %3452 = vrot.lane.b32.xlu0 %v3438, 102
        %v3453 = vpop.permute.xlu0 %3452
        %3454 = vrot.lane.b32.xlu0 %v3428, 102
        %v3455 = vpop.permute.xlu0 %3454
        %3456 = vrot.lane.b32.xlu0 %v3439, 102
        %v3457 = vpop.permute.xlu0 %3456
        %v3458 = vsel %vm1402, %v3441, %v3443
        %v3459 = vsel %vm1402, %v3443, %v3445
        %v3460 = vsel %vm1402, %v3445, %v3447
        %v3461 = vsel %vm1402, %v3447, %v3449
        %v3462 = vsel %vm1402, %v3449, %v3451
        %v3463 = vsel %vm1402, %v3451, %v3453
        %v3464 = vsel %vm1402, %v3453, %v3455
        %v3465 = vsel %vm1402, %v3455, %v3457
        %3474 = vst [vmem:[#allocation2 + $0x280] sm:$0xf0] %v3458
        %3475 = vst [vmem:[#allocation2 + $0x288] sm:$0xf0] %v3459
        %3476 = vst [vmem:[#allocation2 + $0x290] sm:$0xf0] %v3460
        %3477 = vst [vmem:[#allocation2 + $0x298] sm:$0xf0] %v3461
        %3478 = vst [vmem:[#allocation2 + $0x2a0] sm:$0xf0] %v3462
        %3479 = vst [vmem:[#allocation2 + $0x2a8] sm:$0xf0] %v3463
        %3480 = vst [vmem:[#allocation2 + $0x2b0] sm:$0xf0] %v3464
        %3481 = vst [vmem:[#allocation2 + $0x2b8] sm:$0xf0] %v3465
        %v3482 = vld [vmem:[%s164 + $0x34] sm:$0xff]
        %v3483 = vld [vmem:[%s164 + $0x3c] sm:$0xff]
        %v3484 = vld [vmem:[%s164 + $0x44] sm:$0xff]
        %v3485 = vld [vmem:[%s164 + $0x4c] sm:$0xff]
        %v3486 = vld [vmem:[%s164 + $0x54] sm:$0xf]
        %v3492 = vcombine.high %v3482, %v3482
        %v3493 = vcombine.high %v3483, %v3483
        %v3494 = vcombine.high %v3484, %v3484
        %v3495 = vcombine.high %v3485, %v3485
        %3496 = vrot.lane.b32.xlu0 %v3482, 101
        %v3497 = vpop.permute.xlu0 %3496
        %3498 = vrot.lane.b32.xlu0 %v3492, 101
        %v3499 = vpop.permute.xlu0 %3498
        %3500 = vrot.lane.b32.xlu0 %v3483, 101
        %v3501 = vpop.permute.xlu0 %3500
        %3502 = vrot.lane.b32.xlu0 %v3493, 101
        %v3503 = vpop.permute.xlu0 %3502
        %3504 = vrot.lane.b32.xlu0 %v3484, 101
        %v3505 = vpop.permute.xlu0 %3504
        %3506 = vrot.lane.b32.xlu0 %v3494, 101
        %v3507 = vpop.permute.xlu0 %3506
        %3508 = vrot.lane.b32.xlu0 %v3485, 101
        %v3509 = vpop.permute.xlu0 %3508
        %3510 = vrot.lane.b32.xlu0 %v3495, 101
        %v3511 = vpop.permute.xlu0 %3510
        %3512 = vrot.lane.b32.xlu0 %v3486, 101
        %v3513 = vpop.permute.xlu0 %3512
        %v3514 = vsel %vm1459, %v3497, %v3499
        %v3515 = vsel %vm1459, %v3499, %v3501
        %v3516 = vsel %vm1459, %v3501, %v3503
        %v3517 = vsel %vm1459, %v3503, %v3505
        %v3518 = vsel %vm1459, %v3505, %v3507
        %v3519 = vsel %vm1459, %v3507, %v3509
        %v3520 = vsel %vm1459, %v3509, %v3511
        %v3521 = vsel %vm1459, %v3511, %v3513
        %3530 = vst [vmem:[#allocation2 + $0x2c0] sm:$0xf] %v3514
        %3531 = vst [vmem:[#allocation2 + $0x2c8] sm:$0xf] %v3515
        %3532 = vst [vmem:[#allocation2 + $0x2d0] sm:$0xf] %v3516
        %3533 = vst [vmem:[#allocation2 + $0x2d8] sm:$0xf] %v3517
        %3534 = vst [vmem:[#allocation2 + $0x2e0] sm:$0xf] %v3518
        %3535 = vst [vmem:[#allocation2 + $0x2e8] sm:$0xf] %v3519
        %3536 = vst [vmem:[#allocation2 + $0x2f0] sm:$0xf] %v3520
        %3537 = vst [vmem:[#allocation2 + $0x2f8] sm:$0xf] %v3521
        %v3538 = vld [vmem:[%s164 + $0x34] sm:$0xff]
        %v3539 = vld [vmem:[%s164 + $0x3c] sm:$0xff]
        %v3540 = vld [vmem:[%s164 + $0x44] sm:$0xff]
        %v3541 = vld [vmem:[%s164 + $0x4c] sm:$0xff]
        %v3542 = vld [vmem:[%s164 + $0x54] sm:$0xf]
        %v3548 = vcombine.low %v3538, %v3538
        %v3549 = vcombine.low %v3539, %v3539
        %v3550 = vcombine.low %v3540, %v3540
        %v3551 = vcombine.low %v3541, %v3541
        %v3552 = vcombine.low %v3542, %v3542
        %3553 = vrot.lane.b32.xlu0 %v3548, 100
        %v3554 = vpop.permute.xlu0 %3553
        %3555 = vrot.lane.b32.xlu0 %v3538, 100
        %v3556 = vpop.permute.xlu0 %3555
        %3557 = vrot.lane.b32.xlu0 %v3549, 100
        %v3558 = vpop.permute.xlu0 %3557
        %3559 = vrot.lane.b32.xlu0 %v3539, 100
        %v3560 = vpop.permute.xlu0 %3559
        %3561 = vrot.lane.b32.xlu0 %v3550, 100
        %v3562 = vpop.permute.xlu0 %3561
        %3563 = vrot.lane.b32.xlu0 %v3540, 100
        %v3564 = vpop.permute.xlu0 %3563
        %3565 = vrot.lane.b32.xlu0 %v3551, 100
        %v3566 = vpop.permute.xlu0 %3565
        %3567 = vrot.lane.b32.xlu0 %v3541, 100
        %v3568 = vpop.permute.xlu0 %3567
        %3569 = vrot.lane.b32.xlu0 %v3552, 100
        %v3570 = vpop.permute.xlu0 %3569
        %v3571 = vsel %vm1517, %v3554, %v3556
        %v3572 = vsel %vm1517, %v3556, %v3558
        %v3573 = vsel %vm1517, %v3558, %v3560
        %v3574 = vsel %vm1517, %v3560, %v3562
        %v3575 = vsel %vm1517, %v3562, %v3564
        %v3576 = vsel %vm1517, %v3564, %v3566
        %v3577 = vsel %vm1517, %v3566, %v3568
        %v3578 = vsel %vm1517, %v3568, %v3570
        %3587 = vst [vmem:[#allocation2 + $0x2c0] sm:$0xf0] %v3571
        %3588 = vst [vmem:[#allocation2 + $0x2c8] sm:$0xf0] %v3572
        %3589 = vst [vmem:[#allocation2 + $0x2d0] sm:$0xf0] %v3573
        %3590 = vst [vmem:[#allocation2 + $0x2d8] sm:$0xf0] %v3574
        %3591 = vst [vmem:[#allocation2 + $0x2e0] sm:$0xf0] %v3575
        %3592 = vst [vmem:[#allocation2 + $0x2e8] sm:$0xf0] %v3576
        %3593 = vst [vmem:[#allocation2 + $0x2f0] sm:$0xf0] %v3577
        %3594 = vst [vmem:[#allocation2 + $0x2f8] sm:$0xf0] %v3578
        %v3595 = vld [vmem:[%s164 + $0x34] sm:$0xff]
        %v3596 = vld [vmem:[%s164 + $0x3c] sm:$0xff]
        %v3597 = vld [vmem:[%s164 + $0x44] sm:$0xff]
        %v3598 = vld [vmem:[%s164 + $0x4c] sm:$0xff]
        %v3599 = vld [vmem:[%s164 + $0x54] sm:$0xf]
        %v3605 = vcombine.high %v3595, %v3595
        %v3606 = vcombine.high %v3596, %v3596
        %v3607 = vcombine.high %v3597, %v3597
        %v3608 = vcombine.high %v3598, %v3598
        %3609 = vrot.lane.b32.xlu0 %v3595, 84
        %v3610 = vpop.permute.xlu0 %3609
        %3611 = vrot.lane.b32.xlu0 %v3605, 84
        %v3612 = vpop.permute.xlu0 %3611
        %3613 = vrot.lane.b32.xlu0 %v3596, 84
        %v3614 = vpop.permute.xlu0 %3613
        %3615 = vrot.lane.b32.xlu0 %v3606, 84
        %v3616 = vpop.permute.xlu0 %3615
        %3617 = vrot.lane.b32.xlu0 %v3597, 84
        %v3618 = vpop.permute.xlu0 %3617
        %3619 = vrot.lane.b32.xlu0 %v3607, 84
        %v3620 = vpop.permute.xlu0 %3619
        %3621 = vrot.lane.b32.xlu0 %v3598, 84
        %v3622 = vpop.permute.xlu0 %3621
        %3623 = vrot.lane.b32.xlu0 %v3608, 84
        %v3624 = vpop.permute.xlu0 %3623
        %3625 = vrot.lane.b32.xlu0 %v3599, 84
        %v3626 = vpop.permute.xlu0 %3625
        %v3627 = vsel %vm1574, %v3610, %v3612
        %v3628 = vsel %vm1574, %v3612, %v3614
        %v3629 = vsel %vm1574, %v3614, %v3616
        %v3630 = vsel %vm1574, %v3616, %v3618
        %v3631 = vsel %vm1574, %v3618, %v3620
        %v3632 = vsel %vm1574, %v3620, %v3622
        %v3633 = vsel %vm1574, %v3622, %v3624
        %v3634 = vsel %vm1574, %v3624, %v3626
        %3643 = vst [vmem:[#allocation2 + $0x300] sm:$0xf] %v3627
        %3644 = vst [vmem:[#allocation2 + $0x308] sm:$0xf] %v3628
        %3645 = vst [vmem:[#allocation2 + $0x310] sm:$0xf] %v3629
        %3646 = vst [vmem:[#allocation2 + $0x318] sm:$0xf] %v3630
        %3647 = vst [vmem:[#allocation2 + $0x320] sm:$0xf] %v3631
        %3648 = vst [vmem:[#allocation2 + $0x328] sm:$0xf] %v3632
        %3649 = vst [vmem:[#allocation2 + $0x330] sm:$0xf] %v3633
        %3650 = vst [vmem:[#allocation2 + $0x338] sm:$0xf] %v3634
        %v3651 = vld [vmem:[%s164 + $0x34] sm:$0xff]
        %v3652 = vld [vmem:[%s164 + $0x3c] sm:$0xff]
        %v3653 = vld [vmem:[%s164 + $0x44] sm:$0xff]
        %v3654 = vld [vmem:[%s164 + $0x4c] sm:$0xff]
        %v3655 = vld [vmem:[%s164 + $0x54] sm:$0xf]
        %v3661 = vcombine.low %v3651, %v3651
        %v3662 = vcombine.low %v3652, %v3652
        %v3663 = vcombine.low %v3653, %v3653
        %v3664 = vcombine.low %v3654, %v3654
        %v3665 = vcombine.low %v3655, %v3655
        %3666 = vrot.lane.b32.xlu0 %v3661, 83
        %v3667 = vpop.permute.xlu0 %3666
        %3668 = vrot.lane.b32.xlu0 %v3651, 83
        %v3669 = vpop.permute.xlu0 %3668
        %3670 = vrot.lane.b32.xlu0 %v3662, 83
        %v3671 = vpop.permute.xlu0 %3670
        %3672 = vrot.lane.b32.xlu0 %v3652, 83
        %v3673 = vpop.permute.xlu0 %3672
        %3674 = vrot.lane.b32.xlu0 %v3663, 83
        %v3675 = vpop.permute.xlu0 %3674
        %3676 = vrot.lane.b32.xlu0 %v3653, 83
        %v3677 = vpop.permute.xlu0 %3676
        %3678 = vrot.lane.b32.xlu0 %v3664, 83
        %v3679 = vpop.permute.xlu0 %3678
        %3680 = vrot.lane.b32.xlu0 %v3654, 83
        %v3681 = vpop.permute.xlu0 %3680
        %3682 = vrot.lane.b32.xlu0 %v3665, 83
        %v3683 = vpop.permute.xlu0 %3682
        %v3684 = vsel %vm1632, %v3667, %v3669
        %v3685 = vsel %vm1632, %v3669, %v3671
        %v3686 = vsel %vm1632, %v3671, %v3673
        %v3687 = vsel %vm1632, %v3673, %v3675
        %v3688 = vsel %vm1632, %v3675, %v3677
        %v3689 = vsel %vm1632, %v3677, %v3679
        %v3690 = vsel %vm1632, %v3679, %v3681
        %v3691 = vsel %vm1632, %v3681, %v3683
        %3700 = vst [vmem:[#allocation2 + $0x300] sm:$0xf0] %v3684
        %3701 = vst [vmem:[#allocation2 + $0x308] sm:$0xf0] %v3685
        %3702 = vst [vmem:[#allocation2 + $0x310] sm:$0xf0] %v3686
        %3703 = vst [vmem:[#allocation2 + $0x318] sm:$0xf0] %v3687
        %3704 = vst [vmem:[#allocation2 + $0x320] sm:$0xf0] %v3688
        %3705 = vst [vmem:[#allocation2 + $0x328] sm:$0xf0] %v3689
        %3706 = vst [vmem:[#allocation2 + $0x330] sm:$0xf0] %v3690
        %3707 = vst [vmem:[#allocation2 + $0x338] sm:$0xf0] %v3691
        %v3708 = vld [vmem:[%s164 + $0x34] sm:$0xff]
        %v3709 = vld [vmem:[%s164 + $0x3c] sm:$0xff]
        %v3710 = vld [vmem:[%s164 + $0x44] sm:$0xff]
        %v3711 = vld [vmem:[%s164 + $0x4c] sm:$0xff]
        %v3712 = vld [vmem:[%s164 + $0x54] sm:$0xf]
        %v3718 = vcombine.high %v3708, %v3708
        %v3719 = vcombine.high %v3709, %v3709
        %v3720 = vcombine.high %v3710, %v3710
        %v3721 = vcombine.high %v3711, %v3711
        %3722 = vrot.lane.b32.xlu0 %v3708, 82
        %v3723 = vpop.permute.xlu0 %3722
        %3724 = vrot.lane.b32.xlu0 %v3718, 82
        %v3725 = vpop.permute.xlu0 %3724
        %3726 = vrot.lane.b32.xlu0 %v3709, 82
        %v3727 = vpop.permute.xlu0 %3726
        %3728 = vrot.lane.b32.xlu0 %v3719, 82
        %v3729 = vpop.permute.xlu0 %3728
        %3730 = vrot.lane.b32.xlu0 %v3710, 82
        %v3731 = vpop.permute.xlu0 %3730
        %3732 = vrot.lane.b32.xlu0 %v3720, 82
        %v3733 = vpop.permute.xlu0 %3732
        %3734 = vrot.lane.b32.xlu0 %v3711, 82
        %v3735 = vpop.permute.xlu0 %3734
        %3736 = vrot.lane.b32.xlu0 %v3721, 82
        %v3737 = vpop.permute.xlu0 %3736
        %3738 = vrot.lane.b32.xlu0 %v3712, 82
        %v3739 = vpop.permute.xlu0 %3738
        %v3740 = vsel %vm1689, %v3723, %v3725
        %v3741 = vsel %vm1689, %v3725, %v3727
        %v3742 = vsel %vm1689, %v3727, %v3729
        %v3743 = vsel %vm1689, %v3729, %v3731
        %v3744 = vsel %vm1689, %v3731, %v3733
        %v3745 = vsel %vm1689, %v3733, %v3735
        %v3746 = vsel %vm1689, %v3735, %v3737
        %v3747 = vsel %vm1689, %v3737, %v3739
        %3756 = vst [vmem:[#allocation2 + $0x340] sm:$0xf] %v3740
        %3757 = vst [vmem:[#allocation2 + $0x348] sm:$0xf] %v3741
        %3758 = vst [vmem:[#allocation2 + $0x350] sm:$0xf] %v3742
        %3759 = vst [vmem:[#allocation2 + $0x358] sm:$0xf] %v3743
        %3760 = vst [vmem:[#allocation2 + $0x360] sm:$0xf] %v3744
        %3761 = vst [vmem:[#allocation2 + $0x368] sm:$0xf] %v3745
        %3762 = vst [vmem:[#allocation2 + $0x370] sm:$0xf] %v3746
        %3763 = vst [vmem:[#allocation2 + $0x378] sm:$0xf] %v3747
        %v3764 = vld [vmem:[#allocation2] sm:$0xff]
        %v3765 = vld [vmem:[#allocation2 + $0x8] sm:$0xff]
        %v3766 = vld [vmem:[#allocation2 + $0x10] sm:$0xff]
        %v3767 = vld [vmem:[#allocation2 + $0x18] sm:$0xff]
        %v3768 = vld [vmem:[#allocation2 + $0x20] sm:$0xff]
        %v3769 = vld [vmem:[#allocation2 + $0x28] sm:$0xff]
        %v3770 = vld [vmem:[#allocation2 + $0x30] sm:$0xff]
        %v3771 = vld [vmem:[#allocation2 + $0x38] sm:$0xff]
        %v3772 = vld [vmem:[#allocation2 + $0x40] sm:$0xff]
        %v3773 = vld [vmem:[#allocation2 + $0x48] sm:$0xff]
        %v3774 = vld [vmem:[#allocation2 + $0x50] sm:$0xff]
        %v3775 = vld [vmem:[#allocation2 + $0x58] sm:$0xff]
        %v3776 = vld [vmem:[#allocation2 + $0x60] sm:$0xff]
        %v3777 = vld [vmem:[#allocation2 + $0x68] sm:$0xff]
        %v3778 = vld [vmem:[#allocation2 + $0x70] sm:$0xff]
        %v3779 = vld [vmem:[#allocation2 + $0x78] sm:$0xff]
        %v3780 = vld [vmem:[#allocation2 + $0x80] sm:$0xff]
        %v3781 = vld [vmem:[#allocation2 + $0x88] sm:$0xff]
        %v3782 = vld [vmem:[#allocation2 + $0x90] sm:$0xff]
        %v3783 = vld [vmem:[#allocation2 + $0x98] sm:$0xff]
        %v3784 = vld [vmem:[#allocation2 + $0xa0] sm:$0xff]
        %v3785 = vld [vmem:[#allocation2 + $0xa8] sm:$0xff]
        %v3786 = vld [vmem:[#allocation2 + $0xb0] sm:$0xff]
        %v3787 = vld [vmem:[#allocation2 + $0xb8] sm:$0xff]
        %v3788 = vld [vmem:[#allocation2 + $0xc0] sm:$0xff]
        %v3789 = vld [vmem:[#allocation2 + $0xc8] sm:$0xff]
        %v3790 = vld [vmem:[#allocation2 + $0xd0] sm:$0xff]
        %v3791 = vld [vmem:[#allocation2 + $0xd8] sm:$0xff]
        %v3792 = vld [vmem:[#allocation2 + $0xe0] sm:$0xff]
        %v3793 = vld [vmem:[#allocation2 + $0xe8] sm:$0xff]
        %v3794 = vld [vmem:[#allocation2 + $0xf0] sm:$0xff]
        %v3795 = vld [vmem:[#allocation2 + $0xf8] sm:$0xff]
        %v3796 = vld [vmem:[#allocation2 + $0x100] sm:$0xff]
        %v3797 = vld [vmem:[#allocation2 + $0x108] sm:$0xff]
        %v3798 = vld [vmem:[#allocation2 + $0x110] sm:$0xff]
        %v3799 = vld [vmem:[#allocation2 + $0x118] sm:$0xff]
        %v3800 = vld [vmem:[#allocation2 + $0x120] sm:$0xff]
        %v3801 = vld [vmem:[#allocation2 + $0x128] sm:$0xff]
        %v3802 = vld [vmem:[#allocation2 + $0x130] sm:$0xff]
        %v3803 = vld [vmem:[#allocation2 + $0x138] sm:$0xff]
        %v3804 = vld [vmem:[#allocation2 + $0x140] sm:$0xff]
        %v3805 = vld [vmem:[#allocation2 + $0x148] sm:$0xff]
        %v3806 = vld [vmem:[#allocation2 + $0x150] sm:$0xff]
        %v3807 = vld [vmem:[#allocation2 + $0x158] sm:$0xff]
        %v3808 = vld [vmem:[#allocation2 + $0x160] sm:$0xff]
        %v3809 = vld [vmem:[#allocation2 + $0x168] sm:$0xff]
        %v3810 = vld [vmem:[#allocation2 + $0x170] sm:$0xff]
        %v3811 = vld [vmem:[#allocation2 + $0x178] sm:$0xff]
        %v3812 = vld [vmem:[#allocation2 + $0x180] sm:$0xff]
        %v3813 = vld [vmem:[#allocation2 + $0x188] sm:$0xff]
        %v3814 = vld [vmem:[#allocation2 + $0x190] sm:$0xff]
        %v3815 = vld [vmem:[#allocation2 + $0x198] sm:$0xff]
        %v3816 = vld [vmem:[#allocation2 + $0x1a0] sm:$0xff]
        %v3817 = vld [vmem:[#allocation2 + $0x1a8] sm:$0xff]
        %v3818 = vld [vmem:[#allocation2 + $0x1b0] sm:$0xff]
        %v3819 = vld [vmem:[#allocation2 + $0x1b8] sm:$0xff]
        %v3820 = vld [vmem:[#allocation2 + $0x1c0] sm:$0xff]
        %v3821 = vld [vmem:[#allocation2 + $0x1c8] sm:$0xff]
        %v3822 = vld [vmem:[#allocation2 + $0x1d0] sm:$0xff]
        %v3823 = vld [vmem:[#allocation2 + $0x1d8] sm:$0xff]
        %v3824 = vld [vmem:[#allocation2 + $0x1e0] sm:$0xff]
        %v3825 = vld [vmem:[#allocation2 + $0x1e8] sm:$0xff]
        %v3826 = vld [vmem:[#allocation2 + $0x1f0] sm:$0xff]
        %v3827 = vld [vmem:[#allocation2 + $0x1f8] sm:$0xff]
        %v3828 = vld [vmem:[#allocation2 + $0x200] sm:$0xff]
        %v3829 = vld [vmem:[#allocation2 + $0x208] sm:$0xff]
        %v3830 = vld [vmem:[#allocation2 + $0x210] sm:$0xff]
        %v3831 = vld [vmem:[#allocation2 + $0x218] sm:$0xff]
        %v3832 = vld [vmem:[#allocation2 + $0x220] sm:$0xff]
        %v3833 = vld [vmem:[#allocation2 + $0x228] sm:$0xff]
        %v3834 = vld [vmem:[#allocation2 + $0x230] sm:$0xff]
        %v3835 = vld [vmem:[#allocation2 + $0x238] sm:$0xff]
        %v3836 = vld [vmem:[#allocation2 + $0x240] sm:$0xff]
        %v3837 = vld [vmem:[#allocation2 + $0x248] sm:$0xff]
        %v3838 = vld [vmem:[#allocation2 + $0x250] sm:$0xff]
        %v3839 = vld [vmem:[#allocation2 + $0x258] sm:$0xff]
        %v3840 = vld [vmem:[#allocation2 + $0x260] sm:$0xff]
        %v3841 = vld [vmem:[#allocation2 + $0x268] sm:$0xff]
        %v3842 = vld [vmem:[#allocation2 + $0x270] sm:$0xff]
        %v3843 = vld [vmem:[#allocation2 + $0x278] sm:$0xff]
        %v3844 = vld [vmem:[#allocation2 + $0x280] sm:$0xff]
        %v3845 = vld [vmem:[#allocation2 + $0x288] sm:$0xff]
        %v3846 = vld [vmem:[#allocation2 + $0x290] sm:$0xff]
        %v3847 = vld [vmem:[#allocation2 + $0x298] sm:$0xff]
        %v3848 = vld [vmem:[#allocation2 + $0x2a0] sm:$0xff]
        %v3849 = vld [vmem:[#allocation2 + $0x2a8] sm:$0xff]
        %v3850 = vld [vmem:[#allocation2 + $0x2b0] sm:$0xff]
        %v3851 = vld [vmem:[#allocation2 + $0x2b8] sm:$0xff]
        %v3852 = vld [vmem:[#allocation2 + $0x2c0] sm:$0xff]
        %v3853 = vld [vmem:[#allocation2 + $0x2c8] sm:$0xff]
        %v3854 = vld [vmem:[#allocation2 + $0x2d0] sm:$0xff]
        %v3855 = vld [vmem:[#allocation2 + $0x2d8] sm:$0xff]
        %v3856 = vld [vmem:[#allocation2 + $0x2e0] sm:$0xff]
        %v3857 = vld [vmem:[#allocation2 + $0x2e8] sm:$0xff]
        %v3858 = vld [vmem:[#allocation2 + $0x2f0] sm:$0xff]
        %v3859 = vld [vmem:[#allocation2 + $0x2f8] sm:$0xff]
        %v3860 = vld [vmem:[#allocation2 + $0x300] sm:$0xff]
        %v3861 = vld [vmem:[#allocation2 + $0x308] sm:$0xff]
        %v3862 = vld [vmem:[#allocation2 + $0x310] sm:$0xff]
        %v3863 = vld [vmem:[#allocation2 + $0x318] sm:$0xff]
        %v3864 = vld [vmem:[#allocation2 + $0x320] sm:$0xff]
        %v3865 = vld [vmem:[#allocation2 + $0x328] sm:$0xff]
        %v3866 = vld [vmem:[#allocation2 + $0x330] sm:$0xff]
        %v3867 = vld [vmem:[#allocation2 + $0x338] sm:$0xff]
        %v3868 = vld [vmem:[#allocation2 + $0x340] sm:$0xf]
        %v3869 = vld [vmem:[#allocation2 + $0x348] sm:$0xf]
        %v3870 = vld [vmem:[#allocation2 + $0x350] sm:$0xf]
        %v3871 = vld [vmem:[#allocation2 + $0x358] sm:$0xf]
        %v3872 = vld [vmem:[#allocation2 + $0x360] sm:$0xf]
        %v3873 = vld [vmem:[#allocation2 + $0x368] sm:$0xf]
        %v3874 = vld [vmem:[#allocation2 + $0x370] sm:$0xf]
        %v3875 = vld [vmem:[#allocation2 + $0x378] sm:$0xf]
        %v3877 = vsel %vm1858, %v3868, 0
        %v3880 = vsel %vm1858, %v3869, 0
        %v3883 = vsel %vm1858, %v3870, 0
        %v3886 = vsel %vm1858, %v3871, 0
        %v3889 = vsel %vm1858, %v3872, 0
        %v3892 = vsel %vm1858, %v3873, 0
        %v3895 = vsel %vm1858, %v3874, 0
        %v3898 = vsel %vm1858, %v3875, 0
        %3900 = vmatprep.subr.mxu0 0.0
        %3901 = vmatpush1.msra.mxu0 0.0
        %3902 = vmatprep.subr.mxu0 0.0
        %3903 = vmatpush1.msra.mxu0 0.0
        %3904 = vmatprep.subr.mxu0 %v3880
        %3905 = vmatpush1.msra.mxu0 %v3877
        %3906 = vmatprep.subr.mxu0 %v3861
        %3907 = vmatpush1.msra.mxu0 %v3860
        %3908 = vmatprep.subr.mxu0 %v3853
        %3909 = vmatpush1.msra.mxu0 %v3852
        %3910 = vmatprep.subr.mxu0 %v3845
        %3911 = vmatpush1.msra.mxu0 %v3844
        %3912 = vmatprep.subr.mxu0 %v3837
        %3913 = vmatpush1.msra.mxu0 %v3836
        %3914 = vmatprep.subr.mxu0 %v3829
        %3915 = vmatpush1.msra.mxu0 %v3828
        %3916 = vmatprep.subr.mxu0 %v3821
        %3917 = vmatpush1.msra.mxu0 %v3820
        %3918 = vmatprep.subr.mxu0 %v3813
        %3919 = vmatpush1.msra.mxu0 %v3812
        %3920 = vmatprep.subr.mxu0 %v3805
        %3921 = vmatpush1.msra.mxu0 %v3804
        %3922 = vmatprep.subr.mxu0 %v3797
        %3923 = vmatpush1.msra.mxu0 %v3796
        %3924 = vmatprep.subr.mxu0 %v3789
        %3925 = vmatpush1.msra.mxu0 %v3788
        %3926 = vmatprep.subr.mxu0 %v3781
        %3927 = vmatpush1.msra.mxu0 %v3780
        %3928 = vmatprep.subr.mxu0 %v3773
        %3929 = vmatpush1.msra.mxu0 %v3772
        %3930 = vmatprep.subr.mxu0 %v3765
        %3931 = vmatpush1.msra.mxu0 %v3764
        %3932 = vmatprep.subr.mxu0 0.0
        %3933 = vmatpush2.msra.mxu0 0.0
        %3934 = vmatprep.subr.mxu0 0.0
        %3935 = vmatpush2.msra.mxu0 0.0
        %3936 = vmatprep.subr.mxu0 0.0
        %3937 = vmatpush2.msra.mxu0 0.0
        %3938 = vmatprep.subr.mxu0 0.0
        %3939 = vmatpush2.msra.mxu0 0.0
        %3940 = vmatprep.subr.mxu0 0.0
        %3941 = vmatpush2.msra.mxu0 0.0
        %3942 = vmatprep.subr.mxu0 0.0
        %3943 = vmatpush2.msra.mxu0 0.0
        %3944 = vmatprep.subr.mxu0 0.0
        %3945 = vmatpush2.msra.mxu0 0.0
        %3946 = vmatprep.subr.mxu0 0.0
        %3947 = vmatpush2.msra.mxu0 0.0
        %3948 = vmatprep.subr.mxu0 0.0
        %3949 = vmatpush2.msra.mxu0 0.0
        %3950 = vmatprep.subr.mxu0 0.0
        %3951 = vmatpush2.msra.mxu0 0.0
        %3952 = vmatprep.subr.mxu0 0.0
        %3953 = vmatpush2.msra.mxu0 0.0
        %3954 = vmatprep.subr.mxu0 0.0
        %3955 = vmatpush2.msra.mxu0 0.0
        %3956 = vmatprep.subr.mxu0 0.0
        %3957 = vmatpush2.msra.mxu0 0.0
        %3958 = vmatprep.subr.mxu0 0.0
        %3959 = vmatpush2.msra.mxu0 0.0
        %3960 = vmatprep.subr.mxu0 0.0
        %3961 = vmatpush2.msra.mxu0 0.0
        %3962 = vmatprep.subr.mxu0 0.0
        %3963 = vmatpush2.msra.mxu0 0.0
        %3964 = vmatprep.mubr.f32.mxu0 0.0
        %3965 = vmatmul.mubr.f32.gmra.mxu0 %v1847
        %v3966 = vpop.f32.mrf.mxu0
        %v3967 = vadd.f32 %v1829, %v3966
        %v3968 = vpop.f32.mrf.mxu0
        %v3969 = vadd.f32 %v1829, %v3968
        %3970 = vmatprep.mubr.f32.mxu0 0.0
        %3971 = vmatmul.mubr.f32.gmra.mxu0 %v1850
        %v3972 = vpop.f32.mrf.mxu0
        %v3973 = vadd.f32 %v1834, %v3972
        %v3974 = vpop.f32.mrf.mxu0
        %v3975 = vadd.f32 %v1834, %v3974
        %3976 = vmatprep.mubr.f32.mxu0 0.0
        %3977 = vmatmul.mubr.f32.gmra.mxu0 %v1853
        %v3978 = vpop.f32.mrf.mxu0
        %v3979 = vadd.f32 %v1839, %v3978
        %v3980 = vpop.f32.mrf.mxu0
        %v3981 = vadd.f32 %v1839, %v3980
        %3982 = vmatprep.mubr.f32.mxu0 0.0
        %3983 = vmatmul.mubr.f32.gmra.mxu0 %v1856
        %v3984 = vpop.f32.mrf.mxu0
        %v3985 = vadd.f32 %v1844, %v3984
        %v3986 = vpop.f32.mrf.mxu0
        %v3987 = vadd.f32 %v1844, %v3986
        %3988 = vdwg.mxu0
        %3989 = vmatprep.subr.mxu0 0.0
        %3990 = vmatpush1.msra.mxu0 0.0
        %3991 = vmatprep.subr.mxu0 0.0
        %3992 = vmatpush1.msra.mxu0 0.0
        %3993 = vmatprep.subr.mxu0 %v3886
        %3994 = vmatpush1.msra.mxu0 %v3883
        %3995 = vmatprep.subr.mxu0 %v3863
        %3996 = vmatpush1.msra.mxu0 %v3862
        %3997 = vmatprep.subr.mxu0 %v3855
        %3998 = vmatpush1.msra.mxu0 %v3854
        %3999 = vmatprep.subr.mxu0 %v3847
        %4000 = vmatpush1.msra.mxu0 %v3846
        %4001 = vmatprep.subr.mxu0 %v3839
        %4002 = vmatpush1.msra.mxu0 %v3838
        %4003 = vmatprep.subr.mxu0 %v3831
        %4004 = vmatpush1.msra.mxu0 %v3830
        %4005 = vmatprep.subr.mxu0 %v3823
        %4006 = vmatpush1.msra.mxu0 %v3822
        %4007 = vmatprep.subr.mxu0 %v3815
        %4008 = vmatpush1.msra.mxu0 %v3814
        %4009 = vmatprep.subr.mxu0 %v3807
        %4010 = vmatpush1.msra.mxu0 %v3806
        %4011 = vmatprep.subr.mxu0 %v3799
        %4012 = vmatpush1.msra.mxu0 %v3798
        %4013 = vmatprep.subr.mxu0 %v3791
        %4014 = vmatpush1.msra.mxu0 %v3790
        %4015 = vmatprep.subr.mxu0 %v3783
        %4016 = vmatpush1.msra.mxu0 %v3782
        %4017 = vmatprep.subr.mxu0 %v3775
        %4018 = vmatpush1.msra.mxu0 %v3774
        %4019 = vmatprep.subr.mxu0 %v3767
        %4020 = vmatpush1.msra.mxu0 %v3766
        %4021 = vmatprep.subr.mxu0 0.0
        %4022 = vmatpush2.msra.mxu0 0.0
        %4023 = vmatprep.subr.mxu0 0.0
        %4024 = vmatpush2.msra.mxu0 0.0
        %4025 = vmatprep.subr.mxu0 0.0
        %4026 = vmatpush2.msra.mxu0 0.0
        %4027 = vmatprep.subr.mxu0 0.0
        %4028 = vmatpush2.msra.mxu0 0.0
        %4029 = vmatprep.subr.mxu0 0.0
        %4030 = vmatpush2.msra.mxu0 0.0
        %4031 = vmatprep.subr.mxu0 0.0
        %4032 = vmatpush2.msra.mxu0 0.0
        %4033 = vmatprep.subr.mxu0 0.0
        %4034 = vmatpush2.msra.mxu0 0.0
        %4035 = vmatprep.subr.mxu0 0.0
        %4036 = vmatpush2.msra.mxu0 0.0
        %4037 = vmatprep.subr.mxu0 0.0
        %4038 = vmatpush2.msra.mxu0 0.0
        %4039 = vmatprep.subr.mxu0 0.0
        %4040 = vmatpush2.msra.mxu0 0.0
        %4041 = vmatprep.subr.mxu0 0.0
        %4042 = vmatpush2.msra.mxu0 0.0
        %4043 = vmatprep.subr.mxu0 0.0
        %4044 = vmatpush2.msra.mxu0 0.0
        %4045 = vmatprep.subr.mxu0 0.0
        %4046 = vmatpush2.msra.mxu0 0.0
        %4047 = vmatprep.subr.mxu0 0.0
        %4048 = vmatpush2.msra.mxu0 0.0
        %4049 = vmatprep.subr.mxu0 0.0
        %4050 = vmatpush2.msra.mxu0 0.0
        %4051 = vmatprep.subr.mxu0 0.0
        %4052 = vmatpush2.msra.mxu0 0.0
        %4053 = vmatprep.mubr.f32.mxu0 0.0
        %4054 = vmatmul.mubr.f32.gmra.mxu0 %v1847
        %v4055 = vpop.f32.mrf.mxu0
        %v4056 = vadd.f32 %v1829, %v4055
        %v4057 = vpop.f32.mrf.mxu0
        %v4058 = vadd.f32 %v1829, %v4057
        %4059 = vmatprep.mubr.f32.mxu0 0.0
        %4060 = vmatmul.mubr.f32.gmra.mxu0 %v1850
        %v4061 = vpop.f32.mrf.mxu0
        %v4062 = vadd.f32 %v1834, %v4061
        %v4063 = vpop.f32.mrf.mxu0
        %v4064 = vadd.f32 %v1834, %v4063
        %4065 = vmatprep.mubr.f32.mxu0 0.0
        %4066 = vmatmul.mubr.f32.gmra.mxu0 %v1853
        %v4067 = vpop.f32.mrf.mxu0
        %v4068 = vadd.f32 %v1839, %v4067
        %v4069 = vpop.f32.mrf.mxu0
        %v4070 = vadd.f32 %v1839, %v4069
        %4071 = vmatprep.mubr.f32.mxu0 0.0
        %4072 = vmatmul.mubr.f32.gmra.mxu0 %v1856
        %v4073 = vpop.f32.mrf.mxu0
        %v4074 = vadd.f32 %v1844, %v4073
        %v4075 = vpop.f32.mrf.mxu0
        %v4076 = vadd.f32 %v1844, %v4075
        %4077 = vdwg.mxu0
        %4078 = vmatprep.subr.mxu0 0.0
        %4079 = vmatpush1.msra.mxu0 0.0
        %4080 = vmatprep.subr.mxu0 0.0
        %4081 = vmatpush1.msra.mxu0 0.0
        %4082 = vmatprep.subr.mxu0 %v3892
        %4083 = vmatpush1.msra.mxu0 %v3889
        %4084 = vmatprep.subr.mxu0 %v3865
        %4085 = vmatpush1.msra.mxu0 %v3864
        %4086 = vmatprep.subr.mxu0 %v3857
        %4087 = vmatpush1.msra.mxu0 %v3856
        %4088 = vmatprep.subr.mxu0 %v3849
        %4089 = vmatpush1.msra.mxu0 %v3848
        %4090 = vmatprep.subr.mxu0 %v3841
        %4091 = vmatpush1.msra.mxu0 %v3840
        %4092 = vmatprep.subr.mxu0 %v3833
        %4093 = vmatpush1.msra.mxu0 %v3832
        %4094 = vmatprep.subr.mxu0 %v3825
        %4095 = vmatpush1.msra.mxu0 %v3824
        %4096 = vmatprep.subr.mxu0 %v3817
        %4097 = vmatpush1.msra.mxu0 %v3816
        %4098 = vmatprep.subr.mxu0 %v3809
        %4099 = vmatpush1.msra.mxu0 %v3808
        %4100 = vmatprep.subr.mxu0 %v3801
        %4101 = vmatpush1.msra.mxu0 %v3800
        %4102 = vmatprep.subr.mxu0 %v3793
        %4103 = vmatpush1.msra.mxu0 %v3792
        %4104 = vmatprep.subr.mxu0 %v3785
        %4105 = vmatpush1.msra.mxu0 %v3784
        %4106 = vmatprep.subr.mxu0 %v3777
        %4107 = vmatpush1.msra.mxu0 %v3776
        %4108 = vmatprep.subr.mxu0 %v3769
        %4109 = vmatpush1.msra.mxu0 %v3768
        %4110 = vmatprep.subr.mxu0 0.0
        %4111 = vmatpush2.msra.mxu0 0.0
        %4112 = vmatprep.subr.mxu0 0.0
        %4113 = vmatpush2.msra.mxu0 0.0
        %4114 = vmatprep.subr.mxu0 0.0
        %4115 = vmatpush2.msra.mxu0 0.0
        %4116 = vmatprep.subr.mxu0 0.0
        %4117 = vmatpush2.msra.mxu0 0.0
        %4118 = vmatprep.subr.mxu0 0.0
        %4119 = vmatpush2.msra.mxu0 0.0
        %4120 = vmatprep.subr.mxu0 0.0
        %4121 = vmatpush2.msra.mxu0 0.0
        %4122 = vmatprep.subr.mxu0 0.0
        %4123 = vmatpush2.msra.mxu0 0.0
        %4124 = vmatprep.subr.mxu0 0.0
        %4125 = vmatpush2.msra.mxu0 0.0
        %4126 = vmatprep.subr.mxu0 0.0
        %4127 = vmatpush2.msra.mxu0 0.0
        %4128 = vmatprep.subr.mxu0 0.0
        %4129 = vmatpush2.msra.mxu0 0.0
        %4130 = vmatprep.subr.mxu0 0.0
        %4131 = vmatpush2.msra.mxu0 0.0
        %4132 = vmatprep.subr.mxu0 0.0
        %4133 = vmatpush2.msra.mxu0 0.0
        %4134 = vmatprep.subr.mxu0 0.0
        %4135 = vmatpush2.msra.mxu0 0.0
        %4136 = vmatprep.subr.mxu0 0.0
        %4137 = vmatpush2.msra.mxu0 0.0
        %4138 = vmatprep.subr.mxu0 0.0
        %4139 = vmatpush2.msra.mxu0 0.0
        %4140 = vmatprep.subr.mxu0 0.0
        %4141 = vmatpush2.msra.mxu0 0.0
        %4142 = vmatprep.mubr.f32.mxu0 0.0
        %4143 = vmatmul.mubr.f32.gmra.mxu0 %v1847
        %v4144 = vpop.f32.mrf.mxu0
        %v4145 = vadd.f32 %v1829, %v4144
        %v4146 = vpop.f32.mrf.mxu0
        %v4147 = vadd.f32 %v1829, %v4146
        %4148 = vmatprep.mubr.f32.mxu0 0.0
        %4149 = vmatmul.mubr.f32.gmra.mxu0 %v1850
        %v4150 = vpop.f32.mrf.mxu0
        %v4151 = vadd.f32 %v1834, %v4150
        %v4152 = vpop.f32.mrf.mxu0
        %v4153 = vadd.f32 %v1834, %v4152
        %4154 = vmatprep.mubr.f32.mxu0 0.0
        %4155 = vmatmul.mubr.f32.gmra.mxu0 %v1853
        %v4156 = vpop.f32.mrf.mxu0
        %v4157 = vadd.f32 %v1839, %v4156
        %v4158 = vpop.f32.mrf.mxu0
        %v4159 = vadd.f32 %v1839, %v4158
        %4160 = vmatprep.mubr.f32.mxu0 0.0
        %4161 = vmatmul.mubr.f32.gmra.mxu0 %v1856
        %v4162 = vpop.f32.mrf.mxu0
        %v4163 = vadd.f32 %v1844, %v4162
        %v4164 = vpop.f32.mrf.mxu0
        %v4165 = vadd.f32 %v1844, %v4164
        %4166 = vdwg.mxu0
        %4167 = vmatprep.subr.mxu0 0.0
        %4168 = vmatpush1.msra.mxu0 0.0
        %4169 = vmatprep.subr.mxu0 0.0
        %4170 = vmatpush1.msra.mxu0 0.0
        %4171 = vmatprep.subr.mxu0 %v3898
        %4172 = vmatpush1.msra.mxu0 %v3895
        %4173 = vmatprep.subr.mxu0 %v3867
        %4174 = vmatpush1.msra.mxu0 %v3866
        %4175 = vmatprep.subr.mxu0 %v3859
        %4176 = vmatpush1.msra.mxu0 %v3858
        %4177 = vmatprep.subr.mxu0 %v3851
        %4178 = vmatpush1.msra.mxu0 %v3850
        %4179 = vmatprep.subr.mxu0 %v3843
        %4180 = vmatpush1.msra.mxu0 %v3842
        %4181 = vmatprep.subr.mxu0 %v3835
        %4182 = vmatpush1.msra.mxu0 %v3834
        %4183 = vmatprep.subr.mxu0 %v3827
        %4184 = vmatpush1.msra.mxu0 %v3826
        %4185 = vmatprep.subr.mxu0 %v3819
        %4186 = vmatpush1.msra.mxu0 %v3818
        %4187 = vmatprep.subr.mxu0 %v3811
        %4188 = vmatpush1.msra.mxu0 %v3810
        %4189 = vmatprep.subr.mxu0 %v3803
        %4190 = vmatpush1.msra.mxu0 %v3802
        %4191 = vmatprep.subr.mxu0 %v3795
        %4192 = vmatpush1.msra.mxu0 %v3794
        %4193 = vmatprep.subr.mxu0 %v3787
        %4194 = vmatpush1.msra.mxu0 %v3786
        %4195 = vmatprep.subr.mxu0 %v3779
        %4196 = vmatpush1.msra.mxu0 %v3778
        %4197 = vmatprep.subr.mxu0 %v3771
        %4198 = vmatpush1.msra.mxu0 %v3770
        %4199 = vmatprep.subr.mxu0 0.0
        %4200 = vmatpush2.msra.mxu0 0.0
        %4201 = vmatprep.subr.mxu0 0.0
        %4202 = vmatpush2.msra.mxu0 0.0
        %4203 = vmatprep.subr.mxu0 0.0
        %4204 = vmatpush2.msra.mxu0 0.0
        %4205 = vmatprep.subr.mxu0 0.0
        %4206 = vmatpush2.msra.mxu0 0.0
        %4207 = vmatprep.subr.mxu0 0.0
        %4208 = vmatpush2.msra.mxu0 0.0
        %4209 = vmatprep.subr.mxu0 0.0
        %4210 = vmatpush2.msra.mxu0 0.0
        %4211 = vmatprep.subr.mxu0 0.0
        %4212 = vmatpush2.msra.mxu0 0.0
        %4213 = vmatprep.subr.mxu0 0.0
        %4214 = vmatpush2.msra.mxu0 0.0
        %4215 = vmatprep.subr.mxu0 0.0
        %4216 = vmatpush2.msra.mxu0 0.0
        %4217 = vmatprep.subr.mxu0 0.0
        %4218 = vmatpush2.msra.mxu0 0.0
        %4219 = vmatprep.subr.mxu0 0.0
        %4220 = vmatpush2.msra.mxu0 0.0
        %4221 = vmatprep.subr.mxu0 0.0
        %4222 = vmatpush2.msra.mxu0 0.0
        %4223 = vmatprep.subr.mxu0 0.0
        %4224 = vmatpush2.msra.mxu0 0.0
        %4225 = vmatprep.subr.mxu0 0.0
        %4226 = vmatpush2.msra.mxu0 0.0
        %4227 = vmatprep.subr.mxu0 0.0
        %4228 = vmatpush2.msra.mxu0 0.0
        %4229 = vmatprep.subr.mxu0 0.0
        %4230 = vmatpush2.msra.mxu0 0.0
        %4231 = vmatprep.mubr.f32.mxu0 0.0
        %4232 = vmatmul.mubr.f32.gmra.mxu0 %v1847
        %v4233 = vpop.f32.mrf.mxu0
        %v4234 = vadd.f32 %v1829, %v4233
        %v4235 = vpop.f32.mrf.mxu0
        %v4236 = vadd.f32 %v1829, %v4235
        %4237 = vmatprep.mubr.f32.mxu0 0.0
        %4238 = vmatmul.mubr.f32.gmra.mxu0 %v1850
        %v4239 = vpop.f32.mrf.mxu0
        %v4240 = vadd.f32 %v1834, %v4239
        %v4241 = vpop.f32.mrf.mxu0
        %v4242 = vadd.f32 %v1834, %v4241
        %4243 = vmatprep.mubr.f32.mxu0 0.0
        %4244 = vmatmul.mubr.f32.gmra.mxu0 %v1853
        %v4245 = vpop.f32.mrf.mxu0
        %v4246 = vadd.f32 %v1839, %v4245
        %v4247 = vpop.f32.mrf.mxu0
        %v4248 = vadd.f32 %v1839, %v4247
        %4249 = vmatprep.mubr.f32.mxu0 0.0
        %4250 = vmatmul.mubr.f32.gmra.mxu0 %v1856
        %v4251 = vpop.f32.mrf.mxu0
        %v4252 = vadd.f32 %v1844, %v4251
        %v4253 = vpop.f32.mrf.mxu0
        %v4254 = vadd.f32 %v1844, %v4253
        %4255 = vdwg.mxu0
        %4256 = vst [vmem:[%s186 + $0x40] sm:$0xff] %v3967
        %4257 = vst [vmem:[%s186 + $0x48] sm:$0xff] %v3969
        %4258 = vst [vmem:[%s186 + $0x50] sm:$0xff] %v4056
        %4259 = vst [vmem:[%s186 + $0x58] sm:$0xff] %v4058
        %4260 = vst [vmem:[%s186 + $0x60] sm:$0xff] %v4145
        %4261 = vst [vmem:[%s186 + $0x68] sm:$0xff] %v4147
        %4262 = vst [vmem:[%s186 + $0x70] sm:$0xff] %v4234
        %4263 = vst [vmem:[%s186 + $0x78] sm:$0xff] %v4236
        %4264 = vst [vmem:[%s186 + $0x100] sm:$0xff] %v3973
        %4265 = vst [vmem:[%s186 + $0x108] sm:$0xff] %v3975
        %4266 = vst [vmem:[%s186 + $0x110] sm:$0xff] %v4062
        %4267 = vst [vmem:[%s186 + $0x118] sm:$0xff] %v4064
        %4268 = vst [vmem:[%s186 + $0x120] sm:$0xff] %v4151
        %4269 = vst [vmem:[%s186 + $0x128] sm:$0xff] %v4153
        %4270 = vst [vmem:[%s186 + $0x130] sm:$0xff] %v4240
        %4271 = vst [vmem:[%s186 + $0x138] sm:$0xff] %v4242
        %4272 = vst [vmem:[%s186 + $0x1c0] sm:$0xff] %v3979
        %4273 = vst [vmem:[%s186 + $0x1c8] sm:$0xff] %v3981
        %4274 = vst [vmem:[%s186 + $0x1d0] sm:$0xff] %v4068
        %4275 = vst [vmem:[%s186 + $0x1d8] sm:$0xff] %v4070
        %4276 = vst [vmem:[%s186 + $0x1e0] sm:$0xff] %v4157
        %4277 = vst [vmem:[%s186 + $0x1e8] sm:$0xff] %v4159
        %4278 = vst [vmem:[%s186 + $0x1f0] sm:$0xff] %v4246
        %4279 = vst [vmem:[%s186 + $0x1f8] sm:$0xff] %v4248
        %4280 = vst [vmem:[%s186 + $0x280] sm:$0xff] %v3985
        %4281 = vst [vmem:[%s186 + $0x288] sm:$0xff] %v3987
        %4282 = vst [vmem:[%s186 + $0x290] sm:$0xff] %v4074
        %4283 = vst [vmem:[%s186 + $0x298] sm:$0xff] %v4076
        %4284 = vst [vmem:[%s186 + $0x2a0] sm:$0xff] %v4163
        %4285 = vst [vmem:[%s186 + $0x2a8] sm:$0xff] %v4165
        %4286 = vst [vmem:[%s186 + $0x2b0] sm:$0xff] %v4252
        %4287 = vst [vmem:[%s186 + $0x2b8] sm:$0xff] %v4254
        %v4288 = vld [vmem:[%s164 + $0x40] sm:$0xff]
        %v4289 = vld [vmem:[%s164 + $0x48] sm:$0xff]
        %v4290 = vld [vmem:[%s164 + $0x50] sm:$0xff]
        %v4291 = vld [vmem:[%s164 + $0x58] sm:$0xff]
        %v4296 = vcombine.high %v4288, %v4288
        %v4297 = vcombine.high %v4289, %v4289
        %v4298 = vcombine.high %v4290, %v4290
        %v4299 = vcombine.high %v4291, %v4291
        %4304 = vst [vmem:[#allocation2] sm:$0xf] %v4288
        %4305 = vst [vmem:[#allocation2 + $0x8] sm:$0xf] %v4296
        %4306 = vst [vmem:[#allocation2 + $0x10] sm:$0xf] %v4289
        %4307 = vst [vmem:[#allocation2 + $0x18] sm:$0xf] %v4297
        %4308 = vst [vmem:[#allocation2 + $0x20] sm:$0xf] %v4290
        %4309 = vst [vmem:[#allocation2 + $0x28] sm:$0xf] %v4298
        %4310 = vst [vmem:[#allocation2 + $0x30] sm:$0xf] %v4291
        %4311 = vst [vmem:[#allocation2 + $0x38] sm:$0xf] %v4299
        %v4312 = vld [vmem:[%s164 + $0x40] sm:$0xff]
        %v4313 = vld [vmem:[%s164 + $0x48] sm:$0xff]
        %v4314 = vld [vmem:[%s164 + $0x50] sm:$0xff]
        %v4315 = vld [vmem:[%s164 + $0x58] sm:$0xff]
        %v4316 = vld [vmem:[%s164 + $0x60] sm:$0xf]
        %v4322 = vcombine.low %v4312, %v4312
        %v4323 = vcombine.low %v4313, %v4313
        %v4324 = vcombine.low %v4314, %v4314
        %v4325 = vcombine.low %v4315, %v4315
        %v4326 = vcombine.low %v4316, %v4316
        %4327 = vrot.lane.b32.xlu0 %v4322, 127
        %v4328 = vpop.permute.xlu0 %4327
        %4329 = vrot.lane.b32.xlu0 %v4312, 127
        %v4330 = vpop.permute.xlu0 %4329
        %4331 = vrot.lane.b32.xlu0 %v4323, 127
        %v4332 = vpop.permute.xlu0 %4331
        %4333 = vrot.lane.b32.xlu0 %v4313, 127
        %v4334 = vpop.permute.xlu0 %4333
        %4335 = vrot.lane.b32.xlu0 %v4324, 127
        %v4336 = vpop.permute.xlu0 %4335
        %4337 = vrot.lane.b32.xlu0 %v4314, 127
        %v4338 = vpop.permute.xlu0 %4337
        %4339 = vrot.lane.b32.xlu0 %v4325, 127
        %v4340 = vpop.permute.xlu0 %4339
        %4341 = vrot.lane.b32.xlu0 %v4315, 127
        %v4342 = vpop.permute.xlu0 %4341
        %4343 = vrot.lane.b32.xlu0 %v4326, 127
        %v4344 = vpop.permute.xlu0 %4343
        %v4345 = vsel %vm252, %v4328, %v4330
        %v4346 = vsel %vm252, %v4330, %v4332
        %v4347 = vsel %vm252, %v4332, %v4334
        %v4348 = vsel %vm252, %v4334, %v4336
        %v4349 = vsel %vm252, %v4336, %v4338
        %v4350 = vsel %vm252, %v4338, %v4340
        %v4351 = vsel %vm252, %v4340, %v4342
        %v4352 = vsel %vm252, %v4342, %v4344
        %4361 = vst [vmem:[#allocation2] sm:$0xf0] %v4345
        %4362 = vst [vmem:[#allocation2 + $0x8] sm:$0xf0] %v4346
        %4363 = vst [vmem:[#allocation2 + $0x10] sm:$0xf0] %v4347
        %4364 = vst [vmem:[#allocation2 + $0x18] sm:$0xf0] %v4348
        %4365 = vst [vmem:[#allocation2 + $0x20] sm:$0xf0] %v4349
        %4366 = vst [vmem:[#allocation2 + $0x28] sm:$0xf0] %v4350
        %4367 = vst [vmem:[#allocation2 + $0x30] sm:$0xf0] %v4351
        %4368 = vst [vmem:[#allocation2 + $0x38] sm:$0xf0] %v4352
        %v4369 = vld [vmem:[%s164 + $0x40] sm:$0xff]
        %v4370 = vld [vmem:[%s164 + $0x48] sm:$0xff]
        %v4371 = vld [vmem:[%s164 + $0x50] sm:$0xff]
        %v4372 = vld [vmem:[%s164 + $0x58] sm:$0xff]
        %v4373 = vld [vmem:[%s164 + $0x60] sm:$0xf]
        %v4379 = vcombine.high %v4369, %v4369
        %v4380 = vcombine.high %v4370, %v4370
        %v4381 = vcombine.high %v4371, %v4371
        %v4382 = vcombine.high %v4372, %v4372
        %4383 = vrot.lane.b32.xlu0 %v4369, 126
        %v4384 = vpop.permute.xlu0 %4383
        %4385 = vrot.lane.b32.xlu0 %v4379, 126
        %v4386 = vpop.permute.xlu0 %4385
        %4387 = vrot.lane.b32.xlu0 %v4370, 126
        %v4388 = vpop.permute.xlu0 %4387
        %4389 = vrot.lane.b32.xlu0 %v4380, 126
        %v4390 = vpop.permute.xlu0 %4389
        %4391 = vrot.lane.b32.xlu0 %v4371, 126
        %v4392 = vpop.permute.xlu0 %4391
        %4393 = vrot.lane.b32.xlu0 %v4381, 126
        %v4394 = vpop.permute.xlu0 %4393
        %4395 = vrot.lane.b32.xlu0 %v4372, 126
        %v4396 = vpop.permute.xlu0 %4395
        %4397 = vrot.lane.b32.xlu0 %v4382, 126
        %v4398 = vpop.permute.xlu0 %4397
        %4399 = vrot.lane.b32.xlu0 %v4373, 126
        %v4400 = vpop.permute.xlu0 %4399
        %v4401 = vsel %vm309, %v4384, %v4386
        %v4402 = vsel %vm309, %v4386, %v4388
        %v4403 = vsel %vm309, %v4388, %v4390
        %v4404 = vsel %vm309, %v4390, %v4392
        %v4405 = vsel %vm309, %v4392, %v4394
        %v4406 = vsel %vm309, %v4394, %v4396
        %v4407 = vsel %vm309, %v4396, %v4398
        %v4408 = vsel %vm309, %v4398, %v4400
        %4417 = vst [vmem:[#allocation2 + $0x40] sm:$0xf] %v4401
        %4418 = vst [vmem:[#allocation2 + $0x48] sm:$0xf] %v4402
        %4419 = vst [vmem:[#allocation2 + $0x50] sm:$0xf] %v4403
        %4420 = vst [vmem:[#allocation2 + $0x58] sm:$0xf] %v4404
        %4421 = vst [vmem:[#allocation2 + $0x60] sm:$0xf] %v4405
        %4422 = vst [vmem:[#allocation2 + $0x68] sm:$0xf] %v4406
        %4423 = vst [vmem:[#allocation2 + $0x70] sm:$0xf] %v4407
        %4424 = vst [vmem:[#allocation2 + $0x78] sm:$0xf] %v4408
        %v4425 = vld [vmem:[%s164 + $0x40] sm:$0xff]
        %v4426 = vld [vmem:[%s164 + $0x48] sm:$0xff]
        %v4427 = vld [vmem:[%s164 + $0x50] sm:$0xff]
        %v4428 = vld [vmem:[%s164 + $0x58] sm:$0xff]
        %v4429 = vld [vmem:[%s164 + $0x60] sm:$0xf]
        %v4435 = vcombine.low %v4425, %v4425
        %v4436 = vcombine.low %v4426, %v4426
        %v4437 = vcombine.low %v4427, %v4427
        %v4438 = vcombine.low %v4428, %v4428
        %v4439 = vcombine.low %v4429, %v4429
        %4440 = vrot.lane.b32.xlu0 %v4435, 110
        %v4441 = vpop.permute.xlu0 %4440
        %4442 = vrot.lane.b32.xlu0 %v4425, 110
        %v4443 = vpop.permute.xlu0 %4442
        %4444 = vrot.lane.b32.xlu0 %v4436, 110
        %v4445 = vpop.permute.xlu0 %4444
        %4446 = vrot.lane.b32.xlu0 %v4426, 110
        %v4447 = vpop.permute.xlu0 %4446
        %4448 = vrot.lane.b32.xlu0 %v4437, 110
        %v4449 = vpop.permute.xlu0 %4448
        %4450 = vrot.lane.b32.xlu0 %v4427, 110
        %v4451 = vpop.permute.xlu0 %4450
        %4452 = vrot.lane.b32.xlu0 %v4438, 110
        %v4453 = vpop.permute.xlu0 %4452
        %4454 = vrot.lane.b32.xlu0 %v4428, 110
        %v4455 = vpop.permute.xlu0 %4454
        %4456 = vrot.lane.b32.xlu0 %v4439, 110
        %v4457 = vpop.permute.xlu0 %4456
        %v4458 = vsel %vm367, %v4441, %v4443
        %v4459 = vsel %vm367, %v4443, %v4445
        %v4460 = vsel %vm367, %v4445, %v4447
        %v4461 = vsel %vm367, %v4447, %v4449
        %v4462 = vsel %vm367, %v4449, %v4451
        %v4463 = vsel %vm367, %v4451, %v4453
        %v4464 = vsel %vm367, %v4453, %v4455
        %v4465 = vsel %vm367, %v4455, %v4457
        %4474 = vst [vmem:[#allocation2 + $0x40] sm:$0xf0] %v4458
        %4475 = vst [vmem:[#allocation2 + $0x48] sm:$0xf0] %v4459
        %4476 = vst [vmem:[#allocation2 + $0x50] sm:$0xf0] %v4460
        %4477 = vst [vmem:[#allocation2 + $0x58] sm:$0xf0] %v4461
        %4478 = vst [vmem:[#allocation2 + $0x60] sm:$0xf0] %v4462
        %4479 = vst [vmem:[#allocation2 + $0x68] sm:$0xf0] %v4463
        %4480 = vst [vmem:[#allocation2 + $0x70] sm:$0xf0] %v4464
        %4481 = vst [vmem:[#allocation2 + $0x78] sm:$0xf0] %v4465
        %v4482 = vld [vmem:[%s164 + $0x40] sm:$0xff]
        %v4483 = vld [vmem:[%s164 + $0x48] sm:$0xff]
        %v4484 = vld [vmem:[%s164 + $0x50] sm:$0xff]
        %v4485 = vld [vmem:[%s164 + $0x58] sm:$0xff]
        %v4486 = vld [vmem:[%s164 + $0x60] sm:$0xf]
        %v4492 = vcombine.high %v4482, %v4482
        %v4493 = vcombine.high %v4483, %v4483
        %v4494 = vcombine.high %v4484, %v4484
        %v4495 = vcombine.high %v4485, %v4485
        %4496 = vrot.lane.b32.xlu0 %v4482, 109
        %v4497 = vpop.permute.xlu0 %4496
        %4498 = vrot.lane.b32.xlu0 %v4492, 109
        %v4499 = vpop.permute.xlu0 %4498
        %4500 = vrot.lane.b32.xlu0 %v4483, 109
        %v4501 = vpop.permute.xlu0 %4500
        %4502 = vrot.lane.b32.xlu0 %v4493, 109
        %v4503 = vpop.permute.xlu0 %4502
        %4504 = vrot.lane.b32.xlu0 %v4484, 109
        %v4505 = vpop.permute.xlu0 %4504
        %4506 = vrot.lane.b32.xlu0 %v4494, 109
        %v4507 = vpop.permute.xlu0 %4506
        %4508 = vrot.lane.b32.xlu0 %v4485, 109
        %v4509 = vpop.permute.xlu0 %4508
        %4510 = vrot.lane.b32.xlu0 %v4495, 109
        %v4511 = vpop.permute.xlu0 %4510
        %4512 = vrot.lane.b32.xlu0 %v4486, 109
        %v4513 = vpop.permute.xlu0 %4512
        %v4514 = vsel %vm424, %v4497, %v4499
        %v4515 = vsel %vm424, %v4499, %v4501
        %v4516 = vsel %vm424, %v4501, %v4503
        %v4517 = vsel %vm424, %v4503, %v4505
        %v4518 = vsel %vm424, %v4505, %v4507
        %v4519 = vsel %vm424, %v4507, %v4509
        %v4520 = vsel %vm424, %v4509, %v4511
        %v4521 = vsel %vm424, %v4511, %v4513
        %4530 = vst [vmem:[#allocation2 + $0x80] sm:$0xf] %v4514
        %4531 = vst [vmem:[#allocation2 + $0x88] sm:$0xf] %v4515
        %4532 = vst [vmem:[#allocation2 + $0x90] sm:$0xf] %v4516
        %4533 = vst [vmem:[#allocation2 + $0x98] sm:$0xf] %v4517
        %4534 = vst [vmem:[#allocation2 + $0xa0] sm:$0xf] %v4518
        %4535 = vst [vmem:[#allocation2 + $0xa8] sm:$0xf] %v4519
        %4536 = vst [vmem:[#allocation2 + $0xb0] sm:$0xf] %v4520
        %4537 = vst [vmem:[#allocation2 + $0xb8] sm:$0xf] %v4521
        %v4538 = vld [vmem:[%s164 + $0x40] sm:$0xff]
        %v4539 = vld [vmem:[%s164 + $0x48] sm:$0xff]
        %v4540 = vld [vmem:[%s164 + $0x50] sm:$0xff]
        %v4541 = vld [vmem:[%s164 + $0x58] sm:$0xff]
        %v4542 = vld [vmem:[%s164 + $0x60] sm:$0xf]
        %v4548 = vcombine.low %v4538, %v4538
        %v4549 = vcombine.low %v4539, %v4539
        %v4550 = vcombine.low %v4540, %v4540
        %v4551 = vcombine.low %v4541, %v4541
        %v4552 = vcombine.low %v4542, %v4542
        %4553 = vrot.lane.b32.xlu0 %v4548, 108
        %v4554 = vpop.permute.xlu0 %4553
        %4555 = vrot.lane.b32.xlu0 %v4538, 108
        %v4556 = vpop.permute.xlu0 %4555
        %4557 = vrot.lane.b32.xlu0 %v4549, 108
        %v4558 = vpop.permute.xlu0 %4557
        %4559 = vrot.lane.b32.xlu0 %v4539, 108
        %v4560 = vpop.permute.xlu0 %4559
        %4561 = vrot.lane.b32.xlu0 %v4550, 108
        %v4562 = vpop.permute.xlu0 %4561
        %4563 = vrot.lane.b32.xlu0 %v4540, 108
        %v4564 = vpop.permute.xlu0 %4563
        %4565 = vrot.lane.b32.xlu0 %v4551, 108
        %v4566 = vpop.permute.xlu0 %4565
        %4567 = vrot.lane.b32.xlu0 %v4541, 108
        %v4568 = vpop.permute.xlu0 %4567
        %4569 = vrot.lane.b32.xlu0 %v4552, 108
        %v4570 = vpop.permute.xlu0 %4569
        %v4571 = vsel %vm482, %v4554, %v4556
        %v4572 = vsel %vm482, %v4556, %v4558
        %v4573 = vsel %vm482, %v4558, %v4560
        %v4574 = vsel %vm482, %v4560, %v4562
        %v4575 = vsel %vm482, %v4562, %v4564
        %v4576 = vsel %vm482, %v4564, %v4566
        %v4577 = vsel %vm482, %v4566, %v4568
        %v4578 = vsel %vm482, %v4568, %v4570
        %4587 = vst [vmem:[#allocation2 + $0x80] sm:$0xf0] %v4571
        %4588 = vst [vmem:[#allocation2 + $0x88] sm:$0xf0] %v4572
        %4589 = vst [vmem:[#allocation2 + $0x90] sm:$0xf0] %v4573
        %4590 = vst [vmem:[#allocation2 + $0x98] sm:$0xf0] %v4574
        %4591 = vst [vmem:[#allocation2 + $0xa0] sm:$0xf0] %v4575
        %4592 = vst [vmem:[#allocation2 + $0xa8] sm:$0xf0] %v4576
        %4593 = vst [vmem:[#allocation2 + $0xb0] sm:$0xf0] %v4577
        %4594 = vst [vmem:[#allocation2 + $0xb8] sm:$0xf0] %v4578
        %v4595 = vld [vmem:[%s164 + $0x40] sm:$0xff]
        %v4596 = vld [vmem:[%s164 + $0x48] sm:$0xff]
        %v4597 = vld [vmem:[%s164 + $0x50] sm:$0xff]
        %v4598 = vld [vmem:[%s164 + $0x58] sm:$0xff]
        %v4599 = vld [vmem:[%s164 + $0x60] sm:$0xf]
        %v4605 = vcombine.high %v4595, %v4595
        %v4606 = vcombine.high %v4596, %v4596
        %v4607 = vcombine.high %v4597, %v4597
        %v4608 = vcombine.high %v4598, %v4598
        %4609 = vrot.lane.b32.xlu0 %v4595, 92
        %v4610 = vpop.permute.xlu0 %4609
        %4611 = vrot.lane.b32.xlu0 %v4605, 92
        %v4612 = vpop.permute.xlu0 %4611
        %4613 = vrot.lane.b32.xlu0 %v4596, 92
        %v4614 = vpop.permute.xlu0 %4613
        %4615 = vrot.lane.b32.xlu0 %v4606, 92
        %v4616 = vpop.permute.xlu0 %4615
        %4617 = vrot.lane.b32.xlu0 %v4597, 92
        %v4618 = vpop.permute.xlu0 %4617
        %4619 = vrot.lane.b32.xlu0 %v4607, 92
        %v4620 = vpop.permute.xlu0 %4619
        %4621 = vrot.lane.b32.xlu0 %v4598, 92
        %v4622 = vpop.permute.xlu0 %4621
        %4623 = vrot.lane.b32.xlu0 %v4608, 92
        %v4624 = vpop.permute.xlu0 %4623
        %4625 = vrot.lane.b32.xlu0 %v4599, 92
        %v4626 = vpop.permute.xlu0 %4625
        %v4627 = vsel %vm539, %v4610, %v4612
        %v4628 = vsel %vm539, %v4612, %v4614
        %v4629 = vsel %vm539, %v4614, %v4616
        %v4630 = vsel %vm539, %v4616, %v4618
        %v4631 = vsel %vm539, %v4618, %v4620
        %v4632 = vsel %vm539, %v4620, %v4622
        %v4633 = vsel %vm539, %v4622, %v4624
        %v4634 = vsel %vm539, %v4624, %v4626
        %4643 = vst [vmem:[#allocation2 + $0xc0] sm:$0xf] %v4627
        %4644 = vst [vmem:[#allocation2 + $0xc8] sm:$0xf] %v4628
        %4645 = vst [vmem:[#allocation2 + $0xd0] sm:$0xf] %v4629
        %4646 = vst [vmem:[#allocation2 + $0xd8] sm:$0xf] %v4630
        %4647 = vst [vmem:[#allocation2 + $0xe0] sm:$0xf] %v4631
        %4648 = vst [vmem:[#allocation2 + $0xe8] sm:$0xf] %v4632
        %4649 = vst [vmem:[#allocation2 + $0xf0] sm:$0xf] %v4633
        %4650 = vst [vmem:[#allocation2 + $0xf8] sm:$0xf] %v4634
        %v4651 = vld [vmem:[%s164 + $0x40] sm:$0xff]
        %v4652 = vld [vmem:[%s164 + $0x48] sm:$0xff]
        %v4653 = vld [vmem:[%s164 + $0x50] sm:$0xff]
        %v4654 = vld [vmem:[%s164 + $0x58] sm:$0xff]
        %v4655 = vld [vmem:[%s164 + $0x60] sm:$0xf]
        %v4661 = vcombine.low %v4651, %v4651
        %v4662 = vcombine.low %v4652, %v4652
        %v4663 = vcombine.low %v4653, %v4653
        %v4664 = vcombine.low %v4654, %v4654
        %v4665 = vcombine.low %v4655, %v4655
        %4666 = vrot.lane.b32.xlu0 %v4661, 91
        %v4667 = vpop.permute.xlu0 %4666
        %4668 = vrot.lane.b32.xlu0 %v4651, 91
        %v4669 = vpop.permute.xlu0 %4668
        %4670 = vrot.lane.b32.xlu0 %v4662, 91
        %v4671 = vpop.permute.xlu0 %4670
        %4672 = vrot.lane.b32.xlu0 %v4652, 91
        %v4673 = vpop.permute.xlu0 %4672
        %4674 = vrot.lane.b32.xlu0 %v4663, 91
        %v4675 = vpop.permute.xlu0 %4674
        %4676 = vrot.lane.b32.xlu0 %v4653, 91
        %v4677 = vpop.permute.xlu0 %4676
        %4678 = vrot.lane.b32.xlu0 %v4664, 91
        %v4679 = vpop.permute.xlu0 %4678
        %4680 = vrot.lane.b32.xlu0 %v4654, 91
        %v4681 = vpop.permute.xlu0 %4680
        %4682 = vrot.lane.b32.xlu0 %v4665, 91
        %v4683 = vpop.permute.xlu0 %4682
        %v4684 = vsel %vm597, %v4667, %v4669
        %v4685 = vsel %vm597, %v4669, %v4671
        %v4686 = vsel %vm597, %v4671, %v4673
        %v4687 = vsel %vm597, %v4673, %v4675
        %v4688 = vsel %vm597, %v4675, %v4677
        %v4689 = vsel %vm597, %v4677, %v4679
        %v4690 = vsel %vm597, %v4679, %v4681
        %v4691 = vsel %vm597, %v4681, %v4683
        %4700 = vst [vmem:[#allocation2 + $0xc0] sm:$0xf0] %v4684
        %4701 = vst [vmem:[#allocation2 + $0xc8] sm:$0xf0] %v4685
        %4702 = vst [vmem:[#allocation2 + $0xd0] sm:$0xf0] %v4686
        %4703 = vst [vmem:[#allocation2 + $0xd8] sm:$0xf0] %v4687
        %4704 = vst [vmem:[#allocation2 + $0xe0] sm:$0xf0] %v4688
        %4705 = vst [vmem:[#allocation2 + $0xe8] sm:$0xf0] %v4689
        %4706 = vst [vmem:[#allocation2 + $0xf0] sm:$0xf0] %v4690
        %4707 = vst [vmem:[#allocation2 + $0xf8] sm:$0xf0] %v4691
        %v4708 = vld [vmem:[%s164 + $0x40] sm:$0xff]
        %v4709 = vld [vmem:[%s164 + $0x48] sm:$0xff]
        %v4710 = vld [vmem:[%s164 + $0x50] sm:$0xff]
        %v4711 = vld [vmem:[%s164 + $0x58] sm:$0xff]
        %v4712 = vld [vmem:[%s164 + $0x60] sm:$0xf]
        %v4718 = vcombine.high %v4708, %v4708
        %v4719 = vcombine.high %v4709, %v4709
        %v4720 = vcombine.high %v4710, %v4710
        %v4721 = vcombine.high %v4711, %v4711
        %4722 = vrot.lane.b32.xlu0 %v4708, 90
        %v4723 = vpop.permute.xlu0 %4722
        %4724 = vrot.lane.b32.xlu0 %v4718, 90
        %v4725 = vpop.permute.xlu0 %4724
        %4726 = vrot.lane.b32.xlu0 %v4709, 90
        %v4727 = vpop.permute.xlu0 %4726
        %4728 = vrot.lane.b32.xlu0 %v4719, 90
        %v4729 = vpop.permute.xlu0 %4728
        %4730 = vrot.lane.b32.xlu0 %v4710, 90
        %v4731 = vpop.permute.xlu0 %4730
        %4732 = vrot.lane.b32.xlu0 %v4720, 90
        %v4733 = vpop.permute.xlu0 %4732
        %4734 = vrot.lane.b32.xlu0 %v4711, 90
        %v4735 = vpop.permute.xlu0 %4734
        %4736 = vrot.lane.b32.xlu0 %v4721, 90
        %v4737 = vpop.permute.xlu0 %4736
        %4738 = vrot.lane.b32.xlu0 %v4712, 90
        %v4739 = vpop.permute.xlu0 %4738
        %v4740 = vsel %vm654, %v4723, %v4725
        %v4741 = vsel %vm654, %v4725, %v4727
        %v4742 = vsel %vm654, %v4727, %v4729
        %v4743 = vsel %vm654, %v4729, %v4731
        %v4744 = vsel %vm654, %v4731, %v4733
        %v4745 = vsel %vm654, %v4733, %v4735
        %v4746 = vsel %vm654, %v4735, %v4737
        %v4747 = vsel %vm654, %v4737, %v4739
        %4756 = vst [vmem:[#allocation2 + $0x100] sm:$0xf] %v4740
        %4757 = vst [vmem:[#allocation2 + $0x108] sm:$0xf] %v4741
        %4758 = vst [vmem:[#allocation2 + $0x110] sm:$0xf] %v4742
        %4759 = vst [vmem:[#allocation2 + $0x118] sm:$0xf] %v4743
        %4760 = vst [vmem:[#allocation2 + $0x120] sm:$0xf] %v4744
        %4761 = vst [vmem:[#allocation2 + $0x128] sm:$0xf] %v4745
        %4762 = vst [vmem:[#allocation2 + $0x130] sm:$0xf] %v4746
        %4763 = vst [vmem:[#allocation2 + $0x138] sm:$0xf] %v4747
        %v4764 = vld [vmem:[%s164 + $0x48] sm:$0xff]
        %v4765 = vld [vmem:[%s164 + $0x50] sm:$0xff]
        %v4766 = vld [vmem:[%s164 + $0x58] sm:$0xff]
        %v4767 = vld [vmem:[%s164 + $0x60] sm:$0xff]
        %v4768 = vld [vmem:[%s164 + $0x68] sm:$0xf]
        %v4774 = vcombine.low %v4764, %v4764
        %v4775 = vcombine.low %v4765, %v4765
        %v4776 = vcombine.low %v4766, %v4766
        %v4777 = vcombine.low %v4767, %v4767
        %v4778 = vcombine.low %v4768, %v4768
        %4779 = vrot.lane.b32.xlu0 %v4774, 60
        %v4780 = vpop.permute.xlu0 %4779
        %4781 = vrot.lane.b32.xlu0 %v4764, 60
        %v4782 = vpop.permute.xlu0 %4781
        %4783 = vrot.lane.b32.xlu0 %v4775, 60
        %v4784 = vpop.permute.xlu0 %4783
        %4785 = vrot.lane.b32.xlu0 %v4765, 60
        %v4786 = vpop.permute.xlu0 %4785
        %4787 = vrot.lane.b32.xlu0 %v4776, 60
        %v4788 = vpop.permute.xlu0 %4787
        %4789 = vrot.lane.b32.xlu0 %v4766, 60
        %v4790 = vpop.permute.xlu0 %4789
        %4791 = vrot.lane.b32.xlu0 %v4777, 60
        %v4792 = vpop.permute.xlu0 %4791
        %4793 = vrot.lane.b32.xlu0 %v4767, 60
        %v4794 = vpop.permute.xlu0 %4793
        %4795 = vrot.lane.b32.xlu0 %v4778, 60
        %v4796 = vpop.permute.xlu0 %4795
        %v4797 = vsel %vm712, %v4780, %v4782
        %v4798 = vsel %vm712, %v4782, %v4784
        %v4799 = vsel %vm712, %v4784, %v4786
        %v4800 = vsel %vm712, %v4786, %v4788
        %v4801 = vsel %vm712, %v4788, %v4790
        %v4802 = vsel %vm712, %v4790, %v4792
        %v4803 = vsel %vm712, %v4792, %v4794
        %v4804 = vsel %vm712, %v4794, %v4796
        %4813 = vst [vmem:[#allocation2 + $0x100] sm:$0xf0] %v4797
        %4814 = vst [vmem:[#allocation2 + $0x108] sm:$0xf0] %v4798
        %4815 = vst [vmem:[#allocation2 + $0x110] sm:$0xf0] %v4799
        %4816 = vst [vmem:[#allocation2 + $0x118] sm:$0xf0] %v4800
        %4817 = vst [vmem:[#allocation2 + $0x120] sm:$0xf0] %v4801
        %4818 = vst [vmem:[#allocation2 + $0x128] sm:$0xf0] %v4802
        %4819 = vst [vmem:[#allocation2 + $0x130] sm:$0xf0] %v4803
        %4820 = vst [vmem:[#allocation2 + $0x138] sm:$0xf0] %v4804
        %v4821 = vld [vmem:[%s164 + $0x48] sm:$0xff]
        %v4822 = vld [vmem:[%s164 + $0x50] sm:$0xff]
        %v4823 = vld [vmem:[%s164 + $0x58] sm:$0xff]
        %v4824 = vld [vmem:[%s164 + $0x60] sm:$0xff]
        %v4825 = vld [vmem:[%s164 + $0x68] sm:$0xf]
        %v4831 = vcombine.high %v4821, %v4821
        %v4832 = vcombine.high %v4822, %v4822
        %v4833 = vcombine.high %v4823, %v4823
        %v4834 = vcombine.high %v4824, %v4824
        %4835 = vrot.lane.b32.xlu0 %v4821, 59
        %v4836 = vpop.permute.xlu0 %4835
        %4837 = vrot.lane.b32.xlu0 %v4831, 59
        %v4838 = vpop.permute.xlu0 %4837
        %4839 = vrot.lane.b32.xlu0 %v4822, 59
        %v4840 = vpop.permute.xlu0 %4839
        %4841 = vrot.lane.b32.xlu0 %v4832, 59
        %v4842 = vpop.permute.xlu0 %4841
        %4843 = vrot.lane.b32.xlu0 %v4823, 59
        %v4844 = vpop.permute.xlu0 %4843
        %4845 = vrot.lane.b32.xlu0 %v4833, 59
        %v4846 = vpop.permute.xlu0 %4845
        %4847 = vrot.lane.b32.xlu0 %v4824, 59
        %v4848 = vpop.permute.xlu0 %4847
        %4849 = vrot.lane.b32.xlu0 %v4834, 59
        %v4850 = vpop.permute.xlu0 %4849
        %4851 = vrot.lane.b32.xlu0 %v4825, 59
        %v4852 = vpop.permute.xlu0 %4851
        %v4853 = vsel %vm769, %v4836, %v4838
        %v4854 = vsel %vm769, %v4838, %v4840
        %v4855 = vsel %vm769, %v4840, %v4842
        %v4856 = vsel %vm769, %v4842, %v4844
        %v4857 = vsel %vm769, %v4844, %v4846
        %v4858 = vsel %vm769, %v4846, %v4848
        %v4859 = vsel %vm769, %v4848, %v4850
        %v4860 = vsel %vm769, %v4850, %v4852
        %4869 = vst [vmem:[#allocation2 + $0x140] sm:$0xf] %v4853
        %4870 = vst [vmem:[#allocation2 + $0x148] sm:$0xf] %v4854
        %4871 = vst [vmem:[#allocation2 + $0x150] sm:$0xf] %v4855
        %4872 = vst [vmem:[#allocation2 + $0x158] sm:$0xf] %v4856
        %4873 = vst [vmem:[#allocation2 + $0x160] sm:$0xf] %v4857
        %4874 = vst [vmem:[#allocation2 + $0x168] sm:$0xf] %v4858
        %4875 = vst [vmem:[#allocation2 + $0x170] sm:$0xf] %v4859
        %4876 = vst [vmem:[#allocation2 + $0x178] sm:$0xf] %v4860
        %v4877 = vld [vmem:[%s164 + $0x48] sm:$0xff]
        %v4878 = vld [vmem:[%s164 + $0x50] sm:$0xff]
        %v4879 = vld [vmem:[%s164 + $0x58] sm:$0xff]
        %v4880 = vld [vmem:[%s164 + $0x60] sm:$0xff]
        %v4881 = vld [vmem:[%s164 + $0x68] sm:$0xf]
        %v4887 = vcombine.low %v4877, %v4877
        %v4888 = vcombine.low %v4878, %v4878
        %v4889 = vcombine.low %v4879, %v4879
        %v4890 = vcombine.low %v4880, %v4880
        %v4891 = vcombine.low %v4881, %v4881
        %4892 = vrot.lane.b32.xlu0 %v4887, 58
        %v4893 = vpop.permute.xlu0 %4892
        %4894 = vrot.lane.b32.xlu0 %v4877, 58
        %v4895 = vpop.permute.xlu0 %4894
        %4896 = vrot.lane.b32.xlu0 %v4888, 58
        %v4897 = vpop.permute.xlu0 %4896
        %4898 = vrot.lane.b32.xlu0 %v4878, 58
        %v4899 = vpop.permute.xlu0 %4898
        %4900 = vrot.lane.b32.xlu0 %v4889, 58
        %v4901 = vpop.permute.xlu0 %4900
        %4902 = vrot.lane.b32.xlu0 %v4879, 58
        %v4903 = vpop.permute.xlu0 %4902
        %4904 = vrot.lane.b32.xlu0 %v4890, 58
        %v4905 = vpop.permute.xlu0 %4904
        %4906 = vrot.lane.b32.xlu0 %v4880, 58
        %v4907 = vpop.permute.xlu0 %4906
        %4908 = vrot.lane.b32.xlu0 %v4891, 58
        %v4909 = vpop.permute.xlu0 %4908
        %v4910 = vsel %vm827, %v4893, %v4895
        %v4911 = vsel %vm827, %v4895, %v4897
        %v4912 = vsel %vm827, %v4897, %v4899
        %v4913 = vsel %vm827, %v4899, %v4901
        %v4914 = vsel %vm827, %v4901, %v4903
        %v4915 = vsel %vm827, %v4903, %v4905
        %v4916 = vsel %vm827, %v4905, %v4907
        %v4917 = vsel %vm827, %v4907, %v4909
        %4926 = vst [vmem:[#allocation2 + $0x140] sm:$0xf0] %v4910
        %4927 = vst [vmem:[#allocation2 + $0x148] sm:$0xf0] %v4911
        %4928 = vst [vmem:[#allocation2 + $0x150] sm:$0xf0] %v4912
        %4929 = vst [vmem:[#allocation2 + $0x158] sm:$0xf0] %v4913
        %4930 = vst [vmem:[#allocation2 + $0x160] sm:$0xf0] %v4914
        %4931 = vst [vmem:[#allocation2 + $0x168] sm:$0xf0] %v4915
        %4932 = vst [vmem:[#allocation2 + $0x170] sm:$0xf0] %v4916
        %4933 = vst [vmem:[#allocation2 + $0x178] sm:$0xf0] %v4917
        %v4934 = vld [vmem:[%s164 + $0x48] sm:$0xff]
        %v4935 = vld [vmem:[%s164 + $0x50] sm:$0xff]
        %v4936 = vld [vmem:[%s164 + $0x58] sm:$0xff]
        %v4937 = vld [vmem:[%s164 + $0x60] sm:$0xff]
        %v4938 = vld [vmem:[%s164 + $0x68] sm:$0xf]
        %v4944 = vcombine.high %v4934, %v4934
        %v4945 = vcombine.high %v4935, %v4935
        %v4946 = vcombine.high %v4936, %v4936
        %v4947 = vcombine.high %v4937, %v4937
        %4948 = vrot.lane.b32.xlu0 %v4934, 42
        %v4949 = vpop.permute.xlu0 %4948
        %4950 = vrot.lane.b32.xlu0 %v4944, 42
        %v4951 = vpop.permute.xlu0 %4950
        %4952 = vrot.lane.b32.xlu0 %v4935, 42
        %v4953 = vpop.permute.xlu0 %4952
        %4954 = vrot.lane.b32.xlu0 %v4945, 42
        %v4955 = vpop.permute.xlu0 %4954
        %4956 = vrot.lane.b32.xlu0 %v4936, 42
        %v4957 = vpop.permute.xlu0 %4956
        %4958 = vrot.lane.b32.xlu0 %v4946, 42
        %v4959 = vpop.permute.xlu0 %4958
        %4960 = vrot.lane.b32.xlu0 %v4937, 42
        %v4961 = vpop.permute.xlu0 %4960
        %4962 = vrot.lane.b32.xlu0 %v4947, 42
        %v4963 = vpop.permute.xlu0 %4962
        %4964 = vrot.lane.b32.xlu0 %v4938, 42
        %v4965 = vpop.permute.xlu0 %4964
        %v4966 = vsel %vm884, %v4949, %v4951
        %v4967 = vsel %vm884, %v4951, %v4953
        %v4968 = vsel %vm884, %v4953, %v4955
        %v4969 = vsel %vm884, %v4955, %v4957
        %v4970 = vsel %vm884, %v4957, %v4959
        %v4971 = vsel %vm884, %v4959, %v4961
        %v4972 = vsel %vm884, %v4961, %v4963
        %v4973 = vsel %vm884, %v4963, %v4965
        %4982 = vst [vmem:[#allocation2 + $0x180] sm:$0xf] %v4966
        %4983 = vst [vmem:[#allocation2 + $0x188] sm:$0xf] %v4967
        %4984 = vst [vmem:[#allocation2 + $0x190] sm:$0xf] %v4968
        %4985 = vst [vmem:[#allocation2 + $0x198] sm:$0xf] %v4969
        %4986 = vst [vmem:[#allocation2 + $0x1a0] sm:$0xf] %v4970
        %4987 = vst [vmem:[#allocation2 + $0x1a8] sm:$0xf] %v4971
        %4988 = vst [vmem:[#allocation2 + $0x1b0] sm:$0xf] %v4972
        %4989 = vst [vmem:[#allocation2 + $0x1b8] sm:$0xf] %v4973
        %v4990 = vld [vmem:[%s164 + $0x48] sm:$0xff]
        %v4991 = vld [vmem:[%s164 + $0x50] sm:$0xff]
        %v4992 = vld [vmem:[%s164 + $0x58] sm:$0xff]
        %v4993 = vld [vmem:[%s164 + $0x60] sm:$0xff]
        %v4994 = vld [vmem:[%s164 + $0x68] sm:$0xf]
        %v5000 = vcombine.low %v4990, %v4990
        %v5001 = vcombine.low %v4991, %v4991
        %v5002 = vcombine.low %v4992, %v4992
        %v5003 = vcombine.low %v4993, %v4993
        %v5004 = vcombine.low %v4994, %v4994
        %5005 = vrot.lane.b32.xlu0 %v5000, 41
        %v5006 = vpop.permute.xlu0 %5005
        %5007 = vrot.lane.b32.xlu0 %v4990, 41
        %v5008 = vpop.permute.xlu0 %5007
        %5009 = vrot.lane.b32.xlu0 %v5001, 41
        %v5010 = vpop.permute.xlu0 %5009
        %5011 = vrot.lane.b32.xlu0 %v4991, 41
        %v5012 = vpop.permute.xlu0 %5011
        %5013 = vrot.lane.b32.xlu0 %v5002, 41
        %v5014 = vpop.permute.xlu0 %5013
        %5015 = vrot.lane.b32.xlu0 %v4992, 41
        %v5016 = vpop.permute.xlu0 %5015
        %5017 = vrot.lane.b32.xlu0 %v5003, 41
        %v5018 = vpop.permute.xlu0 %5017
        %5019 = vrot.lane.b32.xlu0 %v4993, 41
        %v5020 = vpop.permute.xlu0 %5019
        %5021 = vrot.lane.b32.xlu0 %v5004, 41
        %v5022 = vpop.permute.xlu0 %5021
        %v5023 = vsel %vm942, %v5006, %v5008
        %v5024 = vsel %vm942, %v5008, %v5010
        %v5025 = vsel %vm942, %v5010, %v5012
        %v5026 = vsel %vm942, %v5012, %v5014
        %v5027 = vsel %vm942, %v5014, %v5016
        %v5028 = vsel %vm942, %v5016, %v5018
        %v5029 = vsel %vm942, %v5018, %v5020
        %v5030 = vsel %vm942, %v5020, %v5022
        %5039 = vst [vmem:[#allocation2 + $0x180] sm:$0xf0] %v5023
        %5040 = vst [vmem:[#allocation2 + $0x188] sm:$0xf0] %v5024
        %5041 = vst [vmem:[#allocation2 + $0x190] sm:$0xf0] %v5025
        %5042 = vst [vmem:[#allocation2 + $0x198] sm:$0xf0] %v5026
        %5043 = vst [vmem:[#allocation2 + $0x1a0] sm:$0xf0] %v5027
        %5044 = vst [vmem:[#allocation2 + $0x1a8] sm:$0xf0] %v5028
        %5045 = vst [vmem:[#allocation2 + $0x1b0] sm:$0xf0] %v5029
        %5046 = vst [vmem:[#allocation2 + $0x1b8] sm:$0xf0] %v5030
        %v5047 = vld [vmem:[%s164 + $0x48] sm:$0xff]
        %v5048 = vld [vmem:[%s164 + $0x50] sm:$0xff]
        %v5049 = vld [vmem:[%s164 + $0x58] sm:$0xff]
        %v5050 = vld [vmem:[%s164 + $0x60] sm:$0xff]
        %v5051 = vld [vmem:[%s164 + $0x68] sm:$0xf]
        %v5057 = vcombine.high %v5047, %v5047
        %v5058 = vcombine.high %v5048, %v5048
        %v5059 = vcombine.high %v5049, %v5049
        %v5060 = vcombine.high %v5050, %v5050
        %5061 = vrot.lane.b32.xlu0 %v5047, 40
        %v5062 = vpop.permute.xlu0 %5061
        %5063 = vrot.lane.b32.xlu0 %v5057, 40
        %v5064 = vpop.permute.xlu0 %5063
        %5065 = vrot.lane.b32.xlu0 %v5048, 40
        %v5066 = vpop.permute.xlu0 %5065
        %5067 = vrot.lane.b32.xlu0 %v5058, 40
        %v5068 = vpop.permute.xlu0 %5067
        %5069 = vrot.lane.b32.xlu0 %v5049, 40
        %v5070 = vpop.permute.xlu0 %5069
        %5071 = vrot.lane.b32.xlu0 %v5059, 40
        %v5072 = vpop.permute.xlu0 %5071
        %5073 = vrot.lane.b32.xlu0 %v5050, 40
        %v5074 = vpop.permute.xlu0 %5073
        %5075 = vrot.lane.b32.xlu0 %v5060, 40
        %v5076 = vpop.permute.xlu0 %5075
        %5077 = vrot.lane.b32.xlu0 %v5051, 40
        %v5078 = vpop.permute.xlu0 %5077
        %v5079 = vsel %vm999, %v5062, %v5064
        %v5080 = vsel %vm999, %v5064, %v5066
        %v5081 = vsel %vm999, %v5066, %v5068
        %v5082 = vsel %vm999, %v5068, %v5070
        %v5083 = vsel %vm999, %v5070, %v5072
        %v5084 = vsel %vm999, %v5072, %v5074
        %v5085 = vsel %vm999, %v5074, %v5076
        %v5086 = vsel %vm999, %v5076, %v5078
        %5095 = vst [vmem:[#allocation2 + $0x1c0] sm:$0xf] %v5079
        %5096 = vst [vmem:[#allocation2 + $0x1c8] sm:$0xf] %v5080
        %5097 = vst [vmem:[#allocation2 + $0x1d0] sm:$0xf] %v5081
        %5098 = vst [vmem:[#allocation2 + $0x1d8] sm:$0xf] %v5082
        %5099 = vst [vmem:[#allocation2 + $0x1e0] sm:$0xf] %v5083
        %5100 = vst [vmem:[#allocation2 + $0x1e8] sm:$0xf] %v5084
        %5101 = vst [vmem:[#allocation2 + $0x1f0] sm:$0xf] %v5085
        %5102 = vst [vmem:[#allocation2 + $0x1f8] sm:$0xf] %v5086
        %v5103 = vld [vmem:[%s164 + $0x48] sm:$0xff]
        %v5104 = vld [vmem:[%s164 + $0x50] sm:$0xff]
        %v5105 = vld [vmem:[%s164 + $0x58] sm:$0xff]
        %v5106 = vld [vmem:[%s164 + $0x60] sm:$0xff]
        %v5107 = vld [vmem:[%s164 + $0x68] sm:$0xf]
        %v5113 = vcombine.low %v5103, %v5103
        %v5114 = vcombine.low %v5104, %v5104
        %v5115 = vcombine.low %v5105, %v5105
        %v5116 = vcombine.low %v5106, %v5106
        %v5117 = vcombine.low %v5107, %v5107
        %5118 = vrot.lane.b32.xlu0 %v5113, 24
        %v5119 = vpop.permute.xlu0 %5118
        %5120 = vrot.lane.b32.xlu0 %v5103, 24
        %v5121 = vpop.permute.xlu0 %5120
        %5122 = vrot.lane.b32.xlu0 %v5114, 24
        %v5123 = vpop.permute.xlu0 %5122
        %5124 = vrot.lane.b32.xlu0 %v5104, 24
        %v5125 = vpop.permute.xlu0 %5124
        %5126 = vrot.lane.b32.xlu0 %v5115, 24
        %v5127 = vpop.permute.xlu0 %5126
        %5128 = vrot.lane.b32.xlu0 %v5105, 24
        %v5129 = vpop.permute.xlu0 %5128
        %5130 = vrot.lane.b32.xlu0 %v5116, 24
        %v5131 = vpop.permute.xlu0 %5130
        %5132 = vrot.lane.b32.xlu0 %v5106, 24
        %v5133 = vpop.permute.xlu0 %5132
        %5134 = vrot.lane.b32.xlu0 %v5117, 24
        %v5135 = vpop.permute.xlu0 %5134
        %v5136 = vsel %vm1057, %v5119, %v5121
        %v5137 = vsel %vm1057, %v5121, %v5123
        %v5138 = vsel %vm1057, %v5123, %v5125
        %v5139 = vsel %vm1057, %v5125, %v5127
        %v5140 = vsel %vm1057, %v5127, %v5129
        %v5141 = vsel %vm1057, %v5129, %v5131
        %v5142 = vsel %vm1057, %v5131, %v5133
        %v5143 = vsel %vm1057, %v5133, %v5135
        %5152 = vst [vmem:[#allocation2 + $0x1c0] sm:$0xf0] %v5136
        %5153 = vst [vmem:[#allocation2 + $0x1c8] sm:$0xf0] %v5137
        %5154 = vst [vmem:[#allocation2 + $0x1d0] sm:$0xf0] %v5138
        %5155 = vst [vmem:[#allocation2 + $0x1d8] sm:$0xf0] %v5139
        %5156 = vst [vmem:[#allocation2 + $0x1e0] sm:$0xf0] %v5140
        %5157 = vst [vmem:[#allocation2 + $0x1e8] sm:$0xf0] %v5141
        %5158 = vst [vmem:[#allocation2 + $0x1f0] sm:$0xf0] %v5142
        %5159 = vst [vmem:[#allocation2 + $0x1f8] sm:$0xf0] %v5143
        %v5160 = vld [vmem:[%s164 + $0x48] sm:$0xff]
        %v5161 = vld [vmem:[%s164 + $0x50] sm:$0xff]
        %v5162 = vld [vmem:[%s164 + $0x58] sm:$0xff]
        %v5163 = vld [vmem:[%s164 + $0x60] sm:$0xff]
        %v5164 = vld [vmem:[%s164 + $0x68] sm:$0xf]
        %v5170 = vcombine.high %v5160, %v5160
        %v5171 = vcombine.high %v5161, %v5161
        %v5172 = vcombine.high %v5162, %v5162
        %v5173 = vcombine.high %v5163, %v5163
        %5174 = vrot.lane.b32.xlu0 %v5160, 23
        %v5175 = vpop.permute.xlu0 %5174
        %5176 = vrot.lane.b32.xlu0 %v5170, 23
        %v5177 = vpop.permute.xlu0 %5176
        %5178 = vrot.lane.b32.xlu0 %v5161, 23
        %v5179 = vpop.permute.xlu0 %5178
        %5180 = vrot.lane.b32.xlu0 %v5171, 23
        %v5181 = vpop.permute.xlu0 %5180
        %5182 = vrot.lane.b32.xlu0 %v5162, 23
        %v5183 = vpop.permute.xlu0 %5182
        %5184 = vrot.lane.b32.xlu0 %v5172, 23
        %v5185 = vpop.permute.xlu0 %5184
        %5186 = vrot.lane.b32.xlu0 %v5163, 23
        %v5187 = vpop.permute.xlu0 %5186
        %5188 = vrot.lane.b32.xlu0 %v5173, 23
        %v5189 = vpop.permute.xlu0 %5188
        %5190 = vrot.lane.b32.xlu0 %v5164, 23
        %v5191 = vpop.permute.xlu0 %5190
        %v5192 = vsel %vm1114, %v5175, %v5177
        %v5193 = vsel %vm1114, %v5177, %v5179
        %v5194 = vsel %vm1114, %v5179, %v5181
        %v5195 = vsel %vm1114, %v5181, %v5183
        %v5196 = vsel %vm1114, %v5183, %v5185
        %v5197 = vsel %vm1114, %v5185, %v5187
        %v5198 = vsel %vm1114, %v5187, %v5189
        %v5199 = vsel %vm1114, %v5189, %v5191
        %5208 = vst [vmem:[#allocation2 + $0x200] sm:$0xf] %v5192
        %5209 = vst [vmem:[#allocation2 + $0x208] sm:$0xf] %v5193
        %5210 = vst [vmem:[#allocation2 + $0x210] sm:$0xf] %v5194
        %5211 = vst [vmem:[#allocation2 + $0x218] sm:$0xf] %v5195
        %5212 = vst [vmem:[#allocation2 + $0x220] sm:$0xf] %v5196
        %5213 = vst [vmem:[#allocation2 + $0x228] sm:$0xf] %v5197
        %5214 = vst [vmem:[#allocation2 + $0x230] sm:$0xf] %v5198
        %5215 = vst [vmem:[#allocation2 + $0x238] sm:$0xf] %v5199
        %v5216 = vld [vmem:[%s164 + $0x48] sm:$0xff]
        %v5217 = vld [vmem:[%s164 + $0x50] sm:$0xff]
        %v5218 = vld [vmem:[%s164 + $0x58] sm:$0xff]
        %v5219 = vld [vmem:[%s164 + $0x60] sm:$0xff]
        %v5220 = vld [vmem:[%s164 + $0x68] sm:$0xf]
        %v5226 = vcombine.low %v5216, %v5216
        %v5227 = vcombine.low %v5217, %v5217
        %v5228 = vcombine.low %v5218, %v5218
        %v5229 = vcombine.low %v5219, %v5219
        %v5230 = vcombine.low %v5220, %v5220
        %5231 = vrot.lane.b32.xlu0 %v5226, 22
        %v5232 = vpop.permute.xlu0 %5231
        %5233 = vrot.lane.b32.xlu0 %v5216, 22
        %v5234 = vpop.permute.xlu0 %5233
        %5235 = vrot.lane.b32.xlu0 %v5227, 22
        %v5236 = vpop.permute.xlu0 %5235
        %5237 = vrot.lane.b32.xlu0 %v5217, 22
        %v5238 = vpop.permute.xlu0 %5237
        %5239 = vrot.lane.b32.xlu0 %v5228, 22
        %v5240 = vpop.permute.xlu0 %5239
        %5241 = vrot.lane.b32.xlu0 %v5218, 22
        %v5242 = vpop.permute.xlu0 %5241
        %5243 = vrot.lane.b32.xlu0 %v5229, 22
        %v5244 = vpop.permute.xlu0 %5243
        %5245 = vrot.lane.b32.xlu0 %v5219, 22
        %v5246 = vpop.permute.xlu0 %5245
        %5247 = vrot.lane.b32.xlu0 %v5230, 22
        %v5248 = vpop.permute.xlu0 %5247
        %v5249 = vsel %vm1172, %v5232, %v5234
        %v5250 = vsel %vm1172, %v5234, %v5236
        %v5251 = vsel %vm1172, %v5236, %v5238
        %v5252 = vsel %vm1172, %v5238, %v5240
        %v5253 = vsel %vm1172, %v5240, %v5242
        %v5254 = vsel %vm1172, %v5242, %v5244
        %v5255 = vsel %vm1172, %v5244, %v5246
        %v5256 = vsel %vm1172, %v5246, %v5248
        %5265 = vst [vmem:[#allocation2 + $0x200] sm:$0xf0] %v5249
        %5266 = vst [vmem:[#allocation2 + $0x208] sm:$0xf0] %v5250
        %5267 = vst [vmem:[#allocation2 + $0x210] sm:$0xf0] %v5251
        %5268 = vst [vmem:[#allocation2 + $0x218] sm:$0xf0] %v5252
        %5269 = vst [vmem:[#allocation2 + $0x220] sm:$0xf0] %v5253
        %5270 = vst [vmem:[#allocation2 + $0x228] sm:$0xf0] %v5254
        %5271 = vst [vmem:[#allocation2 + $0x230] sm:$0xf0] %v5255
        %5272 = vst [vmem:[#allocation2 + $0x238] sm:$0xf0] %v5256
        %v5273 = vld [vmem:[%s164 + $0x54] sm:$0xff]
        %v5274 = vld [vmem:[%s164 + $0x5c] sm:$0xff]
        %v5275 = vld [vmem:[%s164 + $0x64] sm:$0xff]
        %v5276 = vld [vmem:[%s164 + $0x6c] sm:$0xff]
        %v5277 = vld [vmem:[%s164 + $0x74] sm:$0xf]
        %v5283 = vcombine.high %v5273, %v5273
        %v5284 = vcombine.high %v5274, %v5274
        %v5285 = vcombine.high %v5275, %v5275
        %v5286 = vcombine.high %v5276, %v5276
        %5287 = vrot.lane.b32.xlu0 %v5273, 120
        %v5288 = vpop.permute.xlu0 %5287
        %5289 = vrot.lane.b32.xlu0 %v5283, 120
        %v5290 = vpop.permute.xlu0 %5289
        %5291 = vrot.lane.b32.xlu0 %v5274, 120
        %v5292 = vpop.permute.xlu0 %5291
        %5293 = vrot.lane.b32.xlu0 %v5284, 120
        %v5294 = vpop.permute.xlu0 %5293
        %5295 = vrot.lane.b32.xlu0 %v5275, 120
        %v5296 = vpop.permute.xlu0 %5295
        %5297 = vrot.lane.b32.xlu0 %v5285, 120
        %v5298 = vpop.permute.xlu0 %5297
        %5299 = vrot.lane.b32.xlu0 %v5276, 120
        %v5300 = vpop.permute.xlu0 %5299
        %5301 = vrot.lane.b32.xlu0 %v5286, 120
        %v5302 = vpop.permute.xlu0 %5301
        %5303 = vrot.lane.b32.xlu0 %v5277, 120
        %v5304 = vpop.permute.xlu0 %5303
        %v5305 = vsel %vm1229, %v5288, %v5290
        %v5306 = vsel %vm1229, %v5290, %v5292
        %v5307 = vsel %vm1229, %v5292, %v5294
        %v5308 = vsel %vm1229, %v5294, %v5296
        %v5309 = vsel %vm1229, %v5296, %v5298
        %v5310 = vsel %vm1229, %v5298, %v5300
        %v5311 = vsel %vm1229, %v5300, %v5302
        %v5312 = vsel %vm1229, %v5302, %v5304
        %5321 = vst [vmem:[#allocation2 + $0x240] sm:$0xf] %v5305
        %5322 = vst [vmem:[#allocation2 + $0x248] sm:$0xf] %v5306
        %5323 = vst [vmem:[#allocation2 + $0x250] sm:$0xf] %v5307
        %5324 = vst [vmem:[#allocation2 + $0x258] sm:$0xf] %v5308
        %5325 = vst [vmem:[#allocation2 + $0x260] sm:$0xf] %v5309
        %5326 = vst [vmem:[#allocation2 + $0x268] sm:$0xf] %v5310
        %5327 = vst [vmem:[#allocation2 + $0x270] sm:$0xf] %v5311
        %5328 = vst [vmem:[#allocation2 + $0x278] sm:$0xf] %v5312
        %v5329 = vld [vmem:[%s164 + $0x54] sm:$0xff]
        %v5330 = vld [vmem:[%s164 + $0x5c] sm:$0xff]
        %v5331 = vld [vmem:[%s164 + $0x64] sm:$0xff]
        %v5332 = vld [vmem:[%s164 + $0x6c] sm:$0xff]
        %v5333 = vld [vmem:[%s164 + $0x74] sm:$0xf]
        %v5339 = vcombine.low %v5329, %v5329
        %v5340 = vcombine.low %v5330, %v5330
        %v5341 = vcombine.low %v5331, %v5331
        %v5342 = vcombine.low %v5332, %v5332
        %v5343 = vcombine.low %v5333, %v5333
        %5344 = vrot.lane.b32.xlu0 %v5339, 119
        %v5345 = vpop.permute.xlu0 %5344
        %5346 = vrot.lane.b32.xlu0 %v5329, 119
        %v5347 = vpop.permute.xlu0 %5346
        %5348 = vrot.lane.b32.xlu0 %v5340, 119
        %v5349 = vpop.permute.xlu0 %5348
        %5350 = vrot.lane.b32.xlu0 %v5330, 119
        %v5351 = vpop.permute.xlu0 %5350
        %5352 = vrot.lane.b32.xlu0 %v5341, 119
        %v5353 = vpop.permute.xlu0 %5352
        %5354 = vrot.lane.b32.xlu0 %v5331, 119
        %v5355 = vpop.permute.xlu0 %5354
        %5356 = vrot.lane.b32.xlu0 %v5342, 119
        %v5357 = vpop.permute.xlu0 %5356
        %5358 = vrot.lane.b32.xlu0 %v5332, 119
        %v5359 = vpop.permute.xlu0 %5358
        %5360 = vrot.lane.b32.xlu0 %v5343, 119
        %v5361 = vpop.permute.xlu0 %5360
        %v5362 = vsel %vm1287, %v5345, %v5347
        %v5363 = vsel %vm1287, %v5347, %v5349
        %v5364 = vsel %vm1287, %v5349, %v5351
        %v5365 = vsel %vm1287, %v5351, %v5353
        %v5366 = vsel %vm1287, %v5353, %v5355
        %v5367 = vsel %vm1287, %v5355, %v5357
        %v5368 = vsel %vm1287, %v5357, %v5359
        %v5369 = vsel %vm1287, %v5359, %v5361
        %5378 = vst [vmem:[#allocation2 + $0x240] sm:$0xf0] %v5362
        %5379 = vst [vmem:[#allocation2 + $0x248] sm:$0xf0] %v5363
        %5380 = vst [vmem:[#allocation2 + $0x250] sm:$0xf0] %v5364
        %5381 = vst [vmem:[#allocation2 + $0x258] sm:$0xf0] %v5365
        %5382 = vst [vmem:[#allocation2 + $0x260] sm:$0xf0] %v5366
        %5383 = vst [vmem:[#allocation2 + $0x268] sm:$0xf0] %v5367
        %5384 = vst [vmem:[#allocation2 + $0x270] sm:$0xf0] %v5368
        %5385 = vst [vmem:[#allocation2 + $0x278] sm:$0xf0] %v5369
        %v5386 = vld [vmem:[%s164 + $0x54] sm:$0xff]
        %v5387 = vld [vmem:[%s164 + $0x5c] sm:$0xff]
        %v5388 = vld [vmem:[%s164 + $0x64] sm:$0xff]
        %v5389 = vld [vmem:[%s164 + $0x6c] sm:$0xff]
        %v5390 = vld [vmem:[%s164 + $0x74] sm:$0xf]
        %v5396 = vcombine.high %v5386, %v5386
        %v5397 = vcombine.high %v5387, %v5387
        %v5398 = vcombine.high %v5388, %v5388
        %v5399 = vcombine.high %v5389, %v5389
        %5400 = vrot.lane.b32.xlu0 %v5386, 118
        %v5401 = vpop.permute.xlu0 %5400
        %5402 = vrot.lane.b32.xlu0 %v5396, 118
        %v5403 = vpop.permute.xlu0 %5402
        %5404 = vrot.lane.b32.xlu0 %v5387, 118
        %v5405 = vpop.permute.xlu0 %5404
        %5406 = vrot.lane.b32.xlu0 %v5397, 118
        %v5407 = vpop.permute.xlu0 %5406
        %5408 = vrot.lane.b32.xlu0 %v5388, 118
        %v5409 = vpop.permute.xlu0 %5408
        %5410 = vrot.lane.b32.xlu0 %v5398, 118
        %v5411 = vpop.permute.xlu0 %5410
        %5412 = vrot.lane.b32.xlu0 %v5389, 118
        %v5413 = vpop.permute.xlu0 %5412
        %5414 = vrot.lane.b32.xlu0 %v5399, 118
        %v5415 = vpop.permute.xlu0 %5414
        %5416 = vrot.lane.b32.xlu0 %v5390, 118
        %v5417 = vpop.permute.xlu0 %5416
        %v5418 = vsel %vm1344, %v5401, %v5403
        %v5419 = vsel %vm1344, %v5403, %v5405
        %v5420 = vsel %vm1344, %v5405, %v5407
        %v5421 = vsel %vm1344, %v5407, %v5409
        %v5422 = vsel %vm1344, %v5409, %v5411
        %v5423 = vsel %vm1344, %v5411, %v5413
        %v5424 = vsel %vm1344, %v5413, %v5415
        %v5425 = vsel %vm1344, %v5415, %v5417
        %5434 = vst [vmem:[#allocation2 + $0x280] sm:$0xf] %v5418
        %5435 = vst [vmem:[#allocation2 + $0x288] sm:$0xf] %v5419
        %5436 = vst [vmem:[#allocation2 + $0x290] sm:$0xf] %v5420
        %5437 = vst [vmem:[#allocation2 + $0x298] sm:$0xf] %v5421
        %5438 = vst [vmem:[#allocation2 + $0x2a0] sm:$0xf] %v5422
        %5439 = vst [vmem:[#allocation2 + $0x2a8] sm:$0xf] %v5423
        %5440 = vst [vmem:[#allocation2 + $0x2b0] sm:$0xf] %v5424
        %5441 = vst [vmem:[#allocation2 + $0x2b8] sm:$0xf] %v5425
        %v5442 = vld [vmem:[%s164 + $0x54] sm:$0xff]
        %v5443 = vld [vmem:[%s164 + $0x5c] sm:$0xff]
        %v5444 = vld [vmem:[%s164 + $0x64] sm:$0xff]
        %v5445 = vld [vmem:[%s164 + $0x6c] sm:$0xff]
        %v5446 = vld [vmem:[%s164 + $0x74] sm:$0xf]
        %v5452 = vcombine.low %v5442, %v5442
        %v5453 = vcombine.low %v5443, %v5443
        %v5454 = vcombine.low %v5444, %v5444
        %v5455 = vcombine.low %v5445, %v5445
        %v5456 = vcombine.low %v5446, %v5446
        %5457 = vrot.lane.b32.xlu0 %v5452, 102
        %v5458 = vpop.permute.xlu0 %5457
        %5459 = vrot.lane.b32.xlu0 %v5442, 102
        %v5460 = vpop.permute.xlu0 %5459
        %5461 = vrot.lane.b32.xlu0 %v5453, 102
        %v5462 = vpop.permute.xlu0 %5461
        %5463 = vrot.lane.b32.xlu0 %v5443, 102
        %v5464 = vpop.permute.xlu0 %5463
        %5465 = vrot.lane.b32.xlu0 %v5454, 102
        %v5466 = vpop.permute.xlu0 %5465
        %5467 = vrot.lane.b32.xlu0 %v5444, 102
        %v5468 = vpop.permute.xlu0 %5467
        %5469 = vrot.lane.b32.xlu0 %v5455, 102
        %v5470 = vpop.permute.xlu0 %5469
        %5471 = vrot.lane.b32.xlu0 %v5445, 102
        %v5472 = vpop.permute.xlu0 %5471
        %5473 = vrot.lane.b32.xlu0 %v5456, 102
        %v5474 = vpop.permute.xlu0 %5473
        %v5475 = vsel %vm1402, %v5458, %v5460
        %v5476 = vsel %vm1402, %v5460, %v5462
        %v5477 = vsel %vm1402, %v5462, %v5464
        %v5478 = vsel %vm1402, %v5464, %v5466
        %v5479 = vsel %vm1402, %v5466, %v5468
        %v5480 = vsel %vm1402, %v5468, %v5470
        %v5481 = vsel %vm1402, %v5470, %v5472
        %v5482 = vsel %vm1402, %v5472, %v5474
        %5491 = vst [vmem:[#allocation2 + $0x280] sm:$0xf0] %v5475
        %5492 = vst [vmem:[#allocation2 + $0x288] sm:$0xf0] %v5476
        %5493 = vst [vmem:[#allocation2 + $0x290] sm:$0xf0] %v5477
        %5494 = vst [vmem:[#allocation2 + $0x298] sm:$0xf0] %v5478
        %5495 = vst [vmem:[#allocation2 + $0x2a0] sm:$0xf0] %v5479
        %5496 = vst [vmem:[#allocation2 + $0x2a8] sm:$0xf0] %v5480
        %5497 = vst [vmem:[#allocation2 + $0x2b0] sm:$0xf0] %v5481
        %5498 = vst [vmem:[#allocation2 + $0x2b8] sm:$0xf0] %v5482
        %v5499 = vld [vmem:[%s164 + $0x54] sm:$0xff]
        %v5500 = vld [vmem:[%s164 + $0x5c] sm:$0xff]
        %v5501 = vld [vmem:[%s164 + $0x64] sm:$0xff]
        %v5502 = vld [vmem:[%s164 + $0x6c] sm:$0xff]
        %v5503 = vld [vmem:[%s164 + $0x74] sm:$0xf]
        %v5509 = vcombine.high %v5499, %v5499
        %v5510 = vcombine.high %v5500, %v5500
        %v5511 = vcombine.high %v5501, %v5501
        %v5512 = vcombine.high %v5502, %v5502
        %5513 = vrot.lane.b32.xlu0 %v5499, 101
        %v5514 = vpop.permute.xlu0 %5513
        %5515 = vrot.lane.b32.xlu0 %v5509, 101
        %v5516 = vpop.permute.xlu0 %5515
        %5517 = vrot.lane.b32.xlu0 %v5500, 101
        %v5518 = vpop.permute.xlu0 %5517
        %5519 = vrot.lane.b32.xlu0 %v5510, 101
        %v5520 = vpop.permute.xlu0 %5519
        %5521 = vrot.lane.b32.xlu0 %v5501, 101
        %v5522 = vpop.permute.xlu0 %5521
        %5523 = vrot.lane.b32.xlu0 %v5511, 101
        %v5524 = vpop.permute.xlu0 %5523
        %5525 = vrot.lane.b32.xlu0 %v5502, 101
        %v5526 = vpop.permute.xlu0 %5525
        %5527 = vrot.lane.b32.xlu0 %v5512, 101
        %v5528 = vpop.permute.xlu0 %5527
        %5529 = vrot.lane.b32.xlu0 %v5503, 101
        %v5530 = vpop.permute.xlu0 %5529
        %v5531 = vsel %vm1459, %v5514, %v5516
        %v5532 = vsel %vm1459, %v5516, %v5518
        %v5533 = vsel %vm1459, %v5518, %v5520
        %v5534 = vsel %vm1459, %v5520, %v5522
        %v5535 = vsel %vm1459, %v5522, %v5524
        %v5536 = vsel %vm1459, %v5524, %v5526
        %v5537 = vsel %vm1459, %v5526, %v5528
        %v5538 = vsel %vm1459, %v5528, %v5530
        %5547 = vst [vmem:[#allocation2 + $0x2c0] sm:$0xf] %v5531
        %5548 = vst [vmem:[#allocation2 + $0x2c8] sm:$0xf] %v5532
        %5549 = vst [vmem:[#allocation2 + $0x2d0] sm:$0xf] %v5533
        %5550 = vst [vmem:[#allocation2 + $0x2d8] sm:$0xf] %v5534
        %5551 = vst [vmem:[#allocation2 + $0x2e0] sm:$0xf] %v5535
        %5552 = vst [vmem:[#allocation2 + $0x2e8] sm:$0xf] %v5536
        %5553 = vst [vmem:[#allocation2 + $0x2f0] sm:$0xf] %v5537
        %5554 = vst [vmem:[#allocation2 + $0x2f8] sm:$0xf] %v5538
        %v5555 = vld [vmem:[%s164 + $0x54] sm:$0xff]
        %v5556 = vld [vmem:[%s164 + $0x5c] sm:$0xff]
        %v5557 = vld [vmem:[%s164 + $0x64] sm:$0xff]
        %v5558 = vld [vmem:[%s164 + $0x6c] sm:$0xff]
        %v5559 = vld [vmem:[%s164 + $0x74] sm:$0xf]
        %v5565 = vcombine.low %v5555, %v5555
        %v5566 = vcombine.low %v5556, %v5556
        %v5567 = vcombine.low %v5557, %v5557
        %v5568 = vcombine.low %v5558, %v5558
        %v5569 = vcombine.low %v5559, %v5559
        %5570 = vrot.lane.b32.xlu0 %v5565, 100
        %v5571 = vpop.permute.xlu0 %5570
        %5572 = vrot.lane.b32.xlu0 %v5555, 100
        %v5573 = vpop.permute.xlu0 %5572
        %5574 = vrot.lane.b32.xlu0 %v5566, 100
        %v5575 = vpop.permute.xlu0 %5574
        %5576 = vrot.lane.b32.xlu0 %v5556, 100
        %v5577 = vpop.permute.xlu0 %5576
        %5578 = vrot.lane.b32.xlu0 %v5567, 100
        %v5579 = vpop.permute.xlu0 %5578
        %5580 = vrot.lane.b32.xlu0 %v5557, 100
        %v5581 = vpop.permute.xlu0 %5580
        %5582 = vrot.lane.b32.xlu0 %v5568, 100
        %v5583 = vpop.permute.xlu0 %5582
        %5584 = vrot.lane.b32.xlu0 %v5558, 100
        %v5585 = vpop.permute.xlu0 %5584
        %5586 = vrot.lane.b32.xlu0 %v5569, 100
        %v5587 = vpop.permute.xlu0 %5586
        %v5588 = vsel %vm1517, %v5571, %v5573
        %v5589 = vsel %vm1517, %v5573, %v5575
        %v5590 = vsel %vm1517, %v5575, %v5577
        %v5591 = vsel %vm1517, %v5577, %v5579
        %v5592 = vsel %vm1517, %v5579, %v5581
        %v5593 = vsel %vm1517, %v5581, %v5583
        %v5594 = vsel %vm1517, %v5583, %v5585
        %v5595 = vsel %vm1517, %v5585, %v5587
        %5604 = vst [vmem:[#allocation2 + $0x2c0] sm:$0xf0] %v5588
        %5605 = vst [vmem:[#allocation2 + $0x2c8] sm:$0xf0] %v5589
        %5606 = vst [vmem:[#allocation2 + $0x2d0] sm:$0xf0] %v5590
        %5607 = vst [vmem:[#allocation2 + $0x2d8] sm:$0xf0] %v5591
        %5608 = vst [vmem:[#allocation2 + $0x2e0] sm:$0xf0] %v5592
        %5609 = vst [vmem:[#allocation2 + $0x2e8] sm:$0xf0] %v5593
        %5610 = vst [vmem:[#allocation2 + $0x2f0] sm:$0xf0] %v5594
        %5611 = vst [vmem:[#allocation2 + $0x2f8] sm:$0xf0] %v5595
        %v5612 = vld [vmem:[%s164 + $0x54] sm:$0xff]
        %v5613 = vld [vmem:[%s164 + $0x5c] sm:$0xff]
        %v5614 = vld [vmem:[%s164 + $0x64] sm:$0xff]
        %v5615 = vld [vmem:[%s164 + $0x6c] sm:$0xff]
        %v5616 = vld [vmem:[%s164 + $0x74] sm:$0xf]
        %v5622 = vcombine.high %v5612, %v5612
        %v5623 = vcombine.high %v5613, %v5613
        %v5624 = vcombine.high %v5614, %v5614
        %v5625 = vcombine.high %v5615, %v5615
        %5626 = vrot.lane.b32.xlu0 %v5612, 84
        %v5627 = vpop.permute.xlu0 %5626
        %5628 = vrot.lane.b32.xlu0 %v5622, 84
        %v5629 = vpop.permute.xlu0 %5628
        %5630 = vrot.lane.b32.xlu0 %v5613, 84
        %v5631 = vpop.permute.xlu0 %5630
        %5632 = vrot.lane.b32.xlu0 %v5623, 84
        %v5633 = vpop.permute.xlu0 %5632
        %5634 = vrot.lane.b32.xlu0 %v5614, 84
        %v5635 = vpop.permute.xlu0 %5634
        %5636 = vrot.lane.b32.xlu0 %v5624, 84
        %v5637 = vpop.permute.xlu0 %5636
        %5638 = vrot.lane.b32.xlu0 %v5615, 84
        %v5639 = vpop.permute.xlu0 %5638
        %5640 = vrot.lane.b32.xlu0 %v5625, 84
        %v5641 = vpop.permute.xlu0 %5640
        %5642 = vrot.lane.b32.xlu0 %v5616, 84
        %v5643 = vpop.permute.xlu0 %5642
        %v5644 = vsel %vm1574, %v5627, %v5629
        %v5645 = vsel %vm1574, %v5629, %v5631
        %v5646 = vsel %vm1574, %v5631, %v5633
        %v5647 = vsel %vm1574, %v5633, %v5635
        %v5648 = vsel %vm1574, %v5635, %v5637
        %v5649 = vsel %vm1574, %v5637, %v5639
        %v5650 = vsel %vm1574, %v5639, %v5641
        %v5651 = vsel %vm1574, %v5641, %v5643
        %5660 = vst [vmem:[#allocation2 + $0x300] sm:$0xf] %v5644
        %5661 = vst [vmem:[#allocation2 + $0x308] sm:$0xf] %v5645
        %5662 = vst [vmem:[#allocation2 + $0x310] sm:$0xf] %v5646
        %5663 = vst [vmem:[#allocation2 + $0x318] sm:$0xf] %v5647
        %5664 = vst [vmem:[#allocation2 + $0x320] sm:$0xf] %v5648
        %5665 = vst [vmem:[#allocation2 + $0x328] sm:$0xf] %v5649
        %5666 = vst [vmem:[#allocation2 + $0x330] sm:$0xf] %v5650
        %5667 = vst [vmem:[#allocation2 + $0x338] sm:$0xf] %v5651
        %v5668 = vld [vmem:[%s164 + $0x54] sm:$0xff]
        %v5669 = vld [vmem:[%s164 + $0x5c] sm:$0xff]
        %v5670 = vld [vmem:[%s164 + $0x64] sm:$0xff]
        %v5671 = vld [vmem:[%s164 + $0x6c] sm:$0xff]
        %v5672 = vld [vmem:[%s164 + $0x74] sm:$0xf]
        %v5678 = vcombine.low %v5668, %v5668
        %v5679 = vcombine.low %v5669, %v5669
        %v5680 = vcombine.low %v5670, %v5670
        %v5681 = vcombine.low %v5671, %v5671
        %v5682 = vcombine.low %v5672, %v5672
        %5683 = vrot.lane.b32.xlu0 %v5678, 83
        %v5684 = vpop.permute.xlu0 %5683
        %5685 = vrot.lane.b32.xlu0 %v5668, 83
        %v5686 = vpop.permute.xlu0 %5685
        %5687 = vrot.lane.b32.xlu0 %v5679, 83
        %v5688 = vpop.permute.xlu0 %5687
        %5689 = vrot.lane.b32.xlu0 %v5669, 83
        %v5690 = vpop.permute.xlu0 %5689
        %5691 = vrot.lane.b32.xlu0 %v5680, 83
        %v5692 = vpop.permute.xlu0 %5691
        %5693 = vrot.lane.b32.xlu0 %v5670, 83
        %v5694 = vpop.permute.xlu0 %5693
        %5695 = vrot.lane.b32.xlu0 %v5681, 83
        %v5696 = vpop.permute.xlu0 %5695
        %5697 = vrot.lane.b32.xlu0 %v5671, 83
        %v5698 = vpop.permute.xlu0 %5697
        %5699 = vrot.lane.b32.xlu0 %v5682, 83
        %v5700 = vpop.permute.xlu0 %5699
        %v5701 = vsel %vm1632, %v5684, %v5686
        %v5702 = vsel %vm1632, %v5686, %v5688
        %v5703 = vsel %vm1632, %v5688, %v5690
        %v5704 = vsel %vm1632, %v5690, %v5692
        %v5705 = vsel %vm1632, %v5692, %v5694
        %v5706 = vsel %vm1632, %v5694, %v5696
        %v5707 = vsel %vm1632, %v5696, %v5698
        %v5708 = vsel %vm1632, %v5698, %v5700
        %5717 = vst [vmem:[#allocation2 + $0x300] sm:$0xf0] %v5701
        %5718 = vst [vmem:[#allocation2 + $0x308] sm:$0xf0] %v5702
        %5719 = vst [vmem:[#allocation2 + $0x310] sm:$0xf0] %v5703
        %5720 = vst [vmem:[#allocation2 + $0x318] sm:$0xf0] %v5704
        %5721 = vst [vmem:[#allocation2 + $0x320] sm:$0xf0] %v5705
        %5722 = vst [vmem:[#allocation2 + $0x328] sm:$0xf0] %v5706
        %5723 = vst [vmem:[#allocation2 + $0x330] sm:$0xf0] %v5707
        %5724 = vst [vmem:[#allocation2 + $0x338] sm:$0xf0] %v5708
        %v5725 = vld [vmem:[%s164 + $0x54] sm:$0xff]
        %v5726 = vld [vmem:[%s164 + $0x5c] sm:$0xff]
        %v5727 = vld [vmem:[%s164 + $0x64] sm:$0xff]
        %v5728 = vld [vmem:[%s164 + $0x6c] sm:$0xff]
        %v5729 = vld [vmem:[%s164 + $0x74] sm:$0xf]
        %v5735 = vcombine.high %v5725, %v5725
        %v5736 = vcombine.high %v5726, %v5726
        %v5737 = vcombine.high %v5727, %v5727
        %v5738 = vcombine.high %v5728, %v5728
        %5739 = vrot.lane.b32.xlu0 %v5725, 82
        %v5740 = vpop.permute.xlu0 %5739
        %5741 = vrot.lane.b32.xlu0 %v5735, 82
        %v5742 = vpop.permute.xlu0 %5741
        %5743 = vrot.lane.b32.xlu0 %v5726, 82
        %v5744 = vpop.permute.xlu0 %5743
        %5745 = vrot.lane.b32.xlu0 %v5736, 82
        %v5746 = vpop.permute.xlu0 %5745
        %5747 = vrot.lane.b32.xlu0 %v5727, 82
        %v5748 = vpop.permute.xlu0 %5747
        %5749 = vrot.lane.b32.xlu0 %v5737, 82
        %v5750 = vpop.permute.xlu0 %5749
        %5751 = vrot.lane.b32.xlu0 %v5728, 82
        %v5752 = vpop.permute.xlu0 %5751
        %5753 = vrot.lane.b32.xlu0 %v5738, 82
        %v5754 = vpop.permute.xlu0 %5753
        %5755 = vrot.lane.b32.xlu0 %v5729, 82
        %v5756 = vpop.permute.xlu0 %5755
        %v5757 = vsel %vm1689, %v5740, %v5742
        %v5758 = vsel %vm1689, %v5742, %v5744
        %v5759 = vsel %vm1689, %v5744, %v5746
        %v5760 = vsel %vm1689, %v5746, %v5748
        %v5761 = vsel %vm1689, %v5748, %v5750
        %v5762 = vsel %vm1689, %v5750, %v5752
        %v5763 = vsel %vm1689, %v5752, %v5754
        %v5764 = vsel %vm1689, %v5754, %v5756
        %5773 = vst [vmem:[#allocation2 + $0x340] sm:$0xf] %v5757
        %5774 = vst [vmem:[#allocation2 + $0x348] sm:$0xf] %v5758
        %5775 = vst [vmem:[#allocation2 + $0x350] sm:$0xf] %v5759
        %5776 = vst [vmem:[#allocation2 + $0x358] sm:$0xf] %v5760
        %5777 = vst [vmem:[#allocation2 + $0x360] sm:$0xf] %v5761
        %5778 = vst [vmem:[#allocation2 + $0x368] sm:$0xf] %v5762
        %5779 = vst [vmem:[#allocation2 + $0x370] sm:$0xf] %v5763
        %5780 = vst [vmem:[#allocation2 + $0x378] sm:$0xf] %v5764
        %v5781 = vld [vmem:[#allocation2] sm:$0xff]
        %v5782 = vld [vmem:[#allocation2 + $0x8] sm:$0xff]
        %v5783 = vld [vmem:[#allocation2 + $0x10] sm:$0xff]
        %v5784 = vld [vmem:[#allocation2 + $0x18] sm:$0xff]
        %v5785 = vld [vmem:[#allocation2 + $0x20] sm:$0xff]
        %v5786 = vld [vmem:[#allocation2 + $0x28] sm:$0xff]
        %v5787 = vld [vmem:[#allocation2 + $0x30] sm:$0xff]
        %v5788 = vld [vmem:[#allocation2 + $0x38] sm:$0xff]
        %v5789 = vld [vmem:[#allocation2 + $0x40] sm:$0xff]
        %v5790 = vld [vmem:[#allocation2 + $0x48] sm:$0xff]
        %v5791 = vld [vmem:[#allocation2 + $0x50] sm:$0xff]
        %v5792 = vld [vmem:[#allocation2 + $0x58] sm:$0xff]
        %v5793 = vld [vmem:[#allocation2 + $0x60] sm:$0xff]
        %v5794 = vld [vmem:[#allocation2 + $0x68] sm:$0xff]
        %v5795 = vld [vmem:[#allocation2 + $0x70] sm:$0xff]
        %v5796 = vld [vmem:[#allocation2 + $0x78] sm:$0xff]
        %v5797 = vld [vmem:[#allocation2 + $0x80] sm:$0xff]
        %v5798 = vld [vmem:[#allocation2 + $0x88] sm:$0xff]
        %v5799 = vld [vmem:[#allocation2 + $0x90] sm:$0xff]
        %v5800 = vld [vmem:[#allocation2 + $0x98] sm:$0xff]
        %v5801 = vld [vmem:[#allocation2 + $0xa0] sm:$0xff]
        %v5802 = vld [vmem:[#allocation2 + $0xa8] sm:$0xff]
        %v5803 = vld [vmem:[#allocation2 + $0xb0] sm:$0xff]
        %v5804 = vld [vmem:[#allocation2 + $0xb8] sm:$0xff]
        %v5805 = vld [vmem:[#allocation2 + $0xc0] sm:$0xff]
        %v5806 = vld [vmem:[#allocation2 + $0xc8] sm:$0xff]
        %v5807 = vld [vmem:[#allocation2 + $0xd0] sm:$0xff]
        %v5808 = vld [vmem:[#allocation2 + $0xd8] sm:$0xff]
        %v5809 = vld [vmem:[#allocation2 + $0xe0] sm:$0xff]
        %v5810 = vld [vmem:[#allocation2 + $0xe8] sm:$0xff]
        %v5811 = vld [vmem:[#allocation2 + $0xf0] sm:$0xff]
        %v5812 = vld [vmem:[#allocation2 + $0xf8] sm:$0xff]
        %v5813 = vld [vmem:[#allocation2 + $0x100] sm:$0xff]
        %v5814 = vld [vmem:[#allocation2 + $0x108] sm:$0xff]
        %v5815 = vld [vmem:[#allocation2 + $0x110] sm:$0xff]
        %v5816 = vld [vmem:[#allocation2 + $0x118] sm:$0xff]
        %v5817 = vld [vmem:[#allocation2 + $0x120] sm:$0xff]
        %v5818 = vld [vmem:[#allocation2 + $0x128] sm:$0xff]
        %v5819 = vld [vmem:[#allocation2 + $0x130] sm:$0xff]
        %v5820 = vld [vmem:[#allocation2 + $0x138] sm:$0xff]
        %v5821 = vld [vmem:[#allocation2 + $0x140] sm:$0xff]
        %v5822 = vld [vmem:[#allocation2 + $0x148] sm:$0xff]
        %v5823 = vld [vmem:[#allocation2 + $0x150] sm:$0xff]
        %v5824 = vld [vmem:[#allocation2 + $0x158] sm:$0xff]
        %v5825 = vld [vmem:[#allocation2 + $0x160] sm:$0xff]
        %v5826 = vld [vmem:[#allocation2 + $0x168] sm:$0xff]
        %v5827 = vld [vmem:[#allocation2 + $0x170] sm:$0xff]
        %v5828 = vld [vmem:[#allocation2 + $0x178] sm:$0xff]
        %v5829 = vld [vmem:[#allocation2 + $0x180] sm:$0xff]
        %v5830 = vld [vmem:[#allocation2 + $0x188] sm:$0xff]
        %v5831 = vld [vmem:[#allocation2 + $0x190] sm:$0xff]
        %v5832 = vld [vmem:[#allocation2 + $0x198] sm:$0xff]
        %v5833 = vld [vmem:[#allocation2 + $0x1a0] sm:$0xff]
        %v5834 = vld [vmem:[#allocation2 + $0x1a8] sm:$0xff]
        %v5835 = vld [vmem:[#allocation2 + $0x1b0] sm:$0xff]
        %v5836 = vld [vmem:[#allocation2 + $0x1b8] sm:$0xff]
        %v5837 = vld [vmem:[#allocation2 + $0x1c0] sm:$0xff]
        %v5838 = vld [vmem:[#allocation2 + $0x1c8] sm:$0xff]
        %v5839 = vld [vmem:[#allocation2 + $0x1d0] sm:$0xff]
        %v5840 = vld [vmem:[#allocation2 + $0x1d8] sm:$0xff]
        %v5841 = vld [vmem:[#allocation2 + $0x1e0] sm:$0xff]
        %v5842 = vld [vmem:[#allocation2 + $0x1e8] sm:$0xff]
        %v5843 = vld [vmem:[#allocation2 + $0x1f0] sm:$0xff]
        %v5844 = vld [vmem:[#allocation2 + $0x1f8] sm:$0xff]
        %v5845 = vld [vmem:[#allocation2 + $0x200] sm:$0xff]
        %v5846 = vld [vmem:[#allocation2 + $0x208] sm:$0xff]
        %v5847 = vld [vmem:[#allocation2 + $0x210] sm:$0xff]
        %v5848 = vld [vmem:[#allocation2 + $0x218] sm:$0xff]
        %v5849 = vld [vmem:[#allocation2 + $0x220] sm:$0xff]
        %v5850 = vld [vmem:[#allocation2 + $0x228] sm:$0xff]
        %v5851 = vld [vmem:[#allocation2 + $0x230] sm:$0xff]
        %v5852 = vld [vmem:[#allocation2 + $0x238] sm:$0xff]
        %v5853 = vld [vmem:[#allocation2 + $0x240] sm:$0xff]
        %v5854 = vld [vmem:[#allocation2 + $0x248] sm:$0xff]
        %v5855 = vld [vmem:[#allocation2 + $0x250] sm:$0xff]
        %v5856 = vld [vmem:[#allocation2 + $0x258] sm:$0xff]
        %v5857 = vld [vmem:[#allocation2 + $0x260] sm:$0xff]
        %v5858 = vld [vmem:[#allocation2 + $0x268] sm:$0xff]
        %v5859 = vld [vmem:[#allocation2 + $0x270] sm:$0xff]
        %v5860 = vld [vmem:[#allocation2 + $0x278] sm:$0xff]
        %v5861 = vld [vmem:[#allocation2 + $0x280] sm:$0xff]
        %v5862 = vld [vmem:[#allocation2 + $0x288] sm:$0xff]
        %v5863 = vld [vmem:[#allocation2 + $0x290] sm:$0xff]
        %v5864 = vld [vmem:[#allocation2 + $0x298] sm:$0xff]
        %v5865 = vld [vmem:[#allocation2 + $0x2a0] sm:$0xff]
        %v5866 = vld [vmem:[#allocation2 + $0x2a8] sm:$0xff]
        %v5867 = vld [vmem:[#allocation2 + $0x2b0] sm:$0xff]
        %v5868 = vld [vmem:[#allocation2 + $0x2b8] sm:$0xff]
        %v5869 = vld [vmem:[#allocation2 + $0x2c0] sm:$0xff]
        %v5870 = vld [vmem:[#allocation2 + $0x2c8] sm:$0xff]
        %v5871 = vld [vmem:[#allocation2 + $0x2d0] sm:$0xff]
        %v5872 = vld [vmem:[#allocation2 + $0x2d8] sm:$0xff]
        %v5873 = vld [vmem:[#allocation2 + $0x2e0] sm:$0xff]
        %v5874 = vld [vmem:[#allocation2 + $0x2e8] sm:$0xff]
        %v5875 = vld [vmem:[#allocation2 + $0x2f0] sm:$0xff]
        %v5876 = vld [vmem:[#allocation2 + $0x2f8] sm:$0xff]
        %v5877 = vld [vmem:[#allocation2 + $0x300] sm:$0xff]
        %v5878 = vld [vmem:[#allocation2 + $0x308] sm:$0xff]
        %v5879 = vld [vmem:[#allocation2 + $0x310] sm:$0xff]
        %v5880 = vld [vmem:[#allocation2 + $0x318] sm:$0xff]
        %v5881 = vld [vmem:[#allocation2 + $0x320] sm:$0xff]
        %v5882 = vld [vmem:[#allocation2 + $0x328] sm:$0xff]
        %v5883 = vld [vmem:[#allocation2 + $0x330] sm:$0xff]
        %v5884 = vld [vmem:[#allocation2 + $0x338] sm:$0xff]
        %v5885 = vld [vmem:[#allocation2 + $0x340] sm:$0xf]
        %v5886 = vld [vmem:[#allocation2 + $0x348] sm:$0xf]
        %v5887 = vld [vmem:[#allocation2 + $0x350] sm:$0xf]
        %v5888 = vld [vmem:[#allocation2 + $0x358] sm:$0xf]
        %v5889 = vld [vmem:[#allocation2 + $0x360] sm:$0xf]
        %v5890 = vld [vmem:[#allocation2 + $0x368] sm:$0xf]
        %v5891 = vld [vmem:[#allocation2 + $0x370] sm:$0xf]
        %v5892 = vld [vmem:[#allocation2 + $0x378] sm:$0xf]
        %v5894 = vsel %vm1858, %v5885, 0
        %v5897 = vsel %vm1858, %v5886, 0
        %v5900 = vsel %vm1858, %v5887, 0
        %v5903 = vsel %vm1858, %v5888, 0
        %v5906 = vsel %vm1858, %v5889, 0
        %v5909 = vsel %vm1858, %v5890, 0
        %v5912 = vsel %vm1858, %v5891, 0
        %v5915 = vsel %vm1858, %v5892, 0
        %5917 = vmatprep.subr.mxu0 0.0
        %5918 = vmatpush1.msra.mxu0 0.0
        %5919 = vmatprep.subr.mxu0 0.0
        %5920 = vmatpush1.msra.mxu0 0.0
        %5921 = vmatprep.subr.mxu0 %v5897
        %5922 = vmatpush1.msra.mxu0 %v5894
        %5923 = vmatprep.subr.mxu0 %v5878
        %5924 = vmatpush1.msra.mxu0 %v5877
        %5925 = vmatprep.subr.mxu0 %v5870
        %5926 = vmatpush1.msra.mxu0 %v5869
        %5927 = vmatprep.subr.mxu0 %v5862
        %5928 = vmatpush1.msra.mxu0 %v5861
        %5929 = vmatprep.subr.mxu0 %v5854
        %5930 = vmatpush1.msra.mxu0 %v5853
        %5931 = vmatprep.subr.mxu0 %v5846
        %5932 = vmatpush1.msra.mxu0 %v5845
        %5933 = vmatprep.subr.mxu0 %v5838
        %5934 = vmatpush1.msra.mxu0 %v5837
        %5935 = vmatprep.subr.mxu0 %v5830
        %5936 = vmatpush1.msra.mxu0 %v5829
        %5937 = vmatprep.subr.mxu0 %v5822
        %5938 = vmatpush1.msra.mxu0 %v5821
        %5939 = vmatprep.subr.mxu0 %v5814
        %5940 = vmatpush1.msra.mxu0 %v5813
        %5941 = vmatprep.subr.mxu0 %v5806
        %5942 = vmatpush1.msra.mxu0 %v5805
        %5943 = vmatprep.subr.mxu0 %v5798
        %5944 = vmatpush1.msra.mxu0 %v5797
        %5945 = vmatprep.subr.mxu0 %v5790
        %5946 = vmatpush1.msra.mxu0 %v5789
        %5947 = vmatprep.subr.mxu0 %v5782
        %5948 = vmatpush1.msra.mxu0 %v5781
        %5949 = vmatprep.subr.mxu0 0.0
        %5950 = vmatpush2.msra.mxu0 0.0
        %5951 = vmatprep.subr.mxu0 0.0
        %5952 = vmatpush2.msra.mxu0 0.0
        %5953 = vmatprep.subr.mxu0 0.0
        %5954 = vmatpush2.msra.mxu0 0.0
        %5955 = vmatprep.subr.mxu0 0.0
        %5956 = vmatpush2.msra.mxu0 0.0
        %5957 = vmatprep.subr.mxu0 0.0
        %5958 = vmatpush2.msra.mxu0 0.0
        %5959 = vmatprep.subr.mxu0 0.0
        %5960 = vmatpush2.msra.mxu0 0.0
        %5961 = vmatprep.subr.mxu0 0.0
        %5962 = vmatpush2.msra.mxu0 0.0
        %5963 = vmatprep.subr.mxu0 0.0
        %5964 = vmatpush2.msra.mxu0 0.0
        %5965 = vmatprep.subr.mxu0 0.0
        %5966 = vmatpush2.msra.mxu0 0.0
        %5967 = vmatprep.subr.mxu0 0.0
        %5968 = vmatpush2.msra.mxu0 0.0
        %5969 = vmatprep.subr.mxu0 0.0
        %5970 = vmatpush2.msra.mxu0 0.0
        %5971 = vmatprep.subr.mxu0 0.0
        %5972 = vmatpush2.msra.mxu0 0.0
        %5973 = vmatprep.subr.mxu0 0.0
        %5974 = vmatpush2.msra.mxu0 0.0
        %5975 = vmatprep.subr.mxu0 0.0
        %5976 = vmatpush2.msra.mxu0 0.0
        %5977 = vmatprep.subr.mxu0 0.0
        %5978 = vmatpush2.msra.mxu0 0.0
        %5979 = vmatprep.subr.mxu0 0.0
        %5980 = vmatpush2.msra.mxu0 0.0
        %5981 = vmatprep.mubr.f32.mxu0 0.0
        %5982 = vmatmul.mubr.f32.gmra.mxu0 %v1847
        %v5983 = vpop.f32.mrf.mxu0
        %v5984 = vadd.f32 %v1829, %v5983
        %v5985 = vpop.f32.mrf.mxu0
        %v5986 = vadd.f32 %v1829, %v5985
        %5987 = vmatprep.mubr.f32.mxu0 0.0
        %5988 = vmatmul.mubr.f32.gmra.mxu0 %v1850
        %v5989 = vpop.f32.mrf.mxu0
        %v5990 = vadd.f32 %v1834, %v5989
        %v5991 = vpop.f32.mrf.mxu0
        %v5992 = vadd.f32 %v1834, %v5991
        %5993 = vmatprep.mubr.f32.mxu0 0.0
        %5994 = vmatmul.mubr.f32.gmra.mxu0 %v1853
        %v5995 = vpop.f32.mrf.mxu0
        %v5996 = vadd.f32 %v1839, %v5995
        %v5997 = vpop.f32.mrf.mxu0
        %v5998 = vadd.f32 %v1839, %v5997
        %5999 = vmatprep.mubr.f32.mxu0 0.0
        %6000 = vmatmul.mubr.f32.gmra.mxu0 %v1856
        %v6001 = vpop.f32.mrf.mxu0
        %v6002 = vadd.f32 %v1844, %v6001
        %v6003 = vpop.f32.mrf.mxu0
        %v6004 = vadd.f32 %v1844, %v6003
        %6005 = vdwg.mxu0
        %6006 = vmatprep.subr.mxu0 0.0
        %6007 = vmatpush1.msra.mxu0 0.0
        %6008 = vmatprep.subr.mxu0 0.0
        %6009 = vmatpush1.msra.mxu0 0.0
        %6010 = vmatprep.subr.mxu0 %v5903
        %6011 = vmatpush1.msra.mxu0 %v5900
        %6012 = vmatprep.subr.mxu0 %v5880
        %6013 = vmatpush1.msra.mxu0 %v5879
        %6014 = vmatprep.subr.mxu0 %v5872
        %6015 = vmatpush1.msra.mxu0 %v5871
        %6016 = vmatprep.subr.mxu0 %v5864
        %6017 = vmatpush1.msra.mxu0 %v5863
        %6018 = vmatprep.subr.mxu0 %v5856
        %6019 = vmatpush1.msra.mxu0 %v5855
        %6020 = vmatprep.subr.mxu0 %v5848
        %6021 = vmatpush1.msra.mxu0 %v5847
        %6022 = vmatprep.subr.mxu0 %v5840
        %6023 = vmatpush1.msra.mxu0 %v5839
        %6024 = vmatprep.subr.mxu0 %v5832
        %6025 = vmatpush1.msra.mxu0 %v5831
        %6026 = vmatprep.subr.mxu0 %v5824
        %6027 = vmatpush1.msra.mxu0 %v5823
        %6028 = vmatprep.subr.mxu0 %v5816
        %6029 = vmatpush1.msra.mxu0 %v5815
        %6030 = vmatprep.subr.mxu0 %v5808
        %6031 = vmatpush1.msra.mxu0 %v5807
        %6032 = vmatprep.subr.mxu0 %v5800
        %6033 = vmatpush1.msra.mxu0 %v5799
        %6034 = vmatprep.subr.mxu0 %v5792
        %6035 = vmatpush1.msra.mxu0 %v5791
        %6036 = vmatprep.subr.mxu0 %v5784
        %6037 = vmatpush1.msra.mxu0 %v5783
        %6038 = vmatprep.subr.mxu0 0.0
        %6039 = vmatpush2.msra.mxu0 0.0
        %6040 = vmatprep.subr.mxu0 0.0
        %6041 = vmatpush2.msra.mxu0 0.0
        %6042 = vmatprep.subr.mxu0 0.0
        %6043 = vmatpush2.msra.mxu0 0.0
        %6044 = vmatprep.subr.mxu0 0.0
        %6045 = vmatpush2.msra.mxu0 0.0
        %6046 = vmatprep.subr.mxu0 0.0
        %6047 = vmatpush2.msra.mxu0 0.0
        %6048 = vmatprep.subr.mxu0 0.0
        %6049 = vmatpush2.msra.mxu0 0.0
        %6050 = vmatprep.subr.mxu0 0.0
        %6051 = vmatpush2.msra.mxu0 0.0
        %6052 = vmatprep.subr.mxu0 0.0
        %6053 = vmatpush2.msra.mxu0 0.0
        %6054 = vmatprep.subr.mxu0 0.0
        %6055 = vmatpush2.msra.mxu0 0.0
        %6056 = vmatprep.subr.mxu0 0.0
        %6057 = vmatpush2.msra.mxu0 0.0
        %6058 = vmatprep.subr.mxu0 0.0
        %6059 = vmatpush2.msra.mxu0 0.0
        %6060 = vmatprep.subr.mxu0 0.0
        %6061 = vmatpush2.msra.mxu0 0.0
        %6062 = vmatprep.subr.mxu0 0.0
        %6063 = vmatpush2.msra.mxu0 0.0
        %6064 = vmatprep.subr.mxu0 0.0
        %6065 = vmatpush2.msra.mxu0 0.0
        %6066 = vmatprep.subr.mxu0 0.0
        %6067 = vmatpush2.msra.mxu0 0.0
        %6068 = vmatprep.subr.mxu0 0.0
        %6069 = vmatpush2.msra.mxu0 0.0
        %6070 = vmatprep.mubr.f32.mxu0 0.0
        %6071 = vmatmul.mubr.f32.gmra.mxu0 %v1847
        %v6072 = vpop.f32.mrf.mxu0
        %v6073 = vadd.f32 %v1829, %v6072
        %v6074 = vpop.f32.mrf.mxu0
        %v6075 = vadd.f32 %v1829, %v6074
        %6076 = vmatprep.mubr.f32.mxu0 0.0
        %6077 = vmatmul.mubr.f32.gmra.mxu0 %v1850
        %v6078 = vpop.f32.mrf.mxu0
        %v6079 = vadd.f32 %v1834, %v6078
        %v6080 = vpop.f32.mrf.mxu0
        %v6081 = vadd.f32 %v1834, %v6080
        %6082 = vmatprep.mubr.f32.mxu0 0.0
        %6083 = vmatmul.mubr.f32.gmra.mxu0 %v1853
        %v6084 = vpop.f32.mrf.mxu0
        %v6085 = vadd.f32 %v1839, %v6084
        %v6086 = vpop.f32.mrf.mxu0
        %v6087 = vadd.f32 %v1839, %v6086
        %6088 = vmatprep.mubr.f32.mxu0 0.0
        %6089 = vmatmul.mubr.f32.gmra.mxu0 %v1856
        %v6090 = vpop.f32.mrf.mxu0
        %v6091 = vadd.f32 %v1844, %v6090
        %v6092 = vpop.f32.mrf.mxu0
        %v6093 = vadd.f32 %v1844, %v6092
        %6094 = vdwg.mxu0
        %6095 = vmatprep.subr.mxu0 0.0
        %6096 = vmatpush1.msra.mxu0 0.0
        %6097 = vmatprep.subr.mxu0 0.0
        %6098 = vmatpush1.msra.mxu0 0.0
        %6099 = vmatprep.subr.mxu0 %v5909
        %6100 = vmatpush1.msra.mxu0 %v5906
        %6101 = vmatprep.subr.mxu0 %v5882
        %6102 = vmatpush1.msra.mxu0 %v5881
        %6103 = vmatprep.subr.mxu0 %v5874
        %6104 = vmatpush1.msra.mxu0 %v5873
        %6105 = vmatprep.subr.mxu0 %v5866
        %6106 = vmatpush1.msra.mxu0 %v5865
        %6107 = vmatprep.subr.mxu0 %v5858
        %6108 = vmatpush1.msra.mxu0 %v5857
        %6109 = vmatprep.subr.mxu0 %v5850
        %6110 = vmatpush1.msra.mxu0 %v5849
        %6111 = vmatprep.subr.mxu0 %v5842
        %6112 = vmatpush1.msra.mxu0 %v5841
        %6113 = vmatprep.subr.mxu0 %v5834
        %6114 = vmatpush1.msra.mxu0 %v5833
        %6115 = vmatprep.subr.mxu0 %v5826
        %6116 = vmatpush1.msra.mxu0 %v5825
        %6117 = vmatprep.subr.mxu0 %v5818
        %6118 = vmatpush1.msra.mxu0 %v5817
        %6119 = vmatprep.subr.mxu0 %v5810
        %6120 = vmatpush1.msra.mxu0 %v5809
        %6121 = vmatprep.subr.mxu0 %v5802
        %6122 = vmatpush1.msra.mxu0 %v5801
        %6123 = vmatprep.subr.mxu0 %v5794
        %6124 = vmatpush1.msra.mxu0 %v5793
        %6125 = vmatprep.subr.mxu0 %v5786
        %6126 = vmatpush1.msra.mxu0 %v5785
        %6127 = vmatprep.subr.mxu0 0.0
        %6128 = vmatpush2.msra.mxu0 0.0
        %6129 = vmatprep.subr.mxu0 0.0
        %6130 = vmatpush2.msra.mxu0 0.0
        %6131 = vmatprep.subr.mxu0 0.0
        %6132 = vmatpush2.msra.mxu0 0.0
        %6133 = vmatprep.subr.mxu0 0.0
        %6134 = vmatpush2.msra.mxu0 0.0
        %6135 = vmatprep.subr.mxu0 0.0
        %6136 = vmatpush2.msra.mxu0 0.0
        %6137 = vmatprep.subr.mxu0 0.0
        %6138 = vmatpush2.msra.mxu0 0.0
        %6139 = vmatprep.subr.mxu0 0.0
        %6140 = vmatpush2.msra.mxu0 0.0
        %6141 = vmatprep.subr.mxu0 0.0
        %6142 = vmatpush2.msra.mxu0 0.0
        %6143 = vmatprep.subr.mxu0 0.0
        %6144 = vmatpush2.msra.mxu0 0.0
        %6145 = vmatprep.subr.mxu0 0.0
        %6146 = vmatpush2.msra.mxu0 0.0
        %6147 = vmatprep.subr.mxu0 0.0
        %6148 = vmatpush2.msra.mxu0 0.0
        %6149 = vmatprep.subr.mxu0 0.0
        %6150 = vmatpush2.msra.mxu0 0.0
        %6151 = vmatprep.subr.mxu0 0.0
        %6152 = vmatpush2.msra.mxu0 0.0
        %6153 = vmatprep.subr.mxu0 0.0
        %6154 = vmatpush2.msra.mxu0 0.0
        %6155 = vmatprep.subr.mxu0 0.0
        %6156 = vmatpush2.msra.mxu0 0.0
        %6157 = vmatprep.subr.mxu0 0.0
        %6158 = vmatpush2.msra.mxu0 0.0
        %6159 = vmatprep.mubr.f32.mxu0 0.0
        %6160 = vmatmul.mubr.f32.gmra.mxu0 %v1847
        %v6161 = vpop.f32.mrf.mxu0
        %v6162 = vadd.f32 %v1829, %v6161
        %v6163 = vpop.f32.mrf.mxu0
        %v6164 = vadd.f32 %v1829, %v6163
        %6165 = vmatprep.mubr.f32.mxu0 0.0
        %6166 = vmatmul.mubr.f32.gmra.mxu0 %v1850
        %v6167 = vpop.f32.mrf.mxu0
        %v6168 = vadd.f32 %v1834, %v6167
        %v6169 = vpop.f32.mrf.mxu0
        %v6170 = vadd.f32 %v1834, %v6169
        %6171 = vmatprep.mubr.f32.mxu0 0.0
        %6172 = vmatmul.mubr.f32.gmra.mxu0 %v1853
        %v6173 = vpop.f32.mrf.mxu0
        %v6174 = vadd.f32 %v1839, %v6173
        %v6175 = vpop.f32.mrf.mxu0
        %v6176 = vadd.f32 %v1839, %v6175
        %6177 = vmatprep.mubr.f32.mxu0 0.0
        %6178 = vmatmul.mubr.f32.gmra.mxu0 %v1856
        %v6179 = vpop.f32.mrf.mxu0
        %v6180 = vadd.f32 %v1844, %v6179
        %v6181 = vpop.f32.mrf.mxu0
        %v6182 = vadd.f32 %v1844, %v6181
        %6183 = vdwg.mxu0
        %6184 = vmatprep.subr.mxu0 0.0
        %6185 = vmatpush1.msra.mxu0 0.0
        %6186 = vmatprep.subr.mxu0 0.0
        %6187 = vmatpush1.msra.mxu0 0.0
        %6188 = vmatprep.subr.mxu0 %v5915
        %6189 = vmatpush1.msra.mxu0 %v5912
        %6190 = vmatprep.subr.mxu0 %v5884
        %6191 = vmatpush1.msra.mxu0 %v5883
        %6192 = vmatprep.subr.mxu0 %v5876
        %6193 = vmatpush1.msra.mxu0 %v5875
        %6194 = vmatprep.subr.mxu0 %v5868
        %6195 = vmatpush1.msra.mxu0 %v5867
        %6196 = vmatprep.subr.mxu0 %v5860
        %6197 = vmatpush1.msra.mxu0 %v5859
        %6198 = vmatprep.subr.mxu0 %v5852
        %6199 = vmatpush1.msra.mxu0 %v5851
        %6200 = vmatprep.subr.mxu0 %v5844
        %6201 = vmatpush1.msra.mxu0 %v5843
        %6202 = vmatprep.subr.mxu0 %v5836
        %6203 = vmatpush1.msra.mxu0 %v5835
        %6204 = vmatprep.subr.mxu0 %v5828
        %6205 = vmatpush1.msra.mxu0 %v5827
        %6206 = vmatprep.subr.mxu0 %v5820
        %6207 = vmatpush1.msra.mxu0 %v5819
        %6208 = vmatprep.subr.mxu0 %v5812
        %6209 = vmatpush1.msra.mxu0 %v5811
        %6210 = vmatprep.subr.mxu0 %v5804
        %6211 = vmatpush1.msra.mxu0 %v5803
        %6212 = vmatprep.subr.mxu0 %v5796
        %6213 = vmatpush1.msra.mxu0 %v5795
        %6214 = vmatprep.subr.mxu0 %v5788
        %6215 = vmatpush1.msra.mxu0 %v5787
        %6216 = vmatprep.subr.mxu0 0.0
        %6217 = vmatpush2.msra.mxu0 0.0
        %6218 = vmatprep.subr.mxu0 0.0
        %6219 = vmatpush2.msra.mxu0 0.0
        %6220 = vmatprep.subr.mxu0 0.0
        %6221 = vmatpush2.msra.mxu0 0.0
        %6222 = vmatprep.subr.mxu0 0.0
        %6223 = vmatpush2.msra.mxu0 0.0
        %6224 = vmatprep.subr.mxu0 0.0
        %6225 = vmatpush2.msra.mxu0 0.0
        %6226 = vmatprep.subr.mxu0 0.0
        %6227 = vmatpush2.msra.mxu0 0.0
        %6228 = vmatprep.subr.mxu0 0.0
        %6229 = vmatpush2.msra.mxu0 0.0
        %6230 = vmatprep.subr.mxu0 0.0
        %6231 = vmatpush2.msra.mxu0 0.0
        %6232 = vmatprep.subr.mxu0 0.0
        %6233 = vmatpush2.msra.mxu0 0.0
        %6234 = vmatprep.subr.mxu0 0.0
        %6235 = vmatpush2.msra.mxu0 0.0
        %6236 = vmatprep.subr.mxu0 0.0
        %6237 = vmatpush2.msra.mxu0 0.0
        %6238 = vmatprep.subr.mxu0 0.0
        %6239 = vmatpush2.msra.mxu0 0.0
        %6240 = vmatprep.subr.mxu0 0.0
        %6241 = vmatpush2.msra.mxu0 0.0
        %6242 = vmatprep.subr.mxu0 0.0
        %6243 = vmatpush2.msra.mxu0 0.0
        %6244 = vmatprep.subr.mxu0 0.0
        %6245 = vmatpush2.msra.mxu0 0.0
        %6246 = vmatprep.subr.mxu0 0.0
        %6247 = vmatpush2.msra.mxu0 0.0
        %6248 = vmatprep.mubr.f32.mxu0 0.0
        %6249 = vmatmul.mubr.f32.gmra.mxu0 %v1847
        %v6250 = vpop.f32.mrf.mxu0
        %v6251 = vadd.f32 %v1829, %v6250
        %v6252 = vpop.f32.mrf.mxu0
        %v6253 = vadd.f32 %v1829, %v6252
        %6254 = vmatprep.mubr.f32.mxu0 0.0
        %6255 = vmatmul.mubr.f32.gmra.mxu0 %v1850
        %v6256 = vpop.f32.mrf.mxu0
        %v6257 = vadd.f32 %v1834, %v6256
        %v6258 = vpop.f32.mrf.mxu0
        %v6259 = vadd.f32 %v1834, %v6258
        %6260 = vmatprep.mubr.f32.mxu0 0.0
        %6261 = vmatmul.mubr.f32.gmra.mxu0 %v1853
        %v6262 = vpop.f32.mrf.mxu0
        %v6263 = vadd.f32 %v1839, %v6262
        %v6264 = vpop.f32.mrf.mxu0
        %v6265 = vadd.f32 %v1839, %v6264
        %6266 = vmatprep.mubr.f32.mxu0 0.0
        %6267 = vmatmul.mubr.f32.gmra.mxu0 %v1856
        %v6268 = vpop.f32.mrf.mxu0
        %v6269 = vadd.f32 %v1844, %v6268
        %v6270 = vpop.f32.mrf.mxu0
        %v6271 = vadd.f32 %v1844, %v6270
        %6272 = vdwg.mxu0
        %6273 = vst [vmem:[%s186 + $0x80] sm:$0xff] %v5984
        %6274 = vst [vmem:[%s186 + $0x88] sm:$0xff] %v5986
        %6275 = vst [vmem:[%s186 + $0x90] sm:$0xff] %v6073
        %6276 = vst [vmem:[%s186 + $0x98] sm:$0xff] %v6075
        %6277 = vst [vmem:[%s186 + $0xa0] sm:$0xff] %v6162
        %6278 = vst [vmem:[%s186 + $0xa8] sm:$0xff] %v6164
        %6279 = vst [vmem:[%s186 + $0xb0] sm:$0xff] %v6251
        %6280 = vst [vmem:[%s186 + $0xb8] sm:$0xff] %v6253
        %6281 = vst [vmem:[%s186 + $0x140] sm:$0xff] %v5990
        %6282 = vst [vmem:[%s186 + $0x148] sm:$0xff] %v5992
        %6283 = vst [vmem:[%s186 + $0x150] sm:$0xff] %v6079
        %6284 = vst [vmem:[%s186 + $0x158] sm:$0xff] %v6081
        %6285 = vst [vmem:[%s186 + $0x160] sm:$0xff] %v6168
        %6286 = vst [vmem:[%s186 + $0x168] sm:$0xff] %v6170
        %6287 = vst [vmem:[%s186 + $0x170] sm:$0xff] %v6257
        %6288 = vst [vmem:[%s186 + $0x178] sm:$0xff] %v6259
        %6289 = vst [vmem:[%s186 + $0x200] sm:$0xff] %v5996
        %6290 = vst [vmem:[%s186 + $0x208] sm:$0xff] %v5998
        %6291 = vst [vmem:[%s186 + $0x210] sm:$0xff] %v6085
        %6292 = vst [vmem:[%s186 + $0x218] sm:$0xff] %v6087
        %6293 = vst [vmem:[%s186 + $0x220] sm:$0xff] %v6174
        %6294 = vst [vmem:[%s186 + $0x228] sm:$0xff] %v6176
        %6295 = vst [vmem:[%s186 + $0x230] sm:$0xff] %v6263
        %6296 = vst [vmem:[%s186 + $0x238] sm:$0xff] %v6265
        %6297 = vst [vmem:[%s186 + $0x2c0] sm:$0xff] %v6002
        %6298 = vst [vmem:[%s186 + $0x2c8] sm:$0xff] %v6004
        %6299 = vst [vmem:[%s186 + $0x2d0] sm:$0xff] %v6091
        %6300 = vst [vmem:[%s186 + $0x2d8] sm:$0xff] %v6093
        %6301 = vst [vmem:[%s186 + $0x2e0] sm:$0xff] %v6180
        %6302 = vst [vmem:[%s186 + $0x2e8] sm:$0xff] %v6182
        %6303 = vst [vmem:[%s186 + $0x2f0] sm:$0xff] %v6269
        %6304 = vst [vmem:[%s186 + $0x2f8] sm:$0xff] %v6271
        %s6305 = sand.u32 %s96, 1
        %s6306 = scalar_lea.sflag [#allocation5], %s6305
        %s6307 = sand.u32 %s96, 1
        %s6308 = smul.addr %s6307, 768
        %s6309 = scalar_lea.vmem [#allocation6], %s6308
        // Predicated region
        $region37: #{tpu_custom_call.1} parent=31 // pred_check
          %p6310 = pneg %p106
        $region38: #{tpu_custom_call.1} parent=31 // pred_check_branch
          %6312 = sbr.rel (%p6310) target = $region40
        $region39: #{tpu_custom_call.1} parent=31 // pred_region
          %s6314 = ssub.s32 12288, 12288
          %6315 = vsyncadd %s6306, %s6314
          %s6316 = smul.addr %s20, 96
          %s6317 = smul.addr %s6316, 128
          %s6318 = scalar_lea.hbm %s3, %s6317
          %s6319 = sshll.u32 %s6309, 4
          %s6320 = int_to_ptr.vmem [resolvable:$true] %s6319
          %6325 = dma.vmem_to_hbm [thread:$0]  %s6320, 12288, %s6318, %s6306, 3072, 3072, 192
        $region40: #{tpu_custom_call.1} parent=31 // pred_fallthru
          _
      $region32: #{tpu_custom_call.1} parent=5 // pred_fallthru
        _
      %p6326 = scmp.le.s32.totalorder 2, %s15
      // Predicated region
      $region41: #{tpu_custom_call.1} parent=5 // pred_check
        %p6327 = pneg %p6326
      $region42: #{tpu_custom_call.1} parent=5 // pred_check_branch
        %6329 = sbr.rel (%p6327) target = $region44
      $region43: #{tpu_custom_call.1} parent=5 // pred_region
        %s6330 = ssub.s32 %s15, 2
        // Predicated region
        $region45: #{tpu_custom_call.1} parent=43 // pred_check
          %p6331 = pneg %p112
        $region46: #{tpu_custom_call.1} parent=43 // pred_check_branch
          %6333 = sbr.rel (%p6331) target = $region48
        $region47: #{tpu_custom_call.1} parent=43 // pred_region
          %s6334 = sand.u32 %s97, 1
          %s6335 = scalar_lea.sflag [#allocation5], %s6334
          %s6336 = sand.u32 %s97, 1
          %s6337 = smul.addr %s6336, 768
          %s6338 = scalar_lea.vmem [#allocation6], %s6337
          %6339 = dma.done %s6335, 12288
        $region48: #{tpu_custom_call.1} parent=43 // pred_fallthru
          _
      $region44: #{tpu_custom_call.1} parent=5 // pred_fallthru
        _
    $region6: #{tpu_custom_call.1} parent=1 // loop_footer
      %s19 = sadd.s32 1, %s15
    $region7: #{tpu_custom_call.1} parent=1 // loop_footer_branch
      %14 = sbr.rel target = $region3
    $region8: #{tpu_custom_call.1} parent=1 // loop_exit
      _
    %6340 = vsyncpa [#allocation4], 1
    %s6341 = scalar_lea.sflag [#allocation4], 1
    %6342 = vsyncpa %s6341, 1
    %6343 = vsyncpa [#allocation5], 1
    %s6344 = scalar_lea.sflag [#allocation5], 1
    %6345 = vsyncpa %s6344, 1

</llo_original>
